<compile_context>
chip_gen: v5e
topology: v5e:2x2
jax: 0.10.0
libtpu: 0.0.40
codegen_flags: <defaults>
</compile_context>

<pallas_src>
import functools

import jax
import jax.numpy as jnp
from jax.experimental import pallas as pl
from jax.experimental.pallas import tpu as pltpu

EPS = 1e-5
LANE = 128


def _round_up(x, m):
    return (x + m - 1) // m * m


def _pick_tile(m, candidates):
    for t in candidates:
        if m % t == 0:
            return t
    return m  # fall back to full extent (block == full array dim)


# ---------------------------------------------------------------------------
# Pallas kernels
# ---------------------------------------------------------------------------
def _gemm_stats_kernel(a_ref, w_ref, o_ref, sum_ref, sq_ref, acc_ref):
    """C = A @ W (K-tiled, f32 acc) with fused per-column sum / sum-of-squares."""
    i = pl.program_id(0)
    k = pl.program_id(1)
    nk = pl.num_programs(1)

    @pl.when(jnp.logical_and(i == 0, k == 0))
    def _():
        sum_ref[...] = jnp.zeros_like(sum_ref)
        sq_ref[...] = jnp.zeros_like(sq_ref)

    @pl.when(k == 0)
    def _():
        acc_ref[...] = jnp.zeros_like(acc_ref)

    acc_ref[...] += jnp.dot(a_ref[...], w_ref[...],
                            preferred_element_type=jnp.float32)

    @pl.when(k == nk - 1)
    def _():
        y = acc_ref[...]
        o_ref[...] = y
        sum_ref[...] += jnp.sum(y, axis=0, keepdims=True)
        sq_ref[...] += jnp.sum(y * y, axis=0, keepdims=True)


def gemm_with_stats(a, w):
    """Returns (a @ w, column sums, column sums-of-squares). w columns are
    already padded to a multiple of 128 lanes."""
    m, kdim = a.shape
    _, c = w.shape
    tm = _pick_tile(m, (512, 256, 128, 64, 32, 16, 8))
    tk = _pick_tile(kdim, (512, 256, 128))
    grid = (m // tm, kdim // tk)
    return pl.pallas_call(
        _gemm_stats_kernel,
        out_shape=(
            jax.ShapeDtypeStruct((m, c), jnp.float32),
            jax.ShapeDtypeStruct((1, c), jnp.float32),
            jax.ShapeDtypeStruct((1, c), jnp.float32),
        ),
        grid_spec=pltpu.PrefetchScalarGridSpec(
            num_scalar_prefetch=0,
            grid=grid,
            in_specs=[
                pl.BlockSpec((tm, tk), lambda i, k: (i, k)),
                pl.BlockSpec((tk, c), lambda i, k: (k, 0)),
            ],
            out_specs=(
                pl.BlockSpec((tm, c), lambda i, k: (i, 0)),
                pl.BlockSpec((1, c), lambda i, k: (0, 0)),
                pl.BlockSpec((1, c), lambda i, k: (0, 0)),
            ),
            scratch_shapes=[pltpu.VMEM((tm, c), jnp.float32)],
        ),
        # stats blocks are revisited across the M axis -> both axes arbitrary
        compiler_params=pltpu.CompilerParams(
            dimension_semantics=("arbitrary", "arbitrary")),
    )(a, w)


def _gemm_act_kernel(a_ref, w_ref, o_ref, acc_ref, *, act):
    k = pl.program_id(1)

    @pl.when(k == 0)
    def _():
        acc_ref[...] = jnp.zeros_like(acc_ref)

    acc_ref[...] += jnp.dot(a_ref[...], w_ref[...],
                            preferred_element_type=jnp.float32)

    @pl.when(k == pl.num_programs(1) - 1)
    def _():
        y = acc_ref[...]
        if act == "tanh":
            y = jnp.tanh(y)
        o_ref[...] = y.astype(o_ref.dtype)


def gemm_act(a, w, act="none"):
    """act(a @ w) with K-tiled f32 accumulation."""
    m, kdim = a.shape
    _, c = w.shape
    tm = _pick_tile(m, (512, 256, 128, 64, 32, 16, 8))
    tk = _pick_tile(kdim, (512, 256, 128))
    grid = (m // tm, kdim // tk)
    return pl.pallas_call(
        functools.partial(_gemm_act_kernel, act=act),
        out_shape=jax.ShapeDtypeStruct((m, c), jnp.float32),
        grid_spec=pltpu.PrefetchScalarGridSpec(
            num_scalar_prefetch=0,
            grid=grid,
            in_specs=[
                pl.BlockSpec((tm, tk), lambda i, k: (i, k)),
                pl.BlockSpec((tk, c), lambda i, k: (k, 0)),
            ],
            out_specs=pl.BlockSpec((tm, c), lambda i, k: (i, 0)),
            scratch_shapes=[pltpu.VMEM((tm, c), jnp.float32)],
        ),
        compiler_params=pltpu.CompilerParams(
            dimension_semantics=("parallel", "arbitrary")),
    )(a, w)


def _affine_relu_kernel(x_ref, scale_ref, shift_ref, o_ref):
    y = x_ref[...] * scale_ref[...] + shift_ref[...]
    o_ref[...] = jnp.maximum(y, 0.0)


def affine_relu(x, scale, shift):
    """relu(x * scale + shift); scale/shift broadcast per column. Big tiles."""
    m, c = x.shape
    tm = _pick_tile(m, (2048, 1024, 512, 256, 128, 64, 32, 16, 8))
    return pl.pallas_call(
        _affine_relu_kernel,
        out_shape=jax.ShapeDtypeStruct((m, c), jnp.float32),
        grid_spec=pltpu.PrefetchScalarGridSpec(
            num_scalar_prefetch=0,
            grid=(m // tm,),
            in_specs=[
                pl.BlockSpec((tm, c), lambda i: (i, 0)),
                pl.BlockSpec((1, c), lambda i: (0, 0)),
                pl.BlockSpec((1, c), lambda i: (0, 0)),
            ],
            out_specs=pl.BlockSpec((tm, c), lambda i: (i, 0)),
        ),
        compiler_params=pltpu.CompilerParams(
            dimension_semantics=("parallel",)),
    )(x, scale, shift)


# ---------------------------------------------------------------------------
# Plain-JAX glue: transposed-conv -> channels-last im2col (layout only)
# ---------------------------------------------------------------------------
def convt_im2col(x_nhwc, weight, stride, pad):
    """ConvTranspose2d(x, W, stride, pad) rewritten as zero-insert + pad +
    stride-1 im2col.  weight layout is PyTorch's (Cin, Cout, kh, kw).
    Returns (rows, wmat_padded, oh, ow)."""
    cin, cout, kh, kw = weight.shape
    n, h, w_, c = x_nhwc.shape
    assert c == cin, (c, cin)
    ep = kh - 1 - pad  # effective padding of the equivalent forward conv

    # zero-insert between pixels (interior padding = stride-1) + edge pad
    xp = jax.lax.pad(
        x_nhwc, jnp.zeros((), x_nhwc.dtype),
        ((0, 0, 0), (ep, ep, stride - 1), (ep, ep, stride - 1), (0, 0, 0)))
    hp, wp = xp.shape[1], xp.shape[2]
    oh, ow = hp - kh + 1, wp - kw + 1

    # channels-last patches: column order (ki, kj, cin) -> contiguous cin
    cols = []
    for i in range(kh):
        for j in range(kw):
            cols.append(xp[:, i:i + oh, j:j + ow, :])
    a = jnp.concatenate(cols, axis=-1).reshape(n * oh * ow, kh * kw * cin)

    # forward-conv kernel: flip spatially, swap in/out channels, match (ki,kj,cin)
    w_flip = weight[:, :, ::-1, ::-1]                       # (cin, cout, kh, kw)
    wmat = jnp.transpose(w_flip, (2, 3, 0, 1)).reshape(kh * kw * cin, cout)
    cpad = _round_up(cout, LANE)
    if cpad != cout:
        wmat = jnp.pad(wmat, ((0, 0), (0, cpad - cout)))    # lane-dense output
    return a, wmat, oh, ow


def rows_to_nhwc(y, n, oh, ow, c_valid):
    y = y.reshape(n, oh, ow, y.shape[-1])
    return y[..., :c_valid]


# ---------------------------------------------------------------------------
# Generator layers
# ---------------------------------------------------------------------------
def convt_bn_relu(x_nhwc, weight, gamma, beta, stride, pad):
    n = x_nhwc.shape[0]
    cout = weight.shape[1]
    a, wmat, oh, ow = convt_im2col(x_nhwc, weight, stride, pad)
    cpad = wmat.shape[1]
    m = a.shape[0]

    raw, s, sq = gemm_with_stats(a, wmat)

    # per-channel BN (training mode, biased variance) -> single affine
    mean = s / m
    var = sq / m - mean * mean
    g = jnp.pad(gamma, (0, cpad - cout)).reshape(1, cpad)
    b = jnp.pad(beta, (0, cpad - cout)).reshape(1, cpad)
    scale = g * jax.lax.rsqrt(var + EPS)
    shift = b - mean * scale

    y = affine_relu(raw, scale, shift)
    return rows_to_nhwc(y, n, oh, ow, cout)


def generator_forward(x, p):
    """x: (N, nz, 1, 1) NCHW, returns (N, img_channel, 64, 64) NCHW."""
    n = x.shape[0]
    xh = jnp.transpose(x, (0, 2, 3, 1))  # -> NHWC, carried channels-last

    xh = convt_bn_relu(xh, p["w1"], p["g1"], p["b1"], 1, 0)
    xh = convt_bn_relu(xh, p["w2"], p["g2"], p["b2"], 2, 1)
    xh = convt_bn_relu(xh, p["w3"], p["g3"], p["b3"], 2, 1)
    xh = convt_bn_relu(xh, p["w4"], p["g4"], p["b4"], 2, 1)

    # dconv5 -> tanh (no BN)
    cout = p["w5"].shape[1]
    a, wmat, oh, ow = convt_im2col(xh, p["w5"], 2, 1)
    y = gemm_act(a, wmat, act="tanh")
    xh = rows_to_nhwc(y, n, oh, ow, cout)
    return jnp.transpose(xh, (0, 3, 1, 2))  # back to NCHW (PyTorch layout)


# ---------------------------------------------------------------------------
# Independent XLA reference (lax conv with lhs dilation) for correctness
# ---------------------------------------------------------------------------
def reference_forward(x, p):
    def convt(x, w, stride, pad):
        k = w.shape[2]
        wc = jnp.flip(w, (2, 3)).transpose(1, 0, 2, 3)  # (Cout, Cin, kh, kw)
        return jax.lax.conv_general_dilated(
            x, wc, window_strides=(1, 1),
            padding=[(k - 1 - pad, k - 1 - pad)] * 2,
            lhs_dilation=(stride, stride),
            dimension_numbers=("NCHW", "OIHW", "NCHW"))

    def bn_relu(x, g, b):
        mean = x.mean(axis=(0, 2, 3), keepdims=True)
        var = ((x - mean) ** 2).mean(axis=(0, 2, 3), keepdims=True)
        y = (x - mean) * jax.lax.rsqrt(var + EPS)
        y = y * g[None, :, None, None] + b[None, :, None, None]
        return jnp.maximum(y, 0.0)

    x = bn_relu(convt(x, p["w1"], 1, 0), p["g1"], p["b1"])
    x = bn_relu(convt(x, p["w2"], 2, 1), p["g2"], p["b2"])
    x = bn_relu(convt(x, p["w3"], 2, 1), p["g3"], p["b3"])
    x = bn_relu(convt(x, p["w4"], 2, 1), p["g4"], p["b4"])
    return jnp.tanh(convt(x, p["w5"], 2, 1))


# ---------------------------------------------------------------------------
if __name__ == "__main__":
    # Small-but-consistent shapes: the architecture fixes the spatial cascade
    # 1 -> 4 -> 8 -> 16 -> 32 -> 64; shrink batch / nz / ngf.
    batch, nz, ngf, img_channel = 2, 8, 8, 3

    key = jax.random.PRNGKey(0)
    keys = jax.random.split(key, 15)
    x = jax.random.normal(keys[0], (batch, nz, 1, 1), jnp.float32)

    def winit(k, shape):
        return (0.02 * jax.random.normal(k, shape)).astype(jnp.float32)

    def bn_g(k, c):
        return (1.0 + 0.1 * jax.random.normal(k, (c,))).astype(jnp.float32)

    def bn_b(k, c):
        return (0.1 * jax.random.normal(k, (c,))).astype(jnp.float32)

    params = {
        # PyTorch ConvTranspose2d weight layout: (Cin, Cout, kh, kw)
        "w1": winit(keys[1], (nz, ngf * 8, 4, 4)),
        "w2": winit(keys[2], (ngf * 8, ngf * 4, 4, 4)),
        "w3": winit(keys[3], (ngf * 4, ngf * 2, 4, 4)),
        "w4": winit(keys[4], (ngf * 2, ngf, 4, 4)),
        "w5": winit(keys[5], (ngf, img_channel, 4, 4)),
        "g1": bn_g(keys[6], ngf * 8), "b1": bn_b(keys[7], ngf * 8),
        "g2": bn_g(keys[8], ngf * 4), "b2": bn_b(keys[9], ngf * 4),
        "g3": bn_g(keys[10], ngf * 2), "b3": bn_b(keys[11], ngf * 2),
        "g4": bn_g(keys[12], ngf), "b4": bn_b(keys[13], ngf),
    }

    out = jax.jit(generator_forward)(x, params)
    out = jax.block_until_ready(out)
    assert out.shape == (batch, img_channel, 64, 64), out.shape

    ref = reference_forward(x, params)
    err = float(jnp.max(jnp.abs(out - ref)))
    assert err < 2e-3, err

    print("KERNEL_OK")
</pallas_src>

<mosaic_0001>
module attributes {stable_mosaic.version = 11 : i64} {
  func.func @_gemm_stats_kernel(%arg0: i32, %arg1: i32, %arg2: memref<32x128xf32, #tpu.memory_space<vmem>>, %arg3: memref<128x128xf32, #tpu.memory_space<vmem>>, %arg4: memref<32x128xf32, #tpu.memory_space<vmem>>, %arg5: memref<1x128xf32, #tpu.memory_space<vmem>>, %arg6: memref<1x128xf32, #tpu.memory_space<vmem>>, %arg7: memref<32x128xf32, #tpu.memory_space<vmem>>) attributes {dimension_semantics = [#tpu.dimension_semantics<arbitrary>, #tpu.dimension_semantics<arbitrary>], iteration_bounds = array<i64: 1, 1>, scalar_prefetch = 0 : i64, scratch_operands = 1 : i64, tpu.core_type = #tpu.core_type<tc>, window_params = [{transform_indices = @transform_0, window_bounds = array<i64: 32, 128>}, {transform_indices = @transform_1, window_bounds = array<i64: 128, 128>}, {transform_indices = @transform_2, window_bounds = array<i64: 32, 128>}, {pipeline_mode = #tpu.pipeline_mode<synchronous>, transform_indices = @transform_3, window_bounds = array<i64: 1, 128>}, {pipeline_mode = #tpu.pipeline_mode<synchronous>, transform_indices = @transform_4, window_bounds = array<i64: 1, 128>}]} {
    %c0_i32 = arith.constant 0 : i32
    %0 = arith.cmpi eq, %arg0, %c0_i32 : i32
    %c0_i32_0 = arith.constant 0 : i32
    %1 = arith.cmpi eq, %arg1, %c0_i32_0 : i32
    %2 = arith.andi %0, %1 : i1
    %3 = arith.extui %2 : i1 to i32
    %c0_i32_1 = arith.constant 0 : i32
    %4 = arith.cmpi ne, %3, %c0_i32_1 : i32
    scf.if %4 {
      %cst_13 = arith.constant 0.000000e+00 : f32
      %17 = vector.broadcast %cst_13 : f32 to vector<1x128xf32>
      %c0_14 = arith.constant 0 : index
      %c0_15 = arith.constant 0 : index
      %18 = vector.load %arg5[%c0_14, %c0_15] : memref<1x128xf32, #tpu.memory_space<vmem>>, vector<1x128xf32>
      tpu.vector_store %arg5[%c0_14, %c0_15], %17 {strides = array<i32>} : memref<1x128xf32, #tpu.memory_space<vmem>>, vector<1x128xf32>,
      %cst_16 = arith.constant 0.000000e+00 : f32
      %19 = vector.broadcast %cst_16 : f32 to vector<1x128xf32>
      %c0_17 = arith.constant 0 : index
      %c0_18 = arith.constant 0 : index
      %20 = vector.load %arg6[%c0_17, %c0_18] : memref<1x128xf32, #tpu.memory_space<vmem>>, vector<1x128xf32>
      tpu.vector_store %arg6[%c0_17, %c0_18], %19 {strides = array<i32>} : memref<1x128xf32, #tpu.memory_space<vmem>>, vector<1x128xf32>,
    } else {
    }
    %c0_i32_2 = arith.constant 0 : i32
    %5 = arith.cmpi eq, %arg1, %c0_i32_2 : i32
    %6 = arith.extui %5 : i1 to i32
    %c0_i32_3 = arith.constant 0 : i32
    %7 = arith.cmpi ne, %6, %c0_i32_3 : i32
    scf.if %7 {
      %cst_13 = arith.constant 0.000000e+00 : f32
      %17 = vector.broadcast %cst_13 : f32 to vector<32x128xf32>
      %c0_14 = arith.constant 0 : index
      %c0_15 = arith.constant 0 : index
      %18 = vector.load %arg7[%c0_14, %c0_15] : memref<32x128xf32, #tpu.memory_space<vmem>>, vector<32x128xf32>
      tpu.vector_store %arg7[%c0_14, %c0_15], %17 {strides = array<i32>} : memref<32x128xf32, #tpu.memory_space<vmem>>, vector<32x128xf32>,
    } else {
    }
    %c0 = arith.constant 0 : index
    %c0_4 = arith.constant 0 : index
    %8 = vector.load %arg7[%c0, %c0_4] : memref<32x128xf32, #tpu.memory_space<vmem>>, vector<32x128xf32>
    %c0_5 = arith.constant 0 : index
    %c0_6 = arith.constant 0 : index
    %9 = vector.load %arg2[%c0_5, %c0_6] : memref<32x128xf32, #tpu.memory_space<vmem>>, vector<32x128xf32>
    %c0_7 = arith.constant 0 : index
    %c0_8 = arith.constant 0 : index
    %10 = vector.load %arg3[%c0_7, %c0_8] : memref<128x128xf32, #tpu.memory_space<vmem>>, vector<128x128xf32>
    %cst = arith.constant dense<0.000000e+00> : vector<32x128xf32>
    %11 = tpu.matmul %9, %10, %cst {dimension_numbers = #tpu.dot_dimension_numbers<[1], [0], [0], [1], [0, 0, 1, 1], [], []>} : vector<32x128xf32>, vector<128x128xf32>, vector<32x128xf32> -> vector<32x128xf32>
    %12 = arith.addf %8, %11 : vector<32x128xf32>
    %c0_9 = arith.constant 0 : index
    %c0_10 = arith.constant 0 : index
    %13 = vector.load %arg7[%c0_9, %c0_10] : memref<32x128xf32, #tpu.memory_space<vmem>>, vector<32x128xf32>
    tpu.vector_store %arg7[%c0_9, %c0_10], %12 {strides = array<i32>} : memref<32x128xf32, #tpu.memory_space<vmem>>, vector<32x128xf32>,
    %c0_i32_11 = arith.constant 0 : i32
    %14 = arith.cmpi eq, %arg1, %c0_i32_11 : i32
    %15 = arith.extui %14 : i1 to i32
    %c0_i32_12 = arith.constant 0 : i32
    %16 = arith.cmpi ne, %15, %c0_i32_12 : i32
    scf.if %16 {
      %c0_13 = arith.constant 0 : index
      %c0_14 = arith.constant 0 : index
      %17 = vector.load %arg7[%c0_13, %c0_14] : memref<32x128xf32, #tpu.memory_space<vmem>>, vector<32x128xf32>
      %c0_15 = arith.constant 0 : index
      %c0_16 = arith.constant 0 : index
      %18 = vector.load %arg4[%c0_15, %c0_16] : memref<32x128xf32, #tpu.memory_space<vmem>>, vector<32x128xf32>
      tpu.vector_store %arg4[%c0_15, %c0_16], %17 {strides = array<i32>} : memref<32x128xf32, #tpu.memory_space<vmem>>, vector<32x128xf32>,
      %c0_17 = arith.constant 0 : index
      %c0_18 = arith.constant 0 : index
      %19 = vector.load %arg5[%c0_17, %c0_18] : memref<1x128xf32, #tpu.memory_space<vmem>>, vector<1x128xf32>
      %cst_19 = arith.constant dense<0.000000e+00> : vector<128xf32>
      %20 = vector.multi_reduction <add>, %17, %cst_19 [0] : vector<32x128xf32> to vector<128xf32>
      %21 = vector.shape_cast %20 : vector<128xf32> to vector<1x128xf32>
      %22 = arith.addf %19, %21 : vector<1x128xf32>
      %c0_20 = arith.constant 0 : index
      %c0_21 = arith.constant 0 : index
      %23 = vector.load %arg5[%c0_20, %c0_21] : memref<1x128xf32, #tpu.memory_space<vmem>>, vector<1x128xf32>
      tpu.vector_store %arg5[%c0_20, %c0_21], %22 {strides = array<i32>} : memref<1x128xf32, #tpu.memory_space<vmem>>, vector<1x128xf32>,
      %c0_22 = arith.constant 0 : index
      %c0_23 = arith.constant 0 : index
      %24 = vector.load %arg6[%c0_22, %c0_23] : memref<1x128xf32, #tpu.memory_space<vmem>>, vector<1x128xf32>
      %25 = arith.mulf %17, %17 : vector<32x128xf32>
      %cst_24 = arith.constant dense<0.000000e+00> : vector<128xf32>
      %26 = vector.multi_reduction <add>, %25, %cst_24 [0] : vector<32x128xf32> to vector<128xf32>
      %27 = vector.shape_cast %26 : vector<128xf32> to vector<1x128xf32>
      %28 = arith.addf %24, %27 : vector<1x128xf32>
      %c0_25 = arith.constant 0 : index
      %c0_26 = arith.constant 0 : index
      %29 = vector.load %arg6[%c0_25, %c0_26] : memref<1x128xf32, #tpu.memory_space<vmem>>, vector<1x128xf32>
      tpu.vector_store %arg6[%c0_25, %c0_26], %28 {strides = array<i32>} : memref<1x128xf32, #tpu.memory_space<vmem>>, vector<1x128xf32>,
    } else {
    }
    return
  }
  func.func @transform_0(%arg0: i32, %arg1: i32) -> (i32, i32) {
    %c0_i32 = arith.constant 0 : i32
    return %arg0, %arg1 : i32, i32
  }
  func.func @transform_1(%arg0: i32, %arg1: i32) -> (i32, i32) {
    %c0_i32 = arith.constant 0 : i32
    %c0_i32_0 = arith.constant 0 : i32
    return %arg1, %c0_i32 : i32, i32
  }
  func.func @transform_2(%arg0: i32, %arg1: i32) -> (i32, i32) {
    %c0_i32 = arith.constant 0 : i32
    %c0_i32_0 = arith.constant 0 : i32
    return %arg0, %c0_i32 : i32, i32
  }
  func.func @transform_3(%arg0: i32, %arg1: i32) -> (i32, i32) {
    %c0_i32 = arith.constant 0 : i32
    %c0_i32_0 = arith.constant 0 : i32
    %c0_i32_1 = arith.constant 0 : i32
    return %c0_i32, %c0_i32_0 : i32, i32
  }
  func.func @transform_4(%arg0: i32, %arg1: i32) -> (i32, i32) {
    %c0_i32 = arith.constant 0 : i32
    %c0_i32_0 = arith.constant 0 : i32
    %c0_i32_1 = arith.constant 0 : i32
    return %c0_i32, %c0_i32_0 : i32, i32
  }
}

module attributes {stable_mosaic.version = 11 : i64} {
  func.func @_affine_relu_kernel(%arg0: i32, %arg1: memref<32x128xf32, #tpu.memory_space<vmem>>, %arg2: memref<1x128xf32, #tpu.memory_space<vmem>>, %arg3: memref<1x128xf32, #tpu.memory_space<vmem>>, %arg4: memref<32x128xf32, #tpu.memory_space<vmem>>) attributes {dimension_semantics = [#tpu.dimension_semantics<parallel>], iteration_bounds = array<i64: 1>, scalar_prefetch = 0 : i64, scratch_operands = 0 : i64, tpu.core_type = #tpu.core_type<tc>, window_params = [{transform_indices = @transform_0, window_bounds = array<i64: 32, 128>}, {pipeline_mode = #tpu.pipeline_mode<synchronous>, transform_indices = @transform_1, window_bounds = array<i64: 1, 128>}, {pipeline_mode = #tpu.pipeline_mode<synchronous>, transform_indices = @transform_2, window_bounds = array<i64: 1, 128>}, {transform_indices = @transform_3, window_bounds = array<i64: 32, 128>}]} {
    %c0 = arith.constant 0 : index
    %c0_0 = arith.constant 0 : index
    %0 = vector.load %arg1[%c0, %c0_0] : memref<32x128xf32, #tpu.memory_space<vmem>>, vector<32x128xf32>
    %c0_1 = arith.constant 0 : index
    %c0_2 = arith.constant 0 : index
    %1 = vector.load %arg2[%c0_1, %c0_2] : memref<1x128xf32, #tpu.memory_space<vmem>>, vector<1x128xf32>
    %2 = vector.broadcast %1 : vector<1x128xf32> to vector<32x128xf32>
    %3 = arith.mulf %0, %2 : vector<32x128xf32>
    %c0_3 = arith.constant 0 : index
    %c0_4 = arith.constant 0 : index
    %4 = vector.load %arg3[%c0_3, %c0_4] : memref<1x128xf32, #tpu.memory_space<vmem>>, vector<1x128xf32>
    %5 = vector.broadcast %4 : vector<1x128xf32> to vector<32x128xf32>
    %6 = arith.addf %3, %5 : vector<32x128xf32>
    %cst = arith.constant 0.000000e+00 : f32
    %7 = vector.broadcast %cst : f32 to vector<32x128xf32>
    %8 = arith.maximumf %6, %7 : vector<32x128xf32>
    %c0_5 = arith.constant 0 : index
    %c0_6 = arith.constant 0 : index
    %9 = vector.load %arg4[%c0_5, %c0_6] : memref<32x128xf32, #tpu.memory_space<vmem>>, vector<32x128xf32>
    tpu.vector_store %arg4[%c0_5, %c0_6], %8 {strides = array<i32>} : memref<32x128xf32, #tpu.memory_space<vmem>>, vector<32x128xf32>,
    return
  }
  func.func @transform_0(%arg0: i32) -> (i32, i32) {
    %c0_i32 = arith.constant 0 : i32
    %c0_i32_0 = arith.constant 0 : i32
    return %arg0, %c0_i32 : i32, i32
  }
  func.func @transform_1(%arg0: i32) -> (i32, i32) {
    %c0_i32 = arith.constant 0 : i32
    %c0_i32_0 = arith.constant 0 : i32
    %c0_i32_1 = arith.constant 0 : i32
    return %c0_i32, %c0_i32_0 : i32, i32
  }
  func.func @transform_2(%arg0: i32) -> (i32, i32) {
    %c0_i32 = arith.constant 0 : i32
    %c0_i32_0 = arith.constant 0 : i32
    %c0_i32_1 = arith.constant 0 : i32
    return %c0_i32, %c0_i32_0 : i32, i32
  }
  func.func @transform_3(%arg0: i32) -> (i32, i32) {
    %c0_i32 = arith.constant 0 : i32
    %c0_i32_0 = arith.constant 0 : i32
    return %arg0, %c0_i32 : i32, i32
  }
}

module attributes {stable_mosaic.version = 11 : i64} {
  func.func @_gemm_stats_kernel(%arg0: i32, %arg1: i32, %arg2: memref<128x512xf32, #tpu.memory_space<vmem>>, %arg3: memref<512x128xf32, #tpu.memory_space<vmem>>, %arg4: memref<128x128xf32, #tpu.memory_space<vmem>>, %arg5: memref<1x128xf32, #tpu.memory_space<vmem>>, %arg6: memref<1x128xf32, #tpu.memory_space<vmem>>, %arg7: memref<128x128xf32, #tpu.memory_space<vmem>>) attributes {dimension_semantics = [#tpu.dimension_semantics<arbitrary>, #tpu.dimension_semantics<arbitrary>], iteration_bounds = array<i64: 1, 2>, scalar_prefetch = 0 : i64, scratch_operands = 1 : i64, tpu.core_type = #tpu.core_type<tc>, window_params = [{transform_indices = @transform_0, window_bounds = array<i64: 128, 512>}, {transform_indices = @transform_1, window_bounds = array<i64: 512, 128>}, {transform_indices = @transform_2, window_bounds = array<i64: 128, 128>}, {pipeline_mode = #tpu.pipeline_mode<synchronous>, transform_indices = @transform_3, window_bounds = array<i64: 1, 128>}, {pipeline_mode = #tpu.pipeline_mode<synchronous>, transform_indices = @transform_4, window_bounds = array<i64: 1, 128>}]} {
    %c0_i32 = arith.constant 0 : i32
    %0 = arith.cmpi eq, %arg0, %c0_i32 : i32
    %c0_i32_0 = arith.constant 0 : i32
    %1 = arith.cmpi eq, %arg1, %c0_i32_0 : i32
    %2 = arith.andi %0, %1 : i1
    %3 = arith.extui %2 : i1 to i32
    %c0_i32_1 = arith.constant 0 : i32
    %4 = arith.cmpi ne, %3, %c0_i32_1 : i32
    scf.if %4 {
      %cst_12 = arith.constant 0.000000e+00 : f32
      %17 = vector.broadcast %cst_12 : f32 to vector<1x128xf32>
      %c0_13 = arith.constant 0 : index
      %c0_14 = arith.constant 0 : index
      %18 = vector.load %arg5[%c0_13, %c0_14] : memref<1x128xf32, #tpu.memory_space<vmem>>, vector<1x128xf32>
      tpu.vector_store %arg5[%c0_13, %c0_14], %17 {strides = array<i32>} : memref<1x128xf32, #tpu.memory_space<vmem>>, vector<1x128xf32>,
      %cst_15 = arith.constant 0.000000e+00 : f32
      %19 = vector.broadcast %cst_15 : f32 to vector<1x128xf32>
      %c0_16 = arith.constant 0 : index
      %c0_17 = arith.constant 0 : index
      %20 = vector.load %arg6[%c0_16, %c0_17] : memref<1x128xf32, #tpu.memory_space<vmem>>, vector<1x128xf32>
      tpu.vector_store %arg6[%c0_16, %c0_17], %19 {strides = array<i32>} : memref<1x128xf32, #tpu.memory_space<vmem>>, vector<1x128xf32>,
    } else {
    }
    %c0_i32_2 = arith.constant 0 : i32
    %5 = arith.cmpi eq, %arg1, %c0_i32_2 : i32
    %6 = arith.extui %5 : i1 to i32
    %c0_i32_3 = arith.constant 0 : i32
    %7 = arith.cmpi ne, %6, %c0_i32_3 : i32
    scf.if %7 {
      %cst_12 = arith.constant 0.000000e+00 : f32
      %17 = vector.broadcast %cst_12 : f32 to vector<128x128xf32>
      %c0_13 = arith.constant 0 : index
      %c0_14 = arith.constant 0 : index
      %18 = vector.load %arg7[%c0_13, %c0_14] : memref<128x128xf32, #tpu.memory_space<vmem>>, vector<128x128xf32>
      tpu.vector_store %arg7[%c0_13, %c0_14], %17 {strides = array<i32>} : memref<128x128xf32, #tpu.memory_space<vmem>>, vector<128x128xf32>,
    } else {
    }
    %c0 = arith.constant 0 : index
    %c0_4 = arith.constant 0 : index
    %8 = vector.load %arg7[%c0, %c0_4] : memref<128x128xf32, #tpu.memory_space<vmem>>, vector<128x128xf32>
    %c0_5 = arith.constant 0 : index
    %c0_6 = arith.constant 0 : index
    %9 = vector.load %arg2[%c0_5, %c0_6] : memref<128x512xf32, #tpu.memory_space<vmem>>, vector<128x512xf32>
    %c0_7 = arith.constant 0 : index
    %c0_8 = arith.constant 0 : index
    %10 = vector.load %arg3[%c0_7, %c0_8] : memref<512x128xf32, #tpu.memory_space<vmem>>, vector<512x128xf32>
    %cst = arith.constant dense<0.000000e+00> : vector<128x128xf32>
    %11 = tpu.matmul %9, %10, %cst {dimension_numbers = #tpu.dot_dimension_numbers<[1], [0], [0], [1], [0, 0, 1, 1], [], []>} : vector<128x512xf32>, vector<512x128xf32>, vector<128x128xf32> -> vector<128x128xf32>
    %12 = arith.addf %8, %11 : vector<128x128xf32>
    %c0_9 = arith.constant 0 : index
    %c0_10 = arith.constant 0 : index
    %13 = vector.load %arg7[%c0_9, %c0_10] : memref<128x128xf32, #tpu.memory_space<vmem>>, vector<128x128xf32>
    tpu.vector_store %arg7[%c0_9, %c0_10], %12 {strides = array<i32>} : memref<128x128xf32, #tpu.memory_space<vmem>>, vector<128x128xf32>,
    %c1_i32 = arith.constant 1 : i32
    %14 = arith.cmpi eq, %arg1, %c1_i32 : i32
    %15 = arith.extui %14 : i1 to i32
    %c0_i32_11 = arith.constant 0 : i32
    %16 = arith.cmpi ne, %15, %c0_i32_11 : i32
    scf.if %16 {
      %c0_12 = arith.constant 0 : index
      %c0_13 = arith.constant 0 : index
      %17 = vector.load %arg7[%c0_12, %c0_13] : memref<128x128xf32, #tpu.memory_space<vmem>>, vector<128x128xf32>
      %c0_14 = arith.constant 0 : index
      %c0_15 = arith.constant 0 : index
      %18 = vector.load %arg4[%c0_14, %c0_15] : memref<128x128xf32, #tpu.memory_space<vmem>>, vector<128x128xf32>
      tpu.vector_store %arg4[%c0_14, %c0_15], %17 {strides = array<i32>} : memref<128x128xf32, #tpu.memory_space<vmem>>, vector<128x128xf32>,
      %c0_16 = arith.constant 0 : index
      %c0_17 = arith.constant 0 : index
      %19 = vector.load %arg5[%c0_16, %c0_17] : memref<1x128xf32, #tpu.memory_space<vmem>>, vector<1x128xf32>
      %cst_18 = arith.constant dense<0.000000e+00> : vector<128xf32>
      %20 = vector.multi_reduction <add>, %17, %cst_18 [0] : vector<128x128xf32> to vector<128xf32>
      %21 = vector.shape_cast %20 : vector<128xf32> to vector<1x128xf32>
      %22 = arith.addf %19, %21 : vector<1x128xf32>
      %c0_19 = arith.constant 0 : index
      %c0_20 = arith.constant 0 : index
      %23 = vector.load %arg5[%c0_19, %c0_20] : memref<1x128xf32, #tpu.memory_space<vmem>>, vector<1x128xf32>
      tpu.vector_store %arg5[%c0_19, %c0_20], %22 {strides = array<i32>} : memref<1x128xf32, #tpu.memory_space<vmem>>, vector<1x128xf32>,
      %c0_21 = arith.constant 0 : index
      %c0_22 = arith.constant 0 : index
      %24 = vector.load %arg6[%c0_21, %c0_22] : memref<1x128xf32, #tpu.memory_space<vmem>>, vector<1x128xf32>
      %25 = arith.mulf %17, %17 : vector<128x128xf32>
      %cst_23 = arith.constant dense<0.000000e+00> : vector<128xf32>
      %26 = vector.multi_reduction <add>, %25, %cst_23 [0] : vector<128x128xf32> to vector<128xf32>
      %27 = vector.shape_cast %26 : vector<128xf32> to vector<1x128xf32>
      %28 = arith.addf %24, %27 : vector<1x128xf32>
      %c0_24 = arith.constant 0 : index
      %c0_25 = arith.constant 0 : index
      %29 = vector.load %arg6[%c0_24, %c0_25] : memref<1x128xf32, #tpu.memory_space<vmem>>, vector<1x128xf32>
      tpu.vector_store %arg6[%c0_24, %c0_25], %28 {strides = array<i32>} : memref<1x128xf32, #tpu.memory_space<vmem>>, vector<1x128xf32>,
    } else {
    }
    return
  }
  func.func @transform_0(%arg0: i32, %arg1: i32) -> (i32, i32) {
    %c0_i32 = arith.constant 0 : i32
    return %arg0, %arg1 : i32, i32
  }
  func.func @transform_1(%arg0: i32, %arg1: i32) -> (i32, i32) {
    %c0_i32 = arith.constant 0 : i32
    %c0_i32_0 = arith.constant 0 : i32
    return %arg1, %c0_i32 : i32, i32
  }
  func.func @transform_2(%arg0: i32, %arg1: i32) -> (i32, i32) {
    %c0_i32 = arith.constant 0 : i32
    %c0_i32_0 = arith.constant 0 : i32
    return %arg0, %c0_i32 : i32, i32
  }
  func.func @transform_3(%arg0: i32, %arg1: i32) -> (i32, i32) {
    %c0_i32 = arith.constant 0 : i32
    %c0_i32_0 = arith.constant 0 : i32
    %c0_i32_1 = arith.constant 0 : i32
    return %c0_i32, %c0_i32_0 : i32, i32
  }
  func.func @transform_4(%arg0: i32, %arg1: i32) -> (i32, i32) {
    %c0_i32 = arith.constant 0 : i32
    %c0_i32_0 = arith.constant 0 : i32
    %c0_i32_1 = arith.constant 0 : i32
    return %c0_i32, %c0_i32_0 : i32, i32
  }
}

module attributes {stable_mosaic.version = 11 : i64} {
  func.func @_affine_relu_kernel(%arg0: i32, %arg1: memref<128x128xf32, #tpu.memory_space<vmem>>, %arg2: memref<1x128xf32, #tpu.memory_space<vmem>>, %arg3: memref<1x128xf32, #tpu.memory_space<vmem>>, %arg4: memref<128x128xf32, #tpu.memory_space<vmem>>) attributes {dimension_semantics = [#tpu.dimension_semantics<parallel>], iteration_bounds = array<i64: 1>, scalar_prefetch = 0 : i64, scratch_operands = 0 : i64, tpu.core_type = #tpu.core_type<tc>, window_params = [{transform_indices = @transform_0, window_bounds = array<i64: 128, 128>}, {pipeline_mode = #tpu.pipeline_mode<synchronous>, transform_indices = @transform_1, window_bounds = array<i64: 1, 128>}, {pipeline_mode = #tpu.pipeline_mode<synchronous>, transform_indices = @transform_2, window_bounds = array<i64: 1, 128>}, {transform_indices = @transform_3, window_bounds = array<i64: 128, 128>}]} {
    %c0 = arith.constant 0 : index
    %c0_0 = arith.constant 0 : index
    %0 = vector.load %arg1[%c0, %c0_0] : memref<128x128xf32, #tpu.memory_space<vmem>>, vector<128x128xf32>
    %c0_1 = arith.constant 0 : index
    %c0_2 = arith.constant 0 : index
    %1 = vector.load %arg2[%c0_1, %c0_2] : memref<1x128xf32, #tpu.memory_space<vmem>>, vector<1x128xf32>
    %2 = vector.broadcast %1 : vector<1x128xf32> to vector<128x128xf32>
    %3 = arith.mulf %0, %2 : vector<128x128xf32>
    %c0_3 = arith.constant 0 : index
    %c0_4 = arith.constant 0 : index
    %4 = vector.load %arg3[%c0_3, %c0_4] : memref<1x128xf32, #tpu.memory_space<vmem>>, vector<1x128xf32>
    %5 = vector.broadcast %4 : vector<1x128xf32> to vector<128x128xf32>
    %6 = arith.addf %3, %5 : vector<128x128xf32>
    %cst = arith.constant 0.000000e+00 : f32
    %7 = vector.broadcast %cst : f32 to vector<128x128xf32>
    %8 = arith.maximumf %6, %7 : vector<128x128xf32>
    %c0_5 = arith.constant 0 : index
    %c0_6 = arith.constant 0 : index
    %9 = vector.load %arg4[%c0_5, %c0_6] : memref<128x128xf32, #tpu.memory_space<vmem>>, vector<128x128xf32>
    tpu.vector_store %arg4[%c0_5, %c0_6], %8 {strides = array<i32>} : memref<128x128xf32, #tpu.memory_space<vmem>>, vector<128x128xf32>,
    return
  }
  func.func @transform_0(%arg0: i32) -> (i32, i32) {
    %c0_i32 = arith.constant 0 : i32
    %c0_i32_0 = arith.constant 0 : i32
    return %arg0, %c0_i32 : i32, i32
  }
  func.func @transform_1(%arg0: i32) -> (i32, i32) {
    %c0_i32 = arith.constant 0 : i32
    %c0_i32_0 = arith.constant 0 : i32
    %c0_i32_1 = arith.constant 0 : i32
    return %c0_i32, %c0_i32_0 : i32, i32
  }
  func.func @transform_2(%arg0: i32) -> (i32, i32) {
    %c0_i32 = arith.constant 0 : i32
    %c0_i32_0 = arith.constant 0 : i32
    %c0_i32_1 = arith.constant 0 : i32
    return %c0_i32, %c0_i32_0 : i32, i32
  }
  func.func @transform_3(%arg0: i32) -> (i32, i32) {
    %c0_i32 = arith.constant 0 : i32
    %c0_i32_0 = arith.constant 0 : i32
    return %arg0, %c0_i32 : i32, i32
  }
}

module attributes {stable_mosaic.version = 11 : i64} {
  func.func @_gemm_stats_kernel(%arg0: i32, %arg1: i32, %arg2: memref<512x512xf32, #tpu.memory_space<vmem>>, %arg3: memref<512x128xf32, #tpu.memory_space<vmem>>, %arg4: memref<512x128xf32, #tpu.memory_space<vmem>>, %arg5: memref<1x128xf32, #tpu.memory_space<vmem>>, %arg6: memref<1x128xf32, #tpu.memory_space<vmem>>, %arg7: memref<512x128xf32, #tpu.memory_space<vmem>>) attributes {dimension_semantics = [#tpu.dimension_semantics<arbitrary>, #tpu.dimension_semantics<arbitrary>], iteration_bounds = array<i64: 1, 1>, scalar_prefetch = 0 : i64, scratch_operands = 1 : i64, tpu.core_type = #tpu.core_type<tc>, window_params = [{transform_indices = @transform_0, window_bounds = array<i64: 512, 512>}, {transform_indices = @transform_1, window_bounds = array<i64: 512, 128>}, {transform_indices = @transform_2, window_bounds = array<i64: 512, 128>}, {pipeline_mode = #tpu.pipeline_mode<synchronous>, transform_indices = @transform_3, window_bounds = array<i64: 1, 128>}, {pipeline_mode = #tpu.pipeline_mode<synchronous>, transform_indices = @transform_4, window_bounds = array<i64: 1, 128>}]} {
    %c0_i32 = arith.constant 0 : i32
    %0 = arith.cmpi eq, %arg0, %c0_i32 : i32
    %c0_i32_0 = arith.constant 0 : i32
    %1 = arith.cmpi eq, %arg1, %c0_i32_0 : i32
    %2 = arith.andi %0, %1 : i1
    %3 = arith.extui %2 : i1 to i32
    %c0_i32_1 = arith.constant 0 : i32
    %4 = arith.cmpi ne, %3, %c0_i32_1 : i32
    scf.if %4 {
      %cst_13 = arith.constant 0.000000e+00 : f32
      %17 = vector.broadcast %cst_13 : f32 to vector<1x128xf32>
      %c0_14 = arith.constant 0 : index
      %c0_15 = arith.constant 0 : index
      %18 = vector.load %arg5[%c0_14, %c0_15] : memref<1x128xf32, #tpu.memory_space<vmem>>, vector<1x128xf32>
      tpu.vector_store %arg5[%c0_14, %c0_15], %17 {strides = array<i32>} : memref<1x128xf32, #tpu.memory_space<vmem>>, vector<1x128xf32>,
      %cst_16 = arith.constant 0.000000e+00 : f32
      %19 = vector.broadcast %cst_16 : f32 to vector<1x128xf32>
      %c0_17 = arith.constant 0 : index
      %c0_18 = arith.constant 0 : index
      %20 = vector.load %arg6[%c0_17, %c0_18] : memref<1x128xf32, #tpu.memory_space<vmem>>, vector<1x128xf32>
      tpu.vector_store %arg6[%c0_17, %c0_18], %19 {strides = array<i32>} : memref<1x128xf32, #tpu.memory_space<vmem>>, vector<1x128xf32>,
    } else {
    }
    %c0_i32_2 = arith.constant 0 : i32
    %5 = arith.cmpi eq, %arg1, %c0_i32_2 : i32
    %6 = arith.extui %5 : i1 to i32
    %c0_i32_3 = arith.constant 0 : i32
    %7 = arith.cmpi ne, %6, %c0_i32_3 : i32
    scf.if %7 {
      %cst_13 = arith.constant 0.000000e+00 : f32
      %17 = vector.broadcast %cst_13 : f32 to vector<512x128xf32>
      %c0_14 = arith.constant 0 : index
      %c0_15 = arith.constant 0 : index
      %18 = vector.load %arg7[%c0_14, %c0_15] : memref<512x128xf32, #tpu.memory_space<vmem>>, vector<512x128xf32>
      tpu.vector_store %arg7[%c0_14, %c0_15], %17 {strides = array<i32>} : memref<512x128xf32, #tpu.memory_space<vmem>>, vector<512x128xf32>,
    } else {
    }
    %c0 = arith.constant 0 : index
    %c0_4 = arith.constant 0 : index
    %8 = vector.load %arg7[%c0, %c0_4] : memref<512x128xf32, #tpu.memory_space<vmem>>, vector<512x128xf32>
    %c0_5 = arith.constant 0 : index
    %c0_6 = arith.constant 0 : index
    %9 = vector.load %arg2[%c0_5, %c0_6] : memref<512x512xf32, #tpu.memory_space<vmem>>, vector<512x512xf32>
    %c0_7 = arith.constant 0 : index
    %c0_8 = arith.constant 0 : index
    %10 = vector.load %arg3[%c0_7, %c0_8] : memref<512x128xf32, #tpu.memory_space<vmem>>, vector<512x128xf32>
    %cst = arith.constant dense<0.000000e+00> : vector<512x128xf32>
    %11 = tpu.matmul %9, %10, %cst {dimension_numbers = #tpu.dot_dimension_numbers<[1], [0], [0], [1], [0, 0, 1, 1], [], []>} : vector<512x512xf32>, vector<512x128xf32>, vector<512x128xf32> -> vector<512x128xf32>
    %12 = arith.addf %8, %11 : vector<512x128xf32>
    %c0_9 = arith.constant 0 : index
    %c0_10 = arith.constant 0 : index
    %13 = vector.load %arg7[%c0_9, %c0_10] : memref<512x128xf32, #tpu.memory_space<vmem>>, vector<512x128xf32>
    tpu.vector_store %arg7[%c0_9, %c0_10], %12 {strides = array<i32>} : memref<512x128xf32, #tpu.memory_space<vmem>>, vector<512x128xf32>,
    %c0_i32_11 = arith.constant 0 : i32
    %14 = arith.cmpi eq, %arg1, %c0_i32_11 : i32
    %15 = arith.extui %14 : i1 to i32
    %c0_i32_12 = arith.constant 0 : i32
    %16 = arith.cmpi ne, %15, %c0_i32_12 : i32
    scf.if %16 {
      %c0_13 = arith.constant 0 : index
      %c0_14 = arith.constant 0 : index
      %17 = vector.load %arg7[%c0_13, %c0_14] : memref<512x128xf32, #tpu.memory_space<vmem>>, vector<512x128xf32>
      %c0_15 = arith.constant 0 : index
      %c0_16 = arith.constant 0 : index
      %18 = vector.load %arg4[%c0_15, %c0_16] : memref<512x128xf32, #tpu.memory_space<vmem>>, vector<512x128xf32>
      tpu.vector_store %arg4[%c0_15, %c0_16], %17 {strides = array<i32>} : memref<512x128xf32, #tpu.memory_space<vmem>>, vector<512x128xf32>,
      %c0_17 = arith.constant 0 : index
      %c0_18 = arith.constant 0 : index
      %19 = vector.load %arg5[%c0_17, %c0_18] : memref<1x128xf32, #tpu.memory_space<vmem>>, vector<1x128xf32>
      %cst_19 = arith.constant dense<0.000000e+00> : vector<128xf32>
      %20 = vector.multi_reduction <add>, %17, %cst_19 [0] : vector<512x128xf32> to vector<128xf32>
      %21 = vector.shape_cast %20 : vector<128xf32> to vector<1x128xf32>
      %22 = arith.addf %19, %21 : vector<1x128xf32>
      %c0_20 = arith.constant 0 : index
      %c0_21 = arith.constant 0 : index
      %23 = vector.load %arg5[%c0_20, %c0_21] : memref<1x128xf32, #tpu.memory_space<vmem>>, vector<1x128xf32>
      tpu.vector_store %arg5[%c0_20, %c0_21], %22 {strides = array<i32>} : memref<1x128xf32, #tpu.memory_space<vmem>>, vector<1x128xf32>,
      %c0_22 = arith.constant 0 : index
      %c0_23 = arith.constant 0 : index
      %24 = vector.load %arg6[%c0_22, %c0_23] : memref<1x128xf32, #tpu.memory_space<vmem>>, vector<1x128xf32>
      %25 = arith.mulf %17, %17 : vector<512x128xf32>
      %cst_24 = arith.constant dense<0.000000e+00> : vector<128xf32>
      %26 = vector.multi_reduction <add>, %25, %cst_24 [0] : vector<512x128xf32> to vector<128xf32>
      %27 = vector.shape_cast %26 : vector<128xf32> to vector<1x128xf32>
      %28 = arith.addf %24, %27 : vector<1x128xf32>
      %c0_25 = arith.constant 0 : index
      %c0_26 = arith.constant 0 : index
      %29 = vector.load %arg6[%c0_25, %c0_26] : memref<1x128xf32, #tpu.memory_space<vmem>>, vector<1x128xf32>
      tpu.vector_store %arg6[%c0_25, %c0_26], %28 {strides = array<i32>} : memref<1x128xf32, #tpu.memory_space<vmem>>, vector<1x128xf32>,
    } else {
    }
    return
  }
  func.func @transform_0(%arg0: i32, %arg1: i32) -> (i32, i32) {
    %c0_i32 = arith.constant 0 : i32
    return %arg0, %arg1 : i32, i32
  }
  func.func @transform_1(%arg0: i32, %arg1: i32) -> (i32, i32) {
    %c0_i32 = arith.constant 0 : i32
    %c0_i32_0 = arith.constant 0 : i32
    return %arg1, %c0_i32 : i32, i32
  }
  func.func @transform_2(%arg0: i32, %arg1: i32) -> (i32, i32) {
    %c0_i32 = arith.constant 0 : i32
    %c0_i32_0 = arith.constant 0 : i32
    return %arg0, %c0_i32 : i32, i32
  }
  func.func @transform_3(%arg0: i32, %arg1: i32) -> (i32, i32) {
    %c0_i32 = arith.constant 0 : i32
    %c0_i32_0 = arith.constant 0 : i32
    %c0_i32_1 = arith.constant 0 : i32
    return %c0_i32, %c0_i32_0 : i32, i32
  }
  func.func @transform_4(%arg0: i32, %arg1: i32) -> (i32, i32) {
    %c0_i32 = arith.constant 0 : i32
    %c0_i32_0 = arith.constant 0 : i32
    %c0_i32_1 = arith.constant 0 : i32
    return %c0_i32, %c0_i32_0 : i32, i32
  }
}

module attributes {stable_mosaic.version = 11 : i64} {
  func.func @_affine_relu_kernel(%arg0: i32, %arg1: memref<512x128xf32, #tpu.memory_space<vmem>>, %arg2: memref<1x128xf32, #tpu.memory_space<vmem>>, %arg3: memref<1x128xf32, #tpu.memory_space<vmem>>, %arg4: memref<512x128xf32, #tpu.memory_space<vmem>>) attributes {dimension_semantics = [#tpu.dimension_semantics<parallel>], iteration_bounds = array<i64: 1>, scalar_prefetch = 0 : i64, scratch_operands = 0 : i64, tpu.core_type = #tpu.core_type<tc>, window_params = [{transform_indices = @transform_0, window_bounds = array<i64: 512, 128>}, {pipeline_mode = #tpu.pipeline_mode<synchronous>, transform_indices = @transform_1, window_bounds = array<i64: 1, 128>}, {pipeline_mode = #tpu.pipeline_mode<synchronous>, transform_indices = @transform_2, window_bounds = array<i64: 1, 128>}, {transform_indices = @transform_3, window_bounds = array<i64: 512, 128>}]} {
    %c0 = arith.constant 0 : index
    %c0_0 = arith.constant 0 : index
    %0 = vector.load %arg1[%c0, %c0_0] : memref<512x128xf32, #tpu.memory_space<vmem>>, vector<512x128xf32>
    %c0_1 = arith.constant 0 : index
    %c0_2 = arith.constant 0 : index
    %1 = vector.load %arg2[%c0_1, %c0_2] : memref<1x128xf32, #tpu.memory_space<vmem>>, vector<1x128xf32>
    %2 = vector.broadcast %1 : vector<1x128xf32> to vector<512x128xf32>
    %3 = arith.mulf %0, %2 : vector<512x128xf32>
    %c0_3 = arith.constant 0 : index
    %c0_4 = arith.constant 0 : index
    %4 = vector.load %arg3[%c0_3, %c0_4] : memref<1x128xf32, #tpu.memory_space<vmem>>, vector<1x128xf32>
    %5 = vector.broadcast %4 : vector<1x128xf32> to vector<512x128xf32>
    %6 = arith.addf %3, %5 : vector<512x128xf32>
    %cst = arith.constant 0.000000e+00 : f32
    %7 = vector.broadcast %cst : f32 to vector<512x128xf32>
    %8 = arith.maximumf %6, %7 : vector<512x128xf32>
    %c0_5 = arith.constant 0 : index
    %c0_6 = arith.constant 0 : index
    %9 = vector.load %arg4[%c0_5, %c0_6] : memref<512x128xf32, #tpu.memory_space<vmem>>, vector<512x128xf32>
    tpu.vector_store %arg4[%c0_5, %c0_6], %8 {strides = array<i32>} : memref<512x128xf32, #tpu.memory_space<vmem>>, vector<512x128xf32>,
    return
  }
  func.func @transform_0(%arg0: i32) -> (i32, i32) {
    %c0_i32 = arith.constant 0 : i32
    %c0_i32_0 = arith.constant 0 : i32
    return %arg0, %c0_i32 : i32, i32
  }
  func.func @transform_1(%arg0: i32) -> (i32, i32) {
    %c0_i32 = arith.constant 0 : i32
    %c0_i32_0 = arith.constant 0 : i32
    %c0_i32_1 = arith.constant 0 : i32
    return %c0_i32, %c0_i32_0 : i32, i32
  }
  func.func @transform_2(%arg0: i32) -> (i32, i32) {
    %c0_i32 = arith.constant 0 : i32
    %c0_i32_0 = arith.constant 0 : i32
    %c0_i32_1 = arith.constant 0 : i32
    return %c0_i32, %c0_i32_0 : i32, i32
  }
  func.func @transform_3(%arg0: i32) -> (i32, i32) {
    %c0_i32 = arith.constant 0 : i32
    %c0_i32_0 = arith.constant 0 : i32
    return %arg0, %c0_i32 : i32, i32
  }
}

module attributes {stable_mosaic.version = 11 : i64} {
  func.func @_affine_relu_kernel(%arg0: i32, %arg1: memref<2048x128xf32, #tpu.memory_space<vmem>>, %arg2: memref<1x128xf32, #tpu.memory_space<vmem>>, %arg3: memref<1x128xf32, #tpu.memory_space<vmem>>, %arg4: memref<2048x128xf32, #tpu.memory_space<vmem>>) attributes {dimension_semantics = [#tpu.dimension_semantics<parallel>], iteration_bounds = array<i64: 1>, scalar_prefetch = 0 : i64, scratch_operands = 0 : i64, tpu.core_type = #tpu.core_type<tc>, window_params = [{transform_indices = @transform_0, window_bounds = array<i64: 2048, 128>}, {pipeline_mode = #tpu.pipeline_mode<synchronous>, transform_indices = @transform_1, window_bounds = array<i64: 1, 128>}, {pipeline_mode = #tpu.pipeline_mode<synchronous>, transform_indices = @transform_2, window_bounds = array<i64: 1, 128>}, {transform_indices = @transform_3, window_bounds = array<i64: 2048, 128>}]} {
    %c0 = arith.constant 0 : index
    %c0_0 = arith.constant 0 : index
    %0 = vector.load %arg1[%c0, %c0_0] : memref<2048x128xf32, #tpu.memory_space<vmem>>, vector<2048x128xf32>
    %c0_1 = arith.constant 0 : index
    %c0_2 = arith.constant 0 : index
    %1 = vector.load %arg2[%c0_1, %c0_2] : memref<1x128xf32, #tpu.memory_space<vmem>>, vector<1x128xf32>
    %2 = vector.broadcast %1 : vector<1x128xf32> to vector<2048x128xf32>
    %3 = arith.mulf %0, %2 : vector<2048x128xf32>
    %c0_3 = arith.constant 0 : index
    %c0_4 = arith.constant 0 : index
    %4 = vector.load %arg3[%c0_3, %c0_4] : memref<1x128xf32, #tpu.memory_space<vmem>>, vector<1x128xf32>
    %5 = vector.broadcast %4 : vector<1x128xf32> to vector<2048x128xf32>
    %6 = arith.addf %3, %5 : vector<2048x128xf32>
    %cst = arith.constant 0.000000e+00 : f32
    %7 = vector.broadcast %cst : f32 to vector<2048x128xf32>
    %8 = arith.maximumf %6, %7 : vector<2048x128xf32>
    %c0_5 = arith.constant 0 : index
    %c0_6 = arith.constant 0 : index
    %9 = vector.load %arg4[%c0_5, %c0_6] : memref<2048x128xf32, #tpu.memory_space<vmem>>, vector<2048x128xf32>
    tpu.vector_store %arg4[%c0_5, %c0_6], %8 {strides = array<i32>} : memref<2048x128xf32, #tpu.memory_space<vmem>>, vector<2048x128xf32>,
    return
  }
  func.func @transform_0(%arg0: i32) -> (i32, i32) {
    %c0_i32 = arith.constant 0 : i32
    %c0_i32_0 = arith.constant 0 : i32
    return %arg0, %c0_i32 : i32, i32
  }
  func.func @transform_1(%arg0: i32) -> (i32, i32) {
    %c0_i32 = arith.constant 0 : i32
    %c0_i32_0 = arith.constant 0 : i32
    %c0_i32_1 = arith.constant 0 : i32
    return %c0_i32, %c0_i32_0 : i32, i32
  }
  func.func @transform_2(%arg0: i32) -> (i32, i32) {
    %c0_i32 = arith.constant 0 : i32
    %c0_i32_0 = arith.constant 0 : i32
    %c0_i32_1 = arith.constant 0 : i32
    return %c0_i32, %c0_i32_0 : i32, i32
  }
  func.func @transform_3(%arg0: i32) -> (i32, i32) {
    %c0_i32 = arith.constant 0 : i32
    %c0_i32_0 = arith.constant 0 : i32
    return %arg0, %c0_i32 : i32, i32
  }
}

module attributes {stable_mosaic.version = 11 : i64} {
  func.func @_gemm_stats_kernel(%arg0: i32, %arg1: i32, %arg2: memref<512x256xf32, #tpu.memory_space<vmem>>, %arg3: memref<256x128xf32, #tpu.memory_space<vmem>>, %arg4: memref<512x128xf32, #tpu.memory_space<vmem>>, %arg5: memref<1x128xf32, #tpu.memory_space<vmem>>, %arg6: memref<1x128xf32, #tpu.memory_space<vmem>>, %arg7: memref<512x128xf32, #tpu.memory_space<vmem>>) attributes {dimension_semantics = [#tpu.dimension_semantics<arbitrary>, #tpu.dimension_semantics<arbitrary>], iteration_bounds = array<i64: 4, 1>, scalar_prefetch = 0 : i64, scratch_operands = 1 : i64, tpu.core_type = #tpu.core_type<tc>, window_params = [{transform_indices = @transform_0, window_bounds = array<i64: 512, 256>}, {transform_indices = @transform_1, window_bounds = array<i64: 256, 128>}, {transform_indices = @transform_2, window_bounds = array<i64: 512, 128>}, {pipeline_mode = #tpu.pipeline_mode<synchronous>, transform_indices = @transform_3, window_bounds = array<i64: 1, 128>}, {pipeline_mode = #tpu.pipeline_mode<synchronous>, transform_indices = @transform_4, window_bounds = array<i64: 1, 128>}]} {
    %c0_i32 = arith.constant 0 : i32
    %0 = arith.cmpi eq, %arg0, %c0_i32 : i32
    %c0_i32_0 = arith.constant 0 : i32
    %1 = arith.cmpi eq, %arg1, %c0_i32_0 : i32
    %2 = arith.andi %0, %1 : i1
    %3 = arith.extui %2 : i1 to i32
    %c0_i32_1 = arith.constant 0 : i32
    %4 = arith.cmpi ne, %3, %c0_i32_1 : i32
    scf.if %4 {
      %cst_13 = arith.constant 0.000000e+00 : f32
      %17 = vector.broadcast %cst_13 : f32 to vector<1x128xf32>
      %c0_14 = arith.constant 0 : index
      %c0_15 = arith.constant 0 : index
      %18 = vector.load %arg5[%c0_14, %c0_15] : memref<1x128xf32, #tpu.memory_space<vmem>>, vector<1x128xf32>
      tpu.vector_store %arg5[%c0_14, %c0_15], %17 {strides = array<i32>} : memref<1x128xf32, #tpu.memory_space<vmem>>, vector<1x128xf32>,
      %cst_16 = arith.constant 0.000000e+00 : f32
      %19 = vector.broadcast %cst_16 : f32 to vector<1x128xf32>
      %c0_17 = arith.constant 0 : index
      %c0_18 = arith.constant 0 : index
      %20 = vector.load %arg6[%c0_17, %c0_18] : memref<1x128xf32, #tpu.memory_space<vmem>>, vector<1x128xf32>
      tpu.vector_store %arg6[%c0_17, %c0_18], %19 {strides = array<i32>} : memref<1x128xf32, #tpu.memory_space<vmem>>, vector<1x128xf32>,
    } else {
    }
    %c0_i32_2 = arith.constant 0 : i32
    %5 = arith.cmpi eq, %arg1, %c0_i32_2 : i32
    %6 = arith.extui %5 : i1 to i32
    %c0_i32_3 = arith.constant 0 : i32
    %7 = arith.cmpi ne, %6, %c0_i32_3 : i32
    scf.if %7 {
      %cst_13 = arith.constant 0.000000e+00 : f32
      %17 = vector.broadcast %cst_13 : f32 to vector<512x128xf32>
      %c0_14 = arith.constant 0 : index
      %c0_15 = arith.constant 0 : index
      %18 = vector.load %arg7[%c0_14, %c0_15] : memref<512x128xf32, #tpu.memory_space<vmem>>, vector<512x128xf32>
      tpu.vector_store %arg7[%c0_14, %c0_15], %17 {strides = array<i32>} : memref<512x128xf32, #tpu.memory_space<vmem>>, vector<512x128xf32>,
    } else {
    }
    %c0 = arith.constant 0 : index
    %c0_4 = arith.constant 0 : index
    %8 = vector.load %arg7[%c0, %c0_4] : memref<512x128xf32, #tpu.memory_space<vmem>>, vector<512x128xf32>
    %c0_5 = arith.constant 0 : index
    %c0_6 = arith.constant 0 : index
    %9 = vector.load %arg2[%c0_5, %c0_6] : memref<512x256xf32, #tpu.memory_space<vmem>>, vector<512x256xf32>
    %c0_7 = arith.constant 0 : index
    %c0_8 = arith.constant 0 : index
    %10 = vector.load %arg3[%c0_7, %c0_8] : memref<256x128xf32, #tpu.memory_space<vmem>>, vector<256x128xf32>
    %cst = arith.constant dense<0.000000e+00> : vector<512x128xf32>
    %11 = tpu.matmul %9, %10, %cst {dimension_numbers = #tpu.dot_dimension_numbers<[1], [0], [0], [1], [0, 0, 1, 1], [], []>} : vector<512x256xf32>, vector<256x128xf32>, vector<512x128xf32> -> vector<512x128xf32>
    %12 = arith.addf %8, %11 : vector<512x128xf32>
    %c0_9 = arith.constant 0 : index
    %c0_10 = arith.constant 0 : index
    %13 = vector.load %arg7[%c0_9, %c0_10] : memref<512x128xf32, #tpu.memory_space<vmem>>, vector<512x128xf32>
    tpu.vector_store %arg7[%c0_9, %c0_10], %12 {strides = array<i32>} : memref<512x128xf32, #tpu.memory_space<vmem>>, vector<512x128xf32>,
    %c0_i32_11 = arith.constant 0 : i32
    %14 = arith.cmpi eq, %arg1, %c0_i32_11 : i32
    %15 = arith.extui %14 : i1 to i32
    %c0_i32_12 = arith.constant 0 : i32
    %16 = arith.cmpi ne, %15, %c0_i32_12 : i32
    scf.if %16 {
      %c0_13 = arith.constant 0 : index
      %c0_14 = arith.constant 0 : index
      %17 = vector.load %arg7[%c0_13, %c0_14] : memref<512x128xf32, #tpu.memory_space<vmem>>, vector<512x128xf32>
      %c0_15 = arith.constant 0 : index
      %c0_16 = arith.constant 0 : index
      %18 = vector.load %arg4[%c0_15, %c0_16] : memref<512x128xf32, #tpu.memory_space<vmem>>, vector<512x128xf32>
      tpu.vector_store %arg4[%c0_15, %c0_16], %17 {strides = array<i32>} : memref<512x128xf32, #tpu.memory_space<vmem>>, vector<512x128xf32>,
      %c0_17 = arith.constant 0 : index
      %c0_18 = arith.constant 0 : index
      %19 = vector.load %arg5[%c0_17, %c0_18] : memref<1x128xf32, #tpu.memory_space<vmem>>, vector<1x128xf32>
      %cst_19 = arith.constant dense<0.000000e+00> : vector<128xf32>
      %20 = vector.multi_reduction <add>, %17, %cst_19 [0] : vector<512x128xf32> to vector<128xf32>
      %21 = vector.shape_cast %20 : vector<128xf32> to vector<1x128xf32>
      %22 = arith.addf %19, %21 : vector<1x128xf32>
      %c0_20 = arith.constant 0 : index
      %c0_21 = arith.constant 0 : index
      %23 = vector.load %arg5[%c0_20, %c0_21] : memref<1x128xf32, #tpu.memory_space<vmem>>, vector<1x128xf32>
      tpu.vector_store %arg5[%c0_20, %c0_21], %22 {strides = array<i32>} : memref<1x128xf32, #tpu.memory_space<vmem>>, vector<1x128xf32>,
      %c0_22 = arith.constant 0 : index
      %c0_23 = arith.constant 0 : index
      %24 = vector.load %arg6[%c0_22, %c0_23] : memref<1x128xf32, #tpu.memory_space<vmem>>, vector<1x128xf32>
      %25 = arith.mulf %17, %17 : vector<512x128xf32>
      %cst_24 = arith.constant dense<0.000000e+00> : vector<128xf32>
      %26 = vector.multi_reduction <add>, %25, %cst_24 [0] : vector<512x128xf32> to vector<128xf32>
      %27 = vector.shape_cast %26 : vector<128xf32> to vector<1x128xf32>
      %28 = arith.addf %24, %27 : vector<1x128xf32>
      %c0_25 = arith.constant 0 : index
      %c0_26 = arith.constant 0 : index
      %29 = vector.load %arg6[%c0_25, %c0_26] : memref<1x128xf32, #tpu.memory_space<vmem>>, vector<1x128xf32>
      tpu.vector_store %arg6[%c0_25, %c0_26], %28 {strides = array<i32>} : memref<1x128xf32, #tpu.memory_space<vmem>>, vector<1x128xf32>,
    } else {
    }
    return
  }
  func.func @transform_0(%arg0: i32, %arg1: i32) -> (i32, i32) {
    %c0_i32 = arith.constant 0 : i32
    return %arg0, %arg1 : i32, i32
  }
  func.func @transform_1(%arg0: i32, %arg1: i32) -> (i32, i32) {
    %c0_i32 = arith.constant 0 : i32
    %c0_i32_0 = arith.constant 0 : i32
    return %arg1, %c0_i32 : i32, i32
  }
  func.func @transform_2(%arg0: i32, %arg1: i32) -> (i32, i32) {
    %c0_i32 = arith.constant 0 : i32
    %c0_i32_0 = arith.constant 0 : i32
    return %arg0, %c0_i32 : i32, i32
  }
  func.func @transform_3(%arg0: i32, %arg1: i32) -> (i32, i32) {
    %c0_i32 = arith.constant 0 : i32
    %c0_i32_0 = arith.constant 0 : i32
    %c0_i32_1 = arith.constant 0 : i32
    return %c0_i32, %c0_i32_0 : i32, i32
  }
  func.func @transform_4(%arg0: i32, %arg1: i32) -> (i32, i32) {
    %c0_i32 = arith.constant 0 : i32
    %c0_i32_0 = arith.constant 0 : i32
    %c0_i32_1 = arith.constant 0 : i32
    return %c0_i32, %c0_i32_0 : i32, i32
  }
}

module attributes {stable_mosaic.version = 11 : i64} {
  func.func @_gemm_act_kernel(%arg0: i32, %arg1: i32, %arg2: memref<512x128xf32, #tpu.memory_space<vmem>>, %arg3: memref<128x128xf32, #tpu.memory_space<vmem>>, %arg4: memref<512x128xf32, #tpu.memory_space<vmem>>, %arg5: memref<512x128xf32, #tpu.memory_space<vmem>>) attributes {dimension_semantics = [#tpu.dimension_semantics<parallel>, #tpu.dimension_semantics<arbitrary>], iteration_bounds = array<i64: 16, 1>, scalar_prefetch = 0 : i64, scratch_operands = 1 : i64, tpu.core_type = #tpu.core_type<tc>, window_params = [{transform_indices = @transform_0, window_bounds = array<i64: 512, 128>}, {transform_indices = @transform_1, window_bounds = array<i64: 128, 128>}, {transform_indices = @transform_2, window_bounds = array<i64: 512, 128>}]} {
    %c0_i32 = arith.constant 0 : i32
    %0 = arith.cmpi eq, %arg1, %c0_i32 : i32
    %1 = arith.extui %0 : i1 to i32
    %c0_i32_0 = arith.constant 0 : i32
    %2 = arith.cmpi ne, %1, %c0_i32_0 : i32
    scf.if %2 {
      %cst_10 = arith.constant 0.000000e+00 : f32
      %12 = vector.broadcast %cst_10 : f32 to vector<512x128xf32>
      %c0_11 = arith.constant 0 : index
      %c0_12 = arith.constant 0 : index
      %13 = vector.load %arg5[%c0_11, %c0_12] : memref<512x128xf32, #tpu.memory_space<vmem>>, vector<512x128xf32>
      tpu.vector_store %arg5[%c0_11, %c0_12], %12 {strides = array<i32>} : memref<512x128xf32, #tpu.memory_space<vmem>>, vector<512x128xf32>,
    } else {
    }
    %c0 = arith.constant 0 : index
    %c0_1 = arith.constant 0 : index
    %3 = vector.load %arg5[%c0, %c0_1] : memref<512x128xf32, #tpu.memory_space<vmem>>, vector<512x128xf32>
    %c0_2 = arith.constant 0 : index
    %c0_3 = arith.constant 0 : index
    %4 = vector.load %arg2[%c0_2, %c0_3] : memref<512x128xf32, #tpu.memory_space<vmem>>, vector<512x128xf32>
    %c0_4 = arith.constant 0 : index
    %c0_5 = arith.constant 0 : index
    %5 = vector.load %arg3[%c0_4, %c0_5] : memref<128x128xf32, #tpu.memory_space<vmem>>, vector<128x128xf32>
    %cst = arith.constant dense<0.000000e+00> : vector<512x128xf32>
    %6 = tpu.matmul %4, %5, %cst {dimension_numbers = #tpu.dot_dimension_numbers<[1], [0], [0], [1], [0, 0, 1, 1], [], []>} : vector<512x128xf32>, vector<128x128xf32>, vector<512x128xf32> -> vector<512x128xf32>
    %7 = arith.addf %3, %6 : vector<512x128xf32>
    %c0_6 = arith.constant 0 : index
    %c0_7 = arith.constant 0 : index
    %8 = vector.load %arg5[%c0_6, %c0_7] : memref<512x128xf32, #tpu.memory_space<vmem>>, vector<512x128xf32>
    tpu.vector_store %arg5[%c0_6, %c0_7], %7 {strides = array<i32>} : memref<512x128xf32, #tpu.memory_space<vmem>>, vector<512x128xf32>,
    %c0_i32_8 = arith.constant 0 : i32
    %9 = arith.cmpi eq, %arg1, %c0_i32_8 : i32
    %10 = arith.extui %9 : i1 to i32
    %c0_i32_9 = arith.constant 0 : i32
    %11 = arith.cmpi ne, %10, %c0_i32_9 : i32
    scf.if %11 {
      %c0_10 = arith.constant 0 : index
      %c0_11 = arith.constant 0 : index
      %12 = vector.load %arg5[%c0_10, %c0_11] : memref<512x128xf32, #tpu.memory_space<vmem>>, vector<512x128xf32>
      %13 = math.tanh %12 : vector<512x128xf32>
      %c0_12 = arith.constant 0 : index
      %c0_13 = arith.constant 0 : index
      %14 = vector.load %arg4[%c0_12, %c0_13] : memref<512x128xf32, #tpu.memory_space<vmem>>, vector<512x128xf32>
      tpu.vector_store %arg4[%c0_12, %c0_13], %13 {strides = array<i32>} : memref<512x128xf32, #tpu.memory_space<vmem>>, vector<512x128xf32>,
    } else {
    }
    return
  }
  func.func @transform_0(%arg0: i32, %arg1: i32) -> (i32, i32) {
    %c0_i32 = arith.constant 0 : i32
    return %arg0, %arg1 : i32, i32
  }
  func.func @transform_1(%arg0: i32, %arg1: i32) -> (i32, i32) {
    %c0_i32 = arith.constant 0 : i32
    %c0_i32_0 = arith.constant 0 : i32
    return %arg1, %c0_i32 : i32, i32
  }
  func.func @transform_2(%arg0: i32, %arg1: i32) -> (i32, i32) {
    %c0_i32 = arith.constant 0 : i32
    %c0_i32_0 = arith.constant 0 : i32
    return %arg0, %c0_i32 : i32, i32
  }
}

</mosaic_0001>

<llo_original>
// kernel: generator_forward.10
$region0: #{generator_forward.10}
  #allocation0 [shape = 'u32[]', space=smem, size = 0x4, offset = 0x4, fixed_abs, tag = 'smem constant byte address 0x4 - core index']
  #allocation1 [shape = 'u32[72,128]{1,0:T(1,128)}', space=vmem, size = 0x9000, scoped, tag = 'internal scratch']
  %s0 = inlined_call_operand.vmem [shape: f32[32,128], index: 0, kind: input, shape index: {}]
  %s1 = inlined_call_operand.vmem [shape: f32[1,128], index: 1, kind: input, shape index: {}]
  %s2 = inlined_call_operand.vmem [shape: f32[1,128], index: 2, kind: input, shape index: {}]
  %s3 = inlined_call_operand.vmem [shape: f32[32,128], index: 3, kind: output, shape index: {}]
  %s4 = sld [smem:[#allocation0]]
  $region22: #{generator_forward.10} parent=0
    _
  %s6 = ssub.s32 1, %s4
  %s7 = scalar_select 0, %s6, %s4
  // Predicated region
  $region2: #{generator_forward.10} parent=0 // pred_check
    _
  $region3: #{generator_forward.10} parent=0 // pred_check_branch
    %9 = sbr.rel (0) target = $region5
  $region4: #{generator_forward.10} parent=0 // pred_region
    _
  $region5: #{generator_forward.10} parent=0 // pred_fallthru
    _
  // Predicated region
  $region6: #{generator_forward.10} parent=0 // pred_check
    _
  $region7: #{generator_forward.10} parent=0 // pred_check_branch
    %11 = sbr.rel (0) target = $region9
  $region8: #{generator_forward.10} parent=0 // pred_region
    _
  $region9: #{generator_forward.10} parent=0 // pred_fallthru
    _
  // Predicated region
  $region10: #{generator_forward.10} parent=0 // pred_check
    _
  $region11: #{generator_forward.10} parent=0 // pred_check_branch
    %13 = sbr.rel (0) target = $region13
  $region12: #{generator_forward.10} parent=0 // pred_region
    _
  $region13: #{generator_forward.10} parent=0 // pred_fallthru
    _
  %v14 = vld [vmem:[%s0] sm:$0xff]
  %v15 = vld [vmem:[%s0 + $0x8] sm:$0xff]
  %v16 = vld [vmem:[%s0 + $0x10] sm:$0xff]
  %v17 = vld [vmem:[%s0 + $0x18] sm:$0xff]
  %v18 = vld [vmem:[%s1] sm:$0x1]
  %v20 = vperm.slane %v18, 0
  %v22 = vmul.f32 %v14, %v20
  %v23 = vmul.f32 %v15, %v20
  %v24 = vmul.f32 %v16, %v20
  %v25 = vmul.f32 %v17, %v20
  %v26 = vld [vmem:[%s2] sm:$0x1]
  %v28 = vperm.slane %v26, 0
  %v30 = vadd.f32 %v22, %v28
  %v31 = vadd.f32 %v23, %v28
  %v32 = vadd.f32 %v24, %v28
  %v33 = vadd.f32 %v25, %v28
  %v34 = vmax.f32 %v30, 0.0
  %v35 = vmax.f32 %v31, 0.0
  %v36 = vmax.f32 %v32, 0.0
  %v37 = vmax.f32 %v33, 0.0
  %38 = vst [vmem:[%s3] sm:$0xff] %v34
  %39 = vst [vmem:[%s3 + $0x8] sm:$0xff] %v35
  %40 = vst [vmem:[%s3 + $0x10] sm:$0xff] %v36
  %41 = vst [vmem:[%s3 + $0x18] sm:$0xff] %v37
  // Predicated region
  $region14: #{generator_forward.10} parent=0 // pred_check
    _
  $region15: #{generator_forward.10} parent=0 // pred_check_branch
    %43 = sbr.rel (0) target = $region17
  $region16: #{generator_forward.10} parent=0 // pred_region
    _
  $region17: #{generator_forward.10} parent=0 // pred_fallthru
    _
  // Predicated region
  $region18: #{generator_forward.10} parent=0 // pred_check
    _
  $region19: #{generator_forward.10} parent=0 // pred_check_branch
    %45 = sbr.rel (0) target = $region21
  $region20: #{generator_forward.10} parent=0 // pred_region
    _
  $region21: #{generator_forward.10} parent=0 // pred_fallthru
    _

// kernel: generator_forward.9
$region0: #{generator_forward.9}
  #allocation0 [shape = 'u32[]', space=smem, size = 0x4, offset = 0x4, fixed_abs, tag = 'smem constant byte address 0x4 - core index']
  #allocation1 [shape = 'u32[72,128]{1,0:T(1,128)}', space=vmem, size = 0x9000, scoped, tag = 'internal scratch']
  #allocation2 [shape = 'f32[32,128]{1,0:T(8,128)}', space=vmem, size = 0x4000, scoped, tag = 'scratch operand']
  %s0 = inlined_call_operand.vmem [shape: f32[32,128], index: 0, kind: input, shape index: {}]
  %s1 = inlined_call_operand.vmem [shape: f32[128,128], index: 1, kind: input, shape index: {}]
  %s2 = inlined_call_operand.vmem [shape: f32[32,128], index: 2, kind: output, shape index: {0}]
  %s3 = inlined_call_operand.vmem [shape: f32[1,128], index: 3, kind: output, shape index: {1}]
  %s4 = inlined_call_operand.vmem [shape: f32[1,128], index: 4, kind: output, shape index: {2}]
  %5 = xla_tuple %s2, %s3, %s4
  %s6 = sld [smem:[#allocation0]]
  $region46: #{generator_forward.9} parent=0
    _
  %s8 = ssub.s32 1, %s6
  %s9 = scalar_select 0, %s8, %s6
  // Predicated region
  $region2: #{generator_forward.9} parent=0 // pred_check
    _
  $region3: #{generator_forward.9} parent=0 // pred_check_branch
    %11 = sbr.rel (0) target = $region5
  $region4: #{generator_forward.9} parent=0 // pred_region
    _
  $region5: #{generator_forward.9} parent=0 // pred_fallthru
    _
  // Predicated region
  $region6: #{generator_forward.9} parent=0 // pred_check
    _
  $region7: #{generator_forward.9} parent=0 // pred_check_branch
    %13 = sbr.rel (0) target = $region9
  $region8: #{generator_forward.9} parent=0 // pred_region
    _
  $region9: #{generator_forward.9} parent=0 // pred_fallthru
    _
  %p14 = scmp.eq.s32.totalorder 0, 0
  %p15 = scmp.eq.s32.totalorder 0, 0
  %p16 = pnand %p14, %p15
  %p17 = pneg %p16
  // Predicated region
  $region10: #{generator_forward.9} parent=0 // pred_check
    _
  $region11: #{generator_forward.9} parent=0 // pred_check_branch
    %19 = sbr.rel (%p16) target = $region13
  $region12: #{generator_forward.9} parent=0 // pred_region
    %20 = vst [vmem:[%s3] sm:$0x1] 0.0
    %21 = vst [vmem:[%s4] sm:$0x1] 0.0
  $region13: #{generator_forward.9} parent=0 // pred_fallthru
    _
  // Predicated region
  $region14: #{generator_forward.9} parent=0 // pred_check
    %p22 = pneg %p15
  $region15: #{generator_forward.9} parent=0 // pred_check_branch
    %24 = sbr.rel (%p22) target = $region17
  $region16: #{generator_forward.9} parent=0 // pred_region
    %25 = vst [vmem:[#allocation2] sm:$0xff] 0.0
    %26 = vst [vmem:[#allocation2 + $0x8] sm:$0xff] 0.0
    %27 = vst [vmem:[#allocation2 + $0x10] sm:$0xff] 0.0
    %28 = vst [vmem:[#allocation2 + $0x18] sm:$0xff] 0.0
  $region17: #{generator_forward.9} parent=0 // pred_fallthru
    _
  %v29 = vld [vmem:[#allocation2] sm:$0xff]
  %v30 = vld [vmem:[#allocation2 + $0x8] sm:$0xff]
  %v31 = vld [vmem:[#allocation2 + $0x10] sm:$0xff]
  %v32 = vld [vmem:[#allocation2 + $0x18] sm:$0xff]
  %v33 = vld [vmem:[%s0] sm:$0xff]
  %v34 = vld [vmem:[%s0 + $0x8] sm:$0xff]
  %v35 = vld [vmem:[%s0 + $0x10] sm:$0xff]
  %v36 = vld [vmem:[%s0 + $0x18] sm:$0xff]
  %v37 = vld [vmem:[%s1] sm:$0xff]
  %v38 = vld [vmem:[%s1 + $0x8] sm:$0xff]
  %v39 = vld [vmem:[%s1 + $0x10] sm:$0xff]
  %v40 = vld [vmem:[%s1 + $0x18] sm:$0xff]
  %v41 = vld [vmem:[%s1 + $0x20] sm:$0xff]
  %v42 = vld [vmem:[%s1 + $0x28] sm:$0xff]
  %v43 = vld [vmem:[%s1 + $0x30] sm:$0xff]
  %v44 = vld [vmem:[%s1 + $0x38] sm:$0xff]
  %v45 = vld [vmem:[%s1 + $0x40] sm:$0xff]
  %v46 = vld [vmem:[%s1 + $0x48] sm:$0xff]
  %v47 = vld [vmem:[%s1 + $0x50] sm:$0xff]
  %v48 = vld [vmem:[%s1 + $0x58] sm:$0xff]
  %v49 = vld [vmem:[%s1 + $0x60] sm:$0xff]
  %v50 = vld [vmem:[%s1 + $0x68] sm:$0xff]
  %v51 = vld [vmem:[%s1 + $0x70] sm:$0xff]
  %v52 = vld [vmem:[%s1 + $0x78] sm:$0xff]
  %53 = vmatpush.msra.mxu0 %v52
  %54 = vmatpush.msra.mxu0 %v51
  %55 = vmatpush.msra.mxu0 %v50
  %56 = vmatpush.msra.mxu0 %v49
  %57 = vmatpush.msra.mxu0 %v48
  %58 = vmatpush.msra.mxu0 %v47
  %59 = vmatpush.msra.mxu0 %v46
  %60 = vmatpush.msra.mxu0 %v45
  %61 = vmatpush.msra.mxu0 %v44
  %62 = vmatpush.msra.mxu0 %v43
  %63 = vmatpush.msra.mxu0 %v42
  %64 = vmatpush.msra.mxu0 %v41
  %65 = vmatpush.msra.mxu0 %v40
  %66 = vmatpush.msra.mxu0 %v39
  %67 = vmatpush.msra.mxu0 %v38
  %68 = vmatpush.msra.mxu0 %v37
  %69 = vmatmul.f32.gmra.mxu0 %v33
  %v70 = vpop.f32.mrf.mxu0
  %v71 = vadd.f32 0.0, %v70
  %72 = vmatmul.f32.gmra.mxu0 %v34
  %v73 = vpop.f32.mrf.mxu0
  %v74 = vadd.f32 0.0, %v73
  %75 = vmatmul.f32.gmra.mxu0 %v35
  %v76 = vpop.f32.mrf.mxu0
  %v77 = vadd.f32 0.0, %v76
  %78 = vmatmul.f32.gmra.mxu0 %v36
  %v79 = vpop.f32.mrf.mxu0
  %v80 = vadd.f32 0.0, %v79
  %81 = vdwg.mxu0
  %v82 = vadd.f32 %v29, %v71
  %v83 = vadd.f32 %v30, %v74
  %v84 = vadd.f32 %v31, %v77
  %v85 = vadd.f32 %v32, %v80
  %86 = vst [vmem:[#allocation2] sm:$0xff] %v82
  %87 = vst [vmem:[#allocation2 + $0x8] sm:$0xff] %v83
  %88 = vst [vmem:[#allocation2 + $0x10] sm:$0xff] %v84
  %89 = vst [vmem:[#allocation2 + $0x18] sm:$0xff] %v85
  // Predicated region
  $region18: #{generator_forward.9} parent=0 // pred_check
    %p90 = pneg %p15
  $region19: #{generator_forward.9} parent=0 // pred_check_branch
    %92 = sbr.rel (%p90) target = $region21
  $region20: #{generator_forward.9} parent=0 // pred_region
    %v93 = vld [vmem:[#allocation2] sm:$0xff]
    %v94 = vld [vmem:[#allocation2 + $0x8] sm:$0xff]
    %v95 = vld [vmem:[#allocation2 + $0x10] sm:$0xff]
    %v96 = vld [vmem:[#allocation2 + $0x18] sm:$0xff]
    %97 = vst [vmem:[%s2] sm:$0xff] %v93
    %98 = vst [vmem:[%s2 + $0x8] sm:$0xff] %v94
    %99 = vst [vmem:[%s2 + $0x10] sm:$0xff] %v95
    %100 = vst [vmem:[%s2 + $0x18] sm:$0xff] %v96
    %v101 = vld [vmem:[%s3] sm:$0x1]
    %v102 = vadd.f32 %v93, %v94
    %v103 = vadd.f32 %v102, %v95
    %v104 = vadd.f32 %v103, %v96
    %v105 = vrot.slane %v104, 4
    %v106 = vadd.f32 %v104, %v105
    %v107 = vrot.slane %v106, 2
    %v108 = vadd.f32 %v106, %v107
    %v109 = vrot.slane %v108, 1
    %v110 = vadd.f32 %v108, %v109
    %v111 = vadd.f32 %v101, %v110
    %112 = vst [vmem:[%s3] sm:$0x1] %v111
    %v113 = vld [vmem:[%s4] sm:$0x1]
    %v114 = vmul.f32 %v93, %v93
    %v115 = vmul.f32 %v94, %v94
    %v116 = vmul.f32 %v95, %v95
    %v117 = vmul.f32 %v96, %v96
    %v118 = vadd.f32 %v114, %v115
    %v119 = vadd.f32 %v118, %v116
    %v120 = vadd.f32 %v119, %v117
    %v121 = vrot.slane %v120, 4
    %v122 = vadd.f32 %v120, %v121
    %v123 = vrot.slane %v122, 2
    %v124 = vadd.f32 %v122, %v123
    %v125 = vrot.slane %v124, 1
    %v126 = vadd.f32 %v124, %v125
    %v127 = vadd.f32 %v113, %v126
    %128 = vst [vmem:[%s4] sm:$0x1] %v127
  $region21: #{generator_forward.9} parent=0 // pred_fallthru
    _
  // Predicated region
  $region22: #{generator_forward.9} parent=0 // pred_check
    _
  $region23: #{generator_forward.9} parent=0 // pred_check_branch
    %130 = sbr.rel (0) target = $region25
  $region24: #{generator_forward.9} parent=0 // pred_region
    _
  $region25: #{generator_forward.9} parent=0 // pred_fallthru
    _
  // Predicated region
  $region26: #{generator_forward.9} parent=0 // pred_check
    _
  $region27: #{generator_forward.9} parent=0 // pred_check_branch
    %132 = sbr.rel (0) target = $region29
  $region28: #{generator_forward.9} parent=0 // pred_region
    _
  $region29: #{generator_forward.9} parent=0 // pred_fallthru
    _
  // Predicated region
  $region30: #{generator_forward.9} parent=0 // pred_check
    _
  $region31: #{generator_forward.9} parent=0 // pred_check_branch
    %134 = sbr.rel (0) target = $region33
  $region32: #{generator_forward.9} parent=0 // pred_region
    _
  $region33: #{generator_forward.9} parent=0 // pred_fallthru
    _
  // Predicated region
  $region34: #{generator_forward.9} parent=0 // pred_check
    _
  $region35: #{generator_forward.9} parent=0 // pred_check_branch
    %136 = sbr.rel (0) target = $region37
  $region36: #{generator_forward.9} parent=0 // pred_region
    _
  $region37: #{generator_forward.9} parent=0 // pred_fallthru
    _
  // Predicated region
  $region38: #{generator_forward.9} parent=0 // pred_check
    _
  $region39: #{generator_forward.9} parent=0 // pred_check_branch
    %138 = sbr.rel (0) target = $region41
  $region40: #{generator_forward.9} parent=0 // pred_region
    _
  $region41: #{generator_forward.9} parent=0 // pred_fallthru
    _
  // Predicated region
  $region42: #{generator_forward.9} parent=0 // pred_check
    _
  $region43: #{generator_forward.9} parent=0 // pred_check_branch
    %140 = sbr.rel (0) target = $region45
  $region44: #{generator_forward.9} parent=0 // pred_region
    _
  $region45: #{generator_forward.9} parent=0 // pred_fallthru
    _

// kernel: generator_forward.12
$region0: #{generator_forward.12}
  #allocation0 [shape = 'u32[]', space=smem, size = 0x4, offset = 0x4, fixed_abs, tag = 'smem constant byte address 0x4 - core index']
  #allocation1 [shape = 'u32[72,128]{1,0:T(1,128)}', space=vmem, size = 0x9000, scoped, tag = 'internal scratch']
  %s0 = inlined_call_operand.vmem [shape: f32[128,128], index: 0, kind: input, shape index: {}]
  %s1 = inlined_call_operand.vmem [shape: f32[1,128], index: 1, kind: input, shape index: {}]
  %s2 = inlined_call_operand.vmem [shape: f32[1,128], index: 2, kind: input, shape index: {}]
  %s3 = inlined_call_operand.vmem [shape: f32[128,128], index: 3, kind: output, shape index: {}]
  %s4 = sld [smem:[#allocation0]]
  $region22: #{generator_forward.12} parent=0
    _
  %s6 = ssub.s32 1, %s4
  %s7 = scalar_select 0, %s6, %s4
  // Predicated region
  $region2: #{generator_forward.12} parent=0 // pred_check
    _
  $region3: #{generator_forward.12} parent=0 // pred_check_branch
    %9 = sbr.rel (0) target = $region5
  $region4: #{generator_forward.12} parent=0 // pred_region
    _
  $region5: #{generator_forward.12} parent=0 // pred_fallthru
    _
  // Predicated region
  $region6: #{generator_forward.12} parent=0 // pred_check
    _
  $region7: #{generator_forward.12} parent=0 // pred_check_branch
    %11 = sbr.rel (0) target = $region9
  $region8: #{generator_forward.12} parent=0 // pred_region
    _
  $region9: #{generator_forward.12} parent=0 // pred_fallthru
    _
  // Predicated region
  $region10: #{generator_forward.12} parent=0 // pred_check
    _
  $region11: #{generator_forward.12} parent=0 // pred_check_branch
    %13 = sbr.rel (0) target = $region13
  $region12: #{generator_forward.12} parent=0 // pred_region
    _
  $region13: #{generator_forward.12} parent=0 // pred_fallthru
    _
  %v14 = vld [vmem:[%s0] sm:$0xff]
  %v15 = vld [vmem:[%s0 + $0x8] sm:$0xff]
  %v16 = vld [vmem:[%s0 + $0x10] sm:$0xff]
  %v17 = vld [vmem:[%s0 + $0x18] sm:$0xff]
  %v18 = vld [vmem:[%s0 + $0x20] sm:$0xff]
  %v19 = vld [vmem:[%s0 + $0x28] sm:$0xff]
  %v20 = vld [vmem:[%s0 + $0x30] sm:$0xff]
  %v21 = vld [vmem:[%s0 + $0x38] sm:$0xff]
  %v22 = vld [vmem:[%s0 + $0x40] sm:$0xff]
  %v23 = vld [vmem:[%s0 + $0x48] sm:$0xff]
  %v24 = vld [vmem:[%s0 + $0x50] sm:$0xff]
  %v25 = vld [vmem:[%s0 + $0x58] sm:$0xff]
  %v26 = vld [vmem:[%s0 + $0x60] sm:$0xff]
  %v27 = vld [vmem:[%s0 + $0x68] sm:$0xff]
  %v28 = vld [vmem:[%s0 + $0x70] sm:$0xff]
  %v29 = vld [vmem:[%s0 + $0x78] sm:$0xff]
  %v30 = vld [vmem:[%s1] sm:$0x1]
  %v32 = vperm.slane %v30, 0
  %v34 = vmul.f32 %v14, %v32
  %v35 = vmul.f32 %v15, %v32
  %v36 = vmul.f32 %v16, %v32
  %v37 = vmul.f32 %v17, %v32
  %v38 = vmul.f32 %v18, %v32
  %v39 = vmul.f32 %v19, %v32
  %v40 = vmul.f32 %v20, %v32
  %v41 = vmul.f32 %v21, %v32
  %v42 = vmul.f32 %v22, %v32
  %v43 = vmul.f32 %v23, %v32
  %v44 = vmul.f32 %v24, %v32
  %v45 = vmul.f32 %v25, %v32
  %v46 = vmul.f32 %v26, %v32
  %v47 = vmul.f32 %v27, %v32
  %v48 = vmul.f32 %v28, %v32
  %v49 = vmul.f32 %v29, %v32
  %v50 = vld [vmem:[%s2] sm:$0x1]
  %v52 = vperm.slane %v50, 0
  %v54 = vadd.f32 %v34, %v52
  %v55 = vadd.f32 %v35, %v52
  %v56 = vadd.f32 %v36, %v52
  %v57 = vadd.f32 %v37, %v52
  %v58 = vadd.f32 %v38, %v52
  %v59 = vadd.f32 %v39, %v52
  %v60 = vadd.f32 %v40, %v52
  %v61 = vadd.f32 %v41, %v52
  %v62 = vadd.f32 %v42, %v52
  %v63 = vadd.f32 %v43, %v52
  %v64 = vadd.f32 %v44, %v52
  %v65 = vadd.f32 %v45, %v52
  %v66 = vadd.f32 %v46, %v52
  %v67 = vadd.f32 %v47, %v52
  %v68 = vadd.f32 %v48, %v52
  %v69 = vadd.f32 %v49, %v52
  %v70 = vmax.f32 %v54, 0.0
  %v71 = vmax.f32 %v55, 0.0
  %v72 = vmax.f32 %v56, 0.0
  %v73 = vmax.f32 %v57, 0.0
  %v74 = vmax.f32 %v58, 0.0
  %v75 = vmax.f32 %v59, 0.0
  %v76 = vmax.f32 %v60, 0.0
  %v77 = vmax.f32 %v61, 0.0
  %v78 = vmax.f32 %v62, 0.0
  %v79 = vmax.f32 %v63, 0.0
  %v80 = vmax.f32 %v64, 0.0
  %v81 = vmax.f32 %v65, 0.0
  %v82 = vmax.f32 %v66, 0.0
  %v83 = vmax.f32 %v67, 0.0
  %v84 = vmax.f32 %v68, 0.0
  %v85 = vmax.f32 %v69, 0.0
  %86 = vst [vmem:[%s3] sm:$0xff] %v70
  %87 = vst [vmem:[%s3 + $0x8] sm:$0xff] %v71
  %88 = vst [vmem:[%s3 + $0x10] sm:$0xff] %v72
  %89 = vst [vmem:[%s3 + $0x18] sm:$0xff] %v73
  %90 = vst [vmem:[%s3 + $0x20] sm:$0xff] %v74
  %91 = vst [vmem:[%s3 + $0x28] sm:$0xff] %v75
  %92 = vst [vmem:[%s3 + $0x30] sm:$0xff] %v76
  %93 = vst [vmem:[%s3 + $0x38] sm:$0xff] %v77
  %94 = vst [vmem:[%s3 + $0x40] sm:$0xff] %v78
  %95 = vst [vmem:[%s3 + $0x48] sm:$0xff] %v79
  %96 = vst [vmem:[%s3 + $0x50] sm:$0xff] %v80
  %97 = vst [vmem:[%s3 + $0x58] sm:$0xff] %v81
  %98 = vst [vmem:[%s3 + $0x60] sm:$0xff] %v82
  %99 = vst [vmem:[%s3 + $0x68] sm:$0xff] %v83
  %100 = vst [vmem:[%s3 + $0x70] sm:$0xff] %v84
  %101 = vst [vmem:[%s3 + $0x78] sm:$0xff] %v85
  // Predicated region
  $region14: #{generator_forward.12} parent=0 // pred_check
    _
  $region15: #{generator_forward.12} parent=0 // pred_check_branch
    %103 = sbr.rel (0) target = $region17
  $region16: #{generator_forward.12} parent=0 // pred_region
    _
  $region17: #{generator_forward.12} parent=0 // pred_fallthru
    _
  // Predicated region
  $region18: #{generator_forward.12} parent=0 // pred_check
    _
  $region19: #{generator_forward.12} parent=0 // pred_check_branch
    %105 = sbr.rel (0) target = $region21
  $region20: #{generator_forward.12} parent=0 // pred_region
    _
  $region21: #{generator_forward.12} parent=0 // pred_fallthru
    _

// kernel: generator_forward.11
$region0: #{generator_forward.11}
  #allocation0 [shape = 'u32[]', space=smem, size = 0x4, offset = 0x4, fixed_abs, tag = 'smem constant byte address 0x4 - core index']
  #allocation1 [shape = 'u32[72,128]{1,0:T(1,128)}', space=vmem, size = 0x9000, scoped, tag = 'internal scratch']
  #allocation2 [shape = 'f32[128,128]{1,0:T(8,128)}', space=vmem, size = 0x10000, scoped, tag = 'scratch operand']
  %s0 = inlined_call_operand.vmem [shape: f32[128,1024], index: 0, kind: input, shape index: {}]
  %s1 = inlined_call_operand.vmem [shape: f32[1024,128], index: 1, kind: input, shape index: {}]
  %s2 = inlined_call_operand.vmem [shape: f32[128,128], index: 2, kind: output, shape index: {0}]
  %s3 = inlined_call_operand.vmem [shape: f32[1,128], index: 3, kind: output, shape index: {1}]
  %s4 = inlined_call_operand.vmem [shape: f32[1,128], index: 4, kind: output, shape index: {2}]
  %5 = xla_tuple %s2, %s3, %s4
  %s6 = sld [smem:[#allocation0]]
  $region92: #{generator_forward.11} parent=0
    _
  %s8 = ssub.s32 1, %s6
  %s9 = scalar_select 0, %s8, %s6
  $region1: #{generator_forward.11} parent=0
    #allocation3 [shape = 'u8[524288]{0}', space=vmem, size = 0x80000, scoped, tag = 'input window, operand 0']
    loop: start=0, step=1, limit=4
    $region2: #{generator_forward.11} parent=1 // loop_pre_header
      _
    $region3: #{generator_forward.11} parent=1 // loop_header
      %s11 = sphi 0, %s15
      %p12 = scmp.ge.s32.totalorder %s11, 4
      %s18 = sphi 0, %s30
      %s19 = sphi 0, %s26
      %s20 = sphi 0, %s18
      %s21 = sphi 0, %s19
      %s22 = sphi 0, %s20
      %s23 = sphi 0, %s21
      %s35 = sphi 0, %s37
      %s38 = sphi 0, %s35
      %s39 = sphi 0, %s38
      %s55 = sphi 0, %s39
      %s61 = sphi 0, %s63
      %s64 = sphi 0, %s61
      %s65 = sphi 0, %s64
      %s81 = sphi 0, %s65
      %s87 = sphi 0, %s89
      %s90 = sphi 0, %s87
      %s91 = sphi 0, %s90
      %s107 = sphi 0, %s91
      %s111 = sphi 0, %s111
      %s113 = sphi 0, %s111
      %s114 = sphi 0, %s113
      %s128 = sphi 0, %s114
      %s132 = sphi 0, %s132
      %s134 = sphi 0, %s132
      %s135 = sphi 0, %s134
      %s149 = sphi 0, %s135
    $region4: #{generator_forward.11} parent=1 // loop_header_branch
      %14 = sbr.rel (%p12) target = $region8
    $region5: #{generator_forward.11} parent=1 // loop_body
      %s16 = ssub.s32 %s11, 1
      %s17 = ssub.s32 %s11, 2
      %s24 = sadd.s32 1, %s19
      %p25 = scmp.ge.s32.totalorder %s24, 2
      %s26 = scalar_select %p25, 0, %s24
      %s27 = sadd.s32 1, %s18
      %s28 = scalar_select %p25, %s27, %s18
      %p29 = scmp.ge.s32.totalorder %s28, 1
      %s30 = scalar_select %p29, 0, %s28
      %s31 = ssub.s32 %s18, %s30
      %s32 = ssub.s32 %s19, %s26
      %s33 = sor.u32 %s31, %s32
      %p34 = scmp.eq.s32.totalorder %s33, 0
      %s36 = sadd.s32 %s35, 1
      %s37 = scalar_select %p34, %s35, %s36
      %p40 = pneg %p34
      %p41 = scmp.eq.s32.totalorder %s11, 1
      %p42 = por %p40, %p41
      %p43 = scmp.ne.s32.totalorder %s35, %s38
      %p44 = scmp.eq.s32.totalorder %s11, 0
      %p45 = por %p43, %p44
      %p46 = scmp.ne.s32.totalorder %s35, %s38
      %p47 = scmp.eq.s32.totalorder %s16, 1
      %p48 = por %p46, %p47
      %p49 = scmp.ne.s32.totalorder %s38, %s39
      %p50 = scmp.eq.s32.totalorder %s16, 0
      %p51 = por %p49, %p50
      %p52 = scmp.ne.s32.totalorder %s38, %s39
      %p53 = scmp.eq.s32.totalorder %s17, 1
      %p54 = por %p52, %p53
      %p56 = scmp.ne.s32.totalorder %s39, %s55
      %p57 = scmp.eq.s32.totalorder %s17, 0
      %p58 = por %p56, %p57
      %s59 = ssub.s32 %s19, %s26
      %p60 = scmp.eq.s32.totalorder %s59, 0
      %s62 = sadd.s32 %s61, 1
      %s63 = scalar_select %p60, %s61, %s62
      %p66 = pneg %p60
      %p67 = scmp.eq.s32.totalorder %s11, 1
      %p68 = por %p66, %p67
      %p69 = scmp.ne.s32.totalorder %s61, %s64
      %p70 = scmp.eq.s32.totalorder %s11, 0
      %p71 = por %p69, %p70
      %p72 = scmp.ne.s32.totalorder %s61, %s64
      %p73 = scmp.eq.s32.totalorder %s16, 1
      %p74 = por %p72, %p73
      %p75 = scmp.ne.s32.totalorder %s64, %s65
      %p76 = scmp.eq.s32.totalorder %s16, 0
      %p77 = por %p75, %p76
      %p78 = scmp.ne.s32.totalorder %s64, %s65
      %p79 = scmp.eq.s32.totalorder %s17, 1
      %p80 = por %p78, %p79
      %p82 = scmp.ne.s32.totalorder %s65, %s81
      %p83 = scmp.eq.s32.totalorder %s17, 0
      %p84 = por %p82, %p83
      %s85 = ssub.s32 %s18, %s30
      %p86 = scmp.eq.s32.totalorder %s85, 0
      %s88 = sadd.s32 %s87, 1
      %s89 = scalar_select %p86, %s87, %s88
      %p92 = pneg %p86
      %p93 = scmp.eq.s32.totalorder %s11, 1
      %p94 = por %p92, %p93
      %p95 = scmp.ne.s32.totalorder %s87, %s90
      %p96 = scmp.eq.s32.totalorder %s11, 0
      %p97 = por %p95, %p96
      %p98 = scmp.ne.s32.totalorder %s87, %s90
      %p99 = scmp.eq.s32.totalorder %s16, 1
      %p100 = por %p98, %p99
      %p101 = scmp.ne.s32.totalorder %s90, %s91
      %p102 = scmp.eq.s32.totalorder %s16, 0
      %p103 = por %p101, %p102
      %p104 = scmp.ne.s32.totalorder %s90, %s91
      %p105 = scmp.eq.s32.totalorder %s17, 1
      %p106 = por %p104, %p105
      %p108 = scmp.ne.s32.totalorder %s91, %s107
      %p109 = scmp.eq.s32.totalorder %s17, 0
      %p110 = por %p108, %p109
      %s112 = sadd.s32 %s111, 1
      %p115 = scmp.eq.s32.totalorder %s11, 1
      %p116 = scmp.ne.s32.totalorder %s111, %s113
      %p117 = scmp.eq.s32.totalorder %s11, 0
      %p118 = por %p116, %p117
      %p119 = scmp.ne.s32.totalorder %s111, %s113
      %p120 = scmp.eq.s32.totalorder %s16, 1
      %p121 = por %p119, %p120
      %p122 = scmp.ne.s32.totalorder %s113, %s114
      %p123 = scmp.eq.s32.totalorder %s16, 0
      %p124 = por %p122, %p123
      %p125 = scmp.ne.s32.totalorder %s113, %s114
      %p126 = scmp.eq.s32.totalorder %s17, 1
      %p127 = por %p125, %p126
      %p129 = scmp.ne.s32.totalorder %s114, %s128
      %p130 = scmp.eq.s32.totalorder %s17, 0
      %p131 = por %p129, %p130
      %s133 = sadd.s32 %s132, 1
      %p136 = scmp.eq.s32.totalorder %s11, 1
      %p137 = scmp.ne.s32.totalorder %s132, %s134
      %p138 = scmp.eq.s32.totalorder %s11, 0
      %p139 = por %p137, %p138
      %p140 = scmp.ne.s32.totalorder %s132, %s134
      %p141 = scmp.eq.s32.totalorder %s16, 1
      %p142 = por %p140, %p141
      %p143 = scmp.ne.s32.totalorder %s134, %s135
      %p144 = scmp.eq.s32.totalorder %s16, 0
      %p145 = por %p143, %p144
      %p146 = scmp.ne.s32.totalorder %s134, %s135
      %p147 = scmp.eq.s32.totalorder %s17, 1
      %p148 = por %p146, %p147
      %p150 = scmp.ne.s32.totalorder %s135, %s149
      %p151 = scmp.eq.s32.totalorder %s17, 0
      %p152 = por %p150, %p151
      %p153 = scmp.le.s32.totalorder 1, %s11
      %p154 = scmp.lt.s32.totalorder %s11, 3
      %p155 = pnand %p153, %p154
      %p156 = pneg %p155
      // Predicated region
      $region9: #{generator_forward.11} parent=5 // pred_check
        _
      $region10: #{generator_forward.11} parent=5 // pred_check_branch
        %158 = sbr.rel (%p155) target = $region12
      $region11: #{generator_forward.11} parent=5 // pred_region
        %s159 = ssub.s32 %s11, 1
      $region12: #{generator_forward.11} parent=5 // pred_fallthru
        _
      %p160 = scmp.lt.s32.totalorder %s11, 2
      // Predicated region
      $region13: #{generator_forward.11} parent=5 // pred_check
        %p161 = pneg %p160
      $region14: #{generator_forward.11} parent=5 // pred_check_branch
        %163 = sbr.rel (%p161) target = $region16
      $region15: #{generator_forward.11} parent=5 // pred_region
        // Predicated region
        $region17: #{generator_forward.11} parent=15 // pred_check
          %p164 = pneg %p45
        $region18: #{generator_forward.11} parent=15 // pred_check_branch
          %166 = sbr.rel (%p164) target = $region20
        $region19: #{generator_forward.11} parent=15 // pred_region
          %s167 = sand.u32 %s35, 1
          %s168 = sand.u32 %s35, 1
          %s169 = smul.addr %s168, 512
          %s170 = scalar_lea.vmem [#allocation3], %s169
          %s171 = smul.u32 16, %s18
          %s172 = smul.u32 4, %s19
          %s173 = smul.addr %s171, 8
          %s174 = sadd.s32 %s172, %s173
          %s175 = smul.addr %s174, 8
          %s176 = scalar_lea.vmem %s0, %s175
          // Predicated region
          $region21: #{generator_forward.11} parent=19 // pred_check
            _
          $region22: #{generator_forward.11} parent=19 // pred_check_branch
            %178 = sbr.rel (0) target = $region24
          $region23: #{generator_forward.11} parent=19 // pred_region
            // Predicated region
            $region25: #{generator_forward.11} parent=23 // pred_check
              _
            $region26: #{generator_forward.11} parent=23 // pred_check_branch
              %180 = sbr.rel (0) target = $region28
            $region27: #{generator_forward.11} parent=23 // pred_region
              loop: start=0, step=1, limit=1
              $region29: #{generator_forward.11} parent=27 // loop_pre_header
                _
              $region30: #{generator_forward.11} parent=27 // loop_header
                %s182 = sphi 0, %s186
                %p183 = scmp.ge.s32.totalorder %s182, 1
                %s187 = sphi %s176, %s176
                %s188 = sphi %s170, %s170
              $region31: #{generator_forward.11} parent=27 // loop_header_branch
                %185 = sbr.rel (%p183) target = $region35
              $region32: #{generator_forward.11} parent=27 // loop_body
                %v189 = vld [vmem:[%s187] sm:$0xff]
                %190 = vst [vmem:[%s188] sm:$0xff] %v189
                %v191 = vld [vmem:[%s187 + $0x8] sm:$0xff]
                %192 = vst [vmem:[%s188 + $0x8] sm:$0xff] %v191
                %v193 = vld [vmem:[%s187 + $0x10] sm:$0xff]
                %194 = vst [vmem:[%s188 + $0x10] sm:$0xff] %v193
                %v195 = vld [vmem:[%s187 + $0x18] sm:$0xff]
                %196 = vst [vmem:[%s188 + $0x18] sm:$0xff] %v195
                %v197 = vld [vmem:[%s187 + $0x40] sm:$0xff]
                %198 = vst [vmem:[%s188 + $0x20] sm:$0xff] %v197
                %v199 = vld [vmem:[%s187 + $0x48] sm:$0xff]
                %200 = vst [vmem:[%s188 + $0x28] sm:$0xff] %v199
                %v201 = vld [vmem:[%s187 + $0x50] sm:$0xff]
                %202 = vst [vmem:[%s188 + $0x30] sm:$0xff] %v201
                %v203 = vld [vmem:[%s187 + $0x58] sm:$0xff]
                %204 = vst [vmem:[%s188 + $0x38] sm:$0xff] %v203
                %v205 = vld [vmem:[%s187 + $0x80] sm:$0xff]
                %206 = vst [vmem:[%s188 + $0x40] sm:$0xff] %v205
                %v207 = vld [vmem:[%s187 + $0x88] sm:$0xff]
                %208 = vst [vmem:[%s188 + $0x48] sm:$0xff] %v207
                %v209 = vld [vmem:[%s187 + $0x90] sm:$0xff]
                %210 = vst [vmem:[%s188 + $0x50] sm:$0xff] %v209
                %v211 = vld [vmem:[%s187 + $0x98] sm:$0xff]
                %212 = vst [vmem:[%s188 + $0x58] sm:$0xff] %v211
                %v213 = vld [vmem:[%s187 + $0xc0] sm:$0xff]
                %214 = vst [vmem:[%s188 + $0x60] sm:$0xff] %v213
                %v215 = vld [vmem:[%s187 + $0xc8] sm:$0xff]
                %216 = vst [vmem:[%s188 + $0x68] sm:$0xff] %v215
                %v217 = vld [vmem:[%s187 + $0xd0] sm:$0xff]
                %218 = vst [vmem:[%s188 + $0x70] sm:$0xff] %v217
                %v219 = vld [vmem:[%s187 + $0xd8] sm:$0xff]
                %220 = vst [vmem:[%s188 + $0x78] sm:$0xff] %v219
                %v221 = vld [vmem:[%s187 + $0x100] sm:$0xff]
                %222 = vst [vmem:[%s188 + $0x80] sm:$0xff] %v221
                %v223 = vld [vmem:[%s187 + $0x108] sm:$0xff]
                %224 = vst [vmem:[%s188 + $0x88] sm:$0xff] %v223
                %v225 = vld [vmem:[%s187 + $0x110] sm:$0xff]
                %226 = vst [vmem:[%s188 + $0x90] sm:$0xff] %v225
                %v227 = vld [vmem:[%s187 + $0x118] sm:$0xff]
                %228 = vst [vmem:[%s188 + $0x98] sm:$0xff] %v227
                %v229 = vld [vmem:[%s187 + $0x140] sm:$0xff]
                %230 = vst [vmem:[%s188 + $0xa0] sm:$0xff] %v229
                %v231 = vld [vmem:[%s187 + $0x148] sm:$0xff]
                %232 = vst [vmem:[%s188 + $0xa8] sm:$0xff] %v231
                %v233 = vld [vmem:[%s187 + $0x150] sm:$0xff]
                %234 = vst [vmem:[%s188 + $0xb0] sm:$0xff] %v233
                %v235 = vld [vmem:[%s187 + $0x158] sm:$0xff]
                %236 = vst [vmem:[%s188 + $0xb8] sm:$0xff] %v235
                %v237 = vld [vmem:[%s187 + $0x180] sm:$0xff]
                %238 = vst [vmem:[%s188 + $0xc0] sm:$0xff] %v237
                %v239 = vld [vmem:[%s187 + $0x188] sm:$0xff]
                %240 = vst [vmem:[%s188 + $0xc8] sm:$0xff] %v239
                %v241 = vld [vmem:[%s187 + $0x190] sm:$0xff]
                %242 = vst [vmem:[%s188 + $0xd0] sm:$0xff] %v241
                %v243 = vld [vmem:[%s187 + $0x198] sm:$0xff]
                %244 = vst [vmem:[%s188 + $0xd8] sm:$0xff] %v243
                %v245 = vld [vmem:[%s187 + $0x1c0] sm:$0xff]
                %246 = vst [vmem:[%s188 + $0xe0] sm:$0xff] %v245
                %v247 = vld [vmem:[%s187 + $0x1c8] sm:$0xff]
                %248 = vst [vmem:[%s188 + $0xe8] sm:$0xff] %v247
                %v249 = vld [vmem:[%s187 + $0x1d0] sm:$0xff]
                %250 = vst [vmem:[%s188 + $0xf0] sm:$0xff] %v249
                %v251 = vld [vmem:[%s187 + $0x1d8] sm:$0xff]
                %252 = vst [vmem:[%s188 + $0xf8] sm:$0xff] %v251
                %v253 = vld [vmem:[%s187 + $0x200] sm:$0xff]
                %254 = vst [vmem:[%s188 + $0x100] sm:$0xff] %v253
                %v255 = vld [vmem:[%s187 + $0x208] sm:$0xff]
                %256 = vst [vmem:[%s188 + $0x108] sm:$0xff] %v255
                %v257 = vld [vmem:[%s187 + $0x210] sm:$0xff]
                %258 = vst [vmem:[%s188 + $0x110] sm:$0xff] %v257
                %v259 = vld [vmem:[%s187 + $0x218] sm:$0xff]
                %260 = vst [vmem:[%s188 + $0x118] sm:$0xff] %v259
                %v261 = vld [vmem:[%s187 + $0x240] sm:$0xff]
                %262 = vst [vmem:[%s188 + $0x120] sm:$0xff] %v261
                %v263 = vld [vmem:[%s187 + $0x248] sm:$0xff]
                %264 = vst [vmem:[%s188 + $0x128] sm:$0xff] %v263
                %v265 = vld [vmem:[%s187 + $0x250] sm:$0xff]
                %266 = vst [vmem:[%s188 + $0x130] sm:$0xff] %v265
                %v267 = vld [vmem:[%s187 + $0x258] sm:$0xff]
                %268 = vst [vmem:[%s188 + $0x138] sm:$0xff] %v267
                %v269 = vld [vmem:[%s187 + $0x280] sm:$0xff]
                %270 = vst [vmem:[%s188 + $0x140] sm:$0xff] %v269
                %v271 = vld [vmem:[%s187 + $0x288] sm:$0xff]
                %272 = vst [vmem:[%s188 + $0x148] sm:$0xff] %v271
                %v273 = vld [vmem:[%s187 + $0x290] sm:$0xff]
                %274 = vst [vmem:[%s188 + $0x150] sm:$0xff] %v273
                %v275 = vld [vmem:[%s187 + $0x298] sm:$0xff]
                %276 = vst [vmem:[%s188 + $0x158] sm:$0xff] %v275
                %v277 = vld [vmem:[%s187 + $0x2c0] sm:$0xff]
                %278 = vst [vmem:[%s188 + $0x160] sm:$0xff] %v277
                %v279 = vld [vmem:[%s187 + $0x2c8] sm:$0xff]
                %280 = vst [vmem:[%s188 + $0x168] sm:$0xff] %v279
                %v281 = vld [vmem:[%s187 + $0x2d0] sm:$0xff]
                %282 = vst [vmem:[%s188 + $0x170] sm:$0xff] %v281
                %v283 = vld [vmem:[%s187 + $0x2d8] sm:$0xff]
                %284 = vst [vmem:[%s188 + $0x178] sm:$0xff] %v283
                %v285 = vld [vmem:[%s187 + $0x300] sm:$0xff]
                %286 = vst [vmem:[%s188 + $0x180] sm:$0xff] %v285
                %v287 = vld [vmem:[%s187 + $0x308] sm:$0xff]
                %288 = vst [vmem:[%s188 + $0x188] sm:$0xff] %v287
                %v289 = vld [vmem:[%s187 + $0x310] sm:$0xff]
                %290 = vst [vmem:[%s188 + $0x190] sm:$0xff] %v289
                %v291 = vld [vmem:[%s187 + $0x318] sm:$0xff]
                %292 = vst [vmem:[%s188 + $0x198] sm:$0xff] %v291
                %v293 = vld [vmem:[%s187 + $0x340] sm:$0xff]
                %294 = vst [vmem:[%s188 + $0x1a0] sm:$0xff] %v293
                %v295 = vld [vmem:[%s187 + $0x348] sm:$0xff]
                %296 = vst [vmem:[%s188 + $0x1a8] sm:$0xff] %v295
                %v297 = vld [vmem:[%s187 + $0x350] sm:$0xff]
                %298 = vst [vmem:[%s188 + $0x1b0] sm:$0xff] %v297
                %v299 = vld [vmem:[%s187 + $0x358] sm:$0xff]
                %300 = vst [vmem:[%s188 + $0x1b8] sm:$0xff] %v299
                %v301 = vld [vmem:[%s187 + $0x380] sm:$0xff]
                %302 = vst [vmem:[%s188 + $0x1c0] sm:$0xff] %v301
                %v303 = vld [vmem:[%s187 + $0x388] sm:$0xff]
                %304 = vst [vmem:[%s188 + $0x1c8] sm:$0xff] %v303
                %v305 = vld [vmem:[%s187 + $0x390] sm:$0xff]
                %306 = vst [vmem:[%s188 + $0x1d0] sm:$0xff] %v305
                %v307 = vld [vmem:[%s187 + $0x398] sm:$0xff]
                %308 = vst [vmem:[%s188 + $0x1d8] sm:$0xff] %v307
                %v309 = vld [vmem:[%s187 + $0x3c0] sm:$0xff]
                %310 = vst [vmem:[%s188 + $0x1e0] sm:$0xff] %v309
                %v311 = vld [vmem:[%s187 + $0x3c8] sm:$0xff]
                %312 = vst [vmem:[%s188 + $0x1e8] sm:$0xff] %v311
                %v313 = vld [vmem:[%s187 + $0x3d0] sm:$0xff]
                %314 = vst [vmem:[%s188 + $0x1f0] sm:$0xff] %v313
                %v315 = vld [vmem:[%s187 + $0x3d8] sm:$0xff]
                %316 = vst [vmem:[%s188 + $0x1f8] sm:$0xff] %v315
              $region33: #{generator_forward.11} parent=27 // loop_footer
                %s186 = sadd.s32 1, %s182
              $region34: #{generator_forward.11} parent=27 // loop_footer_branch
                %181 = sbr.rel target = $region30
              $region35: #{generator_forward.11} parent=27 // loop_exit
                _
            $region28: #{generator_forward.11} parent=23 // pred_fallthru
              _
            // Predicated region
            $region36: #{generator_forward.11} parent=23 // pred_check
              _
            $region37: #{generator_forward.11} parent=23 // pred_check_branch
              %318 = sbr.rel target = $region39
            $region38: #{generator_forward.11} parent=23 // pred_region
              _
            $region39: #{generator_forward.11} parent=23 // pred_fallthru
              _
          $region24: #{generator_forward.11} parent=19 // pred_fallthru
            _
          %319 = vnop
        $region20: #{generator_forward.11} parent=15 // pred_fallthru
          _
        // Predicated region
        $region40: #{generator_forward.11} parent=15 // pred_check
          %p320 = pneg %p71
        $region41: #{generator_forward.11} parent=15 // pred_check_branch
          %322 = sbr.rel (%p320) target = $region43
        $region42: #{generator_forward.11} parent=15 // pred_region
          %s323 = smul.u32 64, %s19
          %p324 = scmp.lt.s32.totalorder %s323, 127
          %s325 = scalar_select %p324, %s323, 127
          %s326 = smul.addr %s325, 8
          %s327 = scalar_lea.vmem %s1, %s326
          %s328 = smul.u32 64, %s19
        $region43: #{generator_forward.11} parent=15 // pred_fallthru
          _
      $region16: #{generator_forward.11} parent=5 // pred_fallthru
        _
      %p329 = scmp.le.s32.totalorder 1, %s11
      %p330 = scmp.lt.s32.totalorder %s11, 3
      %p331 = pnand %p329, %p330
      %p332 = pneg %p331
      // Predicated region
      $region44: #{generator_forward.11} parent=5 // pred_check
        _
      $region45: #{generator_forward.11} parent=5 // pred_check_branch
        %334 = sbr.rel (%p331) target = $region47
      $region46: #{generator_forward.11} parent=5 // pred_region
        %s335 = ssub.s32 %s11, 1
        %s336 = sand.u32 %s38, 1
        %s337 = sand.u32 %s38, 1
        %s338 = smul.addr %s337, 512
        %s339 = scalar_lea.vmem [#allocation3], %s338
        // Predicated region
        $region48: #{generator_forward.11} parent=46 // pred_check
          %p340 = pneg %p51
        $region49: #{generator_forward.11} parent=46 // pred_check_branch
          %342 = sbr.rel (%p340) target = $region51
        $region50: #{generator_forward.11} parent=46 // pred_region
          _
        $region51: #{generator_forward.11} parent=46 // pred_fallthru
          _
        %s343 = sand.u32 %s38, 1
        %s344 = sand.u32 %s38, 1
        %s345 = smul.addr %s344, 512
        %s346 = scalar_lea.vmem [#allocation3], %s345
        %p347 = pneg %p51
        %p348 = pneg %p48
        %s349 = smul.u32 64, %s21
        %p350 = scmp.lt.s32.totalorder %s349, 127
        %s351 = scalar_select %p350, %s349, 127
        %s352 = smul.addr %s351, 8
        %s353 = scalar_lea.vmem %s1, %s352
        %p354 = pneg %p77
        %p355 = pneg %p74
        %p356 = pneg %p103
        %p357 = pneg %p100
        %s358 = smul.u32 16, %s20
        %p359 = scmp.lt.s32.totalorder %s358, 15
        %s360 = scalar_select %p359, %s358, 15
        %s361 = smul.addr %s360, 8
        %s362 = scalar_lea.vmem %s2, %s361
        %p363 = pneg %p124
        %p364 = pneg %p121
        %p365 = pneg %p145
        %p366 = pneg %p142
        %s367 = smul.u32 16, %s20
        %s368 = smul.u32 4, %s21
        %s369 = smul.u32 64, %s21
        %p370 = scmp.lt.s32.totalorder %s369, 127
        %s371 = scalar_select %p370, %s369, 127
        %s372 = smul.addr %s371, 8
        %s373 = scalar_lea.vmem %s1, %s372
        %s374 = smul.u32 64, %s21
        %s375 = smul.u32 16, %s20
        %p376 = scmp.lt.s32.totalorder %s375, 15
        %s377 = scalar_select %p376, %s375, 15
        %s378 = smul.addr %s377, 8
        %s379 = scalar_lea.vmem %s2, %s378
        %s380 = smul.u32 16, %s20
        %p381 = scmp.eq.s32.totalorder %s20, 0
        %p382 = scmp.eq.s32.totalorder %s21, 0
        %p383 = pnand %p381, %p382
        %p384 = pneg %p383
        // Predicated region
        $region52: #{generator_forward.11} parent=46 // pred_check
          _
        $region53: #{generator_forward.11} parent=46 // pred_check_branch
          %386 = sbr.rel (%p383) target = $region55
        $region54: #{generator_forward.11} parent=46 // pred_region
          %387 = vst [vmem:[%s3] sm:$0x1] 0.0
          %388 = vst [vmem:[%s4] sm:$0x1] 0.0
        $region55: #{generator_forward.11} parent=46 // pred_fallthru
          _
        // Predicated region
        $region56: #{generator_forward.11} parent=46 // pred_check
          %p389 = pneg %p382
        $region57: #{generator_forward.11} parent=46 // pred_check_branch
          %391 = sbr.rel (%p389) target = $region59
        $region58: #{generator_forward.11} parent=46 // pred_region
          %392 = vst [vmem:[#allocation2] sm:$0xff] 0.0
          %393 = vst [vmem:[#allocation2 + $0x8] sm:$0xff] 0.0
          %394 = vst [vmem:[#allocation2 + $0x10] sm:$0xff] 0.0
          %395 = vst [vmem:[#allocation2 + $0x18] sm:$0xff] 0.0
          %396 = vst [vmem:[#allocation2 + $0x20] sm:$0xff] 0.0
          %397 = vst [vmem:[#allocation2 + $0x28] sm:$0xff] 0.0
          %398 = vst [vmem:[#allocation2 + $0x30] sm:$0xff] 0.0
          %399 = vst [vmem:[#allocation2 + $0x38] sm:$0xff] 0.0
          %400 = vst [vmem:[#allocation2 + $0x40] sm:$0xff] 0.0
          %401 = vst [vmem:[#allocation2 + $0x48] sm:$0xff] 0.0
          %402 = vst [vmem:[#allocation2 + $0x50] sm:$0xff] 0.0
          %403 = vst [vmem:[#allocation2 + $0x58] sm:$0xff] 0.0
          %404 = vst [vmem:[#allocation2 + $0x60] sm:$0xff] 0.0
          %405 = vst [vmem:[#allocation2 + $0x68] sm:$0xff] 0.0
          %406 = vst [vmem:[#allocation2 + $0x70] sm:$0xff] 0.0
          %407 = vst [vmem:[#allocation2 + $0x78] sm:$0xff] 0.0
        $region59: #{generator_forward.11} parent=46 // pred_fallthru
          _
        %v408 = vld [vmem:[#allocation2] sm:$0xff]
        %v409 = vld [vmem:[#allocation2 + $0x8] sm:$0xff]
        %v410 = vld [vmem:[#allocation2 + $0x10] sm:$0xff]
        %v411 = vld [vmem:[#allocation2 + $0x18] sm:$0xff]
        %v412 = vld [vmem:[#allocation2 + $0x20] sm:$0xff]
        %v413 = vld [vmem:[#allocation2 + $0x28] sm:$0xff]
        %v414 = vld [vmem:[#allocation2 + $0x30] sm:$0xff]
        %v415 = vld [vmem:[#allocation2 + $0x38] sm:$0xff]
        %v416 = vld [vmem:[#allocation2 + $0x40] sm:$0xff]
        %v417 = vld [vmem:[#allocation2 + $0x48] sm:$0xff]
        %v418 = vld [vmem:[#allocation2 + $0x50] sm:$0xff]
        %v419 = vld [vmem:[#allocation2 + $0x58] sm:$0xff]
        %v420 = vld [vmem:[#allocation2 + $0x60] sm:$0xff]
        %v421 = vld [vmem:[#allocation2 + $0x68] sm:$0xff]
        %v422 = vld [vmem:[#allocation2 + $0x70] sm:$0xff]
        %v423 = vld [vmem:[#allocation2 + $0x78] sm:$0xff]
        %v424 = vld [vmem:[%s339] sm:$0xff]
        %v425 = vld [vmem:[%s339 + $0x8] sm:$0xff]
        %v426 = vld [vmem:[%s339 + $0x10] sm:$0xff]
        %v427 = vld [vmem:[%s339 + $0x18] sm:$0xff]
        %v428 = vld [vmem:[%s339 + $0x20] sm:$0xff]
        %v429 = vld [vmem:[%s339 + $0x28] sm:$0xff]
        %v430 = vld [vmem:[%s339 + $0x30] sm:$0xff]
        %v431 = vld [vmem:[%s339 + $0x38] sm:$0xff]
        %v432 = vld [vmem:[%s339 + $0x40] sm:$0xff]
        %v433 = vld [vmem:[%s339 + $0x48] sm:$0xff]
        %v434 = vld [vmem:[%s339 + $0x50] sm:$0xff]
        %v435 = vld [vmem:[%s339 + $0x58] sm:$0xff]
        %v436 = vld [vmem:[%s339 + $0x60] sm:$0xff]
        %v437 = vld [vmem:[%s339 + $0x68] sm:$0xff]
        %v438 = vld [vmem:[%s339 + $0x70] sm:$0xff]
        %v439 = vld [vmem:[%s339 + $0x78] sm:$0xff]
        %v440 = vld [vmem:[%s339 + $0x80] sm:$0xff]
        %v441 = vld [vmem:[%s339 + $0x88] sm:$0xff]
        %v442 = vld [vmem:[%s339 + $0x90] sm:$0xff]
        %v443 = vld [vmem:[%s339 + $0x98] sm:$0xff]
        %v444 = vld [vmem:[%s339 + $0xa0] sm:$0xff]
        %v445 = vld [vmem:[%s339 + $0xa8] sm:$0xff]
        %v446 = vld [vmem:[%s339 + $0xb0] sm:$0xff]
        %v447 = vld [vmem:[%s339 + $0xb8] sm:$0xff]
        %v448 = vld [vmem:[%s339 + $0xc0] sm:$0xff]
        %v449 = vld [vmem:[%s339 + $0xc8] sm:$0xff]
        %v450 = vld [vmem:[%s339 + $0xd0] sm:$0xff]
        %v451 = vld [vmem:[%s339 + $0xd8] sm:$0xff]
        %v452 = vld [vmem:[%s339 + $0xe0] sm:$0xff]
        %v453 = vld [vmem:[%s339 + $0xe8] sm:$0xff]
        %v454 = vld [vmem:[%s339 + $0xf0] sm:$0xff]
        %v455 = vld [vmem:[%s339 + $0xf8] sm:$0xff]
        %v456 = vld [vmem:[%s339 + $0x100] sm:$0xff]
        %v457 = vld [vmem:[%s339 + $0x108] sm:$0xff]
        %v458 = vld [vmem:[%s339 + $0x110] sm:$0xff]
        %v459 = vld [vmem:[%s339 + $0x118] sm:$0xff]
        %v460 = vld [vmem:[%s339 + $0x120] sm:$0xff]
        %v461 = vld [vmem:[%s339 + $0x128] sm:$0xff]
        %v462 = vld [vmem:[%s339 + $0x130] sm:$0xff]
        %v463 = vld [vmem:[%s339 + $0x138] sm:$0xff]
        %v464 = vld [vmem:[%s339 + $0x140] sm:$0xff]
        %v465 = vld [vmem:[%s339 + $0x148] sm:$0xff]
        %v466 = vld [vmem:[%s339 + $0x150] sm:$0xff]
        %v467 = vld [vmem:[%s339 + $0x158] sm:$0xff]
        %v468 = vld [vmem:[%s339 + $0x160] sm:$0xff]
        %v469 = vld [vmem:[%s339 + $0x168] sm:$0xff]
        %v470 = vld [vmem:[%s339 + $0x170] sm:$0xff]
        %v471 = vld [vmem:[%s339 + $0x178] sm:$0xff]
        %v472 = vld [vmem:[%s339 + $0x180] sm:$0xff]
        %v473 = vld [vmem:[%s339 + $0x188] sm:$0xff]
        %v474 = vld [vmem:[%s339 + $0x190] sm:$0xff]
        %v475 = vld [vmem:[%s339 + $0x198] sm:$0xff]
        %v476 = vld [vmem:[%s339 + $0x1a0] sm:$0xff]
        %v477 = vld [vmem:[%s339 + $0x1a8] sm:$0xff]
        %v478 = vld [vmem:[%s339 + $0x1b0] sm:$0xff]
        %v479 = vld [vmem:[%s339 + $0x1b8] sm:$0xff]
        %v480 = vld [vmem:[%s339 + $0x1c0] sm:$0xff]
        %v481 = vld [vmem:[%s339 + $0x1c8] sm:$0xff]
        %v482 = vld [vmem:[%s339 + $0x1d0] sm:$0xff]
        %v483 = vld [vmem:[%s339 + $0x1d8] sm:$0xff]
        %v484 = vld [vmem:[%s339 + $0x1e0] sm:$0xff]
        %v485 = vld [vmem:[%s339 + $0x1e8] sm:$0xff]
        %v486 = vld [vmem:[%s339 + $0x1f0] sm:$0xff]
        %v487 = vld [vmem:[%s339 + $0x1f8] sm:$0xff]
        %v488 = vld [vmem:[%s373] sm:$0xff]
        %v489 = vld [vmem:[%s373 + $0x8] sm:$0xff]
        %v490 = vld [vmem:[%s373 + $0x10] sm:$0xff]
        %v491 = vld [vmem:[%s373 + $0x18] sm:$0xff]
        %v492 = vld [vmem:[%s373 + $0x20] sm:$0xff]
        %v493 = vld [vmem:[%s373 + $0x28] sm:$0xff]
        %v494 = vld [vmem:[%s373 + $0x30] sm:$0xff]
        %v495 = vld [vmem:[%s373 + $0x38] sm:$0xff]
        %v496 = vld [vmem:[%s373 + $0x40] sm:$0xff]
        %v497 = vld [vmem:[%s373 + $0x48] sm:$0xff]
        %v498 = vld [vmem:[%s373 + $0x50] sm:$0xff]
        %v499 = vld [vmem:[%s373 + $0x58] sm:$0xff]
        %v500 = vld [vmem:[%s373 + $0x60] sm:$0xff]
        %v501 = vld [vmem:[%s373 + $0x68] sm:$0xff]
        %v502 = vld [vmem:[%s373 + $0x70] sm:$0xff]
        %v503 = vld [vmem:[%s373 + $0x78] sm:$0xff]
        %v504 = vld [vmem:[%s373 + $0x80] sm:$0xff]
        %v505 = vld [vmem:[%s373 + $0x88] sm:$0xff]
        %v506 = vld [vmem:[%s373 + $0x90] sm:$0xff]
        %v507 = vld [vmem:[%s373 + $0x98] sm:$0xff]
        %v508 = vld [vmem:[%s373 + $0xa0] sm:$0xff]
        %v509 = vld [vmem:[%s373 + $0xa8] sm:$0xff]
        %v510 = vld [vmem:[%s373 + $0xb0] sm:$0xff]
        %v511 = vld [vmem:[%s373 + $0xb8] sm:$0xff]
        %v512 = vld [vmem:[%s373 + $0xc0] sm:$0xff]
        %v513 = vld [vmem:[%s373 + $0xc8] sm:$0xff]
        %v514 = vld [vmem:[%s373 + $0xd0] sm:$0xff]
        %v515 = vld [vmem:[%s373 + $0xd8] sm:$0xff]
        %v516 = vld [vmem:[%s373 + $0xe0] sm:$0xff]
        %v517 = vld [vmem:[%s373 + $0xe8] sm:$0xff]
        %v518 = vld [vmem:[%s373 + $0xf0] sm:$0xff]
        %v519 = vld [vmem:[%s373 + $0xf8] sm:$0xff]
        %v520 = vld [vmem:[%s373 + $0x100] sm:$0xff]
        %v521 = vld [vmem:[%s373 + $0x108] sm:$0xff]
        %v522 = vld [vmem:[%s373 + $0x110] sm:$0xff]
        %v523 = vld [vmem:[%s373 + $0x118] sm:$0xff]
        %v524 = vld [vmem:[%s373 + $0x120] sm:$0xff]
        %v525 = vld [vmem:[%s373 + $0x128] sm:$0xff]
        %v526 = vld [vmem:[%s373 + $0x130] sm:$0xff]
        %v527 = vld [vmem:[%s373 + $0x138] sm:$0xff]
        %v528 = vld [vmem:[%s373 + $0x140] sm:$0xff]
        %v529 = vld [vmem:[%s373 + $0x148] sm:$0xff]
        %v530 = vld [vmem:[%s373 + $0x150] sm:$0xff]
        %v531 = vld [vmem:[%s373 + $0x158] sm:$0xff]
        %v532 = vld [vmem:[%s373 + $0x160] sm:$0xff]
        %v533 = vld [vmem:[%s373 + $0x168] sm:$0xff]
        %v534 = vld [vmem:[%s373 + $0x170] sm:$0xff]
        %v535 = vld [vmem:[%s373 + $0x178] sm:$0xff]
        %v536 = vld [vmem:[%s373 + $0x180] sm:$0xff]
        %v537 = vld [vmem:[%s373 + $0x188] sm:$0xff]
        %v538 = vld [vmem:[%s373 + $0x190] sm:$0xff]
        %v539 = vld [vmem:[%s373 + $0x198] sm:$0xff]
        %v540 = vld [vmem:[%s373 + $0x1a0] sm:$0xff]
        %v541 = vld [vmem:[%s373 + $0x1a8] sm:$0xff]
        %v542 = vld [vmem:[%s373 + $0x1b0] sm:$0xff]
        %v543 = vld [vmem:[%s373 + $0x1b8] sm:$0xff]
        %v544 = vld [vmem:[%s373 + $0x1c0] sm:$0xff]
        %v545 = vld [vmem:[%s373 + $0x1c8] sm:$0xff]
        %v546 = vld [vmem:[%s373 + $0x1d0] sm:$0xff]
        %v547 = vld [vmem:[%s373 + $0x1d8] sm:$0xff]
        %v548 = vld [vmem:[%s373 + $0x1e0] sm:$0xff]
        %v549 = vld [vmem:[%s373 + $0x1e8] sm:$0xff]
        %v550 = vld [vmem:[%s373 + $0x1f0] sm:$0xff]
        %v551 = vld [vmem:[%s373 + $0x1f8] sm:$0xff]
        %552 = vmatpush.msra.mxu0 %v503
        %553 = vmatpush.msra.mxu0 %v502
        %554 = vmatpush.msra.mxu0 %v501
        %555 = vmatpush.msra.mxu0 %v500
        %556 = vmatpush.msra.mxu0 %v499
        %557 = vmatpush.msra.mxu0 %v498
        %558 = vmatpush.msra.mxu0 %v497
        %559 = vmatpush.msra.mxu0 %v496
        %560 = vmatpush.msra.mxu0 %v495
        %561 = vmatpush.msra.mxu0 %v494
        %562 = vmatpush.msra.mxu0 %v493
        %563 = vmatpush.msra.mxu0 %v492
        %564 = vmatpush.msra.mxu0 %v491
        %565 = vmatpush.msra.mxu0 %v490
        %566 = vmatpush.msra.mxu0 %v489
        %567 = vmatpush.msra.mxu0 %v488
        %568 = vmatmul.f32.gmra.mxu0 %v424
        %v569 = vpop.f32.mrf.mxu0
        %v570 = vadd.f32 0.0, %v569
        %571 = vmatmul.f32.gmra.mxu0 %v428
        %v572 = vpop.f32.mrf.mxu0
        %v573 = vadd.f32 0.0, %v572
        %574 = vmatmul.f32.gmra.mxu0 %v432
        %v575 = vpop.f32.mrf.mxu0
        %v576 = vadd.f32 0.0, %v575
        %577 = vmatmul.f32.gmra.mxu0 %v436
        %v578 = vpop.f32.mrf.mxu0
        %v579 = vadd.f32 0.0, %v578
        %580 = vmatmul.f32.gmra.mxu0 %v440
        %v581 = vpop.f32.mrf.mxu0
        %v582 = vadd.f32 0.0, %v581
        %583 = vmatmul.f32.gmra.mxu0 %v444
        %v584 = vpop.f32.mrf.mxu0
        %v585 = vadd.f32 0.0, %v584
        %586 = vmatmul.f32.gmra.mxu0 %v448
        %v587 = vpop.f32.mrf.mxu0
        %v588 = vadd.f32 0.0, %v587
        %589 = vmatmul.f32.gmra.mxu0 %v452
        %v590 = vpop.f32.mrf.mxu0
        %v591 = vadd.f32 0.0, %v590
        %592 = vmatmul.f32.gmra.mxu0 %v456
        %v593 = vpop.f32.mrf.mxu0
        %v594 = vadd.f32 0.0, %v593
        %595 = vmatmul.f32.gmra.mxu0 %v460
        %v596 = vpop.f32.mrf.mxu0
        %v597 = vadd.f32 0.0, %v596
        %598 = vmatmul.f32.gmra.mxu0 %v464
        %v599 = vpop.f32.mrf.mxu0
        %v600 = vadd.f32 0.0, %v599
        %601 = vmatmul.f32.gmra.mxu0 %v468
        %v602 = vpop.f32.mrf.mxu0
        %v603 = vadd.f32 0.0, %v602
        %604 = vmatmul.f32.gmra.mxu0 %v472
        %v605 = vpop.f32.mrf.mxu0
        %v606 = vadd.f32 0.0, %v605
        %607 = vmatmul.f32.gmra.mxu0 %v476
        %v608 = vpop.f32.mrf.mxu0
        %v609 = vadd.f32 0.0, %v608
        %610 = vmatmul.f32.gmra.mxu0 %v480
        %v611 = vpop.f32.mrf.mxu0
        %v612 = vadd.f32 0.0, %v611
        %613 = vmatmul.f32.gmra.mxu0 %v484
        %v614 = vpop.f32.mrf.mxu0
        %v615 = vadd.f32 0.0, %v614
        %616 = vdwg.mxu0
        %617 = vmatpush.msra.mxu0 %v519
        %618 = vmatpush.msra.mxu0 %v518
        %619 = vmatpush.msra.mxu0 %v517
        %620 = vmatpush.msra.mxu0 %v516
        %621 = vmatpush.msra.mxu0 %v515
        %622 = vmatpush.msra.mxu0 %v514
        %623 = vmatpush.msra.mxu0 %v513
        %624 = vmatpush.msra.mxu0 %v512
        %625 = vmatpush.msra.mxu0 %v511
        %626 = vmatpush.msra.mxu0 %v510
        %627 = vmatpush.msra.mxu0 %v509
        %628 = vmatpush.msra.mxu0 %v508
        %629 = vmatpush.msra.mxu0 %v507
        %630 = vmatpush.msra.mxu0 %v506
        %631 = vmatpush.msra.mxu0 %v505
        %632 = vmatpush.msra.mxu0 %v504
        %633 = vmatmul.f32.gmra.mxu0 %v425
        %v634 = vpop.f32.mrf.mxu0
        %v635 = vadd.f32 %v570, %v634
        %636 = vmatmul.f32.gmra.mxu0 %v429
        %v637 = vpop.f32.mrf.mxu0
        %v638 = vadd.f32 %v573, %v637
        %639 = vmatmul.f32.gmra.mxu0 %v433
        %v640 = vpop.f32.mrf.mxu0
        %v641 = vadd.f32 %v576, %v640
        %642 = vmatmul.f32.gmra.mxu0 %v437
        %v643 = vpop.f32.mrf.mxu0
        %v644 = vadd.f32 %v579, %v643
        %645 = vmatmul.f32.gmra.mxu0 %v441
        %v646 = vpop.f32.mrf.mxu0
        %v647 = vadd.f32 %v582, %v646
        %648 = vmatmul.f32.gmra.mxu0 %v445
        %v649 = vpop.f32.mrf.mxu0
        %v650 = vadd.f32 %v585, %v649
        %651 = vmatmul.f32.gmra.mxu0 %v449
        %v652 = vpop.f32.mrf.mxu0
        %v653 = vadd.f32 %v588, %v652
        %654 = vmatmul.f32.gmra.mxu0 %v453
        %v655 = vpop.f32.mrf.mxu0
        %v656 = vadd.f32 %v591, %v655
        %657 = vmatmul.f32.gmra.mxu0 %v457
        %v658 = vpop.f32.mrf.mxu0
        %v659 = vadd.f32 %v594, %v658
        %660 = vmatmul.f32.gmra.mxu0 %v461
        %v661 = vpop.f32.mrf.mxu0
        %v662 = vadd.f32 %v597, %v661
        %663 = vmatmul.f32.gmra.mxu0 %v465
        %v664 = vpop.f32.mrf.mxu0
        %v665 = vadd.f32 %v600, %v664
        %666 = vmatmul.f32.gmra.mxu0 %v469
        %v667 = vpop.f32.mrf.mxu0
        %v668 = vadd.f32 %v603, %v667
        %669 = vmatmul.f32.gmra.mxu0 %v473
        %v670 = vpop.f32.mrf.mxu0
        %v671 = vadd.f32 %v606, %v670
        %672 = vmatmul.f32.gmra.mxu0 %v477
        %v673 = vpop.f32.mrf.mxu0
        %v674 = vadd.f32 %v609, %v673
        %675 = vmatmul.f32.gmra.mxu0 %v481
        %v676 = vpop.f32.mrf.mxu0
        %v677 = vadd.f32 %v612, %v676
        %678 = vmatmul.f32.gmra.mxu0 %v485
        %v679 = vpop.f32.mrf.mxu0
        %v680 = vadd.f32 %v615, %v679
        %681 = vdwg.mxu0
        %682 = vmatpush.msra.mxu0 %v535
        %683 = vmatpush.msra.mxu0 %v534
        %684 = vmatpush.msra.mxu0 %v533
        %685 = vmatpush.msra.mxu0 %v532
        %686 = vmatpush.msra.mxu0 %v531
        %687 = vmatpush.msra.mxu0 %v530
        %688 = vmatpush.msra.mxu0 %v529
        %689 = vmatpush.msra.mxu0 %v528
        %690 = vmatpush.msra.mxu0 %v527
        %691 = vmatpush.msra.mxu0 %v526
        %692 = vmatpush.msra.mxu0 %v525
        %693 = vmatpush.msra.mxu0 %v524
        %694 = vmatpush.msra.mxu0 %v523
        %695 = vmatpush.msra.mxu0 %v522
        %696 = vmatpush.msra.mxu0 %v521
        %697 = vmatpush.msra.mxu0 %v520
        %698 = vmatmul.f32.gmra.mxu0 %v426
        %v699 = vpop.f32.mrf.mxu0
        %v700 = vadd.f32 %v635, %v699
        %701 = vmatmul.f32.gmra.mxu0 %v430
        %v702 = vpop.f32.mrf.mxu0
        %v703 = vadd.f32 %v638, %v702
        %704 = vmatmul.f32.gmra.mxu0 %v434
        %v705 = vpop.f32.mrf.mxu0
        %v706 = vadd.f32 %v641, %v705
        %707 = vmatmul.f32.gmra.mxu0 %v438
        %v708 = vpop.f32.mrf.mxu0
        %v709 = vadd.f32 %v644, %v708
        %710 = vmatmul.f32.gmra.mxu0 %v442
        %v711 = vpop.f32.mrf.mxu0
        %v712 = vadd.f32 %v647, %v711
        %713 = vmatmul.f32.gmra.mxu0 %v446
        %v714 = vpop.f32.mrf.mxu0
        %v715 = vadd.f32 %v650, %v714
        %716 = vmatmul.f32.gmra.mxu0 %v450
        %v717 = vpop.f32.mrf.mxu0
        %v718 = vadd.f32 %v653, %v717
        %719 = vmatmul.f32.gmra.mxu0 %v454
        %v720 = vpop.f32.mrf.mxu0
        %v721 = vadd.f32 %v656, %v720
        %722 = vmatmul.f32.gmra.mxu0 %v458
        %v723 = vpop.f32.mrf.mxu0
        %v724 = vadd.f32 %v659, %v723
        %725 = vmatmul.f32.gmra.mxu0 %v462
        %v726 = vpop.f32.mrf.mxu0
        %v727 = vadd.f32 %v662, %v726
        %728 = vmatmul.f32.gmra.mxu0 %v466
        %v729 = vpop.f32.mrf.mxu0
        %v730 = vadd.f32 %v665, %v729
        %731 = vmatmul.f32.gmra.mxu0 %v470
        %v732 = vpop.f32.mrf.mxu0
        %v733 = vadd.f32 %v668, %v732
        %734 = vmatmul.f32.gmra.mxu0 %v474
        %v735 = vpop.f32.mrf.mxu0
        %v736 = vadd.f32 %v671, %v735
        %737 = vmatmul.f32.gmra.mxu0 %v478
        %v738 = vpop.f32.mrf.mxu0
        %v739 = vadd.f32 %v674, %v738
        %740 = vmatmul.f32.gmra.mxu0 %v482
        %v741 = vpop.f32.mrf.mxu0
        %v742 = vadd.f32 %v677, %v741
        %743 = vmatmul.f32.gmra.mxu0 %v486
        %v744 = vpop.f32.mrf.mxu0
        %v745 = vadd.f32 %v680, %v744
        %746 = vdwg.mxu0
        %747 = vmatpush.msra.mxu0 %v551
        %748 = vmatpush.msra.mxu0 %v550
        %749 = vmatpush.msra.mxu0 %v549
        %750 = vmatpush.msra.mxu0 %v548
        %751 = vmatpush.msra.mxu0 %v547
        %752 = vmatpush.msra.mxu0 %v546
        %753 = vmatpush.msra.mxu0 %v545
        %754 = vmatpush.msra.mxu0 %v544
        %755 = vmatpush.msra.mxu0 %v543
        %756 = vmatpush.msra.mxu0 %v542
        %757 = vmatpush.msra.mxu0 %v541
        %758 = vmatpush.msra.mxu0 %v540
        %759 = vmatpush.msra.mxu0 %v539
        %760 = vmatpush.msra.mxu0 %v538
        %761 = vmatpush.msra.mxu0 %v537
        %762 = vmatpush.msra.mxu0 %v536
        %763 = vmatmul.f32.gmra.mxu0 %v427
        %v764 = vpop.f32.mrf.mxu0
        %v765 = vadd.f32 %v700, %v764
        %766 = vmatmul.f32.gmra.mxu0 %v431
        %v767 = vpop.f32.mrf.mxu0
        %v768 = vadd.f32 %v703, %v767
        %769 = vmatmul.f32.gmra.mxu0 %v435
        %v770 = vpop.f32.mrf.mxu0
        %v771 = vadd.f32 %v706, %v770
        %772 = vmatmul.f32.gmra.mxu0 %v439
        %v773 = vpop.f32.mrf.mxu0
        %v774 = vadd.f32 %v709, %v773
        %775 = vmatmul.f32.gmra.mxu0 %v443
        %v776 = vpop.f32.mrf.mxu0
        %v777 = vadd.f32 %v712, %v776
        %778 = vmatmul.f32.gmra.mxu0 %v447
        %v779 = vpop.f32.mrf.mxu0
        %v780 = vadd.f32 %v715, %v779
        %781 = vmatmul.f32.gmra.mxu0 %v451
        %v782 = vpop.f32.mrf.mxu0
        %v783 = vadd.f32 %v718, %v782
        %784 = vmatmul.f32.gmra.mxu0 %v455
        %v785 = vpop.f32.mrf.mxu0
        %v786 = vadd.f32 %v721, %v785
        %787 = vmatmul.f32.gmra.mxu0 %v459
        %v788 = vpop.f32.mrf.mxu0
        %v789 = vadd.f32 %v724, %v788
        %790 = vmatmul.f32.gmra.mxu0 %v463
        %v791 = vpop.f32.mrf.mxu0
        %v792 = vadd.f32 %v727, %v791
        %793 = vmatmul.f32.gmra.mxu0 %v467
        %v794 = vpop.f32.mrf.mxu0
        %v795 = vadd.f32 %v730, %v794
        %796 = vmatmul.f32.gmra.mxu0 %v471
        %v797 = vpop.f32.mrf.mxu0
        %v798 = vadd.f32 %v733, %v797
        %799 = vmatmul.f32.gmra.mxu0 %v475
        %v800 = vpop.f32.mrf.mxu0
        %v801 = vadd.f32 %v736, %v800
        %802 = vmatmul.f32.gmra.mxu0 %v479
        %v803 = vpop.f32.mrf.mxu0
        %v804 = vadd.f32 %v739, %v803
        %805 = vmatmul.f32.gmra.mxu0 %v483
        %v806 = vpop.f32.mrf.mxu0
        %v807 = vadd.f32 %v742, %v806
        %808 = vmatmul.f32.gmra.mxu0 %v487
        %v809 = vpop.f32.mrf.mxu0
        %v810 = vadd.f32 %v745, %v809
        %811 = vdwg.mxu0
        %v812 = vadd.f32 %v408, %v765
        %v813 = vadd.f32 %v409, %v768
        %v814 = vadd.f32 %v410, %v771
        %v815 = vadd.f32 %v411, %v774
        %v816 = vadd.f32 %v412, %v777
        %v817 = vadd.f32 %v413, %v780
        %v818 = vadd.f32 %v414, %v783
        %v819 = vadd.f32 %v415, %v786
        %v820 = vadd.f32 %v416, %v789
        %v821 = vadd.f32 %v417, %v792
        %v822 = vadd.f32 %v418, %v795
        %v823 = vadd.f32 %v419, %v798
        %v824 = vadd.f32 %v420, %v801
        %v825 = vadd.f32 %v421, %v804
        %v826 = vadd.f32 %v422, %v807
        %v827 = vadd.f32 %v423, %v810
        %828 = vst [vmem:[#allocation2] sm:$0xff] %v812
        %829 = vst [vmem:[#allocation2 + $0x8] sm:$0xff] %v813
        %830 = vst [vmem:[#allocation2 + $0x10] sm:$0xff] %v814
        %831 = vst [vmem:[#allocation2 + $0x18] sm:$0xff] %v815
        %832 = vst [vmem:[#allocation2 + $0x20] sm:$0xff] %v816
        %833 = vst [vmem:[#allocation2 + $0x28] sm:$0xff] %v817
        %834 = vst [vmem:[#allocation2 + $0x30] sm:$0xff] %v818
        %835 = vst [vmem:[#allocation2 + $0x38] sm:$0xff] %v819
        %836 = vst [vmem:[#allocation2 + $0x40] sm:$0xff] %v820
        %837 = vst [vmem:[#allocation2 + $0x48] sm:$0xff] %v821
        %838 = vst [vmem:[#allocation2 + $0x50] sm:$0xff] %v822
        %839 = vst [vmem:[#allocation2 + $0x58] sm:$0xff] %v823
        %840 = vst [vmem:[#allocation2 + $0x60] sm:$0xff] %v824
        %841 = vst [vmem:[#allocation2 + $0x68] sm:$0xff] %v825
        %842 = vst [vmem:[#allocation2 + $0x70] sm:$0xff] %v826
        %843 = vst [vmem:[#allocation2 + $0x78] sm:$0xff] %v827
        %p844 = scmp.eq.s32.totalorder %s21, 1
        // Predicated region
        $region60: #{generator_forward.11} parent=46 // pred_check
          %p845 = pneg %p844
        $region61: #{generator_forward.11} parent=46 // pred_check_branch
          %847 = sbr.rel (%p845) target = $region63
        $region62: #{generator_forward.11} parent=46 // pred_region
          %v848 = vld [vmem:[#allocation2] sm:$0xff]
          %v849 = vld [vmem:[#allocation2 + $0x8] sm:$0xff]
          %v850 = vld [vmem:[#allocation2 + $0x10] sm:$0xff]
          %v851 = vld [vmem:[#allocation2 + $0x18] sm:$0xff]
          %v852 = vld [vmem:[#allocation2 + $0x20] sm:$0xff]
          %v853 = vld [vmem:[#allocation2 + $0x28] sm:$0xff]
          %v854 = vld [vmem:[#allocation2 + $0x30] sm:$0xff]
          %v855 = vld [vmem:[#allocation2 + $0x38] sm:$0xff]
          %v856 = vld [vmem:[#allocation2 + $0x40] sm:$0xff]
          %v857 = vld [vmem:[#allocation2 + $0x48] sm:$0xff]
          %v858 = vld [vmem:[#allocation2 + $0x50] sm:$0xff]
          %v859 = vld [vmem:[#allocation2 + $0x58] sm:$0xff]
          %v860 = vld [vmem:[#allocation2 + $0x60] sm:$0xff]
          %v861 = vld [vmem:[#allocation2 + $0x68] sm:$0xff]
          %v862 = vld [vmem:[#allocation2 + $0x70] sm:$0xff]
          %v863 = vld [vmem:[#allocation2 + $0x78] sm:$0xff]
          %864 = vst [vmem:[%s379] sm:$0xff] %v848
          %865 = vst [vmem:[%s379 + $0x8] sm:$0xff] %v849
          %866 = vst [vmem:[%s379 + $0x10] sm:$0xff] %v850
          %867 = vst [vmem:[%s379 + $0x18] sm:$0xff] %v851
          %868 = vst [vmem:[%s379 + $0x20] sm:$0xff] %v852
          %869 = vst [vmem:[%s379 + $0x28] sm:$0xff] %v853
          %870 = vst [vmem:[%s379 + $0x30] sm:$0xff] %v854
          %871 = vst [vmem:[%s379 + $0x38] sm:$0xff] %v855
          %872 = vst [vmem:[%s379 + $0x40] sm:$0xff] %v856
          %873 = vst [vmem:[%s379 + $0x48] sm:$0xff] %v857
          %874 = vst [vmem:[%s379 + $0x50] sm:$0xff] %v858
          %875 = vst [vmem:[%s379 + $0x58] sm:$0xff] %v859
          %876 = vst [vmem:[%s379 + $0x60] sm:$0xff] %v860
          %877 = vst [vmem:[%s379 + $0x68] sm:$0xff] %v861
          %878 = vst [vmem:[%s379 + $0x70] sm:$0xff] %v862
          %879 = vst [vmem:[%s379 + $0x78] sm:$0xff] %v863
          %v880 = vld [vmem:[%s3] sm:$0x1]
          %v881 = vadd.f32 %v848, %v849
          %v882 = vadd.f32 %v881, %v850
          %v883 = vadd.f32 %v882, %v851
          %v884 = vadd.f32 %v883, %v852
          %v885 = vadd.f32 %v884, %v853
          %v886 = vadd.f32 %v885, %v854
          %v887 = vadd.f32 %v886, %v855
          %v888 = vadd.f32 %v887, %v856
          %v889 = vadd.f32 %v888, %v857
          %v890 = vadd.f32 %v889, %v858
          %v891 = vadd.f32 %v890, %v859
          %v892 = vadd.f32 %v891, %v860
          %v893 = vadd.f32 %v892, %v861
          %v894 = vadd.f32 %v893, %v862
          %v895 = vadd.f32 %v894, %v863
          %v896 = vrot.slane %v895, 4
          %v897 = vadd.f32 %v895, %v896
          %v898 = vrot.slane %v897, 2
          %v899 = vadd.f32 %v897, %v898
          %v900 = vrot.slane %v899, 1
          %v901 = vadd.f32 %v899, %v900
          %v902 = vadd.f32 %v880, %v901
          %903 = vst [vmem:[%s3] sm:$0x1] %v902
          %v904 = vld [vmem:[%s4] sm:$0x1]
          %v905 = vmul.f32 %v848, %v848
          %v906 = vmul.f32 %v849, %v849
          %v907 = vmul.f32 %v850, %v850
          %v908 = vmul.f32 %v851, %v851
          %v909 = vmul.f32 %v852, %v852
          %v910 = vmul.f32 %v853, %v853
          %v911 = vmul.f32 %v854, %v854
          %v912 = vmul.f32 %v855, %v855
          %v913 = vmul.f32 %v856, %v856
          %v914 = vmul.f32 %v857, %v857
          %v915 = vmul.f32 %v858, %v858
          %v916 = vmul.f32 %v859, %v859
          %v917 = vmul.f32 %v860, %v860
          %v918 = vmul.f32 %v861, %v861
          %v919 = vmul.f32 %v862, %v862
          %v920 = vmul.f32 %v863, %v863
          %v921 = vadd.f32 %v905, %v906
          %v922 = vadd.f32 %v921, %v907
          %v923 = vadd.f32 %v922, %v908
          %v924 = vadd.f32 %v923, %v909
          %v925 = vadd.f32 %v924, %v910
          %v926 = vadd.f32 %v925, %v911
          %v927 = vadd.f32 %v926, %v912
          %v928 = vadd.f32 %v927, %v913
          %v929 = vadd.f32 %v928, %v914
          %v930 = vadd.f32 %v929, %v915
          %v931 = vadd.f32 %v930, %v916
          %v932 = vadd.f32 %v931, %v917
          %v933 = vadd.f32 %v932, %v918
          %v934 = vadd.f32 %v933, %v919
          %v935 = vadd.f32 %v934, %v920
          %v936 = vrot.slane %v935, 4
          %v937 = vadd.f32 %v935, %v936
          %v938 = vrot.slane %v937, 2
          %v939 = vadd.f32 %v937, %v938
          %v940 = vrot.slane %v939, 1
          %v941 = vadd.f32 %v939, %v940
          %v942 = vadd.f32 %v904, %v941
          %943 = vst [vmem:[%s4] sm:$0x1] %v942
        $region63: #{generator_forward.11} parent=46 // pred_fallthru
          _
        %s944 = smul.u32 16, %s20
        %p945 = scmp.lt.s32.totalorder %s944, 15
        %s946 = scalar_select %p945, %s944, 15
        %s947 = smul.addr %s946, 8
        %s948 = scalar_lea.vmem %s2, %s947
        // Predicated region
        $region64: #{generator_forward.11} parent=46 // pred_check
          %p949 = pneg %p100
        $region65: #{generator_forward.11} parent=46 // pred_check_branch
          %951 = sbr.rel (%p949) target = $region67
        $region66: #{generator_forward.11} parent=46 // pred_region
          %s952 = smul.u32 16, %s20
        $region67: #{generator_forward.11} parent=46 // pred_fallthru
          _
        // Predicated region
        $region68: #{generator_forward.11} parent=46 // pred_check
          %p953 = pneg %p121
        $region69: #{generator_forward.11} parent=46 // pred_check_branch
          %955 = sbr.rel (%p953) target = $region71
        $region70: #{generator_forward.11} parent=46 // pred_region
          _
        $region71: #{generator_forward.11} parent=46 // pred_fallthru
          _
        // Predicated region
        $region72: #{generator_forward.11} parent=46 // pred_check
          %p956 = pneg %p142
        $region73: #{generator_forward.11} parent=46 // pred_check_branch
          %958 = sbr.rel (%p956) target = $region75
        $region74: #{generator_forward.11} parent=46 // pred_region
          _
        $region75: #{generator_forward.11} parent=46 // pred_fallthru
          _
        // Predicated region
        $region76: #{generator_forward.11} parent=46 // pred_check
          %p959 = pneg %p100
        $region77: #{generator_forward.11} parent=46 // pred_check_branch
          %961 = sbr.rel (%p959) target = $region79
        $region78: #{generator_forward.11} parent=46 // pred_region
          %s962 = smul.u32 16, %s20
          %p963 = scmp.lt.s32.totalorder %s962, 15
          %s964 = scalar_select %p963, %s962, 15
          %s965 = smul.addr %s964, 8
          %s966 = scalar_lea.vmem %s2, %s965
        $region79: #{generator_forward.11} parent=46 // pred_fallthru
          _
        // Predicated region
        $region80: #{generator_forward.11} parent=46 // pred_check
          %p967 = pneg %p121
        $region81: #{generator_forward.11} parent=46 // pred_check_branch
          %969 = sbr.rel (%p967) target = $region83
        $region82: #{generator_forward.11} parent=46 // pred_region
          _
        $region83: #{generator_forward.11} parent=46 // pred_fallthru
          _
        // Predicated region
        $region84: #{generator_forward.11} parent=46 // pred_check
          %p970 = pneg %p142
        $region85: #{generator_forward.11} parent=46 // pred_check_branch
          %972 = sbr.rel (%p970) target = $region87
        $region86: #{generator_forward.11} parent=46 // pred_region
          _
        $region87: #{generator_forward.11} parent=46 // pred_fallthru
          _
      $region47: #{generator_forward.11} parent=5 // pred_fallthru
        _
      %p973 = scmp.le.s32.totalorder 2, %s11
      // Predicated region
      $region88: #{generator_forward.11} parent=5 // pred_check
        %p974 = pneg %p973
      $region89: #{generator_forward.11} parent=5 // pred_check_branch
        %976 = sbr.rel (%p974) target = $region91
      $region90: #{generator_forward.11} parent=5 // pred_region
        %s977 = ssub.s32 %s11, 2
      $region91: #{generator_forward.11} parent=5 // pred_fallthru
        _
    $region6: #{generator_forward.11} parent=1 // loop_footer
      %s15 = sadd.s32 1, %s11
    $region7: #{generator_forward.11} parent=1 // loop_footer_branch
      %10 = sbr.rel target = $region3
    $region8: #{generator_forward.11} parent=1 // loop_exit
      _

// kernel: generator_forward.14
$region0: #{generator_forward.14}
  #allocation0 [shape = 'u32[]', space=smem, size = 0x4, offset = 0x4, fixed_abs, tag = 'smem constant byte address 0x4 - core index']
  #allocation1 [shape = 'u32[72,128]{1,0:T(1,128)}', space=vmem, size = 0x9000, scoped, tag = 'internal scratch']
  %s0 = inlined_call_operand.vmem [shape: f32[512,128], index: 0, kind: input, shape index: {}]
  %s1 = inlined_call_operand.vmem [shape: f32[1,128], index: 1, kind: input, shape index: {}]
  %s2 = inlined_call_operand.vmem [shape: f32[1,128], index: 2, kind: input, shape index: {}]
  %s3 = inlined_call_operand.vmem [shape: f32[512,128], index: 3, kind: output, shape index: {}]
  %s4 = sld [smem:[#allocation0]]
  $region22: #{generator_forward.14} parent=0
    _
  %s6 = ssub.s32 1, %s4
  %s7 = scalar_select 0, %s6, %s4
  // Predicated region
  $region2: #{generator_forward.14} parent=0 // pred_check
    _
  $region3: #{generator_forward.14} parent=0 // pred_check_branch
    %9 = sbr.rel (0) target = $region5
  $region4: #{generator_forward.14} parent=0 // pred_region
    _
  $region5: #{generator_forward.14} parent=0 // pred_fallthru
    _
  // Predicated region
  $region6: #{generator_forward.14} parent=0 // pred_check
    _
  $region7: #{generator_forward.14} parent=0 // pred_check_branch
    %11 = sbr.rel (0) target = $region9
  $region8: #{generator_forward.14} parent=0 // pred_region
    _
  $region9: #{generator_forward.14} parent=0 // pred_fallthru
    _
  // Predicated region
  $region10: #{generator_forward.14} parent=0 // pred_check
    _
  $region11: #{generator_forward.14} parent=0 // pred_check_branch
    %13 = sbr.rel (0) target = $region13
  $region12: #{generator_forward.14} parent=0 // pred_region
    _
  $region13: #{generator_forward.14} parent=0 // pred_fallthru
    _
  %v14 = vld [vmem:[%s0] sm:$0xff]
  %v15 = vld [vmem:[%s0 + $0x8] sm:$0xff]
  %v16 = vld [vmem:[%s0 + $0x10] sm:$0xff]
  %v17 = vld [vmem:[%s0 + $0x18] sm:$0xff]
  %v18 = vld [vmem:[%s0 + $0x20] sm:$0xff]
  %v19 = vld [vmem:[%s0 + $0x28] sm:$0xff]
  %v20 = vld [vmem:[%s0 + $0x30] sm:$0xff]
  %v21 = vld [vmem:[%s0 + $0x38] sm:$0xff]
  %v22 = vld [vmem:[%s0 + $0x40] sm:$0xff]
  %v23 = vld [vmem:[%s0 + $0x48] sm:$0xff]
  %v24 = vld [vmem:[%s0 + $0x50] sm:$0xff]
  %v25 = vld [vmem:[%s0 + $0x58] sm:$0xff]
  %v26 = vld [vmem:[%s0 + $0x60] sm:$0xff]
  %v27 = vld [vmem:[%s0 + $0x68] sm:$0xff]
  %v28 = vld [vmem:[%s0 + $0x70] sm:$0xff]
  %v29 = vld [vmem:[%s0 + $0x78] sm:$0xff]
  %v30 = vld [vmem:[%s0 + $0x80] sm:$0xff]
  %v31 = vld [vmem:[%s0 + $0x88] sm:$0xff]
  %v32 = vld [vmem:[%s0 + $0x90] sm:$0xff]
  %v33 = vld [vmem:[%s0 + $0x98] sm:$0xff]
  %v34 = vld [vmem:[%s0 + $0xa0] sm:$0xff]
  %v35 = vld [vmem:[%s0 + $0xa8] sm:$0xff]
  %v36 = vld [vmem:[%s0 + $0xb0] sm:$0xff]
  %v37 = vld [vmem:[%s0 + $0xb8] sm:$0xff]
  %v38 = vld [vmem:[%s0 + $0xc0] sm:$0xff]
  %v39 = vld [vmem:[%s0 + $0xc8] sm:$0xff]
  %v40 = vld [vmem:[%s0 + $0xd0] sm:$0xff]
  %v41 = vld [vmem:[%s0 + $0xd8] sm:$0xff]
  %v42 = vld [vmem:[%s0 + $0xe0] sm:$0xff]
  %v43 = vld [vmem:[%s0 + $0xe8] sm:$0xff]
  %v44 = vld [vmem:[%s0 + $0xf0] sm:$0xff]
  %v45 = vld [vmem:[%s0 + $0xf8] sm:$0xff]
  %v46 = vld [vmem:[%s0 + $0x100] sm:$0xff]
  %v47 = vld [vmem:[%s0 + $0x108] sm:$0xff]
  %v48 = vld [vmem:[%s0 + $0x110] sm:$0xff]
  %v49 = vld [vmem:[%s0 + $0x118] sm:$0xff]
  %v50 = vld [vmem:[%s0 + $0x120] sm:$0xff]
  %v51 = vld [vmem:[%s0 + $0x128] sm:$0xff]
  %v52 = vld [vmem:[%s0 + $0x130] sm:$0xff]
  %v53 = vld [vmem:[%s0 + $0x138] sm:$0xff]
  %v54 = vld [vmem:[%s0 + $0x140] sm:$0xff]
  %v55 = vld [vmem:[%s0 + $0x148] sm:$0xff]
  %v56 = vld [vmem:[%s0 + $0x150] sm:$0xff]
  %v57 = vld [vmem:[%s0 + $0x158] sm:$0xff]
  %v58 = vld [vmem:[%s0 + $0x160] sm:$0xff]
  %v59 = vld [vmem:[%s0 + $0x168] sm:$0xff]
  %v60 = vld [vmem:[%s0 + $0x170] sm:$0xff]
  %v61 = vld [vmem:[%s0 + $0x178] sm:$0xff]
  %v62 = vld [vmem:[%s0 + $0x180] sm:$0xff]
  %v63 = vld [vmem:[%s0 + $0x188] sm:$0xff]
  %v64 = vld [vmem:[%s0 + $0x190] sm:$0xff]
  %v65 = vld [vmem:[%s0 + $0x198] sm:$0xff]
  %v66 = vld [vmem:[%s0 + $0x1a0] sm:$0xff]
  %v67 = vld [vmem:[%s0 + $0x1a8] sm:$0xff]
  %v68 = vld [vmem:[%s0 + $0x1b0] sm:$0xff]
  %v69 = vld [vmem:[%s0 + $0x1b8] sm:$0xff]
  %v70 = vld [vmem:[%s0 + $0x1c0] sm:$0xff]
  %v71 = vld [vmem:[%s0 + $0x1c8] sm:$0xff]
  %v72 = vld [vmem:[%s0 + $0x1d0] sm:$0xff]
  %v73 = vld [vmem:[%s0 + $0x1d8] sm:$0xff]
  %v74 = vld [vmem:[%s0 + $0x1e0] sm:$0xff]
  %v75 = vld [vmem:[%s0 + $0x1e8] sm:$0xff]
  %v76 = vld [vmem:[%s0 + $0x1f0] sm:$0xff]
  %v77 = vld [vmem:[%s0 + $0x1f8] sm:$0xff]
  %v78 = vld [vmem:[%s1] sm:$0x1]
  %v80 = vperm.slane %v78, 0
  %v82 = vmul.f32 %v14, %v80
  %v83 = vmul.f32 %v15, %v80
  %v84 = vmul.f32 %v16, %v80
  %v85 = vmul.f32 %v17, %v80
  %v86 = vmul.f32 %v18, %v80
  %v87 = vmul.f32 %v19, %v80
  %v88 = vmul.f32 %v20, %v80
  %v89 = vmul.f32 %v21, %v80
  %v90 = vmul.f32 %v22, %v80
  %v91 = vmul.f32 %v23, %v80
  %v92 = vmul.f32 %v24, %v80
  %v93 = vmul.f32 %v25, %v80
  %v94 = vmul.f32 %v26, %v80
  %v95 = vmul.f32 %v27, %v80
  %v96 = vmul.f32 %v28, %v80
  %v97 = vmul.f32 %v29, %v80
  %v98 = vmul.f32 %v30, %v80
  %v99 = vmul.f32 %v31, %v80
  %v100 = vmul.f32 %v32, %v80
  %v101 = vmul.f32 %v33, %v80
  %v102 = vmul.f32 %v34, %v80
  %v103 = vmul.f32 %v35, %v80
  %v104 = vmul.f32 %v36, %v80
  %v105 = vmul.f32 %v37, %v80
  %v106 = vmul.f32 %v38, %v80
  %v107 = vmul.f32 %v39, %v80
  %v108 = vmul.f32 %v40, %v80
  %v109 = vmul.f32 %v41, %v80
  %v110 = vmul.f32 %v42, %v80
  %v111 = vmul.f32 %v43, %v80
  %v112 = vmul.f32 %v44, %v80
  %v113 = vmul.f32 %v45, %v80
  %v114 = vmul.f32 %v46, %v80
  %v115 = vmul.f32 %v47, %v80
  %v116 = vmul.f32 %v48, %v80
  %v117 = vmul.f32 %v49, %v80
  %v118 = vmul.f32 %v50, %v80
  %v119 = vmul.f32 %v51, %v80
  %v120 = vmul.f32 %v52, %v80
  %v121 = vmul.f32 %v53, %v80
  %v122 = vmul.f32 %v54, %v80
  %v123 = vmul.f32 %v55, %v80
  %v124 = vmul.f32 %v56, %v80
  %v125 = vmul.f32 %v57, %v80
  %v126 = vmul.f32 %v58, %v80
  %v127 = vmul.f32 %v59, %v80
  %v128 = vmul.f32 %v60, %v80
  %v129 = vmul.f32 %v61, %v80
  %v130 = vmul.f32 %v62, %v80
  %v131 = vmul.f32 %v63, %v80
  %v132 = vmul.f32 %v64, %v80
  %v133 = vmul.f32 %v65, %v80
  %v134 = vmul.f32 %v66, %v80
  %v135 = vmul.f32 %v67, %v80
  %v136 = vmul.f32 %v68, %v80
  %v137 = vmul.f32 %v69, %v80
  %v138 = vmul.f32 %v70, %v80
  %v139 = vmul.f32 %v71, %v80
  %v140 = vmul.f32 %v72, %v80
  %v141 = vmul.f32 %v73, %v80
  %v142 = vmul.f32 %v74, %v80
  %v143 = vmul.f32 %v75, %v80
  %v144 = vmul.f32 %v76, %v80
  %v145 = vmul.f32 %v77, %v80
  %v146 = vld [vmem:[%s2] sm:$0x1]
  %v148 = vperm.slane %v146, 0
  %v150 = vadd.f32 %v82, %v148
  %v151 = vadd.f32 %v83, %v148
  %v152 = vadd.f32 %v84, %v148
  %v153 = vadd.f32 %v85, %v148
  %v154 = vadd.f32 %v86, %v148
  %v155 = vadd.f32 %v87, %v148
  %v156 = vadd.f32 %v88, %v148
  %v157 = vadd.f32 %v89, %v148
  %v158 = vadd.f32 %v90, %v148
  %v159 = vadd.f32 %v91, %v148
  %v160 = vadd.f32 %v92, %v148
  %v161 = vadd.f32 %v93, %v148
  %v162 = vadd.f32 %v94, %v148
  %v163 = vadd.f32 %v95, %v148
  %v164 = vadd.f32 %v96, %v148
  %v165 = vadd.f32 %v97, %v148
  %v166 = vadd.f32 %v98, %v148
  %v167 = vadd.f32 %v99, %v148
  %v168 = vadd.f32 %v100, %v148
  %v169 = vadd.f32 %v101, %v148
  %v170 = vadd.f32 %v102, %v148
  %v171 = vadd.f32 %v103, %v148
  %v172 = vadd.f32 %v104, %v148
  %v173 = vadd.f32 %v105, %v148
  %v174 = vadd.f32 %v106, %v148
  %v175 = vadd.f32 %v107, %v148
  %v176 = vadd.f32 %v108, %v148
  %v177 = vadd.f32 %v109, %v148
  %v178 = vadd.f32 %v110, %v148
  %v179 = vadd.f32 %v111, %v148
  %v180 = vadd.f32 %v112, %v148
  %v181 = vadd.f32 %v113, %v148
  %v182 = vadd.f32 %v114, %v148
  %v183 = vadd.f32 %v115, %v148
  %v184 = vadd.f32 %v116, %v148
  %v185 = vadd.f32 %v117, %v148
  %v186 = vadd.f32 %v118, %v148
  %v187 = vadd.f32 %v119, %v148
  %v188 = vadd.f32 %v120, %v148
  %v189 = vadd.f32 %v121, %v148
  %v190 = vadd.f32 %v122, %v148
  %v191 = vadd.f32 %v123, %v148
  %v192 = vadd.f32 %v124, %v148
  %v193 = vadd.f32 %v125, %v148
  %v194 = vadd.f32 %v126, %v148
  %v195 = vadd.f32 %v127, %v148
  %v196 = vadd.f32 %v128, %v148
  %v197 = vadd.f32 %v129, %v148
  %v198 = vadd.f32 %v130, %v148
  %v199 = vadd.f32 %v131, %v148
  %v200 = vadd.f32 %v132, %v148
  %v201 = vadd.f32 %v133, %v148
  %v202 = vadd.f32 %v134, %v148
  %v203 = vadd.f32 %v135, %v148
  %v204 = vadd.f32 %v136, %v148
  %v205 = vadd.f32 %v137, %v148
  %v206 = vadd.f32 %v138, %v148
  %v207 = vadd.f32 %v139, %v148
  %v208 = vadd.f32 %v140, %v148
  %v209 = vadd.f32 %v141, %v148
  %v210 = vadd.f32 %v142, %v148
  %v211 = vadd.f32 %v143, %v148
  %v212 = vadd.f32 %v144, %v148
  %v213 = vadd.f32 %v145, %v148
  %v214 = vmax.f32 %v150, 0.0
  %v215 = vmax.f32 %v151, 0.0
  %v216 = vmax.f32 %v152, 0.0
  %v217 = vmax.f32 %v153, 0.0
  %v218 = vmax.f32 %v154, 0.0
  %v219 = vmax.f32 %v155, 0.0
  %v220 = vmax.f32 %v156, 0.0
  %v221 = vmax.f32 %v157, 0.0
  %v222 = vmax.f32 %v158, 0.0
  %v223 = vmax.f32 %v159, 0.0
  %v224 = vmax.f32 %v160, 0.0
  %v225 = vmax.f32 %v161, 0.0
  %v226 = vmax.f32 %v162, 0.0
  %v227 = vmax.f32 %v163, 0.0
  %v228 = vmax.f32 %v164, 0.0
  %v229 = vmax.f32 %v165, 0.0
  %v230 = vmax.f32 %v166, 0.0
  %v231 = vmax.f32 %v167, 0.0
  %v232 = vmax.f32 %v168, 0.0
  %v233 = vmax.f32 %v169, 0.0
  %v234 = vmax.f32 %v170, 0.0
  %v235 = vmax.f32 %v171, 0.0
  %v236 = vmax.f32 %v172, 0.0
  %v237 = vmax.f32 %v173, 0.0
  %v238 = vmax.f32 %v174, 0.0
  %v239 = vmax.f32 %v175, 0.0
  %v240 = vmax.f32 %v176, 0.0
  %v241 = vmax.f32 %v177, 0.0
  %v242 = vmax.f32 %v178, 0.0
  %v243 = vmax.f32 %v179, 0.0
  %v244 = vmax.f32 %v180, 0.0
  %v245 = vmax.f32 %v181, 0.0
  %v246 = vmax.f32 %v182, 0.0
  %v247 = vmax.f32 %v183, 0.0
  %v248 = vmax.f32 %v184, 0.0
  %v249 = vmax.f32 %v185, 0.0
  %v250 = vmax.f32 %v186, 0.0
  %v251 = vmax.f32 %v187, 0.0
  %v252 = vmax.f32 %v188, 0.0
  %v253 = vmax.f32 %v189, 0.0
  %v254 = vmax.f32 %v190, 0.0
  %v255 = vmax.f32 %v191, 0.0
  %v256 = vmax.f32 %v192, 0.0
  %v257 = vmax.f32 %v193, 0.0
  %v258 = vmax.f32 %v194, 0.0
  %v259 = vmax.f32 %v195, 0.0
  %v260 = vmax.f32 %v196, 0.0
  %v261 = vmax.f32 %v197, 0.0
  %v262 = vmax.f32 %v198, 0.0
  %v263 = vmax.f32 %v199, 0.0
  %v264 = vmax.f32 %v200, 0.0
  %v265 = vmax.f32 %v201, 0.0
  %v266 = vmax.f32 %v202, 0.0
  %v267 = vmax.f32 %v203, 0.0
  %v268 = vmax.f32 %v204, 0.0
  %v269 = vmax.f32 %v205, 0.0
  %v270 = vmax.f32 %v206, 0.0
  %v271 = vmax.f32 %v207, 0.0
  %v272 = vmax.f32 %v208, 0.0
  %v273 = vmax.f32 %v209, 0.0
  %v274 = vmax.f32 %v210, 0.0
  %v275 = vmax.f32 %v211, 0.0
  %v276 = vmax.f32 %v212, 0.0
  %v277 = vmax.f32 %v213, 0.0
  %278 = vst [vmem:[%s3] sm:$0xff] %v214
  %279 = vst [vmem:[%s3 + $0x8] sm:$0xff] %v215
  %280 = vst [vmem:[%s3 + $0x10] sm:$0xff] %v216
  %281 = vst [vmem:[%s3 + $0x18] sm:$0xff] %v217
  %282 = vst [vmem:[%s3 + $0x20] sm:$0xff] %v218
  %283 = vst [vmem:[%s3 + $0x28] sm:$0xff] %v219
  %284 = vst [vmem:[%s3 + $0x30] sm:$0xff] %v220
  %285 = vst [vmem:[%s3 + $0x38] sm:$0xff] %v221
  %286 = vst [vmem:[%s3 + $0x40] sm:$0xff] %v222
  %287 = vst [vmem:[%s3 + $0x48] sm:$0xff] %v223
  %288 = vst [vmem:[%s3 + $0x50] sm:$0xff] %v224
  %289 = vst [vmem:[%s3 + $0x58] sm:$0xff] %v225
  %290 = vst [vmem:[%s3 + $0x60] sm:$0xff] %v226
  %291 = vst [vmem:[%s3 + $0x68] sm:$0xff] %v227
  %292 = vst [vmem:[%s3 + $0x70] sm:$0xff] %v228
  %293 = vst [vmem:[%s3 + $0x78] sm:$0xff] %v229
  %294 = vst [vmem:[%s3 + $0x80] sm:$0xff] %v230
  %295 = vst [vmem:[%s3 + $0x88] sm:$0xff] %v231
  %296 = vst [vmem:[%s3 + $0x90] sm:$0xff] %v232
  %297 = vst [vmem:[%s3 + $0x98] sm:$0xff] %v233
  %298 = vst [vmem:[%s3 + $0xa0] sm:$0xff] %v234
  %299 = vst [vmem:[%s3 + $0xa8] sm:$0xff] %v235
  %300 = vst [vmem:[%s3 + $0xb0] sm:$0xff] %v236
  %301 = vst [vmem:[%s3 + $0xb8] sm:$0xff] %v237
  %302 = vst [vmem:[%s3 + $0xc0] sm:$0xff] %v238
  %303 = vst [vmem:[%s3 + $0xc8] sm:$0xff] %v239
  %304 = vst [vmem:[%s3 + $0xd0] sm:$0xff] %v240
  %305 = vst [vmem:[%s3 + $0xd8] sm:$0xff] %v241
  %306 = vst [vmem:[%s3 + $0xe0] sm:$0xff] %v242
  %307 = vst [vmem:[%s3 + $0xe8] sm:$0xff] %v243
  %308 = vst [vmem:[%s3 + $0xf0] sm:$0xff] %v244
  %309 = vst [vmem:[%s3 + $0xf8] sm:$0xff] %v245
  %310 = vst [vmem:[%s3 + $0x100] sm:$0xff] %v246
  %311 = vst [vmem:[%s3 + $0x108] sm:$0xff] %v247
  %312 = vst [vmem:[%s3 + $0x110] sm:$0xff] %v248
  %313 = vst [vmem:[%s3 + $0x118] sm:$0xff] %v249
  %314 = vst [vmem:[%s3 + $0x120] sm:$0xff] %v250
  %315 = vst [vmem:[%s3 + $0x128] sm:$0xff] %v251
  %316 = vst [vmem:[%s3 + $0x130] sm:$0xff] %v252
  %317 = vst [vmem:[%s3 + $0x138] sm:$0xff] %v253
  %318 = vst [vmem:[%s3 + $0x140] sm:$0xff] %v254
  %319 = vst [vmem:[%s3 + $0x148] sm:$0xff] %v255
  %320 = vst [vmem:[%s3 + $0x150] sm:$0xff] %v256
  %321 = vst [vmem:[%s3 + $0x158] sm:$0xff] %v257
  %322 = vst [vmem:[%s3 + $0x160] sm:$0xff] %v258
  %323 = vst [vmem:[%s3 + $0x168] sm:$0xff] %v259
  %324 = vst [vmem:[%s3 + $0x170] sm:$0xff] %v260
  %325 = vst [vmem:[%s3 + $0x178] sm:$0xff] %v261
  %326 = vst [vmem:[%s3 + $0x180] sm:$0xff] %v262
  %327 = vst [vmem:[%s3 + $0x188] sm:$0xff] %v263
  %328 = vst [vmem:[%s3 + $0x190] sm:$0xff] %v264
  %329 = vst [vmem:[%s3 + $0x198] sm:$0xff] %v265
  %330 = vst [vmem:[%s3 + $0x1a0] sm:$0xff] %v266
  %331 = vst [vmem:[%s3 + $0x1a8] sm:$0xff] %v267
  %332 = vst [vmem:[%s3 + $0x1b0] sm:$0xff] %v268
  %333 = vst [vmem:[%s3 + $0x1b8] sm:$0xff] %v269
  %334 = vst [vmem:[%s3 + $0x1c0] sm:$0xff] %v270
  %335 = vst [vmem:[%s3 + $0x1c8] sm:$0xff] %v271
  %336 = vst [vmem:[%s3 + $0x1d0] sm:$0xff] %v272
  %337 = vst [vmem:[%s3 + $0x1d8] sm:$0xff] %v273
  %338 = vst [vmem:[%s3 + $0x1e0] sm:$0xff] %v274
  %339 = vst [vmem:[%s3 + $0x1e8] sm:$0xff] %v275
  %340 = vst [vmem:[%s3 + $0x1f0] sm:$0xff] %v276
  %341 = vst [vmem:[%s3 + $0x1f8] sm:$0xff] %v277
  // Predicated region
  $region14: #{generator_forward.14} parent=0 // pred_check
    _
  $region15: #{generator_forward.14} parent=0 // pred_check_branch
    %343 = sbr.rel (0) target = $region17
  $region16: #{generator_forward.14} parent=0 // pred_region
    _
  $region17: #{generator_forward.14} parent=0 // pred_fallthru
    _
  // Predicated region
  $region18: #{generator_forward.14} parent=0 // pred_check
    _
  $region19: #{generator_forward.14} parent=0 // pred_check_branch
    %345 = sbr.rel (0) target = $region21
  $region20: #{generator_forward.14} parent=0 // pred_region
    _
  $region21: #{generator_forward.14} parent=0 // pred_fallthru
    _

// kernel: generator_forward.13
$region0: #{generator_forward.13}
  #allocation0 [shape = 'u32[]', space=smem, size = 0x4, offset = 0x4, fixed_abs, tag = 'smem constant byte address 0x4 - core index']
  #allocation1 [shape = 'u32[72,128]{1,0:T(1,128)}', space=vmem, size = 0x9000, scoped, tag = 'internal scratch']
  #allocation2 [shape = 'f32[512,128]{1,0:T(8,128)}', space=vmem, size = 0x40000, scoped, tag = 'scratch operand']
  %s0 = inlined_call_operand.vmem [shape: f32[512,512], index: 0, kind: input, shape index: {}]
  %s1 = inlined_call_operand.vmem [shape: f32[512,128], index: 1, kind: input, shape index: {}]
  %s2 = inlined_call_operand.vmem [shape: f32[512,128], index: 2, kind: output, shape index: {0}]
  %s3 = inlined_call_operand.vmem [shape: f32[1,128], index: 3, kind: output, shape index: {1}]
  %s4 = inlined_call_operand.vmem [shape: f32[1,128], index: 4, kind: output, shape index: {2}]
  %5 = xla_tuple %s2, %s3, %s4
  %s6 = sld [smem:[#allocation0]]
  $region46: #{generator_forward.13} parent=0
    _
  %s8 = ssub.s32 1, %s6
  %s9 = scalar_select 0, %s8, %s6
  // Predicated region
  $region2: #{generator_forward.13} parent=0 // pred_check
    _
  $region3: #{generator_forward.13} parent=0 // pred_check_branch
    %11 = sbr.rel (0) target = $region5
  $region4: #{generator_forward.13} parent=0 // pred_region
    _
  $region5: #{generator_forward.13} parent=0 // pred_fallthru
    _
  // Predicated region
  $region6: #{generator_forward.13} parent=0 // pred_check
    _
  $region7: #{generator_forward.13} parent=0 // pred_check_branch
    %13 = sbr.rel (0) target = $region9
  $region8: #{generator_forward.13} parent=0 // pred_region
    _
  $region9: #{generator_forward.13} parent=0 // pred_fallthru
    _
  %p14 = scmp.eq.s32.totalorder 0, 0
  %p15 = scmp.eq.s32.totalorder 0, 0
  %p16 = pnand %p14, %p15
  %p17 = pneg %p16
  // Predicated region
  $region10: #{generator_forward.13} parent=0 // pred_check
    _
  $region11: #{generator_forward.13} parent=0 // pred_check_branch
    %19 = sbr.rel (%p16) target = $region13
  $region12: #{generator_forward.13} parent=0 // pred_region
    %20 = vst [vmem:[%s3] sm:$0x1] 0.0
    %21 = vst [vmem:[%s4] sm:$0x1] 0.0
  $region13: #{generator_forward.13} parent=0 // pred_fallthru
    _
  // Predicated region
  $region14: #{generator_forward.13} parent=0 // pred_check
    %p22 = pneg %p15
  $region15: #{generator_forward.13} parent=0 // pred_check_branch
    %24 = sbr.rel (%p22) target = $region17
  $region16: #{generator_forward.13} parent=0 // pred_region
    %25 = vst [vmem:[#allocation2] sm:$0xff] 0.0
    %26 = vst [vmem:[#allocation2 + $0x8] sm:$0xff] 0.0
    %27 = vst [vmem:[#allocation2 + $0x10] sm:$0xff] 0.0
    %28 = vst [vmem:[#allocation2 + $0x18] sm:$0xff] 0.0
    %29 = vst [vmem:[#allocation2 + $0x20] sm:$0xff] 0.0
    %30 = vst [vmem:[#allocation2 + $0x28] sm:$0xff] 0.0
    %31 = vst [vmem:[#allocation2 + $0x30] sm:$0xff] 0.0
    %32 = vst [vmem:[#allocation2 + $0x38] sm:$0xff] 0.0
    %33 = vst [vmem:[#allocation2 + $0x40] sm:$0xff] 0.0
    %34 = vst [vmem:[#allocation2 + $0x48] sm:$0xff] 0.0
    %35 = vst [vmem:[#allocation2 + $0x50] sm:$0xff] 0.0
    %36 = vst [vmem:[#allocation2 + $0x58] sm:$0xff] 0.0
    %37 = vst [vmem:[#allocation2 + $0x60] sm:$0xff] 0.0
    %38 = vst [vmem:[#allocation2 + $0x68] sm:$0xff] 0.0
    %39 = vst [vmem:[#allocation2 + $0x70] sm:$0xff] 0.0
    %40 = vst [vmem:[#allocation2 + $0x78] sm:$0xff] 0.0
    %41 = vst [vmem:[#allocation2 + $0x80] sm:$0xff] 0.0
    %42 = vst [vmem:[#allocation2 + $0x88] sm:$0xff] 0.0
    %43 = vst [vmem:[#allocation2 + $0x90] sm:$0xff] 0.0
    %44 = vst [vmem:[#allocation2 + $0x98] sm:$0xff] 0.0
    %45 = vst [vmem:[#allocation2 + $0xa0] sm:$0xff] 0.0
    %46 = vst [vmem:[#allocation2 + $0xa8] sm:$0xff] 0.0
    %47 = vst [vmem:[#allocation2 + $0xb0] sm:$0xff] 0.0
    %48 = vst [vmem:[#allocation2 + $0xb8] sm:$0xff] 0.0
    %49 = vst [vmem:[#allocation2 + $0xc0] sm:$0xff] 0.0
    %50 = vst [vmem:[#allocation2 + $0xc8] sm:$0xff] 0.0
    %51 = vst [vmem:[#allocation2 + $0xd0] sm:$0xff] 0.0
    %52 = vst [vmem:[#allocation2 + $0xd8] sm:$0xff] 0.0
    %53 = vst [vmem:[#allocation2 + $0xe0] sm:$0xff] 0.0
    %54 = vst [vmem:[#allocation2 + $0xe8] sm:$0xff] 0.0
    %55 = vst [vmem:[#allocation2 + $0xf0] sm:$0xff] 0.0
    %56 = vst [vmem:[#allocation2 + $0xf8] sm:$0xff] 0.0
    %57 = vst [vmem:[#allocation2 + $0x100] sm:$0xff] 0.0
    %58 = vst [vmem:[#allocation2 + $0x108] sm:$0xff] 0.0
    %59 = vst [vmem:[#allocation2 + $0x110] sm:$0xff] 0.0
    %60 = vst [vmem:[#allocation2 + $0x118] sm:$0xff] 0.0
    %61 = vst [vmem:[#allocation2 + $0x120] sm:$0xff] 0.0
    %62 = vst [vmem:[#allocation2 + $0x128] sm:$0xff] 0.0
    %63 = vst [vmem:[#allocation2 + $0x130] sm:$0xff] 0.0
    %64 = vst [vmem:[#allocation2 + $0x138] sm:$0xff] 0.0
    %65 = vst [vmem:[#allocation2 + $0x140] sm:$0xff] 0.0
    %66 = vst [vmem:[#allocation2 + $0x148] sm:$0xff] 0.0
    %67 = vst [vmem:[#allocation2 + $0x150] sm:$0xff] 0.0
    %68 = vst [vmem:[#allocation2 + $0x158] sm:$0xff] 0.0
    %69 = vst [vmem:[#allocation2 + $0x160] sm:$0xff] 0.0
    %70 = vst [vmem:[#allocation2 + $0x168] sm:$0xff] 0.0
    %71 = vst [vmem:[#allocation2 + $0x170] sm:$0xff] 0.0
    %72 = vst [vmem:[#allocation2 + $0x178] sm:$0xff] 0.0
    %73 = vst [vmem:[#allocation2 + $0x180] sm:$0xff] 0.0
    %74 = vst [vmem:[#allocation2 + $0x188] sm:$0xff] 0.0
    %75 = vst [vmem:[#allocation2 + $0x190] sm:$0xff] 0.0
    %76 = vst [vmem:[#allocation2 + $0x198] sm:$0xff] 0.0
    %77 = vst [vmem:[#allocation2 + $0x1a0] sm:$0xff] 0.0
    %78 = vst [vmem:[#allocation2 + $0x1a8] sm:$0xff] 0.0
    %79 = vst [vmem:[#allocation2 + $0x1b0] sm:$0xff] 0.0
    %80 = vst [vmem:[#allocation2 + $0x1b8] sm:$0xff] 0.0
    %81 = vst [vmem:[#allocation2 + $0x1c0] sm:$0xff] 0.0
    %82 = vst [vmem:[#allocation2 + $0x1c8] sm:$0xff] 0.0
    %83 = vst [vmem:[#allocation2 + $0x1d0] sm:$0xff] 0.0
    %84 = vst [vmem:[#allocation2 + $0x1d8] sm:$0xff] 0.0
    %85 = vst [vmem:[#allocation2 + $0x1e0] sm:$0xff] 0.0
    %86 = vst [vmem:[#allocation2 + $0x1e8] sm:$0xff] 0.0
    %87 = vst [vmem:[#allocation2 + $0x1f0] sm:$0xff] 0.0
    %88 = vst [vmem:[#allocation2 + $0x1f8] sm:$0xff] 0.0
  $region17: #{generator_forward.13} parent=0 // pred_fallthru
    _
  %v89 = vld [vmem:[#allocation2] sm:$0xff]
  %v90 = vld [vmem:[#allocation2 + $0x8] sm:$0xff]
  %v91 = vld [vmem:[#allocation2 + $0x10] sm:$0xff]
  %v92 = vld [vmem:[#allocation2 + $0x18] sm:$0xff]
  %v93 = vld [vmem:[#allocation2 + $0x20] sm:$0xff]
  %v94 = vld [vmem:[#allocation2 + $0x28] sm:$0xff]
  %v95 = vld [vmem:[#allocation2 + $0x30] sm:$0xff]
  %v96 = vld [vmem:[#allocation2 + $0x38] sm:$0xff]
  %v97 = vld [vmem:[#allocation2 + $0x40] sm:$0xff]
  %v98 = vld [vmem:[#allocation2 + $0x48] sm:$0xff]
  %v99 = vld [vmem:[#allocation2 + $0x50] sm:$0xff]
  %v100 = vld [vmem:[#allocation2 + $0x58] sm:$0xff]
  %v101 = vld [vmem:[#allocation2 + $0x60] sm:$0xff]
  %v102 = vld [vmem:[#allocation2 + $0x68] sm:$0xff]
  %v103 = vld [vmem:[#allocation2 + $0x70] sm:$0xff]
  %v104 = vld [vmem:[#allocation2 + $0x78] sm:$0xff]
  %v105 = vld [vmem:[#allocation2 + $0x80] sm:$0xff]
  %v106 = vld [vmem:[#allocation2 + $0x88] sm:$0xff]
  %v107 = vld [vmem:[#allocation2 + $0x90] sm:$0xff]
  %v108 = vld [vmem:[#allocation2 + $0x98] sm:$0xff]
  %v109 = vld [vmem:[#allocation2 + $0xa0] sm:$0xff]
  %v110 = vld [vmem:[#allocation2 + $0xa8] sm:$0xff]
  %v111 = vld [vmem:[#allocation2 + $0xb0] sm:$0xff]
  %v112 = vld [vmem:[#allocation2 + $0xb8] sm:$0xff]
  %v113 = vld [vmem:[#allocation2 + $0xc0] sm:$0xff]
  %v114 = vld [vmem:[#allocation2 + $0xc8] sm:$0xff]
  %v115 = vld [vmem:[#allocation2 + $0xd0] sm:$0xff]
  %v116 = vld [vmem:[#allocation2 + $0xd8] sm:$0xff]
  %v117 = vld [vmem:[#allocation2 + $0xe0] sm:$0xff]
  %v118 = vld [vmem:[#allocation2 + $0xe8] sm:$0xff]
  %v119 = vld [vmem:[#allocation2 + $0xf0] sm:$0xff]
  %v120 = vld [vmem:[#allocation2 + $0xf8] sm:$0xff]
  %v121 = vld [vmem:[#allocation2 + $0x100] sm:$0xff]
  %v122 = vld [vmem:[#allocation2 + $0x108] sm:$0xff]
  %v123 = vld [vmem:[#allocation2 + $0x110] sm:$0xff]
  %v124 = vld [vmem:[#allocation2 + $0x118] sm:$0xff]
  %v125 = vld [vmem:[#allocation2 + $0x120] sm:$0xff]
  %v126 = vld [vmem:[#allocation2 + $0x128] sm:$0xff]
  %v127 = vld [vmem:[#allocation2 + $0x130] sm:$0xff]
  %v128 = vld [vmem:[#allocation2 + $0x138] sm:$0xff]
  %v129 = vld [vmem:[#allocation2 + $0x140] sm:$0xff]
  %v130 = vld [vmem:[#allocation2 + $0x148] sm:$0xff]
  %v131 = vld [vmem:[#allocation2 + $0x150] sm:$0xff]
  %v132 = vld [vmem:[#allocation2 + $0x158] sm:$0xff]
  %v133 = vld [vmem:[#allocation2 + $0x160] sm:$0xff]
  %v134 = vld [vmem:[#allocation2 + $0x168] sm:$0xff]
  %v135 = vld [vmem:[#allocation2 + $0x170] sm:$0xff]
  %v136 = vld [vmem:[#allocation2 + $0x178] sm:$0xff]
  %v137 = vld [vmem:[#allocation2 + $0x180] sm:$0xff]
  %v138 = vld [vmem:[#allocation2 + $0x188] sm:$0xff]
  %v139 = vld [vmem:[#allocation2 + $0x190] sm:$0xff]
  %v140 = vld [vmem:[#allocation2 + $0x198] sm:$0xff]
  %v141 = vld [vmem:[#allocation2 + $0x1a0] sm:$0xff]
  %v142 = vld [vmem:[#allocation2 + $0x1a8] sm:$0xff]
  %v143 = vld [vmem:[#allocation2 + $0x1b0] sm:$0xff]
  %v144 = vld [vmem:[#allocation2 + $0x1b8] sm:$0xff]
  %v145 = vld [vmem:[#allocation2 + $0x1c0] sm:$0xff]
  %v146 = vld [vmem:[#allocation2 + $0x1c8] sm:$0xff]
  %v147 = vld [vmem:[#allocation2 + $0x1d0] sm:$0xff]
  %v148 = vld [vmem:[#allocation2 + $0x1d8] sm:$0xff]
  %v149 = vld [vmem:[#allocation2 + $0x1e0] sm:$0xff]
  %v150 = vld [vmem:[#allocation2 + $0x1e8] sm:$0xff]
  %v151 = vld [vmem:[#allocation2 + $0x1f0] sm:$0xff]
  %v152 = vld [vmem:[#allocation2 + $0x1f8] sm:$0xff]
  %v153 = vld [vmem:[%s0] sm:$0xff]
  %v154 = vld [vmem:[%s0 + $0x8] sm:$0xff]
  %v155 = vld [vmem:[%s0 + $0x10] sm:$0xff]
  %v156 = vld [vmem:[%s0 + $0x18] sm:$0xff]
  %v157 = vld [vmem:[%s0 + $0x20] sm:$0xff]
  %v158 = vld [vmem:[%s0 + $0x28] sm:$0xff]
  %v159 = vld [vmem:[%s0 + $0x30] sm:$0xff]
  %v160 = vld [vmem:[%s0 + $0x38] sm:$0xff]
  %v161 = vld [vmem:[%s0 + $0x40] sm:$0xff]
  %v162 = vld [vmem:[%s0 + $0x48] sm:$0xff]
  %v163 = vld [vmem:[%s0 + $0x50] sm:$0xff]
  %v164 = vld [vmem:[%s0 + $0x58] sm:$0xff]
  %v165 = vld [vmem:[%s0 + $0x60] sm:$0xff]
  %v166 = vld [vmem:[%s0 + $0x68] sm:$0xff]
  %v167 = vld [vmem:[%s0 + $0x70] sm:$0xff]
  %v168 = vld [vmem:[%s0 + $0x78] sm:$0xff]
  %v169 = vld [vmem:[%s0 + $0x80] sm:$0xff]
  %v170 = vld [vmem:[%s0 + $0x88] sm:$0xff]
  %v171 = vld [vmem:[%s0 + $0x90] sm:$0xff]
  %v172 = vld [vmem:[%s0 + $0x98] sm:$0xff]
  %v173 = vld [vmem:[%s0 + $0xa0] sm:$0xff]
  %v174 = vld [vmem:[%s0 + $0xa8] sm:$0xff]
  %v175 = vld [vmem:[%s0 + $0xb0] sm:$0xff]
  %v176 = vld [vmem:[%s0 + $0xb8] sm:$0xff]
  %v177 = vld [vmem:[%s0 + $0xc0] sm:$0xff]
  %v178 = vld [vmem:[%s0 + $0xc8] sm:$0xff]
  %v179 = vld [vmem:[%s0 + $0xd0] sm:$0xff]
  %v180 = vld [vmem:[%s0 + $0xd8] sm:$0xff]
  %v181 = vld [vmem:[%s0 + $0xe0] sm:$0xff]
  %v182 = vld [vmem:[%s0 + $0xe8] sm:$0xff]
  %v183 = vld [vmem:[%s0 + $0xf0] sm:$0xff]
  %v184 = vld [vmem:[%s0 + $0xf8] sm:$0xff]
  %v185 = vld [vmem:[%s0 + $0x100] sm:$0xff]
  %v186 = vld [vmem:[%s0 + $0x108] sm:$0xff]
  %v187 = vld [vmem:[%s0 + $0x110] sm:$0xff]
  %v188 = vld [vmem:[%s0 + $0x118] sm:$0xff]
  %v189 = vld [vmem:[%s0 + $0x120] sm:$0xff]
  %v190 = vld [vmem:[%s0 + $0x128] sm:$0xff]
  %v191 = vld [vmem:[%s0 + $0x130] sm:$0xff]
  %v192 = vld [vmem:[%s0 + $0x138] sm:$0xff]
  %v193 = vld [vmem:[%s0 + $0x140] sm:$0xff]
  %v194 = vld [vmem:[%s0 + $0x148] sm:$0xff]
  %v195 = vld [vmem:[%s0 + $0x150] sm:$0xff]
  %v196 = vld [vmem:[%s0 + $0x158] sm:$0xff]
  %v197 = vld [vmem:[%s0 + $0x160] sm:$0xff]
  %v198 = vld [vmem:[%s0 + $0x168] sm:$0xff]
  %v199 = vld [vmem:[%s0 + $0x170] sm:$0xff]
  %v200 = vld [vmem:[%s0 + $0x178] sm:$0xff]
  %v201 = vld [vmem:[%s0 + $0x180] sm:$0xff]
  %v202 = vld [vmem:[%s0 + $0x188] sm:$0xff]
  %v203 = vld [vmem:[%s0 + $0x190] sm:$0xff]
  %v204 = vld [vmem:[%s0 + $0x198] sm:$0xff]
  %v205 = vld [vmem:[%s0 + $0x1a0] sm:$0xff]
  %v206 = vld [vmem:[%s0 + $0x1a8] sm:$0xff]
  %v207 = vld [vmem:[%s0 + $0x1b0] sm:$0xff]
  %v208 = vld [vmem:[%s0 + $0x1b8] sm:$0xff]
  %v209 = vld [vmem:[%s0 + $0x1c0] sm:$0xff]
  %v210 = vld [vmem:[%s0 + $0x1c8] sm:$0xff]
  %v211 = vld [vmem:[%s0 + $0x1d0] sm:$0xff]
  %v212 = vld [vmem:[%s0 + $0x1d8] sm:$0xff]
  %v213 = vld [vmem:[%s0 + $0x1e0] sm:$0xff]
  %v214 = vld [vmem:[%s0 + $0x1e8] sm:$0xff]
  %v215 = vld [vmem:[%s0 + $0x1f0] sm:$0xff]
  %v216 = vld [vmem:[%s0 + $0x1f8] sm:$0xff]
  %v217 = vld [vmem:[%s0 + $0x200] sm:$0xff]
  %v218 = vld [vmem:[%s0 + $0x208] sm:$0xff]
  %v219 = vld [vmem:[%s0 + $0x210] sm:$0xff]
  %v220 = vld [vmem:[%s0 + $0x218] sm:$0xff]
  %v221 = vld [vmem:[%s0 + $0x220] sm:$0xff]
  %v222 = vld [vmem:[%s0 + $0x228] sm:$0xff]
  %v223 = vld [vmem:[%s0 + $0x230] sm:$0xff]
  %v224 = vld [vmem:[%s0 + $0x238] sm:$0xff]
  %v225 = vld [vmem:[%s0 + $0x240] sm:$0xff]
  %v226 = vld [vmem:[%s0 + $0x248] sm:$0xff]
  %v227 = vld [vmem:[%s0 + $0x250] sm:$0xff]
  %v228 = vld [vmem:[%s0 + $0x258] sm:$0xff]
  %v229 = vld [vmem:[%s0 + $0x260] sm:$0xff]
  %v230 = vld [vmem:[%s0 + $0x268] sm:$0xff]
  %v231 = vld [vmem:[%s0 + $0x270] sm:$0xff]
  %v232 = vld [vmem:[%s0 + $0x278] sm:$0xff]
  %v233 = vld [vmem:[%s0 + $0x280] sm:$0xff]
  %v234 = vld [vmem:[%s0 + $0x288] sm:$0xff]
  %v235 = vld [vmem:[%s0 + $0x290] sm:$0xff]
  %v236 = vld [vmem:[%s0 + $0x298] sm:$0xff]
  %v237 = vld [vmem:[%s0 + $0x2a0] sm:$0xff]
  %v238 = vld [vmem:[%s0 + $0x2a8] sm:$0xff]
  %v239 = vld [vmem:[%s0 + $0x2b0] sm:$0xff]
  %v240 = vld [vmem:[%s0 + $0x2b8] sm:$0xff]
  %v241 = vld [vmem:[%s0 + $0x2c0] sm:$0xff]
  %v242 = vld [vmem:[%s0 + $0x2c8] sm:$0xff]
  %v243 = vld [vmem:[%s0 + $0x2d0] sm:$0xff]
  %v244 = vld [vmem:[%s0 + $0x2d8] sm:$0xff]
  %v245 = vld [vmem:[%s0 + $0x2e0] sm:$0xff]
  %v246 = vld [vmem:[%s0 + $0x2e8] sm:$0xff]
  %v247 = vld [vmem:[%s0 + $0x2f0] sm:$0xff]
  %v248 = vld [vmem:[%s0 + $0x2f8] sm:$0xff]
  %v249 = vld [vmem:[%s0 + $0x300] sm:$0xff]
  %v250 = vld [vmem:[%s0 + $0x308] sm:$0xff]
  %v251 = vld [vmem:[%s0 + $0x310] sm:$0xff]
  %v252 = vld [vmem:[%s0 + $0x318] sm:$0xff]
  %v253 = vld [vmem:[%s0 + $0x320] sm:$0xff]
  %v254 = vld [vmem:[%s0 + $0x328] sm:$0xff]
  %v255 = vld [vmem:[%s0 + $0x330] sm:$0xff]
  %v256 = vld [vmem:[%s0 + $0x338] sm:$0xff]
  %v257 = vld [vmem:[%s0 + $0x340] sm:$0xff]
  %v258 = vld [vmem:[%s0 + $0x348] sm:$0xff]
  %v259 = vld [vmem:[%s0 + $0x350] sm:$0xff]
  %v260 = vld [vmem:[%s0 + $0x358] sm:$0xff]
  %v261 = vld [vmem:[%s0 + $0x360] sm:$0xff]
  %v262 = vld [vmem:[%s0 + $0x368] sm:$0xff]
  %v263 = vld [vmem:[%s0 + $0x370] sm:$0xff]
  %v264 = vld [vmem:[%s0 + $0x378] sm:$0xff]
  %v265 = vld [vmem:[%s0 + $0x380] sm:$0xff]
  %v266 = vld [vmem:[%s0 + $0x388] sm:$0xff]
  %v267 = vld [vmem:[%s0 + $0x390] sm:$0xff]
  %v268 = vld [vmem:[%s0 + $0x398] sm:$0xff]
  %v269 = vld [vmem:[%s0 + $0x3a0] sm:$0xff]
  %v270 = vld [vmem:[%s0 + $0x3a8] sm:$0xff]
  %v271 = vld [vmem:[%s0 + $0x3b0] sm:$0xff]
  %v272 = vld [vmem:[%s0 + $0x3b8] sm:$0xff]
  %v273 = vld [vmem:[%s0 + $0x3c0] sm:$0xff]
  %v274 = vld [vmem:[%s0 + $0x3c8] sm:$0xff]
  %v275 = vld [vmem:[%s0 + $0x3d0] sm:$0xff]
  %v276 = vld [vmem:[%s0 + $0x3d8] sm:$0xff]
  %v277 = vld [vmem:[%s0 + $0x3e0] sm:$0xff]
  %v278 = vld [vmem:[%s0 + $0x3e8] sm:$0xff]
  %v279 = vld [vmem:[%s0 + $0x3f0] sm:$0xff]
  %v280 = vld [vmem:[%s0 + $0x3f8] sm:$0xff]
  %v281 = vld [vmem:[%s0 + $0x400] sm:$0xff]
  %v282 = vld [vmem:[%s0 + $0x408] sm:$0xff]
  %v283 = vld [vmem:[%s0 + $0x410] sm:$0xff]
  %v284 = vld [vmem:[%s0 + $0x418] sm:$0xff]
  %v285 = vld [vmem:[%s0 + $0x420] sm:$0xff]
  %v286 = vld [vmem:[%s0 + $0x428] sm:$0xff]
  %v287 = vld [vmem:[%s0 + $0x430] sm:$0xff]
  %v288 = vld [vmem:[%s0 + $0x438] sm:$0xff]
  %v289 = vld [vmem:[%s0 + $0x440] sm:$0xff]
  %v290 = vld [vmem:[%s0 + $0x448] sm:$0xff]
  %v291 = vld [vmem:[%s0 + $0x450] sm:$0xff]
  %v292 = vld [vmem:[%s0 + $0x458] sm:$0xff]
  %v293 = vld [vmem:[%s0 + $0x460] sm:$0xff]
  %v294 = vld [vmem:[%s0 + $0x468] sm:$0xff]
  %v295 = vld [vmem:[%s0 + $0x470] sm:$0xff]
  %v296 = vld [vmem:[%s0 + $0x478] sm:$0xff]
  %v297 = vld [vmem:[%s0 + $0x480] sm:$0xff]
  %v298 = vld [vmem:[%s0 + $0x488] sm:$0xff]
  %v299 = vld [vmem:[%s0 + $0x490] sm:$0xff]
  %v300 = vld [vmem:[%s0 + $0x498] sm:$0xff]
  %v301 = vld [vmem:[%s0 + $0x4a0] sm:$0xff]
  %v302 = vld [vmem:[%s0 + $0x4a8] sm:$0xff]
  %v303 = vld [vmem:[%s0 + $0x4b0] sm:$0xff]
  %v304 = vld [vmem:[%s0 + $0x4b8] sm:$0xff]
  %v305 = vld [vmem:[%s0 + $0x4c0] sm:$0xff]
  %v306 = vld [vmem:[%s0 + $0x4c8] sm:$0xff]
  %v307 = vld [vmem:[%s0 + $0x4d0] sm:$0xff]
  %v308 = vld [vmem:[%s0 + $0x4d8] sm:$0xff]
  %v309 = vld [vmem:[%s0 + $0x4e0] sm:$0xff]
  %v310 = vld [vmem:[%s0 + $0x4e8] sm:$0xff]
  %v311 = vld [vmem:[%s0 + $0x4f0] sm:$0xff]
  %v312 = vld [vmem:[%s0 + $0x4f8] sm:$0xff]
  %v313 = vld [vmem:[%s0 + $0x500] sm:$0xff]
  %v314 = vld [vmem:[%s0 + $0x508] sm:$0xff]
  %v315 = vld [vmem:[%s0 + $0x510] sm:$0xff]
  %v316 = vld [vmem:[%s0 + $0x518] sm:$0xff]
  %v317 = vld [vmem:[%s0 + $0x520] sm:$0xff]
  %v318 = vld [vmem:[%s0 + $0x528] sm:$0xff]
  %v319 = vld [vmem:[%s0 + $0x530] sm:$0xff]
  %v320 = vld [vmem:[%s0 + $0x538] sm:$0xff]
  %v321 = vld [vmem:[%s0 + $0x540] sm:$0xff]
  %v322 = vld [vmem:[%s0 + $0x548] sm:$0xff]
  %v323 = vld [vmem:[%s0 + $0x550] sm:$0xff]
  %v324 = vld [vmem:[%s0 + $0x558] sm:$0xff]
  %v325 = vld [vmem:[%s0 + $0x560] sm:$0xff]
  %v326 = vld [vmem:[%s0 + $0x568] sm:$0xff]
  %v327 = vld [vmem:[%s0 + $0x570] sm:$0xff]
  %v328 = vld [vmem:[%s0 + $0x578] sm:$0xff]
  %v329 = vld [vmem:[%s0 + $0x580] sm:$0xff]
  %v330 = vld [vmem:[%s0 + $0x588] sm:$0xff]
  %v331 = vld [vmem:[%s0 + $0x590] sm:$0xff]
  %v332 = vld [vmem:[%s0 + $0x598] sm:$0xff]
  %v333 = vld [vmem:[%s0 + $0x5a0] sm:$0xff]
  %v334 = vld [vmem:[%s0 + $0x5a8] sm:$0xff]
  %v335 = vld [vmem:[%s0 + $0x5b0] sm:$0xff]
  %v336 = vld [vmem:[%s0 + $0x5b8] sm:$0xff]
  %v337 = vld [vmem:[%s0 + $0x5c0] sm:$0xff]
  %v338 = vld [vmem:[%s0 + $0x5c8] sm:$0xff]
  %v339 = vld [vmem:[%s0 + $0x5d0] sm:$0xff]
  %v340 = vld [vmem:[%s0 + $0x5d8] sm:$0xff]
  %v341 = vld [vmem:[%s0 + $0x5e0] sm:$0xff]
  %v342 = vld [vmem:[%s0 + $0x5e8] sm:$0xff]
  %v343 = vld [vmem:[%s0 + $0x5f0] sm:$0xff]
  %v344 = vld [vmem:[%s0 + $0x5f8] sm:$0xff]
  %v345 = vld [vmem:[%s0 + $0x600] sm:$0xff]
  %v346 = vld [vmem:[%s0 + $0x608] sm:$0xff]
  %v347 = vld [vmem:[%s0 + $0x610] sm:$0xff]
  %v348 = vld [vmem:[%s0 + $0x618] sm:$0xff]
  %v349 = vld [vmem:[%s0 + $0x620] sm:$0xff]
  %v350 = vld [vmem:[%s0 + $0x628] sm:$0xff]
  %v351 = vld [vmem:[%s0 + $0x630] sm:$0xff]
  %v352 = vld [vmem:[%s0 + $0x638] sm:$0xff]
  %v353 = vld [vmem:[%s0 + $0x640] sm:$0xff]
  %v354 = vld [vmem:[%s0 + $0x648] sm:$0xff]
  %v355 = vld [vmem:[%s0 + $0x650] sm:$0xff]
  %v356 = vld [vmem:[%s0 + $0x658] sm:$0xff]
  %v357 = vld [vmem:[%s0 + $0x660] sm:$0xff]
  %v358 = vld [vmem:[%s0 + $0x668] sm:$0xff]
  %v359 = vld [vmem:[%s0 + $0x670] sm:$0xff]
  %v360 = vld [vmem:[%s0 + $0x678] sm:$0xff]
  %v361 = vld [vmem:[%s0 + $0x680] sm:$0xff]
  %v362 = vld [vmem:[%s0 + $0x688] sm:$0xff]
  %v363 = vld [vmem:[%s0 + $0x690] sm:$0xff]
  %v364 = vld [vmem:[%s0 + $0x698] sm:$0xff]
  %v365 = vld [vmem:[%s0 + $0x6a0] sm:$0xff]
  %v366 = vld [vmem:[%s0 + $0x6a8] sm:$0xff]
  %v367 = vld [vmem:[%s0 + $0x6b0] sm:$0xff]
  %v368 = vld [vmem:[%s0 + $0x6b8] sm:$0xff]
  %v369 = vld [vmem:[%s0 + $0x6c0] sm:$0xff]
  %v370 = vld [vmem:[%s0 + $0x6c8] sm:$0xff]
  %v371 = vld [vmem:[%s0 + $0x6d0] sm:$0xff]
  %v372 = vld [vmem:[%s0 + $0x6d8] sm:$0xff]
  %v373 = vld [vmem:[%s0 + $0x6e0] sm:$0xff]
  %v374 = vld [vmem:[%s0 + $0x6e8] sm:$0xff]
  %v375 = vld [vmem:[%s0 + $0x6f0] sm:$0xff]
  %v376 = vld [vmem:[%s0 + $0x6f8] sm:$0xff]
  %v377 = vld [vmem:[%s0 + $0x700] sm:$0xff]
  %v378 = vld [vmem:[%s0 + $0x708] sm:$0xff]
  %v379 = vld [vmem:[%s0 + $0x710] sm:$0xff]
  %v380 = vld [vmem:[%s0 + $0x718] sm:$0xff]
  %v381 = vld [vmem:[%s0 + $0x720] sm:$0xff]
  %v382 = vld [vmem:[%s0 + $0x728] sm:$0xff]
  %v383 = vld [vmem:[%s0 + $0x730] sm:$0xff]
  %v384 = vld [vmem:[%s0 + $0x738] sm:$0xff]
  %v385 = vld [vmem:[%s0 + $0x740] sm:$0xff]
  %v386 = vld [vmem:[%s0 + $0x748] sm:$0xff]
  %v387 = vld [vmem:[%s0 + $0x750] sm:$0xff]
  %v388 = vld [vmem:[%s0 + $0x758] sm:$0xff]
  %v389 = vld [vmem:[%s0 + $0x760] sm:$0xff]
  %v390 = vld [vmem:[%s0 + $0x768] sm:$0xff]
  %v391 = vld [vmem:[%s0 + $0x770] sm:$0xff]
  %v392 = vld [vmem:[%s0 + $0x778] sm:$0xff]
  %v393 = vld [vmem:[%s0 + $0x780] sm:$0xff]
  %v394 = vld [vmem:[%s0 + $0x788] sm:$0xff]
  %v395 = vld [vmem:[%s0 + $0x790] sm:$0xff]
  %v396 = vld [vmem:[%s0 + $0x798] sm:$0xff]
  %v397 = vld [vmem:[%s0 + $0x7a0] sm:$0xff]
  %v398 = vld [vmem:[%s0 + $0x7a8] sm:$0xff]
  %v399 = vld [vmem:[%s0 + $0x7b0] sm:$0xff]
  %v400 = vld [vmem:[%s0 + $0x7b8] sm:$0xff]
  %v401 = vld [vmem:[%s0 + $0x7c0] sm:$0xff]
  %v402 = vld [vmem:[%s0 + $0x7c8] sm:$0xff]
  %v403 = vld [vmem:[%s0 + $0x7d0] sm:$0xff]
  %v404 = vld [vmem:[%s0 + $0x7d8] sm:$0xff]
  %v405 = vld [vmem:[%s0 + $0x7e0] sm:$0xff]
  %v406 = vld [vmem:[%s0 + $0x7e8] sm:$0xff]
  %v407 = vld [vmem:[%s0 + $0x7f0] sm:$0xff]
  %v408 = vld [vmem:[%s0 + $0x7f8] sm:$0xff]
  %v409 = vld [vmem:[%s1] sm:$0xff]
  %v410 = vld [vmem:[%s1 + $0x8] sm:$0xff]
  %v411 = vld [vmem:[%s1 + $0x10] sm:$0xff]
  %v412 = vld [vmem:[%s1 + $0x18] sm:$0xff]
  %v413 = vld [vmem:[%s1 + $0x20] sm:$0xff]
  %v414 = vld [vmem:[%s1 + $0x28] sm:$0xff]
  %v415 = vld [vmem:[%s1 + $0x30] sm:$0xff]
  %v416 = vld [vmem:[%s1 + $0x38] sm:$0xff]
  %v417 = vld [vmem:[%s1 + $0x40] sm:$0xff]
  %v418 = vld [vmem:[%s1 + $0x48] sm:$0xff]
  %v419 = vld [vmem:[%s1 + $0x50] sm:$0xff]
  %v420 = vld [vmem:[%s1 + $0x58] sm:$0xff]
  %v421 = vld [vmem:[%s1 + $0x60] sm:$0xff]
  %v422 = vld [vmem:[%s1 + $0x68] sm:$0xff]
  %v423 = vld [vmem:[%s1 + $0x70] sm:$0xff]
  %v424 = vld [vmem:[%s1 + $0x78] sm:$0xff]
  %v425 = vld [vmem:[%s1 + $0x80] sm:$0xff]
  %v426 = vld [vmem:[%s1 + $0x88] sm:$0xff]
  %v427 = vld [vmem:[%s1 + $0x90] sm:$0xff]
  %v428 = vld [vmem:[%s1 + $0x98] sm:$0xff]
  %v429 = vld [vmem:[%s1 + $0xa0] sm:$0xff]
  %v430 = vld [vmem:[%s1 + $0xa8] sm:$0xff]
  %v431 = vld [vmem:[%s1 + $0xb0] sm:$0xff]
  %v432 = vld [vmem:[%s1 + $0xb8] sm:$0xff]
  %v433 = vld [vmem:[%s1 + $0xc0] sm:$0xff]
  %v434 = vld [vmem:[%s1 + $0xc8] sm:$0xff]
  %v435 = vld [vmem:[%s1 + $0xd0] sm:$0xff]
  %v436 = vld [vmem:[%s1 + $0xd8] sm:$0xff]
  %v437 = vld [vmem:[%s1 + $0xe0] sm:$0xff]
  %v438 = vld [vmem:[%s1 + $0xe8] sm:$0xff]
  %v439 = vld [vmem:[%s1 + $0xf0] sm:$0xff]
  %v440 = vld [vmem:[%s1 + $0xf8] sm:$0xff]
  %v441 = vld [vmem:[%s1 + $0x100] sm:$0xff]
  %v442 = vld [vmem:[%s1 + $0x108] sm:$0xff]
  %v443 = vld [vmem:[%s1 + $0x110] sm:$0xff]
  %v444 = vld [vmem:[%s1 + $0x118] sm:$0xff]
  %v445 = vld [vmem:[%s1 + $0x120] sm:$0xff]
  %v446 = vld [vmem:[%s1 + $0x128] sm:$0xff]
  %v447 = vld [vmem:[%s1 + $0x130] sm:$0xff]
  %v448 = vld [vmem:[%s1 + $0x138] sm:$0xff]
  %v449 = vld [vmem:[%s1 + $0x140] sm:$0xff]
  %v450 = vld [vmem:[%s1 + $0x148] sm:$0xff]
  %v451 = vld [vmem:[%s1 + $0x150] sm:$0xff]
  %v452 = vld [vmem:[%s1 + $0x158] sm:$0xff]
  %v453 = vld [vmem:[%s1 + $0x160] sm:$0xff]
  %v454 = vld [vmem:[%s1 + $0x168] sm:$0xff]
  %v455 = vld [vmem:[%s1 + $0x170] sm:$0xff]
  %v456 = vld [vmem:[%s1 + $0x178] sm:$0xff]
  %v457 = vld [vmem:[%s1 + $0x180] sm:$0xff]
  %v458 = vld [vmem:[%s1 + $0x188] sm:$0xff]
  %v459 = vld [vmem:[%s1 + $0x190] sm:$0xff]
  %v460 = vld [vmem:[%s1 + $0x198] sm:$0xff]
  %v461 = vld [vmem:[%s1 + $0x1a0] sm:$0xff]
  %v462 = vld [vmem:[%s1 + $0x1a8] sm:$0xff]
  %v463 = vld [vmem:[%s1 + $0x1b0] sm:$0xff]
  %v464 = vld [vmem:[%s1 + $0x1b8] sm:$0xff]
  %v465 = vld [vmem:[%s1 + $0x1c0] sm:$0xff]
  %v466 = vld [vmem:[%s1 + $0x1c8] sm:$0xff]
  %v467 = vld [vmem:[%s1 + $0x1d0] sm:$0xff]
  %v468 = vld [vmem:[%s1 + $0x1d8] sm:$0xff]
  %v469 = vld [vmem:[%s1 + $0x1e0] sm:$0xff]
  %v470 = vld [vmem:[%s1 + $0x1e8] sm:$0xff]
  %v471 = vld [vmem:[%s1 + $0x1f0] sm:$0xff]
  %v472 = vld [vmem:[%s1 + $0x1f8] sm:$0xff]
  %473 = vmatpush.msra.mxu0 %v424
  %474 = vmatpush.msra.mxu0 %v423
  %475 = vmatpush.msra.mxu0 %v422
  %476 = vmatpush.msra.mxu0 %v421
  %477 = vmatpush.msra.mxu0 %v420
  %478 = vmatpush.msra.mxu0 %v419
  %479 = vmatpush.msra.mxu0 %v418
  %480 = vmatpush.msra.mxu0 %v417
  %481 = vmatpush.msra.mxu0 %v416
  %482 = vmatpush.msra.mxu0 %v415
  %483 = vmatpush.msra.mxu0 %v414
  %484 = vmatpush.msra.mxu0 %v413
  %485 = vmatpush.msra.mxu0 %v412
  %486 = vmatpush.msra.mxu0 %v411
  %487 = vmatpush.msra.mxu0 %v410
  %488 = vmatpush.msra.mxu0 %v409
  %489 = vmatmul.f32.gmra.mxu0 %v153
  %v490 = vpop.f32.mrf.mxu0
  %v491 = vadd.f32 0.0, %v490
  %492 = vmatmul.f32.gmra.mxu0 %v157
  %v493 = vpop.f32.mrf.mxu0
  %v494 = vadd.f32 0.0, %v493
  %495 = vmatmul.f32.gmra.mxu0 %v161
  %v496 = vpop.f32.mrf.mxu0
  %v497 = vadd.f32 0.0, %v496
  %498 = vmatmul.f32.gmra.mxu0 %v165
  %v499 = vpop.f32.mrf.mxu0
  %v500 = vadd.f32 0.0, %v499
  %501 = vmatmul.f32.gmra.mxu0 %v169
  %v502 = vpop.f32.mrf.mxu0
  %v503 = vadd.f32 0.0, %v502
  %504 = vmatmul.f32.gmra.mxu0 %v173
  %v505 = vpop.f32.mrf.mxu0
  %v506 = vadd.f32 0.0, %v505
  %507 = vmatmul.f32.gmra.mxu0 %v177
  %v508 = vpop.f32.mrf.mxu0
  %v509 = vadd.f32 0.0, %v508
  %510 = vmatmul.f32.gmra.mxu0 %v181
  %v511 = vpop.f32.mrf.mxu0
  %v512 = vadd.f32 0.0, %v511
  %513 = vmatmul.f32.gmra.mxu0 %v185
  %v514 = vpop.f32.mrf.mxu0
  %v515 = vadd.f32 0.0, %v514
  %516 = vmatmul.f32.gmra.mxu0 %v189
  %v517 = vpop.f32.mrf.mxu0
  %v518 = vadd.f32 0.0, %v517
  %519 = vmatmul.f32.gmra.mxu0 %v193
  %v520 = vpop.f32.mrf.mxu0
  %v521 = vadd.f32 0.0, %v520
  %522 = vmatmul.f32.gmra.mxu0 %v197
  %v523 = vpop.f32.mrf.mxu0
  %v524 = vadd.f32 0.0, %v523
  %525 = vmatmul.f32.gmra.mxu0 %v201
  %v526 = vpop.f32.mrf.mxu0
  %v527 = vadd.f32 0.0, %v526
  %528 = vmatmul.f32.gmra.mxu0 %v205
  %v529 = vpop.f32.mrf.mxu0
  %v530 = vadd.f32 0.0, %v529
  %531 = vmatmul.f32.gmra.mxu0 %v209
  %v532 = vpop.f32.mrf.mxu0
  %v533 = vadd.f32 0.0, %v532
  %534 = vmatmul.f32.gmra.mxu0 %v213
  %v535 = vpop.f32.mrf.mxu0
  %v536 = vadd.f32 0.0, %v535
  %537 = vmatmul.f32.gmra.mxu0 %v217
  %v538 = vpop.f32.mrf.mxu0
  %v539 = vadd.f32 0.0, %v538
  %540 = vmatmul.f32.gmra.mxu0 %v221
  %v541 = vpop.f32.mrf.mxu0
  %v542 = vadd.f32 0.0, %v541
  %543 = vmatmul.f32.gmra.mxu0 %v225
  %v544 = vpop.f32.mrf.mxu0
  %v545 = vadd.f32 0.0, %v544
  %546 = vmatmul.f32.gmra.mxu0 %v229
  %v547 = vpop.f32.mrf.mxu0
  %v548 = vadd.f32 0.0, %v547
  %549 = vmatmul.f32.gmra.mxu0 %v233
  %v550 = vpop.f32.mrf.mxu0
  %v551 = vadd.f32 0.0, %v550
  %552 = vmatmul.f32.gmra.mxu0 %v237
  %v553 = vpop.f32.mrf.mxu0
  %v554 = vadd.f32 0.0, %v553
  %555 = vmatmul.f32.gmra.mxu0 %v241
  %v556 = vpop.f32.mrf.mxu0
  %v557 = vadd.f32 0.0, %v556
  %558 = vmatmul.f32.gmra.mxu0 %v245
  %v559 = vpop.f32.mrf.mxu0
  %v560 = vadd.f32 0.0, %v559
  %561 = vmatmul.f32.gmra.mxu0 %v249
  %v562 = vpop.f32.mrf.mxu0
  %v563 = vadd.f32 0.0, %v562
  %564 = vmatmul.f32.gmra.mxu0 %v253
  %v565 = vpop.f32.mrf.mxu0
  %v566 = vadd.f32 0.0, %v565
  %567 = vmatmul.f32.gmra.mxu0 %v257
  %v568 = vpop.f32.mrf.mxu0
  %v569 = vadd.f32 0.0, %v568
  %570 = vmatmul.f32.gmra.mxu0 %v261
  %v571 = vpop.f32.mrf.mxu0
  %v572 = vadd.f32 0.0, %v571
  %573 = vmatmul.f32.gmra.mxu0 %v265
  %v574 = vpop.f32.mrf.mxu0
  %v575 = vadd.f32 0.0, %v574
  %576 = vmatmul.f32.gmra.mxu0 %v269
  %v577 = vpop.f32.mrf.mxu0
  %v578 = vadd.f32 0.0, %v577
  %579 = vmatmul.f32.gmra.mxu0 %v273
  %v580 = vpop.f32.mrf.mxu0
  %v581 = vadd.f32 0.0, %v580
  %582 = vmatmul.f32.gmra.mxu0 %v277
  %v583 = vpop.f32.mrf.mxu0
  %v584 = vadd.f32 0.0, %v583
  %585 = vmatmul.f32.gmra.mxu0 %v281
  %v586 = vpop.f32.mrf.mxu0
  %v587 = vadd.f32 0.0, %v586
  %588 = vmatmul.f32.gmra.mxu0 %v285
  %v589 = vpop.f32.mrf.mxu0
  %v590 = vadd.f32 0.0, %v589
  %591 = vmatmul.f32.gmra.mxu0 %v289
  %v592 = vpop.f32.mrf.mxu0
  %v593 = vadd.f32 0.0, %v592
  %594 = vmatmul.f32.gmra.mxu0 %v293
  %v595 = vpop.f32.mrf.mxu0
  %v596 = vadd.f32 0.0, %v595
  %597 = vmatmul.f32.gmra.mxu0 %v297
  %v598 = vpop.f32.mrf.mxu0
  %v599 = vadd.f32 0.0, %v598
  %600 = vmatmul.f32.gmra.mxu0 %v301
  %v601 = vpop.f32.mrf.mxu0
  %v602 = vadd.f32 0.0, %v601
  %603 = vmatmul.f32.gmra.mxu0 %v305
  %v604 = vpop.f32.mrf.mxu0
  %v605 = vadd.f32 0.0, %v604
  %606 = vmatmul.f32.gmra.mxu0 %v309
  %v607 = vpop.f32.mrf.mxu0
  %v608 = vadd.f32 0.0, %v607
  %609 = vmatmul.f32.gmra.mxu0 %v313
  %v610 = vpop.f32.mrf.mxu0
  %v611 = vadd.f32 0.0, %v610
  %612 = vmatmul.f32.gmra.mxu0 %v317
  %v613 = vpop.f32.mrf.mxu0
  %v614 = vadd.f32 0.0, %v613
  %615 = vmatmul.f32.gmra.mxu0 %v321
  %v616 = vpop.f32.mrf.mxu0
  %v617 = vadd.f32 0.0, %v616
  %618 = vmatmul.f32.gmra.mxu0 %v325
  %v619 = vpop.f32.mrf.mxu0
  %v620 = vadd.f32 0.0, %v619
  %621 = vmatmul.f32.gmra.mxu0 %v329
  %v622 = vpop.f32.mrf.mxu0
  %v623 = vadd.f32 0.0, %v622
  %624 = vmatmul.f32.gmra.mxu0 %v333
  %v625 = vpop.f32.mrf.mxu0
  %v626 = vadd.f32 0.0, %v625
  %627 = vmatmul.f32.gmra.mxu0 %v337
  %v628 = vpop.f32.mrf.mxu0
  %v629 = vadd.f32 0.0, %v628
  %630 = vmatmul.f32.gmra.mxu0 %v341
  %v631 = vpop.f32.mrf.mxu0
  %v632 = vadd.f32 0.0, %v631
  %633 = vmatmul.f32.gmra.mxu0 %v345
  %v634 = vpop.f32.mrf.mxu0
  %v635 = vadd.f32 0.0, %v634
  %636 = vmatmul.f32.gmra.mxu0 %v349
  %v637 = vpop.f32.mrf.mxu0
  %v638 = vadd.f32 0.0, %v637
  %639 = vmatmul.f32.gmra.mxu0 %v353
  %v640 = vpop.f32.mrf.mxu0
  %v641 = vadd.f32 0.0, %v640
  %642 = vmatmul.f32.gmra.mxu0 %v357
  %v643 = vpop.f32.mrf.mxu0
  %v644 = vadd.f32 0.0, %v643
  %645 = vmatmul.f32.gmra.mxu0 %v361
  %v646 = vpop.f32.mrf.mxu0
  %v647 = vadd.f32 0.0, %v646
  %648 = vmatmul.f32.gmra.mxu0 %v365
  %v649 = vpop.f32.mrf.mxu0
  %v650 = vadd.f32 0.0, %v649
  %651 = vmatmul.f32.gmra.mxu0 %v369
  %v652 = vpop.f32.mrf.mxu0
  %v653 = vadd.f32 0.0, %v652
  %654 = vmatmul.f32.gmra.mxu0 %v373
  %v655 = vpop.f32.mrf.mxu0
  %v656 = vadd.f32 0.0, %v655
  %657 = vmatmul.f32.gmra.mxu0 %v377
  %v658 = vpop.f32.mrf.mxu0
  %v659 = vadd.f32 0.0, %v658
  %660 = vmatmul.f32.gmra.mxu0 %v381
  %v661 = vpop.f32.mrf.mxu0
  %v662 = vadd.f32 0.0, %v661
  %663 = vmatmul.f32.gmra.mxu0 %v385
  %v664 = vpop.f32.mrf.mxu0
  %v665 = vadd.f32 0.0, %v664
  %666 = vmatmul.f32.gmra.mxu0 %v389
  %v667 = vpop.f32.mrf.mxu0
  %v668 = vadd.f32 0.0, %v667
  %669 = vmatmul.f32.gmra.mxu0 %v393
  %v670 = vpop.f32.mrf.mxu0
  %v671 = vadd.f32 0.0, %v670
  %672 = vmatmul.f32.gmra.mxu0 %v397
  %v673 = vpop.f32.mrf.mxu0
  %v674 = vadd.f32 0.0, %v673
  %675 = vmatmul.f32.gmra.mxu0 %v401
  %v676 = vpop.f32.mrf.mxu0
  %v677 = vadd.f32 0.0, %v676
  %678 = vmatmul.f32.gmra.mxu0 %v405
  %v679 = vpop.f32.mrf.mxu0
  %v680 = vadd.f32 0.0, %v679
  %681 = vdwg.mxu0
  %682 = vmatpush.msra.mxu0 %v440
  %683 = vmatpush.msra.mxu0 %v439
  %684 = vmatpush.msra.mxu0 %v438
  %685 = vmatpush.msra.mxu0 %v437
  %686 = vmatpush.msra.mxu0 %v436
  %687 = vmatpush.msra.mxu0 %v435
  %688 = vmatpush.msra.mxu0 %v434
  %689 = vmatpush.msra.mxu0 %v433
  %690 = vmatpush.msra.mxu0 %v432
  %691 = vmatpush.msra.mxu0 %v431
  %692 = vmatpush.msra.mxu0 %v430
  %693 = vmatpush.msra.mxu0 %v429
  %694 = vmatpush.msra.mxu0 %v428
  %695 = vmatpush.msra.mxu0 %v427
  %696 = vmatpush.msra.mxu0 %v426
  %697 = vmatpush.msra.mxu0 %v425
  %698 = vmatmul.f32.gmra.mxu0 %v154
  %v699 = vpop.f32.mrf.mxu0
  %v700 = vadd.f32 %v491, %v699
  %701 = vmatmul.f32.gmra.mxu0 %v158
  %v702 = vpop.f32.mrf.mxu0
  %v703 = vadd.f32 %v494, %v702
  %704 = vmatmul.f32.gmra.mxu0 %v162
  %v705 = vpop.f32.mrf.mxu0
  %v706 = vadd.f32 %v497, %v705
  %707 = vmatmul.f32.gmra.mxu0 %v166
  %v708 = vpop.f32.mrf.mxu0
  %v709 = vadd.f32 %v500, %v708
  %710 = vmatmul.f32.gmra.mxu0 %v170
  %v711 = vpop.f32.mrf.mxu0
  %v712 = vadd.f32 %v503, %v711
  %713 = vmatmul.f32.gmra.mxu0 %v174
  %v714 = vpop.f32.mrf.mxu0
  %v715 = vadd.f32 %v506, %v714
  %716 = vmatmul.f32.gmra.mxu0 %v178
  %v717 = vpop.f32.mrf.mxu0
  %v718 = vadd.f32 %v509, %v717
  %719 = vmatmul.f32.gmra.mxu0 %v182
  %v720 = vpop.f32.mrf.mxu0
  %v721 = vadd.f32 %v512, %v720
  %722 = vmatmul.f32.gmra.mxu0 %v186
  %v723 = vpop.f32.mrf.mxu0
  %v724 = vadd.f32 %v515, %v723
  %725 = vmatmul.f32.gmra.mxu0 %v190
  %v726 = vpop.f32.mrf.mxu0
  %v727 = vadd.f32 %v518, %v726
  %728 = vmatmul.f32.gmra.mxu0 %v194
  %v729 = vpop.f32.mrf.mxu0
  %v730 = vadd.f32 %v521, %v729
  %731 = vmatmul.f32.gmra.mxu0 %v198
  %v732 = vpop.f32.mrf.mxu0
  %v733 = vadd.f32 %v524, %v732
  %734 = vmatmul.f32.gmra.mxu0 %v202
  %v735 = vpop.f32.mrf.mxu0
  %v736 = vadd.f32 %v527, %v735
  %737 = vmatmul.f32.gmra.mxu0 %v206
  %v738 = vpop.f32.mrf.mxu0
  %v739 = vadd.f32 %v530, %v738
  %740 = vmatmul.f32.gmra.mxu0 %v210
  %v741 = vpop.f32.mrf.mxu0
  %v742 = vadd.f32 %v533, %v741
  %743 = vmatmul.f32.gmra.mxu0 %v214
  %v744 = vpop.f32.mrf.mxu0
  %v745 = vadd.f32 %v536, %v744
  %746 = vmatmul.f32.gmra.mxu0 %v218
  %v747 = vpop.f32.mrf.mxu0
  %v748 = vadd.f32 %v539, %v747
  %749 = vmatmul.f32.gmra.mxu0 %v222
  %v750 = vpop.f32.mrf.mxu0
  %v751 = vadd.f32 %v542, %v750
  %752 = vmatmul.f32.gmra.mxu0 %v226
  %v753 = vpop.f32.mrf.mxu0
  %v754 = vadd.f32 %v545, %v753
  %755 = vmatmul.f32.gmra.mxu0 %v230
  %v756 = vpop.f32.mrf.mxu0
  %v757 = vadd.f32 %v548, %v756
  %758 = vmatmul.f32.gmra.mxu0 %v234
  %v759 = vpop.f32.mrf.mxu0
  %v760 = vadd.f32 %v551, %v759
  %761 = vmatmul.f32.gmra.mxu0 %v238
  %v762 = vpop.f32.mrf.mxu0
  %v763 = vadd.f32 %v554, %v762
  %764 = vmatmul.f32.gmra.mxu0 %v242
  %v765 = vpop.f32.mrf.mxu0
  %v766 = vadd.f32 %v557, %v765
  %767 = vmatmul.f32.gmra.mxu0 %v246
  %v768 = vpop.f32.mrf.mxu0
  %v769 = vadd.f32 %v560, %v768
  %770 = vmatmul.f32.gmra.mxu0 %v250
  %v771 = vpop.f32.mrf.mxu0
  %v772 = vadd.f32 %v563, %v771
  %773 = vmatmul.f32.gmra.mxu0 %v254
  %v774 = vpop.f32.mrf.mxu0
  %v775 = vadd.f32 %v566, %v774
  %776 = vmatmul.f32.gmra.mxu0 %v258
  %v777 = vpop.f32.mrf.mxu0
  %v778 = vadd.f32 %v569, %v777
  %779 = vmatmul.f32.gmra.mxu0 %v262
  %v780 = vpop.f32.mrf.mxu0
  %v781 = vadd.f32 %v572, %v780
  %782 = vmatmul.f32.gmra.mxu0 %v266
  %v783 = vpop.f32.mrf.mxu0
  %v784 = vadd.f32 %v575, %v783
  %785 = vmatmul.f32.gmra.mxu0 %v270
  %v786 = vpop.f32.mrf.mxu0
  %v787 = vadd.f32 %v578, %v786
  %788 = vmatmul.f32.gmra.mxu0 %v274
  %v789 = vpop.f32.mrf.mxu0
  %v790 = vadd.f32 %v581, %v789
  %791 = vmatmul.f32.gmra.mxu0 %v278
  %v792 = vpop.f32.mrf.mxu0
  %v793 = vadd.f32 %v584, %v792
  %794 = vmatmul.f32.gmra.mxu0 %v282
  %v795 = vpop.f32.mrf.mxu0
  %v796 = vadd.f32 %v587, %v795
  %797 = vmatmul.f32.gmra.mxu0 %v286
  %v798 = vpop.f32.mrf.mxu0
  %v799 = vadd.f32 %v590, %v798
  %800 = vmatmul.f32.gmra.mxu0 %v290
  %v801 = vpop.f32.mrf.mxu0
  %v802 = vadd.f32 %v593, %v801
  %803 = vmatmul.f32.gmra.mxu0 %v294
  %v804 = vpop.f32.mrf.mxu0
  %v805 = vadd.f32 %v596, %v804
  %806 = vmatmul.f32.gmra.mxu0 %v298
  %v807 = vpop.f32.mrf.mxu0
  %v808 = vadd.f32 %v599, %v807
  %809 = vmatmul.f32.gmra.mxu0 %v302
  %v810 = vpop.f32.mrf.mxu0
  %v811 = vadd.f32 %v602, %v810
  %812 = vmatmul.f32.gmra.mxu0 %v306
  %v813 = vpop.f32.mrf.mxu0
  %v814 = vadd.f32 %v605, %v813
  %815 = vmatmul.f32.gmra.mxu0 %v310
  %v816 = vpop.f32.mrf.mxu0
  %v817 = vadd.f32 %v608, %v816
  %818 = vmatmul.f32.gmra.mxu0 %v314
  %v819 = vpop.f32.mrf.mxu0
  %v820 = vadd.f32 %v611, %v819
  %821 = vmatmul.f32.gmra.mxu0 %v318
  %v822 = vpop.f32.mrf.mxu0
  %v823 = vadd.f32 %v614, %v822
  %824 = vmatmul.f32.gmra.mxu0 %v322
  %v825 = vpop.f32.mrf.mxu0
  %v826 = vadd.f32 %v617, %v825
  %827 = vmatmul.f32.gmra.mxu0 %v326
  %v828 = vpop.f32.mrf.mxu0
  %v829 = vadd.f32 %v620, %v828
  %830 = vmatmul.f32.gmra.mxu0 %v330
  %v831 = vpop.f32.mrf.mxu0
  %v832 = vadd.f32 %v623, %v831
  %833 = vmatmul.f32.gmra.mxu0 %v334
  %v834 = vpop.f32.mrf.mxu0
  %v835 = vadd.f32 %v626, %v834
  %836 = vmatmul.f32.gmra.mxu0 %v338
  %v837 = vpop.f32.mrf.mxu0
  %v838 = vadd.f32 %v629, %v837
  %839 = vmatmul.f32.gmra.mxu0 %v342
  %v840 = vpop.f32.mrf.mxu0
  %v841 = vadd.f32 %v632, %v840
  %842 = vmatmul.f32.gmra.mxu0 %v346
  %v843 = vpop.f32.mrf.mxu0
  %v844 = vadd.f32 %v635, %v843
  %845 = vmatmul.f32.gmra.mxu0 %v350
  %v846 = vpop.f32.mrf.mxu0
  %v847 = vadd.f32 %v638, %v846
  %848 = vmatmul.f32.gmra.mxu0 %v354
  %v849 = vpop.f32.mrf.mxu0
  %v850 = vadd.f32 %v641, %v849
  %851 = vmatmul.f32.gmra.mxu0 %v358
  %v852 = vpop.f32.mrf.mxu0
  %v853 = vadd.f32 %v644, %v852
  %854 = vmatmul.f32.gmra.mxu0 %v362
  %v855 = vpop.f32.mrf.mxu0
  %v856 = vadd.f32 %v647, %v855
  %857 = vmatmul.f32.gmra.mxu0 %v366
  %v858 = vpop.f32.mrf.mxu0
  %v859 = vadd.f32 %v650, %v858
  %860 = vmatmul.f32.gmra.mxu0 %v370
  %v861 = vpop.f32.mrf.mxu0
  %v862 = vadd.f32 %v653, %v861
  %863 = vmatmul.f32.gmra.mxu0 %v374
  %v864 = vpop.f32.mrf.mxu0
  %v865 = vadd.f32 %v656, %v864
  %866 = vmatmul.f32.gmra.mxu0 %v378
  %v867 = vpop.f32.mrf.mxu0
  %v868 = vadd.f32 %v659, %v867
  %869 = vmatmul.f32.gmra.mxu0 %v382
  %v870 = vpop.f32.mrf.mxu0
  %v871 = vadd.f32 %v662, %v870
  %872 = vmatmul.f32.gmra.mxu0 %v386
  %v873 = vpop.f32.mrf.mxu0
  %v874 = vadd.f32 %v665, %v873
  %875 = vmatmul.f32.gmra.mxu0 %v390
  %v876 = vpop.f32.mrf.mxu0
  %v877 = vadd.f32 %v668, %v876
  %878 = vmatmul.f32.gmra.mxu0 %v394
  %v879 = vpop.f32.mrf.mxu0
  %v880 = vadd.f32 %v671, %v879
  %881 = vmatmul.f32.gmra.mxu0 %v398
  %v882 = vpop.f32.mrf.mxu0
  %v883 = vadd.f32 %v674, %v882
  %884 = vmatmul.f32.gmra.mxu0 %v402
  %v885 = vpop.f32.mrf.mxu0
  %v886 = vadd.f32 %v677, %v885
  %887 = vmatmul.f32.gmra.mxu0 %v406
  %v888 = vpop.f32.mrf.mxu0
  %v889 = vadd.f32 %v680, %v888
  %890 = vdwg.mxu0
  %891 = vmatpush.msra.mxu0 %v456
  %892 = vmatpush.msra.mxu0 %v455
  %893 = vmatpush.msra.mxu0 %v454
  %894 = vmatpush.msra.mxu0 %v453
  %895 = vmatpush.msra.mxu0 %v452
  %896 = vmatpush.msra.mxu0 %v451
  %897 = vmatpush.msra.mxu0 %v450
  %898 = vmatpush.msra.mxu0 %v449
  %899 = vmatpush.msra.mxu0 %v448
  %900 = vmatpush.msra.mxu0 %v447
  %901 = vmatpush.msra.mxu0 %v446
  %902 = vmatpush.msra.mxu0 %v445
  %903 = vmatpush.msra.mxu0 %v444
  %904 = vmatpush.msra.mxu0 %v443
  %905 = vmatpush.msra.mxu0 %v442
  %906 = vmatpush.msra.mxu0 %v441
  %907 = vmatmul.f32.gmra.mxu0 %v155
  %v908 = vpop.f32.mrf.mxu0
  %v909 = vadd.f32 %v700, %v908
  %910 = vmatmul.f32.gmra.mxu0 %v159
  %v911 = vpop.f32.mrf.mxu0
  %v912 = vadd.f32 %v703, %v911
  %913 = vmatmul.f32.gmra.mxu0 %v163
  %v914 = vpop.f32.mrf.mxu0
  %v915 = vadd.f32 %v706, %v914
  %916 = vmatmul.f32.gmra.mxu0 %v167
  %v917 = vpop.f32.mrf.mxu0
  %v918 = vadd.f32 %v709, %v917
  %919 = vmatmul.f32.gmra.mxu0 %v171
  %v920 = vpop.f32.mrf.mxu0
  %v921 = vadd.f32 %v712, %v920
  %922 = vmatmul.f32.gmra.mxu0 %v175
  %v923 = vpop.f32.mrf.mxu0
  %v924 = vadd.f32 %v715, %v923
  %925 = vmatmul.f32.gmra.mxu0 %v179
  %v926 = vpop.f32.mrf.mxu0
  %v927 = vadd.f32 %v718, %v926
  %928 = vmatmul.f32.gmra.mxu0 %v183
  %v929 = vpop.f32.mrf.mxu0
  %v930 = vadd.f32 %v721, %v929
  %931 = vmatmul.f32.gmra.mxu0 %v187
  %v932 = vpop.f32.mrf.mxu0
  %v933 = vadd.f32 %v724, %v932
  %934 = vmatmul.f32.gmra.mxu0 %v191
  %v935 = vpop.f32.mrf.mxu0
  %v936 = vadd.f32 %v727, %v935
  %937 = vmatmul.f32.gmra.mxu0 %v195
  %v938 = vpop.f32.mrf.mxu0
  %v939 = vadd.f32 %v730, %v938
  %940 = vmatmul.f32.gmra.mxu0 %v199
  %v941 = vpop.f32.mrf.mxu0
  %v942 = vadd.f32 %v733, %v941
  %943 = vmatmul.f32.gmra.mxu0 %v203
  %v944 = vpop.f32.mrf.mxu0
  %v945 = vadd.f32 %v736, %v944
  %946 = vmatmul.f32.gmra.mxu0 %v207
  %v947 = vpop.f32.mrf.mxu0
  %v948 = vadd.f32 %v739, %v947
  %949 = vmatmul.f32.gmra.mxu0 %v211
  %v950 = vpop.f32.mrf.mxu0
  %v951 = vadd.f32 %v742, %v950
  %952 = vmatmul.f32.gmra.mxu0 %v215
  %v953 = vpop.f32.mrf.mxu0
  %v954 = vadd.f32 %v745, %v953
  %955 = vmatmul.f32.gmra.mxu0 %v219
  %v956 = vpop.f32.mrf.mxu0
  %v957 = vadd.f32 %v748, %v956
  %958 = vmatmul.f32.gmra.mxu0 %v223
  %v959 = vpop.f32.mrf.mxu0
  %v960 = vadd.f32 %v751, %v959
  %961 = vmatmul.f32.gmra.mxu0 %v227
  %v962 = vpop.f32.mrf.mxu0
  %v963 = vadd.f32 %v754, %v962
  %964 = vmatmul.f32.gmra.mxu0 %v231
  %v965 = vpop.f32.mrf.mxu0
  %v966 = vadd.f32 %v757, %v965
  %967 = vmatmul.f32.gmra.mxu0 %v235
  %v968 = vpop.f32.mrf.mxu0
  %v969 = vadd.f32 %v760, %v968
  %970 = vmatmul.f32.gmra.mxu0 %v239
  %v971 = vpop.f32.mrf.mxu0
  %v972 = vadd.f32 %v763, %v971
  %973 = vmatmul.f32.gmra.mxu0 %v243
  %v974 = vpop.f32.mrf.mxu0
  %v975 = vadd.f32 %v766, %v974
  %976 = vmatmul.f32.gmra.mxu0 %v247
  %v977 = vpop.f32.mrf.mxu0
  %v978 = vadd.f32 %v769, %v977
  %979 = vmatmul.f32.gmra.mxu0 %v251
  %v980 = vpop.f32.mrf.mxu0
  %v981 = vadd.f32 %v772, %v980
  %982 = vmatmul.f32.gmra.mxu0 %v255
  %v983 = vpop.f32.mrf.mxu0
  %v984 = vadd.f32 %v775, %v983
  %985 = vmatmul.f32.gmra.mxu0 %v259
  %v986 = vpop.f32.mrf.mxu0
  %v987 = vadd.f32 %v778, %v986
  %988 = vmatmul.f32.gmra.mxu0 %v263
  %v989 = vpop.f32.mrf.mxu0
  %v990 = vadd.f32 %v781, %v989
  %991 = vmatmul.f32.gmra.mxu0 %v267
  %v992 = vpop.f32.mrf.mxu0
  %v993 = vadd.f32 %v784, %v992
  %994 = vmatmul.f32.gmra.mxu0 %v271
  %v995 = vpop.f32.mrf.mxu0
  %v996 = vadd.f32 %v787, %v995
  %997 = vmatmul.f32.gmra.mxu0 %v275
  %v998 = vpop.f32.mrf.mxu0
  %v999 = vadd.f32 %v790, %v998
  %1000 = vmatmul.f32.gmra.mxu0 %v279
  %v1001 = vpop.f32.mrf.mxu0
  %v1002 = vadd.f32 %v793, %v1001
  %1003 = vmatmul.f32.gmra.mxu0 %v283
  %v1004 = vpop.f32.mrf.mxu0
  %v1005 = vadd.f32 %v796, %v1004
  %1006 = vmatmul.f32.gmra.mxu0 %v287
  %v1007 = vpop.f32.mrf.mxu0
  %v1008 = vadd.f32 %v799, %v1007
  %1009 = vmatmul.f32.gmra.mxu0 %v291
  %v1010 = vpop.f32.mrf.mxu0
  %v1011 = vadd.f32 %v802, %v1010
  %1012 = vmatmul.f32.gmra.mxu0 %v295
  %v1013 = vpop.f32.mrf.mxu0
  %v1014 = vadd.f32 %v805, %v1013
  %1015 = vmatmul.f32.gmra.mxu0 %v299
  %v1016 = vpop.f32.mrf.mxu0
  %v1017 = vadd.f32 %v808, %v1016
  %1018 = vmatmul.f32.gmra.mxu0 %v303
  %v1019 = vpop.f32.mrf.mxu0
  %v1020 = vadd.f32 %v811, %v1019
  %1021 = vmatmul.f32.gmra.mxu0 %v307
  %v1022 = vpop.f32.mrf.mxu0
  %v1023 = vadd.f32 %v814, %v1022
  %1024 = vmatmul.f32.gmra.mxu0 %v311
  %v1025 = vpop.f32.mrf.mxu0
  %v1026 = vadd.f32 %v817, %v1025
  %1027 = vmatmul.f32.gmra.mxu0 %v315
  %v1028 = vpop.f32.mrf.mxu0
  %v1029 = vadd.f32 %v820, %v1028
  %1030 = vmatmul.f32.gmra.mxu0 %v319
  %v1031 = vpop.f32.mrf.mxu0
  %v1032 = vadd.f32 %v823, %v1031
  %1033 = vmatmul.f32.gmra.mxu0 %v323
  %v1034 = vpop.f32.mrf.mxu0
  %v1035 = vadd.f32 %v826, %v1034
  %1036 = vmatmul.f32.gmra.mxu0 %v327
  %v1037 = vpop.f32.mrf.mxu0
  %v1038 = vadd.f32 %v829, %v1037
  %1039 = vmatmul.f32.gmra.mxu0 %v331
  %v1040 = vpop.f32.mrf.mxu0
  %v1041 = vadd.f32 %v832, %v1040
  %1042 = vmatmul.f32.gmra.mxu0 %v335
  %v1043 = vpop.f32.mrf.mxu0
  %v1044 = vadd.f32 %v835, %v1043
  %1045 = vmatmul.f32.gmra.mxu0 %v339
  %v1046 = vpop.f32.mrf.mxu0
  %v1047 = vadd.f32 %v838, %v1046
  %1048 = vmatmul.f32.gmra.mxu0 %v343
  %v1049 = vpop.f32.mrf.mxu0
  %v1050 = vadd.f32 %v841, %v1049
  %1051 = vmatmul.f32.gmra.mxu0 %v347
  %v1052 = vpop.f32.mrf.mxu0
  %v1053 = vadd.f32 %v844, %v1052
  %1054 = vmatmul.f32.gmra.mxu0 %v351
  %v1055 = vpop.f32.mrf.mxu0
  %v1056 = vadd.f32 %v847, %v1055
  %1057 = vmatmul.f32.gmra.mxu0 %v355
  %v1058 = vpop.f32.mrf.mxu0
  %v1059 = vadd.f32 %v850, %v1058
  %1060 = vmatmul.f32.gmra.mxu0 %v359
  %v1061 = vpop.f32.mrf.mxu0
  %v1062 = vadd.f32 %v853, %v1061
  %1063 = vmatmul.f32.gmra.mxu0 %v363
  %v1064 = vpop.f32.mrf.mxu0
  %v1065 = vadd.f32 %v856, %v1064
  %1066 = vmatmul.f32.gmra.mxu0 %v367
  %v1067 = vpop.f32.mrf.mxu0
  %v1068 = vadd.f32 %v859, %v1067
  %1069 = vmatmul.f32.gmra.mxu0 %v371
  %v1070 = vpop.f32.mrf.mxu0
  %v1071 = vadd.f32 %v862, %v1070
  %1072 = vmatmul.f32.gmra.mxu0 %v375
  %v1073 = vpop.f32.mrf.mxu0
  %v1074 = vadd.f32 %v865, %v1073
  %1075 = vmatmul.f32.gmra.mxu0 %v379
  %v1076 = vpop.f32.mrf.mxu0
  %v1077 = vadd.f32 %v868, %v1076
  %1078 = vmatmul.f32.gmra.mxu0 %v383
  %v1079 = vpop.f32.mrf.mxu0
  %v1080 = vadd.f32 %v871, %v1079
  %1081 = vmatmul.f32.gmra.mxu0 %v387
  %v1082 = vpop.f32.mrf.mxu0
  %v1083 = vadd.f32 %v874, %v1082
  %1084 = vmatmul.f32.gmra.mxu0 %v391
  %v1085 = vpop.f32.mrf.mxu0
  %v1086 = vadd.f32 %v877, %v1085
  %1087 = vmatmul.f32.gmra.mxu0 %v395
  %v1088 = vpop.f32.mrf.mxu0
  %v1089 = vadd.f32 %v880, %v1088
  %1090 = vmatmul.f32.gmra.mxu0 %v399
  %v1091 = vpop.f32.mrf.mxu0
  %v1092 = vadd.f32 %v883, %v1091
  %1093 = vmatmul.f32.gmra.mxu0 %v403
  %v1094 = vpop.f32.mrf.mxu0
  %v1095 = vadd.f32 %v886, %v1094
  %1096 = vmatmul.f32.gmra.mxu0 %v407
  %v1097 = vpop.f32.mrf.mxu0
  %v1098 = vadd.f32 %v889, %v1097
  %1099 = vdwg.mxu0
  %1100 = vmatpush.msra.mxu0 %v472
  %1101 = vmatpush.msra.mxu0 %v471
  %1102 = vmatpush.msra.mxu0 %v470
  %1103 = vmatpush.msra.mxu0 %v469
  %1104 = vmatpush.msra.mxu0 %v468
  %1105 = vmatpush.msra.mxu0 %v467
  %1106 = vmatpush.msra.mxu0 %v466
  %1107 = vmatpush.msra.mxu0 %v465
  %1108 = vmatpush.msra.mxu0 %v464
  %1109 = vmatpush.msra.mxu0 %v463
  %1110 = vmatpush.msra.mxu0 %v462
  %1111 = vmatpush.msra.mxu0 %v461
  %1112 = vmatpush.msra.mxu0 %v460
  %1113 = vmatpush.msra.mxu0 %v459
  %1114 = vmatpush.msra.mxu0 %v458
  %1115 = vmatpush.msra.mxu0 %v457
  %1116 = vmatmul.f32.gmra.mxu0 %v156
  %v1117 = vpop.f32.mrf.mxu0
  %v1118 = vadd.f32 %v909, %v1117
  %1119 = vmatmul.f32.gmra.mxu0 %v160
  %v1120 = vpop.f32.mrf.mxu0
  %v1121 = vadd.f32 %v912, %v1120
  %1122 = vmatmul.f32.gmra.mxu0 %v164
  %v1123 = vpop.f32.mrf.mxu0
  %v1124 = vadd.f32 %v915, %v1123
  %1125 = vmatmul.f32.gmra.mxu0 %v168
  %v1126 = vpop.f32.mrf.mxu0
  %v1127 = vadd.f32 %v918, %v1126
  %1128 = vmatmul.f32.gmra.mxu0 %v172
  %v1129 = vpop.f32.mrf.mxu0
  %v1130 = vadd.f32 %v921, %v1129
  %1131 = vmatmul.f32.gmra.mxu0 %v176
  %v1132 = vpop.f32.mrf.mxu0
  %v1133 = vadd.f32 %v924, %v1132
  %1134 = vmatmul.f32.gmra.mxu0 %v180
  %v1135 = vpop.f32.mrf.mxu0
  %v1136 = vadd.f32 %v927, %v1135
  %1137 = vmatmul.f32.gmra.mxu0 %v184
  %v1138 = vpop.f32.mrf.mxu0
  %v1139 = vadd.f32 %v930, %v1138
  %1140 = vmatmul.f32.gmra.mxu0 %v188
  %v1141 = vpop.f32.mrf.mxu0
  %v1142 = vadd.f32 %v933, %v1141
  %1143 = vmatmul.f32.gmra.mxu0 %v192
  %v1144 = vpop.f32.mrf.mxu0
  %v1145 = vadd.f32 %v936, %v1144
  %1146 = vmatmul.f32.gmra.mxu0 %v196
  %v1147 = vpop.f32.mrf.mxu0
  %v1148 = vadd.f32 %v939, %v1147
  %1149 = vmatmul.f32.gmra.mxu0 %v200
  %v1150 = vpop.f32.mrf.mxu0
  %v1151 = vadd.f32 %v942, %v1150
  %1152 = vmatmul.f32.gmra.mxu0 %v204
  %v1153 = vpop.f32.mrf.mxu0
  %v1154 = vadd.f32 %v945, %v1153
  %1155 = vmatmul.f32.gmra.mxu0 %v208
  %v1156 = vpop.f32.mrf.mxu0
  %v1157 = vadd.f32 %v948, %v1156
  %1158 = vmatmul.f32.gmra.mxu0 %v212
  %v1159 = vpop.f32.mrf.mxu0
  %v1160 = vadd.f32 %v951, %v1159
  %1161 = vmatmul.f32.gmra.mxu0 %v216
  %v1162 = vpop.f32.mrf.mxu0
  %v1163 = vadd.f32 %v954, %v1162
  %1164 = vmatmul.f32.gmra.mxu0 %v220
  %v1165 = vpop.f32.mrf.mxu0
  %v1166 = vadd.f32 %v957, %v1165
  %1167 = vmatmul.f32.gmra.mxu0 %v224
  %v1168 = vpop.f32.mrf.mxu0
  %v1169 = vadd.f32 %v960, %v1168
  %1170 = vmatmul.f32.gmra.mxu0 %v228
  %v1171 = vpop.f32.mrf.mxu0
  %v1172 = vadd.f32 %v963, %v1171
  %1173 = vmatmul.f32.gmra.mxu0 %v232
  %v1174 = vpop.f32.mrf.mxu0
  %v1175 = vadd.f32 %v966, %v1174
  %1176 = vmatmul.f32.gmra.mxu0 %v236
  %v1177 = vpop.f32.mrf.mxu0
  %v1178 = vadd.f32 %v969, %v1177
  %1179 = vmatmul.f32.gmra.mxu0 %v240
  %v1180 = vpop.f32.mrf.mxu0
  %v1181 = vadd.f32 %v972, %v1180
  %1182 = vmatmul.f32.gmra.mxu0 %v244
  %v1183 = vpop.f32.mrf.mxu0
  %v1184 = vadd.f32 %v975, %v1183
  %1185 = vmatmul.f32.gmra.mxu0 %v248
  %v1186 = vpop.f32.mrf.mxu0
  %v1187 = vadd.f32 %v978, %v1186
  %1188 = vmatmul.f32.gmra.mxu0 %v252
  %v1189 = vpop.f32.mrf.mxu0
  %v1190 = vadd.f32 %v981, %v1189
  %1191 = vmatmul.f32.gmra.mxu0 %v256
  %v1192 = vpop.f32.mrf.mxu0
  %v1193 = vadd.f32 %v984, %v1192
  %1194 = vmatmul.f32.gmra.mxu0 %v260
  %v1195 = vpop.f32.mrf.mxu0
  %v1196 = vadd.f32 %v987, %v1195
  %1197 = vmatmul.f32.gmra.mxu0 %v264
  %v1198 = vpop.f32.mrf.mxu0
  %v1199 = vadd.f32 %v990, %v1198
  %1200 = vmatmul.f32.gmra.mxu0 %v268
  %v1201 = vpop.f32.mrf.mxu0
  %v1202 = vadd.f32 %v993, %v1201
  %1203 = vmatmul.f32.gmra.mxu0 %v272
  %v1204 = vpop.f32.mrf.mxu0
  %v1205 = vadd.f32 %v996, %v1204
  %1206 = vmatmul.f32.gmra.mxu0 %v276
  %v1207 = vpop.f32.mrf.mxu0
  %v1208 = vadd.f32 %v999, %v1207
  %1209 = vmatmul.f32.gmra.mxu0 %v280
  %v1210 = vpop.f32.mrf.mxu0
  %v1211 = vadd.f32 %v1002, %v1210
  %1212 = vmatmul.f32.gmra.mxu0 %v284
  %v1213 = vpop.f32.mrf.mxu0
  %v1214 = vadd.f32 %v1005, %v1213
  %1215 = vmatmul.f32.gmra.mxu0 %v288
  %v1216 = vpop.f32.mrf.mxu0
  %v1217 = vadd.f32 %v1008, %v1216
  %1218 = vmatmul.f32.gmra.mxu0 %v292
  %v1219 = vpop.f32.mrf.mxu0
  %v1220 = vadd.f32 %v1011, %v1219
  %1221 = vmatmul.f32.gmra.mxu0 %v296
  %v1222 = vpop.f32.mrf.mxu0
  %v1223 = vadd.f32 %v1014, %v1222
  %1224 = vmatmul.f32.gmra.mxu0 %v300
  %v1225 = vpop.f32.mrf.mxu0
  %v1226 = vadd.f32 %v1017, %v1225
  %1227 = vmatmul.f32.gmra.mxu0 %v304
  %v1228 = vpop.f32.mrf.mxu0
  %v1229 = vadd.f32 %v1020, %v1228
  %1230 = vmatmul.f32.gmra.mxu0 %v308
  %v1231 = vpop.f32.mrf.mxu0
  %v1232 = vadd.f32 %v1023, %v1231
  %1233 = vmatmul.f32.gmra.mxu0 %v312
  %v1234 = vpop.f32.mrf.mxu0
  %v1235 = vadd.f32 %v1026, %v1234
  %1236 = vmatmul.f32.gmra.mxu0 %v316
  %v1237 = vpop.f32.mrf.mxu0
  %v1238 = vadd.f32 %v1029, %v1237
  %1239 = vmatmul.f32.gmra.mxu0 %v320
  %v1240 = vpop.f32.mrf.mxu0
  %v1241 = vadd.f32 %v1032, %v1240
  %1242 = vmatmul.f32.gmra.mxu0 %v324
  %v1243 = vpop.f32.mrf.mxu0
  %v1244 = vadd.f32 %v1035, %v1243
  %1245 = vmatmul.f32.gmra.mxu0 %v328
  %v1246 = vpop.f32.mrf.mxu0
  %v1247 = vadd.f32 %v1038, %v1246
  %1248 = vmatmul.f32.gmra.mxu0 %v332
  %v1249 = vpop.f32.mrf.mxu0
  %v1250 = vadd.f32 %v1041, %v1249
  %1251 = vmatmul.f32.gmra.mxu0 %v336
  %v1252 = vpop.f32.mrf.mxu0
  %v1253 = vadd.f32 %v1044, %v1252
  %1254 = vmatmul.f32.gmra.mxu0 %v340
  %v1255 = vpop.f32.mrf.mxu0
  %v1256 = vadd.f32 %v1047, %v1255
  %1257 = vmatmul.f32.gmra.mxu0 %v344
  %v1258 = vpop.f32.mrf.mxu0
  %v1259 = vadd.f32 %v1050, %v1258
  %1260 = vmatmul.f32.gmra.mxu0 %v348
  %v1261 = vpop.f32.mrf.mxu0
  %v1262 = vadd.f32 %v1053, %v1261
  %1263 = vmatmul.f32.gmra.mxu0 %v352
  %v1264 = vpop.f32.mrf.mxu0
  %v1265 = vadd.f32 %v1056, %v1264
  %1266 = vmatmul.f32.gmra.mxu0 %v356
  %v1267 = vpop.f32.mrf.mxu0
  %v1268 = vadd.f32 %v1059, %v1267
  %1269 = vmatmul.f32.gmra.mxu0 %v360
  %v1270 = vpop.f32.mrf.mxu0
  %v1271 = vadd.f32 %v1062, %v1270
  %1272 = vmatmul.f32.gmra.mxu0 %v364
  %v1273 = vpop.f32.mrf.mxu0
  %v1274 = vadd.f32 %v1065, %v1273
  %1275 = vmatmul.f32.gmra.mxu0 %v368
  %v1276 = vpop.f32.mrf.mxu0
  %v1277 = vadd.f32 %v1068, %v1276
  %1278 = vmatmul.f32.gmra.mxu0 %v372
  %v1279 = vpop.f32.mrf.mxu0
  %v1280 = vadd.f32 %v1071, %v1279
  %1281 = vmatmul.f32.gmra.mxu0 %v376
  %v1282 = vpop.f32.mrf.mxu0
  %v1283 = vadd.f32 %v1074, %v1282
  %1284 = vmatmul.f32.gmra.mxu0 %v380
  %v1285 = vpop.f32.mrf.mxu0
  %v1286 = vadd.f32 %v1077, %v1285
  %1287 = vmatmul.f32.gmra.mxu0 %v384
  %v1288 = vpop.f32.mrf.mxu0
  %v1289 = vadd.f32 %v1080, %v1288
  %1290 = vmatmul.f32.gmra.mxu0 %v388
  %v1291 = vpop.f32.mrf.mxu0
  %v1292 = vadd.f32 %v1083, %v1291
  %1293 = vmatmul.f32.gmra.mxu0 %v392
  %v1294 = vpop.f32.mrf.mxu0
  %v1295 = vadd.f32 %v1086, %v1294
  %1296 = vmatmul.f32.gmra.mxu0 %v396
  %v1297 = vpop.f32.mrf.mxu0
  %v1298 = vadd.f32 %v1089, %v1297
  %1299 = vmatmul.f32.gmra.mxu0 %v400
  %v1300 = vpop.f32.mrf.mxu0
  %v1301 = vadd.f32 %v1092, %v1300
  %1302 = vmatmul.f32.gmra.mxu0 %v404
  %v1303 = vpop.f32.mrf.mxu0
  %v1304 = vadd.f32 %v1095, %v1303
  %1305 = vmatmul.f32.gmra.mxu0 %v408
  %v1306 = vpop.f32.mrf.mxu0
  %v1307 = vadd.f32 %v1098, %v1306
  %1308 = vdwg.mxu0
  %v1309 = vadd.f32 %v89, %v1118
  %v1310 = vadd.f32 %v90, %v1121
  %v1311 = vadd.f32 %v91, %v1124
  %v1312 = vadd.f32 %v92, %v1127
  %v1313 = vadd.f32 %v93, %v1130
  %v1314 = vadd.f32 %v94, %v1133
  %v1315 = vadd.f32 %v95, %v1136
  %v1316 = vadd.f32 %v96, %v1139
  %v1317 = vadd.f32 %v97, %v1142
  %v1318 = vadd.f32 %v98, %v1145
  %v1319 = vadd.f32 %v99, %v1148
  %v1320 = vadd.f32 %v100, %v1151
  %v1321 = vadd.f32 %v101, %v1154
  %v1322 = vadd.f32 %v102, %v1157
  %v1323 = vadd.f32 %v103, %v1160
  %v1324 = vadd.f32 %v104, %v1163
  %v1325 = vadd.f32 %v105, %v1166
  %v1326 = vadd.f32 %v106, %v1169
  %v1327 = vadd.f32 %v107, %v1172
  %v1328 = vadd.f32 %v108, %v1175
  %v1329 = vadd.f32 %v109, %v1178
  %v1330 = vadd.f32 %v110, %v1181
  %v1331 = vadd.f32 %v111, %v1184
  %v1332 = vadd.f32 %v112, %v1187
  %v1333 = vadd.f32 %v113, %v1190
  %v1334 = vadd.f32 %v114, %v1193
  %v1335 = vadd.f32 %v115, %v1196
  %v1336 = vadd.f32 %v116, %v1199
  %v1337 = vadd.f32 %v117, %v1202
  %v1338 = vadd.f32 %v118, %v1205
  %v1339 = vadd.f32 %v119, %v1208
  %v1340 = vadd.f32 %v120, %v1211
  %v1341 = vadd.f32 %v121, %v1214
  %v1342 = vadd.f32 %v122, %v1217
  %v1343 = vadd.f32 %v123, %v1220
  %v1344 = vadd.f32 %v124, %v1223
  %v1345 = vadd.f32 %v125, %v1226
  %v1346 = vadd.f32 %v126, %v1229
  %v1347 = vadd.f32 %v127, %v1232
  %v1348 = vadd.f32 %v128, %v1235
  %v1349 = vadd.f32 %v129, %v1238
  %v1350 = vadd.f32 %v130, %v1241
  %v1351 = vadd.f32 %v131, %v1244
  %v1352 = vadd.f32 %v132, %v1247
  %v1353 = vadd.f32 %v133, %v1250
  %v1354 = vadd.f32 %v134, %v1253
  %v1355 = vadd.f32 %v135, %v1256
  %v1356 = vadd.f32 %v136, %v1259
  %v1357 = vadd.f32 %v137, %v1262
  %v1358 = vadd.f32 %v138, %v1265
  %v1359 = vadd.f32 %v139, %v1268
  %v1360 = vadd.f32 %v140, %v1271
  %v1361 = vadd.f32 %v141, %v1274
  %v1362 = vadd.f32 %v142, %v1277
  %v1363 = vadd.f32 %v143, %v1280
  %v1364 = vadd.f32 %v144, %v1283
  %v1365 = vadd.f32 %v145, %v1286
  %v1366 = vadd.f32 %v146, %v1289
  %v1367 = vadd.f32 %v147, %v1292
  %v1368 = vadd.f32 %v148, %v1295
  %v1369 = vadd.f32 %v149, %v1298
  %v1370 = vadd.f32 %v150, %v1301
  %v1371 = vadd.f32 %v151, %v1304
  %v1372 = vadd.f32 %v152, %v1307
  %1373 = vst [vmem:[#allocation2] sm:$0xff] %v1309
  %1374 = vst [vmem:[#allocation2 + $0x8] sm:$0xff] %v1310
  %1375 = vst [vmem:[#allocation2 + $0x10] sm:$0xff] %v1311
  %1376 = vst [vmem:[#allocation2 + $0x18] sm:$0xff] %v1312
  %1377 = vst [vmem:[#allocation2 + $0x20] sm:$0xff] %v1313
  %1378 = vst [vmem:[#allocation2 + $0x28] sm:$0xff] %v1314
  %1379 = vst [vmem:[#allocation2 + $0x30] sm:$0xff] %v1315
  %1380 = vst [vmem:[#allocation2 + $0x38] sm:$0xff] %v1316
  %1381 = vst [vmem:[#allocation2 + $0x40] sm:$0xff] %v1317
  %1382 = vst [vmem:[#allocation2 + $0x48] sm:$0xff] %v1318
  %1383 = vst [vmem:[#allocation2 + $0x50] sm:$0xff] %v1319
  %1384 = vst [vmem:[#allocation2 + $0x58] sm:$0xff] %v1320
  %1385 = vst [vmem:[#allocation2 + $0x60] sm:$0xff] %v1321
  %1386 = vst [vmem:[#allocation2 + $0x68] sm:$0xff] %v1322
  %1387 = vst [vmem:[#allocation2 + $0x70] sm:$0xff] %v1323
  %1388 = vst [vmem:[#allocation2 + $0x78] sm:$0xff] %v1324
  %1389 = vst [vmem:[#allocation2 + $0x80] sm:$0xff] %v1325
  %1390 = vst [vmem:[#allocation2 + $0x88] sm:$0xff] %v1326
  %1391 = vst [vmem:[#allocation2 + $0x90] sm:$0xff] %v1327
  %1392 = vst [vmem:[#allocation2 + $0x98] sm:$0xff] %v1328
  %1393 = vst [vmem:[#allocation2 + $0xa0] sm:$0xff] %v1329
  %1394 = vst [vmem:[#allocation2 + $0xa8] sm:$0xff] %v1330
  %1395 = vst [vmem:[#allocation2 + $0xb0] sm:$0xff] %v1331
  %1396 = vst [vmem:[#allocation2 + $0xb8] sm:$0xff] %v1332
  %1397 = vst [vmem:[#allocation2 + $0xc0] sm:$0xff] %v1333
  %1398 = vst [vmem:[#allocation2 + $0xc8] sm:$0xff] %v1334
  %1399 = vst [vmem:[#allocation2 + $0xd0] sm:$0xff] %v1335
  %1400 = vst [vmem:[#allocation2 + $0xd8] sm:$0xff] %v1336
  %1401 = vst [vmem:[#allocation2 + $0xe0] sm:$0xff] %v1337
  %1402 = vst [vmem:[#allocation2 + $0xe8] sm:$0xff] %v1338
  %1403 = vst [vmem:[#allocation2 + $0xf0] sm:$0xff] %v1339
  %1404 = vst [vmem:[#allocation2 + $0xf8] sm:$0xff] %v1340
  %1405 = vst [vmem:[#allocation2 + $0x100] sm:$0xff] %v1341
  %1406 = vst [vmem:[#allocation2 + $0x108] sm:$0xff] %v1342
  %1407 = vst [vmem:[#allocation2 + $0x110] sm:$0xff] %v1343
  %1408 = vst [vmem:[#allocation2 + $0x118] sm:$0xff] %v1344
  %1409 = vst [vmem:[#allocation2 + $0x120] sm:$0xff] %v1345
  %1410 = vst [vmem:[#allocation2 + $0x128] sm:$0xff] %v1346
  %1411 = vst [vmem:[#allocation2 + $0x130] sm:$0xff] %v1347
  %1412 = vst [vmem:[#allocation2 + $0x138] sm:$0xff] %v1348
  %1413 = vst [vmem:[#allocation2 + $0x140] sm:$0xff] %v1349
  %1414 = vst [vmem:[#allocation2 + $0x148] sm:$0xff] %v1350
  %1415 = vst [vmem:[#allocation2 + $0x150] sm:$0xff] %v1351
  %1416 = vst [vmem:[#allocation2 + $0x158] sm:$0xff] %v1352
  %1417 = vst [vmem:[#allocation2 + $0x160] sm:$0xff] %v1353
  %1418 = vst [vmem:[#allocation2 + $0x168] sm:$0xff] %v1354
  %1419 = vst [vmem:[#allocation2 + $0x170] sm:$0xff] %v1355
  %1420 = vst [vmem:[#allocation2 + $0x178] sm:$0xff] %v1356
  %1421 = vst [vmem:[#allocation2 + $0x180] sm:$0xff] %v1357
  %1422 = vst [vmem:[#allocation2 + $0x188] sm:$0xff] %v1358
  %1423 = vst [vmem:[#allocation2 + $0x190] sm:$0xff] %v1359
  %1424 = vst [vmem:[#allocation2 + $0x198] sm:$0xff] %v1360
  %1425 = vst [vmem:[#allocation2 + $0x1a0] sm:$0xff] %v1361
  %1426 = vst [vmem:[#allocation2 + $0x1a8] sm:$0xff] %v1362
  %1427 = vst [vmem:[#allocation2 + $0x1b0] sm:$0xff] %v1363
  %1428 = vst [vmem:[#allocation2 + $0x1b8] sm:$0xff] %v1364
  %1429 = vst [vmem:[#allocation2 + $0x1c0] sm:$0xff] %v1365
  %1430 = vst [vmem:[#allocation2 + $0x1c8] sm:$0xff] %v1366
  %1431 = vst [vmem:[#allocation2 + $0x1d0] sm:$0xff] %v1367
  %1432 = vst [vmem:[#allocation2 + $0x1d8] sm:$0xff] %v1368
  %1433 = vst [vmem:[#allocation2 + $0x1e0] sm:$0xff] %v1369
  %1434 = vst [vmem:[#allocation2 + $0x1e8] sm:$0xff] %v1370
  %1435 = vst [vmem:[#allocation2 + $0x1f0] sm:$0xff] %v1371
  %1436 = vst [vmem:[#allocation2 + $0x1f8] sm:$0xff] %v1372
  // Predicated region
  $region18: #{generator_forward.13} parent=0 // pred_check
    %p1437 = pneg %p15
  $region19: #{generator_forward.13} parent=0 // pred_check_branch
    %1439 = sbr.rel (%p1437) target = $region21
  $region20: #{generator_forward.13} parent=0 // pred_region
    %v1440 = vld [vmem:[#allocation2] sm:$0xff]
    %v1441 = vld [vmem:[#allocation2 + $0x8] sm:$0xff]
    %v1442 = vld [vmem:[#allocation2 + $0x10] sm:$0xff]
    %v1443 = vld [vmem:[#allocation2 + $0x18] sm:$0xff]
    %v1444 = vld [vmem:[#allocation2 + $0x20] sm:$0xff]
    %v1445 = vld [vmem:[#allocation2 + $0x28] sm:$0xff]
    %v1446 = vld [vmem:[#allocation2 + $0x30] sm:$0xff]
    %v1447 = vld [vmem:[#allocation2 + $0x38] sm:$0xff]
    %v1448 = vld [vmem:[#allocation2 + $0x40] sm:$0xff]
    %v1449 = vld [vmem:[#allocation2 + $0x48] sm:$0xff]
    %v1450 = vld [vmem:[#allocation2 + $0x50] sm:$0xff]
    %v1451 = vld [vmem:[#allocation2 + $0x58] sm:$0xff]
    %v1452 = vld [vmem:[#allocation2 + $0x60] sm:$0xff]
    %v1453 = vld [vmem:[#allocation2 + $0x68] sm:$0xff]
    %v1454 = vld [vmem:[#allocation2 + $0x70] sm:$0xff]
    %v1455 = vld [vmem:[#allocation2 + $0x78] sm:$0xff]
    %v1456 = vld [vmem:[#allocation2 + $0x80] sm:$0xff]
    %v1457 = vld [vmem:[#allocation2 + $0x88] sm:$0xff]
    %v1458 = vld [vmem:[#allocation2 + $0x90] sm:$0xff]
    %v1459 = vld [vmem:[#allocation2 + $0x98] sm:$0xff]
    %v1460 = vld [vmem:[#allocation2 + $0xa0] sm:$0xff]
    %v1461 = vld [vmem:[#allocation2 + $0xa8] sm:$0xff]
    %v1462 = vld [vmem:[#allocation2 + $0xb0] sm:$0xff]
    %v1463 = vld [vmem:[#allocation2 + $0xb8] sm:$0xff]
    %v1464 = vld [vmem:[#allocation2 + $0xc0] sm:$0xff]
    %v1465 = vld [vmem:[#allocation2 + $0xc8] sm:$0xff]
    %v1466 = vld [vmem:[#allocation2 + $0xd0] sm:$0xff]
    %v1467 = vld [vmem:[#allocation2 + $0xd8] sm:$0xff]
    %v1468 = vld [vmem:[#allocation2 + $0xe0] sm:$0xff]
    %v1469 = vld [vmem:[#allocation2 + $0xe8] sm:$0xff]
    %v1470 = vld [vmem:[#allocation2 + $0xf0] sm:$0xff]
    %v1471 = vld [vmem:[#allocation2 + $0xf8] sm:$0xff]
    %v1472 = vld [vmem:[#allocation2 + $0x100] sm:$0xff]
    %v1473 = vld [vmem:[#allocation2 + $0x108] sm:$0xff]
    %v1474 = vld [vmem:[#allocation2 + $0x110] sm:$0xff]
    %v1475 = vld [vmem:[#allocation2 + $0x118] sm:$0xff]
    %v1476 = vld [vmem:[#allocation2 + $0x120] sm:$0xff]
    %v1477 = vld [vmem:[#allocation2 + $0x128] sm:$0xff]
    %v1478 = vld [vmem:[#allocation2 + $0x130] sm:$0xff]
    %v1479 = vld [vmem:[#allocation2 + $0x138] sm:$0xff]
    %v1480 = vld [vmem:[#allocation2 + $0x140] sm:$0xff]
    %v1481 = vld [vmem:[#allocation2 + $0x148] sm:$0xff]
    %v1482 = vld [vmem:[#allocation2 + $0x150] sm:$0xff]
    %v1483 = vld [vmem:[#allocation2 + $0x158] sm:$0xff]
    %v1484 = vld [vmem:[#allocation2 + $0x160] sm:$0xff]
    %v1485 = vld [vmem:[#allocation2 + $0x168] sm:$0xff]
    %v1486 = vld [vmem:[#allocation2 + $0x170] sm:$0xff]
    %v1487 = vld [vmem:[#allocation2 + $0x178] sm:$0xff]
    %v1488 = vld [vmem:[#allocation2 + $0x180] sm:$0xff]
    %v1489 = vld [vmem:[#allocation2 + $0x188] sm:$0xff]
    %v1490 = vld [vmem:[#allocation2 + $0x190] sm:$0xff]
    %v1491 = vld [vmem:[#allocation2 + $0x198] sm:$0xff]
    %v1492 = vld [vmem:[#allocation2 + $0x1a0] sm:$0xff]
    %v1493 = vld [vmem:[#allocation2 + $0x1a8] sm:$0xff]
    %v1494 = vld [vmem:[#allocation2 + $0x1b0] sm:$0xff]
    %v1495 = vld [vmem:[#allocation2 + $0x1b8] sm:$0xff]
    %v1496 = vld [vmem:[#allocation2 + $0x1c0] sm:$0xff]
    %v1497 = vld [vmem:[#allocation2 + $0x1c8] sm:$0xff]
    %v1498 = vld [vmem:[#allocation2 + $0x1d0] sm:$0xff]
    %v1499 = vld [vmem:[#allocation2 + $0x1d8] sm:$0xff]
    %v1500 = vld [vmem:[#allocation2 + $0x1e0] sm:$0xff]
    %v1501 = vld [vmem:[#allocation2 + $0x1e8] sm:$0xff]
    %v1502 = vld [vmem:[#allocation2 + $0x1f0] sm:$0xff]
    %v1503 = vld [vmem:[#allocation2 + $0x1f8] sm:$0xff]
    %1504 = vst [vmem:[%s2] sm:$0xff] %v1440
    %1505 = vst [vmem:[%s2 + $0x8] sm:$0xff] %v1441
    %1506 = vst [vmem:[%s2 + $0x10] sm:$0xff] %v1442
    %1507 = vst [vmem:[%s2 + $0x18] sm:$0xff] %v1443
    %1508 = vst [vmem:[%s2 + $0x20] sm:$0xff] %v1444
    %1509 = vst [vmem:[%s2 + $0x28] sm:$0xff] %v1445
    %1510 = vst [vmem:[%s2 + $0x30] sm:$0xff] %v1446
    %1511 = vst [vmem:[%s2 + $0x38] sm:$0xff] %v1447
    %1512 = vst [vmem:[%s2 + $0x40] sm:$0xff] %v1448
    %1513 = vst [vmem:[%s2 + $0x48] sm:$0xff] %v1449
    %1514 = vst [vmem:[%s2 + $0x50] sm:$0xff] %v1450
    %1515 = vst [vmem:[%s2 + $0x58] sm:$0xff] %v1451
    %1516 = vst [vmem:[%s2 + $0x60] sm:$0xff] %v1452
    %1517 = vst [vmem:[%s2 + $0x68] sm:$0xff] %v1453
    %1518 = vst [vmem:[%s2 + $0x70] sm:$0xff] %v1454
    %1519 = vst [vmem:[%s2 + $0x78] sm:$0xff] %v1455
    %1520 = vst [vmem:[%s2 + $0x80] sm:$0xff] %v1456
    %1521 = vst [vmem:[%s2 + $0x88] sm:$0xff] %v1457
    %1522 = vst [vmem:[%s2 + $0x90] sm:$0xff] %v1458
    %1523 = vst [vmem:[%s2 + $0x98] sm:$0xff] %v1459
    %1524 = vst [vmem:[%s2 + $0xa0] sm:$0xff] %v1460
    %1525 = vst [vmem:[%s2 + $0xa8] sm:$0xff] %v1461
    %1526 = vst [vmem:[%s2 + $0xb0] sm:$0xff] %v1462
    %1527 = vst [vmem:[%s2 + $0xb8] sm:$0xff] %v1463
    %1528 = vst [vmem:[%s2 + $0xc0] sm:$0xff] %v1464
    %1529 = vst [vmem:[%s2 + $0xc8] sm:$0xff] %v1465
    %1530 = vst [vmem:[%s2 + $0xd0] sm:$0xff] %v1466
    %1531 = vst [vmem:[%s2 + $0xd8] sm:$0xff] %v1467
    %1532 = vst [vmem:[%s2 + $0xe0] sm:$0xff] %v1468
    %1533 = vst [vmem:[%s2 + $0xe8] sm:$0xff] %v1469
    %1534 = vst [vmem:[%s2 + $0xf0] sm:$0xff] %v1470
    %1535 = vst [vmem:[%s2 + $0xf8] sm:$0xff] %v1471
    %1536 = vst [vmem:[%s2 + $0x100] sm:$0xff] %v1472
    %1537 = vst [vmem:[%s2 + $0x108] sm:$0xff] %v1473
    %1538 = vst [vmem:[%s2 + $0x110] sm:$0xff] %v1474
    %1539 = vst [vmem:[%s2 + $0x118] sm:$0xff] %v1475
    %1540 = vst [vmem:[%s2 + $0x120] sm:$0xff] %v1476
    %1541 = vst [vmem:[%s2 + $0x128] sm:$0xff] %v1477
    %1542 = vst [vmem:[%s2 + $0x130] sm:$0xff] %v1478
    %1543 = vst [vmem:[%s2 + $0x138] sm:$0xff] %v1479
    %1544 = vst [vmem:[%s2 + $0x140] sm:$0xff] %v1480
    %1545 = vst [vmem:[%s2 + $0x148] sm:$0xff] %v1481
    %1546 = vst [vmem:[%s2 + $0x150] sm:$0xff] %v1482
    %1547 = vst [vmem:[%s2 + $0x158] sm:$0xff] %v1483
    %1548 = vst [vmem:[%s2 + $0x160] sm:$0xff] %v1484
    %1549 = vst [vmem:[%s2 + $0x168] sm:$0xff] %v1485
    %1550 = vst [vmem:[%s2 + $0x170] sm:$0xff] %v1486
    %1551 = vst [vmem:[%s2 + $0x178] sm:$0xff] %v1487
    %1552 = vst [vmem:[%s2 + $0x180] sm:$0xff] %v1488
    %1553 = vst [vmem:[%s2 + $0x188] sm:$0xff] %v1489
    %1554 = vst [vmem:[%s2 + $0x190] sm:$0xff] %v1490
    %1555 = vst [vmem:[%s2 + $0x198] sm:$0xff] %v1491
    %1556 = vst [vmem:[%s2 + $0x1a0] sm:$0xff] %v1492
    %1557 = vst [vmem:[%s2 + $0x1a8] sm:$0xff] %v1493
    %1558 = vst [vmem:[%s2 + $0x1b0] sm:$0xff] %v1494
    %1559 = vst [vmem:[%s2 + $0x1b8] sm:$0xff] %v1495
    %1560 = vst [vmem:[%s2 + $0x1c0] sm:$0xff] %v1496
    %1561 = vst [vmem:[%s2 + $0x1c8] sm:$0xff] %v1497
    %1562 = vst [vmem:[%s2 + $0x1d0] sm:$0xff] %v1498
    %1563 = vst [vmem:[%s2 + $0x1d8] sm:$0xff] %v1499
    %1564 = vst [vmem:[%s2 + $0x1e0] sm:$0xff] %v1500
    %1565 = vst [vmem:[%s2 + $0x1e8] sm:$0xff] %v1501
    %1566 = vst [vmem:[%s2 + $0x1f0] sm:$0xff] %v1502
    %1567 = vst [vmem:[%s2 + $0x1f8] sm:$0xff] %v1503
    %v1568 = vld [vmem:[%s3] sm:$0x1]
    %v1569 = vadd.f32 %v1440, %v1441
    %v1570 = vadd.f32 %v1569, %v1442
    %v1571 = vadd.f32 %v1570, %v1443
    %v1572 = vadd.f32 %v1571, %v1444
    %v1573 = vadd.f32 %v1572, %v1445
    %v1574 = vadd.f32 %v1573, %v1446
    %v1575 = vadd.f32 %v1574, %v1447
    %v1576 = vadd.f32 %v1575, %v1448
    %v1577 = vadd.f32 %v1576, %v1449
    %v1578 = vadd.f32 %v1577, %v1450
    %v1579 = vadd.f32 %v1578, %v1451
    %v1580 = vadd.f32 %v1579, %v1452
    %v1581 = vadd.f32 %v1580, %v1453
    %v1582 = vadd.f32 %v1581, %v1454
    %v1583 = vadd.f32 %v1582, %v1455
    %v1584 = vadd.f32 %v1583, %v1456
    %v1585 = vadd.f32 %v1584, %v1457
    %v1586 = vadd.f32 %v1585, %v1458
    %v1587 = vadd.f32 %v1586, %v1459
    %v1588 = vadd.f32 %v1587, %v1460
    %v1589 = vadd.f32 %v1588, %v1461
    %v1590 = vadd.f32 %v1589, %v1462
    %v1591 = vadd.f32 %v1590, %v1463
    %v1592 = vadd.f32 %v1591, %v1464
    %v1593 = vadd.f32 %v1592, %v1465
    %v1594 = vadd.f32 %v1593, %v1466
    %v1595 = vadd.f32 %v1594, %v1467
    %v1596 = vadd.f32 %v1595, %v1468
    %v1597 = vadd.f32 %v1596, %v1469
    %v1598 = vadd.f32 %v1597, %v1470
    %v1599 = vadd.f32 %v1598, %v1471
    %v1600 = vadd.f32 %v1599, %v1472
    %v1601 = vadd.f32 %v1600, %v1473
    %v1602 = vadd.f32 %v1601, %v1474
    %v1603 = vadd.f32 %v1602, %v1475
    %v1604 = vadd.f32 %v1603, %v1476
    %v1605 = vadd.f32 %v1604, %v1477
    %v1606 = vadd.f32 %v1605, %v1478
    %v1607 = vadd.f32 %v1606, %v1479
    %v1608 = vadd.f32 %v1607, %v1480
    %v1609 = vadd.f32 %v1608, %v1481
    %v1610 = vadd.f32 %v1609, %v1482
    %v1611 = vadd.f32 %v1610, %v1483
    %v1612 = vadd.f32 %v1611, %v1484
    %v1613 = vadd.f32 %v1612, %v1485
    %v1614 = vadd.f32 %v1613, %v1486
    %v1615 = vadd.f32 %v1614, %v1487
    %v1616 = vadd.f32 %v1615, %v1488
    %v1617 = vadd.f32 %v1616, %v1489
    %v1618 = vadd.f32 %v1617, %v1490
    %v1619 = vadd.f32 %v1618, %v1491
    %v1620 = vadd.f32 %v1619, %v1492
    %v1621 = vadd.f32 %v1620, %v1493
    %v1622 = vadd.f32 %v1621, %v1494
    %v1623 = vadd.f32 %v1622, %v1495
    %v1624 = vadd.f32 %v1623, %v1496
    %v1625 = vadd.f32 %v1624, %v1497
    %v1626 = vadd.f32 %v1625, %v1498
    %v1627 = vadd.f32 %v1626, %v1499
    %v1628 = vadd.f32 %v1627, %v1500
    %v1629 = vadd.f32 %v1628, %v1501
    %v1630 = vadd.f32 %v1629, %v1502
    %v1631 = vadd.f32 %v1630, %v1503
    %v1632 = vrot.slane %v1631, 4
    %v1633 = vadd.f32 %v1631, %v1632
    %v1634 = vrot.slane %v1633, 2
    %v1635 = vadd.f32 %v1633, %v1634
    %v1636 = vrot.slane %v1635, 1
    %v1637 = vadd.f32 %v1635, %v1636
    %v1638 = vadd.f32 %v1568, %v1637
    %1639 = vst [vmem:[%s3] sm:$0x1] %v1638
    %v1640 = vld [vmem:[%s4] sm:$0x1]
    %v1641 = vmul.f32 %v1440, %v1440
    %v1642 = vmul.f32 %v1441, %v1441
    %v1643 = vmul.f32 %v1442, %v1442
    %v1644 = vmul.f32 %v1443, %v1443
    %v1645 = vmul.f32 %v1444, %v1444
    %v1646 = vmul.f32 %v1445, %v1445
    %v1647 = vmul.f32 %v1446, %v1446
    %v1648 = vmul.f32 %v1447, %v1447
    %v1649 = vmul.f32 %v1448, %v1448
    %v1650 = vmul.f32 %v1449, %v1449
    %v1651 = vmul.f32 %v1450, %v1450
    %v1652 = vmul.f32 %v1451, %v1451
    %v1653 = vmul.f32 %v1452, %v1452
    %v1654 = vmul.f32 %v1453, %v1453
    %v1655 = vmul.f32 %v1454, %v1454
    %v1656 = vmul.f32 %v1455, %v1455
    %v1657 = vmul.f32 %v1456, %v1456
    %v1658 = vmul.f32 %v1457, %v1457
    %v1659 = vmul.f32 %v1458, %v1458
    %v1660 = vmul.f32 %v1459, %v1459
    %v1661 = vmul.f32 %v1460, %v1460
    %v1662 = vmul.f32 %v1461, %v1461
    %v1663 = vmul.f32 %v1462, %v1462
    %v1664 = vmul.f32 %v1463, %v1463
    %v1665 = vmul.f32 %v1464, %v1464
    %v1666 = vmul.f32 %v1465, %v1465
    %v1667 = vmul.f32 %v1466, %v1466
    %v1668 = vmul.f32 %v1467, %v1467
    %v1669 = vmul.f32 %v1468, %v1468
    %v1670 = vmul.f32 %v1469, %v1469
    %v1671 = vmul.f32 %v1470, %v1470
    %v1672 = vmul.f32 %v1471, %v1471
    %v1673 = vmul.f32 %v1472, %v1472
    %v1674 = vmul.f32 %v1473, %v1473
    %v1675 = vmul.f32 %v1474, %v1474
    %v1676 = vmul.f32 %v1475, %v1475
    %v1677 = vmul.f32 %v1476, %v1476
    %v1678 = vmul.f32 %v1477, %v1477
    %v1679 = vmul.f32 %v1478, %v1478
    %v1680 = vmul.f32 %v1479, %v1479
    %v1681 = vmul.f32 %v1480, %v1480
    %v1682 = vmul.f32 %v1481, %v1481
    %v1683 = vmul.f32 %v1482, %v1482
    %v1684 = vmul.f32 %v1483, %v1483
    %v1685 = vmul.f32 %v1484, %v1484
    %v1686 = vmul.f32 %v1485, %v1485
    %v1687 = vmul.f32 %v1486, %v1486
    %v1688 = vmul.f32 %v1487, %v1487
    %v1689 = vmul.f32 %v1488, %v1488
    %v1690 = vmul.f32 %v1489, %v1489
    %v1691 = vmul.f32 %v1490, %v1490
    %v1692 = vmul.f32 %v1491, %v1491
    %v1693 = vmul.f32 %v1492, %v1492
    %v1694 = vmul.f32 %v1493, %v1493
    %v1695 = vmul.f32 %v1494, %v1494
    %v1696 = vmul.f32 %v1495, %v1495
    %v1697 = vmul.f32 %v1496, %v1496
    %v1698 = vmul.f32 %v1497, %v1497
    %v1699 = vmul.f32 %v1498, %v1498
    %v1700 = vmul.f32 %v1499, %v1499
    %v1701 = vmul.f32 %v1500, %v1500
    %v1702 = vmul.f32 %v1501, %v1501
    %v1703 = vmul.f32 %v1502, %v1502
    %v1704 = vmul.f32 %v1503, %v1503
    %v1705 = vadd.f32 %v1641, %v1642
    %v1706 = vadd.f32 %v1705, %v1643
    %v1707 = vadd.f32 %v1706, %v1644
    %v1708 = vadd.f32 %v1707, %v1645
    %v1709 = vadd.f32 %v1708, %v1646
    %v1710 = vadd.f32 %v1709, %v1647
    %v1711 = vadd.f32 %v1710, %v1648
    %v1712 = vadd.f32 %v1711, %v1649
    %v1713 = vadd.f32 %v1712, %v1650
    %v1714 = vadd.f32 %v1713, %v1651
    %v1715 = vadd.f32 %v1714, %v1652
    %v1716 = vadd.f32 %v1715, %v1653
    %v1717 = vadd.f32 %v1716, %v1654
    %v1718 = vadd.f32 %v1717, %v1655
    %v1719 = vadd.f32 %v1718, %v1656
    %v1720 = vadd.f32 %v1719, %v1657
    %v1721 = vadd.f32 %v1720, %v1658
    %v1722 = vadd.f32 %v1721, %v1659
    %v1723 = vadd.f32 %v1722, %v1660
    %v1724 = vadd.f32 %v1723, %v1661
    %v1725 = vadd.f32 %v1724, %v1662
    %v1726 = vadd.f32 %v1725, %v1663
    %v1727 = vadd.f32 %v1726, %v1664
    %v1728 = vadd.f32 %v1727, %v1665
    %v1729 = vadd.f32 %v1728, %v1666
    %v1730 = vadd.f32 %v1729, %v1667
    %v1731 = vadd.f32 %v1730, %v1668
    %v1732 = vadd.f32 %v1731, %v1669
    %v1733 = vadd.f32 %v1732, %v1670
    %v1734 = vadd.f32 %v1733, %v1671
    %v1735 = vadd.f32 %v1734, %v1672
    %v1736 = vadd.f32 %v1735, %v1673
    %v1737 = vadd.f32 %v1736, %v1674
    %v1738 = vadd.f32 %v1737, %v1675
    %v1739 = vadd.f32 %v1738, %v1676
    %v1740 = vadd.f32 %v1739, %v1677
    %v1741 = vadd.f32 %v1740, %v1678
    %v1742 = vadd.f32 %v1741, %v1679
    %v1743 = vadd.f32 %v1742, %v1680
    %v1744 = vadd.f32 %v1743, %v1681
    %v1745 = vadd.f32 %v1744, %v1682
    %v1746 = vadd.f32 %v1745, %v1683
    %v1747 = vadd.f32 %v1746, %v1684
    %v1748 = vadd.f32 %v1747, %v1685
    %v1749 = vadd.f32 %v1748, %v1686
    %v1750 = vadd.f32 %v1749, %v1687
    %v1751 = vadd.f32 %v1750, %v1688
    %v1752 = vadd.f32 %v1751, %v1689
    %v1753 = vadd.f32 %v1752, %v1690
    %v1754 = vadd.f32 %v1753, %v1691
    %v1755 = vadd.f32 %v1754, %v1692
    %v1756 = vadd.f32 %v1755, %v1693
    %v1757 = vadd.f32 %v1756, %v1694
    %v1758 = vadd.f32 %v1757, %v1695
    %v1759 = vadd.f32 %v1758, %v1696
    %v1760 = vadd.f32 %v1759, %v1697
    %v1761 = vadd.f32 %v1760, %v1698
    %v1762 = vadd.f32 %v1761, %v1699
    %v1763 = vadd.f32 %v1762, %v1700
    %v1764 = vadd.f32 %v1763, %v1701
    %v1765 = vadd.f32 %v1764, %v1702
    %v1766 = vadd.f32 %v1765, %v1703
    %v1767 = vadd.f32 %v1766, %v1704
    %v1768 = vrot.slane %v1767, 4
    %v1769 = vadd.f32 %v1767, %v1768
    %v1770 = vrot.slane %v1769, 2
    %v1771 = vadd.f32 %v1769, %v1770
    %v1772 = vrot.slane %v1771, 1
    %v1773 = vadd.f32 %v1771, %v1772
    %v1774 = vadd.f32 %v1640, %v1773
    %1775 = vst [vmem:[%s4] sm:$0x1] %v1774
  $region21: #{generator_forward.13} parent=0 // pred_fallthru
    _
  // Predicated region
  $region22: #{generator_forward.13} parent=0 // pred_check
    _
  $region23: #{generator_forward.13} parent=0 // pred_check_branch
    %1777 = sbr.rel (0) target = $region25
  $region24: #{generator_forward.13} parent=0 // pred_region
    _
  $region25: #{generator_forward.13} parent=0 // pred_fallthru
    _
  // Predicated region
  $region26: #{generator_forward.13} parent=0 // pred_check
    _
  $region27: #{generator_forward.13} parent=0 // pred_check_branch
    %1779 = sbr.rel (0) target = $region29
  $region28: #{generator_forward.13} parent=0 // pred_region
    _
  $region29: #{generator_forward.13} parent=0 // pred_fallthru
    _
  // Predicated region
  $region30: #{generator_forward.13} parent=0 // pred_check
    _
  $region31: #{generator_forward.13} parent=0 // pred_check_branch
    %1781 = sbr.rel (0) target = $region33
  $region32: #{generator_forward.13} parent=0 // pred_region
    _
  $region33: #{generator_forward.13} parent=0 // pred_fallthru
    _
  // Predicated region
  $region34: #{generator_forward.13} parent=0 // pred_check
    _
  $region35: #{generator_forward.13} parent=0 // pred_check_branch
    %1783 = sbr.rel (0) target = $region37
  $region36: #{generator_forward.13} parent=0 // pred_region
    _
  $region37: #{generator_forward.13} parent=0 // pred_fallthru
    _
  // Predicated region
  $region38: #{generator_forward.13} parent=0 // pred_check
    _
  $region39: #{generator_forward.13} parent=0 // pred_check_branch
    %1785 = sbr.rel (0) target = $region41
  $region40: #{generator_forward.13} parent=0 // pred_region
    _
  $region41: #{generator_forward.13} parent=0 // pred_fallthru
    _
  // Predicated region
  $region42: #{generator_forward.13} parent=0 // pred_check
    _
  $region43: #{generator_forward.13} parent=0 // pred_check_branch
    %1787 = sbr.rel (0) target = $region45
  $region44: #{generator_forward.13} parent=0 // pred_region
    _
  $region45: #{generator_forward.13} parent=0 // pred_fallthru
    _

// kernel: generator_forward.16
$region0: #{generator_forward.16}
  #allocation0 [shape = 'u32[]', space=smem, size = 0x4, offset = 0x4, fixed_abs, tag = 'smem constant byte address 0x4 - core index']
  #allocation1 [shape = 'u32[72,128]{1,0:T(1,128)}', space=vmem, size = 0x9000, scoped, tag = 'internal scratch']
  %s0 = inlined_call_operand.vmem [shape: f32[2048,128], index: 0, kind: input, shape index: {}]
  %s1 = inlined_call_operand.vmem [shape: f32[1,128], index: 1, kind: input, shape index: {}]
  %s2 = inlined_call_operand.vmem [shape: f32[1,128], index: 2, kind: input, shape index: {}]
  %s3 = inlined_call_operand.vmem [shape: f32[2048,128], index: 3, kind: output, shape index: {}]
  %s4 = sld [smem:[#allocation0]]
  $region22: #{generator_forward.16} parent=0
    _
  %s6 = ssub.s32 1, %s4
  %s7 = scalar_select 0, %s6, %s4
  // Predicated region
  $region2: #{generator_forward.16} parent=0 // pred_check
    _
  $region3: #{generator_forward.16} parent=0 // pred_check_branch
    %9 = sbr.rel (0) target = $region5
  $region4: #{generator_forward.16} parent=0 // pred_region
    _
  $region5: #{generator_forward.16} parent=0 // pred_fallthru
    _
  // Predicated region
  $region6: #{generator_forward.16} parent=0 // pred_check
    _
  $region7: #{generator_forward.16} parent=0 // pred_check_branch
    %11 = sbr.rel (0) target = $region9
  $region8: #{generator_forward.16} parent=0 // pred_region
    _
  $region9: #{generator_forward.16} parent=0 // pred_fallthru
    _
  // Predicated region
  $region10: #{generator_forward.16} parent=0 // pred_check
    _
  $region11: #{generator_forward.16} parent=0 // pred_check_branch
    %13 = sbr.rel (0) target = $region13
  $region12: #{generator_forward.16} parent=0 // pred_region
    _
  $region13: #{generator_forward.16} parent=0 // pred_fallthru
    _
  %v14 = vld [vmem:[%s0] sm:$0xff]
  %v15 = vld [vmem:[%s0 + $0x8] sm:$0xff]
  %v16 = vld [vmem:[%s0 + $0x10] sm:$0xff]
  %v17 = vld [vmem:[%s0 + $0x18] sm:$0xff]
  %v18 = vld [vmem:[%s0 + $0x20] sm:$0xff]
  %v19 = vld [vmem:[%s0 + $0x28] sm:$0xff]
  %v20 = vld [vmem:[%s0 + $0x30] sm:$0xff]
  %v21 = vld [vmem:[%s0 + $0x38] sm:$0xff]
  %v22 = vld [vmem:[%s0 + $0x40] sm:$0xff]
  %v23 = vld [vmem:[%s0 + $0x48] sm:$0xff]
  %v24 = vld [vmem:[%s0 + $0x50] sm:$0xff]
  %v25 = vld [vmem:[%s0 + $0x58] sm:$0xff]
  %v26 = vld [vmem:[%s0 + $0x60] sm:$0xff]
  %v27 = vld [vmem:[%s0 + $0x68] sm:$0xff]
  %v28 = vld [vmem:[%s0 + $0x70] sm:$0xff]
  %v29 = vld [vmem:[%s0 + $0x78] sm:$0xff]
  %v30 = vld [vmem:[%s0 + $0x80] sm:$0xff]
  %v31 = vld [vmem:[%s0 + $0x88] sm:$0xff]
  %v32 = vld [vmem:[%s0 + $0x90] sm:$0xff]
  %v33 = vld [vmem:[%s0 + $0x98] sm:$0xff]
  %v34 = vld [vmem:[%s0 + $0xa0] sm:$0xff]
  %v35 = vld [vmem:[%s0 + $0xa8] sm:$0xff]
  %v36 = vld [vmem:[%s0 + $0xb0] sm:$0xff]
  %v37 = vld [vmem:[%s0 + $0xb8] sm:$0xff]
  %v38 = vld [vmem:[%s0 + $0xc0] sm:$0xff]
  %v39 = vld [vmem:[%s0 + $0xc8] sm:$0xff]
  %v40 = vld [vmem:[%s0 + $0xd0] sm:$0xff]
  %v41 = vld [vmem:[%s0 + $0xd8] sm:$0xff]
  %v42 = vld [vmem:[%s0 + $0xe0] sm:$0xff]
  %v43 = vld [vmem:[%s0 + $0xe8] sm:$0xff]
  %v44 = vld [vmem:[%s0 + $0xf0] sm:$0xff]
  %v45 = vld [vmem:[%s0 + $0xf8] sm:$0xff]
  %v46 = vld [vmem:[%s0 + $0x100] sm:$0xff]
  %v47 = vld [vmem:[%s0 + $0x108] sm:$0xff]
  %v48 = vld [vmem:[%s0 + $0x110] sm:$0xff]
  %v49 = vld [vmem:[%s0 + $0x118] sm:$0xff]
  %v50 = vld [vmem:[%s0 + $0x120] sm:$0xff]
  %v51 = vld [vmem:[%s0 + $0x128] sm:$0xff]
  %v52 = vld [vmem:[%s0 + $0x130] sm:$0xff]
  %v53 = vld [vmem:[%s0 + $0x138] sm:$0xff]
  %v54 = vld [vmem:[%s0 + $0x140] sm:$0xff]
  %v55 = vld [vmem:[%s0 + $0x148] sm:$0xff]
  %v56 = vld [vmem:[%s0 + $0x150] sm:$0xff]
  %v57 = vld [vmem:[%s0 + $0x158] sm:$0xff]
  %v58 = vld [vmem:[%s0 + $0x160] sm:$0xff]
  %v59 = vld [vmem:[%s0 + $0x168] sm:$0xff]
  %v60 = vld [vmem:[%s0 + $0x170] sm:$0xff]
  %v61 = vld [vmem:[%s0 + $0x178] sm:$0xff]
  %v62 = vld [vmem:[%s0 + $0x180] sm:$0xff]
  %v63 = vld [vmem:[%s0 + $0x188] sm:$0xff]
  %v64 = vld [vmem:[%s0 + $0x190] sm:$0xff]
  %v65 = vld [vmem:[%s0 + $0x198] sm:$0xff]
  %v66 = vld [vmem:[%s0 + $0x1a0] sm:$0xff]
  %v67 = vld [vmem:[%s0 + $0x1a8] sm:$0xff]
  %v68 = vld [vmem:[%s0 + $0x1b0] sm:$0xff]
  %v69 = vld [vmem:[%s0 + $0x1b8] sm:$0xff]
  %v70 = vld [vmem:[%s0 + $0x1c0] sm:$0xff]
  %v71 = vld [vmem:[%s0 + $0x1c8] sm:$0xff]
  %v72 = vld [vmem:[%s0 + $0x1d0] sm:$0xff]
  %v73 = vld [vmem:[%s0 + $0x1d8] sm:$0xff]
  %v74 = vld [vmem:[%s0 + $0x1e0] sm:$0xff]
  %v75 = vld [vmem:[%s0 + $0x1e8] sm:$0xff]
  %v76 = vld [vmem:[%s0 + $0x1f0] sm:$0xff]
  %v77 = vld [vmem:[%s0 + $0x1f8] sm:$0xff]
  %v78 = vld [vmem:[%s0 + $0x200] sm:$0xff]
  %v79 = vld [vmem:[%s0 + $0x208] sm:$0xff]
  %v80 = vld [vmem:[%s0 + $0x210] sm:$0xff]
  %v81 = vld [vmem:[%s0 + $0x218] sm:$0xff]
  %v82 = vld [vmem:[%s0 + $0x220] sm:$0xff]
  %v83 = vld [vmem:[%s0 + $0x228] sm:$0xff]
  %v84 = vld [vmem:[%s0 + $0x230] sm:$0xff]
  %v85 = vld [vmem:[%s0 + $0x238] sm:$0xff]
  %v86 = vld [vmem:[%s0 + $0x240] sm:$0xff]
  %v87 = vld [vmem:[%s0 + $0x248] sm:$0xff]
  %v88 = vld [vmem:[%s0 + $0x250] sm:$0xff]
  %v89 = vld [vmem:[%s0 + $0x258] sm:$0xff]
  %v90 = vld [vmem:[%s0 + $0x260] sm:$0xff]
  %v91 = vld [vmem:[%s0 + $0x268] sm:$0xff]
  %v92 = vld [vmem:[%s0 + $0x270] sm:$0xff]
  %v93 = vld [vmem:[%s0 + $0x278] sm:$0xff]
  %v94 = vld [vmem:[%s0 + $0x280] sm:$0xff]
  %v95 = vld [vmem:[%s0 + $0x288] sm:$0xff]
  %v96 = vld [vmem:[%s0 + $0x290] sm:$0xff]
  %v97 = vld [vmem:[%s0 + $0x298] sm:$0xff]
  %v98 = vld [vmem:[%s0 + $0x2a0] sm:$0xff]
  %v99 = vld [vmem:[%s0 + $0x2a8] sm:$0xff]
  %v100 = vld [vmem:[%s0 + $0x2b0] sm:$0xff]
  %v101 = vld [vmem:[%s0 + $0x2b8] sm:$0xff]
  %v102 = vld [vmem:[%s0 + $0x2c0] sm:$0xff]
  %v103 = vld [vmem:[%s0 + $0x2c8] sm:$0xff]
  %v104 = vld [vmem:[%s0 + $0x2d0] sm:$0xff]
  %v105 = vld [vmem:[%s0 + $0x2d8] sm:$0xff]
  %v106 = vld [vmem:[%s0 + $0x2e0] sm:$0xff]
  %v107 = vld [vmem:[%s0 + $0x2e8] sm:$0xff]
  %v108 = vld [vmem:[%s0 + $0x2f0] sm:$0xff]
  %v109 = vld [vmem:[%s0 + $0x2f8] sm:$0xff]
  %v110 = vld [vmem:[%s0 + $0x300] sm:$0xff]
  %v111 = vld [vmem:[%s0 + $0x308] sm:$0xff]
  %v112 = vld [vmem:[%s0 + $0x310] sm:$0xff]
  %v113 = vld [vmem:[%s0 + $0x318] sm:$0xff]
  %v114 = vld [vmem:[%s0 + $0x320] sm:$0xff]
  %v115 = vld [vmem:[%s0 + $0x328] sm:$0xff]
  %v116 = vld [vmem:[%s0 + $0x330] sm:$0xff]
  %v117 = vld [vmem:[%s0 + $0x338] sm:$0xff]
  %v118 = vld [vmem:[%s0 + $0x340] sm:$0xff]
  %v119 = vld [vmem:[%s0 + $0x348] sm:$0xff]
  %v120 = vld [vmem:[%s0 + $0x350] sm:$0xff]
  %v121 = vld [vmem:[%s0 + $0x358] sm:$0xff]
  %v122 = vld [vmem:[%s0 + $0x360] sm:$0xff]
  %v123 = vld [vmem:[%s0 + $0x368] sm:$0xff]
  %v124 = vld [vmem:[%s0 + $0x370] sm:$0xff]
  %v125 = vld [vmem:[%s0 + $0x378] sm:$0xff]
  %v126 = vld [vmem:[%s0 + $0x380] sm:$0xff]
  %v127 = vld [vmem:[%s0 + $0x388] sm:$0xff]
  %v128 = vld [vmem:[%s0 + $0x390] sm:$0xff]
  %v129 = vld [vmem:[%s0 + $0x398] sm:$0xff]
  %v130 = vld [vmem:[%s0 + $0x3a0] sm:$0xff]
  %v131 = vld [vmem:[%s0 + $0x3a8] sm:$0xff]
  %v132 = vld [vmem:[%s0 + $0x3b0] sm:$0xff]
  %v133 = vld [vmem:[%s0 + $0x3b8] sm:$0xff]
  %v134 = vld [vmem:[%s0 + $0x3c0] sm:$0xff]
  %v135 = vld [vmem:[%s0 + $0x3c8] sm:$0xff]
  %v136 = vld [vmem:[%s0 + $0x3d0] sm:$0xff]
  %v137 = vld [vmem:[%s0 + $0x3d8] sm:$0xff]
  %v138 = vld [vmem:[%s0 + $0x3e0] sm:$0xff]
  %v139 = vld [vmem:[%s0 + $0x3e8] sm:$0xff]
  %v140 = vld [vmem:[%s0 + $0x3f0] sm:$0xff]
  %v141 = vld [vmem:[%s0 + $0x3f8] sm:$0xff]
  %v142 = vld [vmem:[%s0 + $0x400] sm:$0xff]
  %v143 = vld [vmem:[%s0 + $0x408] sm:$0xff]
  %v144 = vld [vmem:[%s0 + $0x410] sm:$0xff]
  %v145 = vld [vmem:[%s0 + $0x418] sm:$0xff]
  %v146 = vld [vmem:[%s0 + $0x420] sm:$0xff]
  %v147 = vld [vmem:[%s0 + $0x428] sm:$0xff]
  %v148 = vld [vmem:[%s0 + $0x430] sm:$0xff]
  %v149 = vld [vmem:[%s0 + $0x438] sm:$0xff]
  %v150 = vld [vmem:[%s0 + $0x440] sm:$0xff]
  %v151 = vld [vmem:[%s0 + $0x448] sm:$0xff]
  %v152 = vld [vmem:[%s0 + $0x450] sm:$0xff]
  %v153 = vld [vmem:[%s0 + $0x458] sm:$0xff]
  %v154 = vld [vmem:[%s0 + $0x460] sm:$0xff]
  %v155 = vld [vmem:[%s0 + $0x468] sm:$0xff]
  %v156 = vld [vmem:[%s0 + $0x470] sm:$0xff]
  %v157 = vld [vmem:[%s0 + $0x478] sm:$0xff]
  %v158 = vld [vmem:[%s0 + $0x480] sm:$0xff]
  %v159 = vld [vmem:[%s0 + $0x488] sm:$0xff]
  %v160 = vld [vmem:[%s0 + $0x490] sm:$0xff]
  %v161 = vld [vmem:[%s0 + $0x498] sm:$0xff]
  %v162 = vld [vmem:[%s0 + $0x4a0] sm:$0xff]
  %v163 = vld [vmem:[%s0 + $0x4a8] sm:$0xff]
  %v164 = vld [vmem:[%s0 + $0x4b0] sm:$0xff]
  %v165 = vld [vmem:[%s0 + $0x4b8] sm:$0xff]
  %v166 = vld [vmem:[%s0 + $0x4c0] sm:$0xff]
  %v167 = vld [vmem:[%s0 + $0x4c8] sm:$0xff]
  %v168 = vld [vmem:[%s0 + $0x4d0] sm:$0xff]
  %v169 = vld [vmem:[%s0 + $0x4d8] sm:$0xff]
  %v170 = vld [vmem:[%s0 + $0x4e0] sm:$0xff]
  %v171 = vld [vmem:[%s0 + $0x4e8] sm:$0xff]
  %v172 = vld [vmem:[%s0 + $0x4f0] sm:$0xff]
  %v173 = vld [vmem:[%s0 + $0x4f8] sm:$0xff]
  %v174 = vld [vmem:[%s0 + $0x500] sm:$0xff]
  %v175 = vld [vmem:[%s0 + $0x508] sm:$0xff]
  %v176 = vld [vmem:[%s0 + $0x510] sm:$0xff]
  %v177 = vld [vmem:[%s0 + $0x518] sm:$0xff]
  %v178 = vld [vmem:[%s0 + $0x520] sm:$0xff]
  %v179 = vld [vmem:[%s0 + $0x528] sm:$0xff]
  %v180 = vld [vmem:[%s0 + $0x530] sm:$0xff]
  %v181 = vld [vmem:[%s0 + $0x538] sm:$0xff]
  %v182 = vld [vmem:[%s0 + $0x540] sm:$0xff]
  %v183 = vld [vmem:[%s0 + $0x548] sm:$0xff]
  %v184 = vld [vmem:[%s0 + $0x550] sm:$0xff]
  %v185 = vld [vmem:[%s0 + $0x558] sm:$0xff]
  %v186 = vld [vmem:[%s0 + $0x560] sm:$0xff]
  %v187 = vld [vmem:[%s0 + $0x568] sm:$0xff]
  %v188 = vld [vmem:[%s0 + $0x570] sm:$0xff]
  %v189 = vld [vmem:[%s0 + $0x578] sm:$0xff]
  %v190 = vld [vmem:[%s0 + $0x580] sm:$0xff]
  %v191 = vld [vmem:[%s0 + $0x588] sm:$0xff]
  %v192 = vld [vmem:[%s0 + $0x590] sm:$0xff]
  %v193 = vld [vmem:[%s0 + $0x598] sm:$0xff]
  %v194 = vld [vmem:[%s0 + $0x5a0] sm:$0xff]
  %v195 = vld [vmem:[%s0 + $0x5a8] sm:$0xff]
  %v196 = vld [vmem:[%s0 + $0x5b0] sm:$0xff]
  %v197 = vld [vmem:[%s0 + $0x5b8] sm:$0xff]
  %v198 = vld [vmem:[%s0 + $0x5c0] sm:$0xff]
  %v199 = vld [vmem:[%s0 + $0x5c8] sm:$0xff]
  %v200 = vld [vmem:[%s0 + $0x5d0] sm:$0xff]
  %v201 = vld [vmem:[%s0 + $0x5d8] sm:$0xff]
  %v202 = vld [vmem:[%s0 + $0x5e0] sm:$0xff]
  %v203 = vld [vmem:[%s0 + $0x5e8] sm:$0xff]
  %v204 = vld [vmem:[%s0 + $0x5f0] sm:$0xff]
  %v205 = vld [vmem:[%s0 + $0x5f8] sm:$0xff]
  %v206 = vld [vmem:[%s0 + $0x600] sm:$0xff]
  %v207 = vld [vmem:[%s0 + $0x608] sm:$0xff]
  %v208 = vld [vmem:[%s0 + $0x610] sm:$0xff]
  %v209 = vld [vmem:[%s0 + $0x618] sm:$0xff]
  %v210 = vld [vmem:[%s0 + $0x620] sm:$0xff]
  %v211 = vld [vmem:[%s0 + $0x628] sm:$0xff]
  %v212 = vld [vmem:[%s0 + $0x630] sm:$0xff]
  %v213 = vld [vmem:[%s0 + $0x638] sm:$0xff]
  %v214 = vld [vmem:[%s0 + $0x640] sm:$0xff]
  %v215 = vld [vmem:[%s0 + $0x648] sm:$0xff]
  %v216 = vld [vmem:[%s0 + $0x650] sm:$0xff]
  %v217 = vld [vmem:[%s0 + $0x658] sm:$0xff]
  %v218 = vld [vmem:[%s0 + $0x660] sm:$0xff]
  %v219 = vld [vmem:[%s0 + $0x668] sm:$0xff]
  %v220 = vld [vmem:[%s0 + $0x670] sm:$0xff]
  %v221 = vld [vmem:[%s0 + $0x678] sm:$0xff]
  %v222 = vld [vmem:[%s0 + $0x680] sm:$0xff]
  %v223 = vld [vmem:[%s0 + $0x688] sm:$0xff]
  %v224 = vld [vmem:[%s0 + $0x690] sm:$0xff]
  %v225 = vld [vmem:[%s0 + $0x698] sm:$0xff]
  %v226 = vld [vmem:[%s0 + $0x6a0] sm:$0xff]
  %v227 = vld [vmem:[%s0 + $0x6a8] sm:$0xff]
  %v228 = vld [vmem:[%s0 + $0x6b0] sm:$0xff]
  %v229 = vld [vmem:[%s0 + $0x6b8] sm:$0xff]
  %v230 = vld [vmem:[%s0 + $0x6c0] sm:$0xff]
  %v231 = vld [vmem:[%s0 + $0x6c8] sm:$0xff]
  %v232 = vld [vmem:[%s0 + $0x6d0] sm:$0xff]
  %v233 = vld [vmem:[%s0 + $0x6d8] sm:$0xff]
  %v234 = vld [vmem:[%s0 + $0x6e0] sm:$0xff]
  %v235 = vld [vmem:[%s0 + $0x6e8] sm:$0xff]
  %v236 = vld [vmem:[%s0 + $0x6f0] sm:$0xff]
  %v237 = vld [vmem:[%s0 + $0x6f8] sm:$0xff]
  %v238 = vld [vmem:[%s0 + $0x700] sm:$0xff]
  %v239 = vld [vmem:[%s0 + $0x708] sm:$0xff]
  %v240 = vld [vmem:[%s0 + $0x710] sm:$0xff]
  %v241 = vld [vmem:[%s0 + $0x718] sm:$0xff]
  %v242 = vld [vmem:[%s0 + $0x720] sm:$0xff]
  %v243 = vld [vmem:[%s0 + $0x728] sm:$0xff]
  %v244 = vld [vmem:[%s0 + $0x730] sm:$0xff]
  %v245 = vld [vmem:[%s0 + $0x738] sm:$0xff]
  %v246 = vld [vmem:[%s0 + $0x740] sm:$0xff]
  %v247 = vld [vmem:[%s0 + $0x748] sm:$0xff]
  %v248 = vld [vmem:[%s0 + $0x750] sm:$0xff]
  %v249 = vld [vmem:[%s0 + $0x758] sm:$0xff]
  %v250 = vld [vmem:[%s0 + $0x760] sm:$0xff]
  %v251 = vld [vmem:[%s0 + $0x768] sm:$0xff]
  %v252 = vld [vmem:[%s0 + $0x770] sm:$0xff]
  %v253 = vld [vmem:[%s0 + $0x778] sm:$0xff]
  %v254 = vld [vmem:[%s0 + $0x780] sm:$0xff]
  %v255 = vld [vmem:[%s0 + $0x788] sm:$0xff]
  %v256 = vld [vmem:[%s0 + $0x790] sm:$0xff]
  %v257 = vld [vmem:[%s0 + $0x798] sm:$0xff]
  %v258 = vld [vmem:[%s0 + $0x7a0] sm:$0xff]
  %v259 = vld [vmem:[%s0 + $0x7a8] sm:$0xff]
  %v260 = vld [vmem:[%s0 + $0x7b0] sm:$0xff]
  %v261 = vld [vmem:[%s0 + $0x7b8] sm:$0xff]
  %v262 = vld [vmem:[%s0 + $0x7c0] sm:$0xff]
  %v263 = vld [vmem:[%s0 + $0x7c8] sm:$0xff]
  %v264 = vld [vmem:[%s0 + $0x7d0] sm:$0xff]
  %v265 = vld [vmem:[%s0 + $0x7d8] sm:$0xff]
  %v266 = vld [vmem:[%s0 + $0x7e0] sm:$0xff]
  %v267 = vld [vmem:[%s0 + $0x7e8] sm:$0xff]
  %v268 = vld [vmem:[%s0 + $0x7f0] sm:$0xff]
  %v269 = vld [vmem:[%s0 + $0x7f8] sm:$0xff]
  %v270 = vld [vmem:[%s1] sm:$0x1]
  %v272 = vperm.slane %v270, 0
  %v274 = vmul.f32 %v14, %v272
  %v275 = vmul.f32 %v15, %v272
  %v276 = vmul.f32 %v16, %v272
  %v277 = vmul.f32 %v17, %v272
  %v278 = vmul.f32 %v18, %v272
  %v279 = vmul.f32 %v19, %v272
  %v280 = vmul.f32 %v20, %v272
  %v281 = vmul.f32 %v21, %v272
  %v282 = vmul.f32 %v22, %v272
  %v283 = vmul.f32 %v23, %v272
  %v284 = vmul.f32 %v24, %v272
  %v285 = vmul.f32 %v25, %v272
  %v286 = vmul.f32 %v26, %v272
  %v287 = vmul.f32 %v27, %v272
  %v288 = vmul.f32 %v28, %v272
  %v289 = vmul.f32 %v29, %v272
  %v290 = vmul.f32 %v30, %v272
  %v291 = vmul.f32 %v31, %v272
  %v292 = vmul.f32 %v32, %v272
  %v293 = vmul.f32 %v33, %v272
  %v294 = vmul.f32 %v34, %v272
  %v295 = vmul.f32 %v35, %v272
  %v296 = vmul.f32 %v36, %v272
  %v297 = vmul.f32 %v37, %v272
  %v298 = vmul.f32 %v38, %v272
  %v299 = vmul.f32 %v39, %v272
  %v300 = vmul.f32 %v40, %v272
  %v301 = vmul.f32 %v41, %v272
  %v302 = vmul.f32 %v42, %v272
  %v303 = vmul.f32 %v43, %v272
  %v304 = vmul.f32 %v44, %v272
  %v305 = vmul.f32 %v45, %v272
  %v306 = vmul.f32 %v46, %v272
  %v307 = vmul.f32 %v47, %v272
  %v308 = vmul.f32 %v48, %v272
  %v309 = vmul.f32 %v49, %v272
  %v310 = vmul.f32 %v50, %v272
  %v311 = vmul.f32 %v51, %v272
  %v312 = vmul.f32 %v52, %v272
  %v313 = vmul.f32 %v53, %v272
  %v314 = vmul.f32 %v54, %v272
  %v315 = vmul.f32 %v55, %v272
  %v316 = vmul.f32 %v56, %v272
  %v317 = vmul.f32 %v57, %v272
  %v318 = vmul.f32 %v58, %v272
  %v319 = vmul.f32 %v59, %v272
  %v320 = vmul.f32 %v60, %v272
  %v321 = vmul.f32 %v61, %v272
  %v322 = vmul.f32 %v62, %v272
  %v323 = vmul.f32 %v63, %v272
  %v324 = vmul.f32 %v64, %v272
  %v325 = vmul.f32 %v65, %v272
  %v326 = vmul.f32 %v66, %v272
  %v327 = vmul.f32 %v67, %v272
  %v328 = vmul.f32 %v68, %v272
  %v329 = vmul.f32 %v69, %v272
  %v330 = vmul.f32 %v70, %v272
  %v331 = vmul.f32 %v71, %v272
  %v332 = vmul.f32 %v72, %v272
  %v333 = vmul.f32 %v73, %v272
  %v334 = vmul.f32 %v74, %v272
  %v335 = vmul.f32 %v75, %v272
  %v336 = vmul.f32 %v76, %v272
  %v337 = vmul.f32 %v77, %v272
  %v338 = vmul.f32 %v78, %v272
  %v339 = vmul.f32 %v79, %v272
  %v340 = vmul.f32 %v80, %v272
  %v341 = vmul.f32 %v81, %v272
  %v342 = vmul.f32 %v82, %v272
  %v343 = vmul.f32 %v83, %v272
  %v344 = vmul.f32 %v84, %v272
  %v345 = vmul.f32 %v85, %v272
  %v346 = vmul.f32 %v86, %v272
  %v347 = vmul.f32 %v87, %v272
  %v348 = vmul.f32 %v88, %v272
  %v349 = vmul.f32 %v89, %v272
  %v350 = vmul.f32 %v90, %v272
  %v351 = vmul.f32 %v91, %v272
  %v352 = vmul.f32 %v92, %v272
  %v353 = vmul.f32 %v93, %v272
  %v354 = vmul.f32 %v94, %v272
  %v355 = vmul.f32 %v95, %v272
  %v356 = vmul.f32 %v96, %v272
  %v357 = vmul.f32 %v97, %v272
  %v358 = vmul.f32 %v98, %v272
  %v359 = vmul.f32 %v99, %v272
  %v360 = vmul.f32 %v100, %v272
  %v361 = vmul.f32 %v101, %v272
  %v362 = vmul.f32 %v102, %v272
  %v363 = vmul.f32 %v103, %v272
  %v364 = vmul.f32 %v104, %v272
  %v365 = vmul.f32 %v105, %v272
  %v366 = vmul.f32 %v106, %v272
  %v367 = vmul.f32 %v107, %v272
  %v368 = vmul.f32 %v108, %v272
  %v369 = vmul.f32 %v109, %v272
  %v370 = vmul.f32 %v110, %v272
  %v371 = vmul.f32 %v111, %v272
  %v372 = vmul.f32 %v112, %v272
  %v373 = vmul.f32 %v113, %v272
  %v374 = vmul.f32 %v114, %v272
  %v375 = vmul.f32 %v115, %v272
  %v376 = vmul.f32 %v116, %v272
  %v377 = vmul.f32 %v117, %v272
  %v378 = vmul.f32 %v118, %v272
  %v379 = vmul.f32 %v119, %v272
  %v380 = vmul.f32 %v120, %v272
  %v381 = vmul.f32 %v121, %v272
  %v382 = vmul.f32 %v122, %v272
  %v383 = vmul.f32 %v123, %v272
  %v384 = vmul.f32 %v124, %v272
  %v385 = vmul.f32 %v125, %v272
  %v386 = vmul.f32 %v126, %v272
  %v387 = vmul.f32 %v127, %v272
  %v388 = vmul.f32 %v128, %v272
  %v389 = vmul.f32 %v129, %v272
  %v390 = vmul.f32 %v130, %v272
  %v391 = vmul.f32 %v131, %v272
  %v392 = vmul.f32 %v132, %v272
  %v393 = vmul.f32 %v133, %v272
  %v394 = vmul.f32 %v134, %v272
  %v395 = vmul.f32 %v135, %v272
  %v396 = vmul.f32 %v136, %v272
  %v397 = vmul.f32 %v137, %v272
  %v398 = vmul.f32 %v138, %v272
  %v399 = vmul.f32 %v139, %v272
  %v400 = vmul.f32 %v140, %v272
  %v401 = vmul.f32 %v141, %v272
  %v402 = vmul.f32 %v142, %v272
  %v403 = vmul.f32 %v143, %v272
  %v404 = vmul.f32 %v144, %v272
  %v405 = vmul.f32 %v145, %v272
  %v406 = vmul.f32 %v146, %v272
  %v407 = vmul.f32 %v147, %v272
  %v408 = vmul.f32 %v148, %v272
  %v409 = vmul.f32 %v149, %v272
  %v410 = vmul.f32 %v150, %v272
  %v411 = vmul.f32 %v151, %v272
  %v412 = vmul.f32 %v152, %v272
  %v413 = vmul.f32 %v153, %v272
  %v414 = vmul.f32 %v154, %v272
  %v415 = vmul.f32 %v155, %v272
  %v416 = vmul.f32 %v156, %v272
  %v417 = vmul.f32 %v157, %v272
  %v418 = vmul.f32 %v158, %v272
  %v419 = vmul.f32 %v159, %v272
  %v420 = vmul.f32 %v160, %v272
  %v421 = vmul.f32 %v161, %v272
  %v422 = vmul.f32 %v162, %v272
  %v423 = vmul.f32 %v163, %v272
  %v424 = vmul.f32 %v164, %v272
  %v425 = vmul.f32 %v165, %v272
  %v426 = vmul.f32 %v166, %v272
  %v427 = vmul.f32 %v167, %v272
  %v428 = vmul.f32 %v168, %v272
  %v429 = vmul.f32 %v169, %v272
  %v430 = vmul.f32 %v170, %v272
  %v431 = vmul.f32 %v171, %v272
  %v432 = vmul.f32 %v172, %v272
  %v433 = vmul.f32 %v173, %v272
  %v434 = vmul.f32 %v174, %v272
  %v435 = vmul.f32 %v175, %v272
  %v436 = vmul.f32 %v176, %v272
  %v437 = vmul.f32 %v177, %v272
  %v438 = vmul.f32 %v178, %v272
  %v439 = vmul.f32 %v179, %v272
  %v440 = vmul.f32 %v180, %v272
  %v441 = vmul.f32 %v181, %v272
  %v442 = vmul.f32 %v182, %v272
  %v443 = vmul.f32 %v183, %v272
  %v444 = vmul.f32 %v184, %v272
  %v445 = vmul.f32 %v185, %v272
  %v446 = vmul.f32 %v186, %v272
  %v447 = vmul.f32 %v187, %v272
  %v448 = vmul.f32 %v188, %v272
  %v449 = vmul.f32 %v189, %v272
  %v450 = vmul.f32 %v190, %v272
  %v451 = vmul.f32 %v191, %v272
  %v452 = vmul.f32 %v192, %v272
  %v453 = vmul.f32 %v193, %v272
  %v454 = vmul.f32 %v194, %v272
  %v455 = vmul.f32 %v195, %v272
  %v456 = vmul.f32 %v196, %v272
  %v457 = vmul.f32 %v197, %v272
  %v458 = vmul.f32 %v198, %v272
  %v459 = vmul.f32 %v199, %v272
  %v460 = vmul.f32 %v200, %v272
  %v461 = vmul.f32 %v201, %v272
  %v462 = vmul.f32 %v202, %v272
  %v463 = vmul.f32 %v203, %v272
  %v464 = vmul.f32 %v204, %v272
  %v465 = vmul.f32 %v205, %v272
  %v466 = vmul.f32 %v206, %v272
  %v467 = vmul.f32 %v207, %v272
  %v468 = vmul.f32 %v208, %v272
  %v469 = vmul.f32 %v209, %v272
  %v470 = vmul.f32 %v210, %v272
  %v471 = vmul.f32 %v211, %v272
  %v472 = vmul.f32 %v212, %v272
  %v473 = vmul.f32 %v213, %v272
  %v474 = vmul.f32 %v214, %v272
  %v475 = vmul.f32 %v215, %v272
  %v476 = vmul.f32 %v216, %v272
  %v477 = vmul.f32 %v217, %v272
  %v478 = vmul.f32 %v218, %v272
  %v479 = vmul.f32 %v219, %v272
  %v480 = vmul.f32 %v220, %v272
  %v481 = vmul.f32 %v221, %v272
  %v482 = vmul.f32 %v222, %v272
  %v483 = vmul.f32 %v223, %v272
  %v484 = vmul.f32 %v224, %v272
  %v485 = vmul.f32 %v225, %v272
  %v486 = vmul.f32 %v226, %v272
  %v487 = vmul.f32 %v227, %v272
  %v488 = vmul.f32 %v228, %v272
  %v489 = vmul.f32 %v229, %v272
  %v490 = vmul.f32 %v230, %v272
  %v491 = vmul.f32 %v231, %v272
  %v492 = vmul.f32 %v232, %v272
  %v493 = vmul.f32 %v233, %v272
  %v494 = vmul.f32 %v234, %v272
  %v495 = vmul.f32 %v235, %v272
  %v496 = vmul.f32 %v236, %v272
  %v497 = vmul.f32 %v237, %v272
  %v498 = vmul.f32 %v238, %v272
  %v499 = vmul.f32 %v239, %v272
  %v500 = vmul.f32 %v240, %v272
  %v501 = vmul.f32 %v241, %v272
  %v502 = vmul.f32 %v242, %v272
  %v503 = vmul.f32 %v243, %v272
  %v504 = vmul.f32 %v244, %v272
  %v505 = vmul.f32 %v245, %v272
  %v506 = vmul.f32 %v246, %v272
  %v507 = vmul.f32 %v247, %v272
  %v508 = vmul.f32 %v248, %v272
  %v509 = vmul.f32 %v249, %v272
  %v510 = vmul.f32 %v250, %v272
  %v511 = vmul.f32 %v251, %v272
  %v512 = vmul.f32 %v252, %v272
  %v513 = vmul.f32 %v253, %v272
  %v514 = vmul.f32 %v254, %v272
  %v515 = vmul.f32 %v255, %v272
  %v516 = vmul.f32 %v256, %v272
  %v517 = vmul.f32 %v257, %v272
  %v518 = vmul.f32 %v258, %v272
  %v519 = vmul.f32 %v259, %v272
  %v520 = vmul.f32 %v260, %v272
  %v521 = vmul.f32 %v261, %v272
  %v522 = vmul.f32 %v262, %v272
  %v523 = vmul.f32 %v263, %v272
  %v524 = vmul.f32 %v264, %v272
  %v525 = vmul.f32 %v265, %v272
  %v526 = vmul.f32 %v266, %v272
  %v527 = vmul.f32 %v267, %v272
  %v528 = vmul.f32 %v268, %v272
  %v529 = vmul.f32 %v269, %v272
  %v530 = vld [vmem:[%s2] sm:$0x1]
  %v532 = vperm.slane %v530, 0
  %v534 = vadd.f32 %v274, %v532
  %v535 = vadd.f32 %v275, %v532
  %v536 = vadd.f32 %v276, %v532
  %v537 = vadd.f32 %v277, %v532
  %v538 = vadd.f32 %v278, %v532
  %v539 = vadd.f32 %v279, %v532
  %v540 = vadd.f32 %v280, %v532
  %v541 = vadd.f32 %v281, %v532
  %v542 = vadd.f32 %v282, %v532
  %v543 = vadd.f32 %v283, %v532
  %v544 = vadd.f32 %v284, %v532
  %v545 = vadd.f32 %v285, %v532
  %v546 = vadd.f32 %v286, %v532
  %v547 = vadd.f32 %v287, %v532
  %v548 = vadd.f32 %v288, %v532
  %v549 = vadd.f32 %v289, %v532
  %v550 = vadd.f32 %v290, %v532
  %v551 = vadd.f32 %v291, %v532
  %v552 = vadd.f32 %v292, %v532
  %v553 = vadd.f32 %v293, %v532
  %v554 = vadd.f32 %v294, %v532
  %v555 = vadd.f32 %v295, %v532
  %v556 = vadd.f32 %v296, %v532
  %v557 = vadd.f32 %v297, %v532
  %v558 = vadd.f32 %v298, %v532
  %v559 = vadd.f32 %v299, %v532
  %v560 = vadd.f32 %v300, %v532
  %v561 = vadd.f32 %v301, %v532
  %v562 = vadd.f32 %v302, %v532
  %v563 = vadd.f32 %v303, %v532
  %v564 = vadd.f32 %v304, %v532
  %v565 = vadd.f32 %v305, %v532
  %v566 = vadd.f32 %v306, %v532
  %v567 = vadd.f32 %v307, %v532
  %v568 = vadd.f32 %v308, %v532
  %v569 = vadd.f32 %v309, %v532
  %v570 = vadd.f32 %v310, %v532
  %v571 = vadd.f32 %v311, %v532
  %v572 = vadd.f32 %v312, %v532
  %v573 = vadd.f32 %v313, %v532
  %v574 = vadd.f32 %v314, %v532
  %v575 = vadd.f32 %v315, %v532
  %v576 = vadd.f32 %v316, %v532
  %v577 = vadd.f32 %v317, %v532
  %v578 = vadd.f32 %v318, %v532
  %v579 = vadd.f32 %v319, %v532
  %v580 = vadd.f32 %v320, %v532
  %v581 = vadd.f32 %v321, %v532
  %v582 = vadd.f32 %v322, %v532
  %v583 = vadd.f32 %v323, %v532
  %v584 = vadd.f32 %v324, %v532
  %v585 = vadd.f32 %v325, %v532
  %v586 = vadd.f32 %v326, %v532
  %v587 = vadd.f32 %v327, %v532
  %v588 = vadd.f32 %v328, %v532
  %v589 = vadd.f32 %v329, %v532
  %v590 = vadd.f32 %v330, %v532
  %v591 = vadd.f32 %v331, %v532
  %v592 = vadd.f32 %v332, %v532
  %v593 = vadd.f32 %v333, %v532
  %v594 = vadd.f32 %v334, %v532
  %v595 = vadd.f32 %v335, %v532
  %v596 = vadd.f32 %v336, %v532
  %v597 = vadd.f32 %v337, %v532
  %v598 = vadd.f32 %v338, %v532
  %v599 = vadd.f32 %v339, %v532
  %v600 = vadd.f32 %v340, %v532
  %v601 = vadd.f32 %v341, %v532
  %v602 = vadd.f32 %v342, %v532
  %v603 = vadd.f32 %v343, %v532
  %v604 = vadd.f32 %v344, %v532
  %v605 = vadd.f32 %v345, %v532
  %v606 = vadd.f32 %v346, %v532
  %v607 = vadd.f32 %v347, %v532
  %v608 = vadd.f32 %v348, %v532
  %v609 = vadd.f32 %v349, %v532
  %v610 = vadd.f32 %v350, %v532
  %v611 = vadd.f32 %v351, %v532
  %v612 = vadd.f32 %v352, %v532
  %v613 = vadd.f32 %v353, %v532
  %v614 = vadd.f32 %v354, %v532
  %v615 = vadd.f32 %v355, %v532
  %v616 = vadd.f32 %v356, %v532
  %v617 = vadd.f32 %v357, %v532
  %v618 = vadd.f32 %v358, %v532
  %v619 = vadd.f32 %v359, %v532
  %v620 = vadd.f32 %v360, %v532
  %v621 = vadd.f32 %v361, %v532
  %v622 = vadd.f32 %v362, %v532
  %v623 = vadd.f32 %v363, %v532
  %v624 = vadd.f32 %v364, %v532
  %v625 = vadd.f32 %v365, %v532
  %v626 = vadd.f32 %v366, %v532
  %v627 = vadd.f32 %v367, %v532
  %v628 = vadd.f32 %v368, %v532
  %v629 = vadd.f32 %v369, %v532
  %v630 = vadd.f32 %v370, %v532
  %v631 = vadd.f32 %v371, %v532
  %v632 = vadd.f32 %v372, %v532
  %v633 = vadd.f32 %v373, %v532
  %v634 = vadd.f32 %v374, %v532
  %v635 = vadd.f32 %v375, %v532
  %v636 = vadd.f32 %v376, %v532
  %v637 = vadd.f32 %v377, %v532
  %v638 = vadd.f32 %v378, %v532
  %v639 = vadd.f32 %v379, %v532
  %v640 = vadd.f32 %v380, %v532
  %v641 = vadd.f32 %v381, %v532
  %v642 = vadd.f32 %v382, %v532
  %v643 = vadd.f32 %v383, %v532
  %v644 = vadd.f32 %v384, %v532
  %v645 = vadd.f32 %v385, %v532
  %v646 = vadd.f32 %v386, %v532
  %v647 = vadd.f32 %v387, %v532
  %v648 = vadd.f32 %v388, %v532
  %v649 = vadd.f32 %v389, %v532
  %v650 = vadd.f32 %v390, %v532
  %v651 = vadd.f32 %v391, %v532
  %v652 = vadd.f32 %v392, %v532
  %v653 = vadd.f32 %v393, %v532
  %v654 = vadd.f32 %v394, %v532
  %v655 = vadd.f32 %v395, %v532
  %v656 = vadd.f32 %v396, %v532
  %v657 = vadd.f32 %v397, %v532
  %v658 = vadd.f32 %v398, %v532
  %v659 = vadd.f32 %v399, %v532
  %v660 = vadd.f32 %v400, %v532
  %v661 = vadd.f32 %v401, %v532
  %v662 = vadd.f32 %v402, %v532
  %v663 = vadd.f32 %v403, %v532
  %v664 = vadd.f32 %v404, %v532
  %v665 = vadd.f32 %v405, %v532
  %v666 = vadd.f32 %v406, %v532
  %v667 = vadd.f32 %v407, %v532
  %v668 = vadd.f32 %v408, %v532
  %v669 = vadd.f32 %v409, %v532
  %v670 = vadd.f32 %v410, %v532
  %v671 = vadd.f32 %v411, %v532
  %v672 = vadd.f32 %v412, %v532
  %v673 = vadd.f32 %v413, %v532
  %v674 = vadd.f32 %v414, %v532
  %v675 = vadd.f32 %v415, %v532
  %v676 = vadd.f32 %v416, %v532
  %v677 = vadd.f32 %v417, %v532
  %v678 = vadd.f32 %v418, %v532
  %v679 = vadd.f32 %v419, %v532
  %v680 = vadd.f32 %v420, %v532
  %v681 = vadd.f32 %v421, %v532
  %v682 = vadd.f32 %v422, %v532
  %v683 = vadd.f32 %v423, %v532
  %v684 = vadd.f32 %v424, %v532
  %v685 = vadd.f32 %v425, %v532
  %v686 = vadd.f32 %v426, %v532
  %v687 = vadd.f32 %v427, %v532
  %v688 = vadd.f32 %v428, %v532
  %v689 = vadd.f32 %v429, %v532
  %v690 = vadd.f32 %v430, %v532
  %v691 = vadd.f32 %v431, %v532
  %v692 = vadd.f32 %v432, %v532
  %v693 = vadd.f32 %v433, %v532
  %v694 = vadd.f32 %v434, %v532
  %v695 = vadd.f32 %v435, %v532
  %v696 = vadd.f32 %v436, %v532
  %v697 = vadd.f32 %v437, %v532
  %v698 = vadd.f32 %v438, %v532
  %v699 = vadd.f32 %v439, %v532
  %v700 = vadd.f32 %v440, %v532
  %v701 = vadd.f32 %v441, %v532
  %v702 = vadd.f32 %v442, %v532
  %v703 = vadd.f32 %v443, %v532
  %v704 = vadd.f32 %v444, %v532
  %v705 = vadd.f32 %v445, %v532
  %v706 = vadd.f32 %v446, %v532
  %v707 = vadd.f32 %v447, %v532
  %v708 = vadd.f32 %v448, %v532
  %v709 = vadd.f32 %v449, %v532
  %v710 = vadd.f32 %v450, %v532
  %v711 = vadd.f32 %v451, %v532
  %v712 = vadd.f32 %v452, %v532
  %v713 = vadd.f32 %v453, %v532
  %v714 = vadd.f32 %v454, %v532
  %v715 = vadd.f32 %v455, %v532
  %v716 = vadd.f32 %v456, %v532
  %v717 = vadd.f32 %v457, %v532
  %v718 = vadd.f32 %v458, %v532
  %v719 = vadd.f32 %v459, %v532
  %v720 = vadd.f32 %v460, %v532
  %v721 = vadd.f32 %v461, %v532
  %v722 = vadd.f32 %v462, %v532
  %v723 = vadd.f32 %v463, %v532
  %v724 = vadd.f32 %v464, %v532
  %v725 = vadd.f32 %v465, %v532
  %v726 = vadd.f32 %v466, %v532
  %v727 = vadd.f32 %v467, %v532
  %v728 = vadd.f32 %v468, %v532
  %v729 = vadd.f32 %v469, %v532
  %v730 = vadd.f32 %v470, %v532
  %v731 = vadd.f32 %v471, %v532
  %v732 = vadd.f32 %v472, %v532
  %v733 = vadd.f32 %v473, %v532
  %v734 = vadd.f32 %v474, %v532
  %v735 = vadd.f32 %v475, %v532
  %v736 = vadd.f32 %v476, %v532
  %v737 = vadd.f32 %v477, %v532
  %v738 = vadd.f32 %v478, %v532
  %v739 = vadd.f32 %v479, %v532
  %v740 = vadd.f32 %v480, %v532
  %v741 = vadd.f32 %v481, %v532
  %v742 = vadd.f32 %v482, %v532
  %v743 = vadd.f32 %v483, %v532
  %v744 = vadd.f32 %v484, %v532
  %v745 = vadd.f32 %v485, %v532
  %v746 = vadd.f32 %v486, %v532
  %v747 = vadd.f32 %v487, %v532
  %v748 = vadd.f32 %v488, %v532
  %v749 = vadd.f32 %v489, %v532
  %v750 = vadd.f32 %v490, %v532
  %v751 = vadd.f32 %v491, %v532
  %v752 = vadd.f32 %v492, %v532
  %v753 = vadd.f32 %v493, %v532
  %v754 = vadd.f32 %v494, %v532
  %v755 = vadd.f32 %v495, %v532
  %v756 = vadd.f32 %v496, %v532
  %v757 = vadd.f32 %v497, %v532
  %v758 = vadd.f32 %v498, %v532
  %v759 = vadd.f32 %v499, %v532
  %v760 = vadd.f32 %v500, %v532
  %v761 = vadd.f32 %v501, %v532
  %v762 = vadd.f32 %v502, %v532
  %v763 = vadd.f32 %v503, %v532
  %v764 = vadd.f32 %v504, %v532
  %v765 = vadd.f32 %v505, %v532
  %v766 = vadd.f32 %v506, %v532
  %v767 = vadd.f32 %v507, %v532
  %v768 = vadd.f32 %v508, %v532
  %v769 = vadd.f32 %v509, %v532
  %v770 = vadd.f32 %v510, %v532
  %v771 = vadd.f32 %v511, %v532
  %v772 = vadd.f32 %v512, %v532
  %v773 = vadd.f32 %v513, %v532
  %v774 = vadd.f32 %v514, %v532
  %v775 = vadd.f32 %v515, %v532
  %v776 = vadd.f32 %v516, %v532
  %v777 = vadd.f32 %v517, %v532
  %v778 = vadd.f32 %v518, %v532
  %v779 = vadd.f32 %v519, %v532
  %v780 = vadd.f32 %v520, %v532
  %v781 = vadd.f32 %v521, %v532
  %v782 = vadd.f32 %v522, %v532
  %v783 = vadd.f32 %v523, %v532
  %v784 = vadd.f32 %v524, %v532
  %v785 = vadd.f32 %v525, %v532
  %v786 = vadd.f32 %v526, %v532
  %v787 = vadd.f32 %v527, %v532
  %v788 = vadd.f32 %v528, %v532
  %v789 = vadd.f32 %v529, %v532
  %v790 = vmax.f32 %v534, 0.0
  %v791 = vmax.f32 %v535, 0.0
  %v792 = vmax.f32 %v536, 0.0
  %v793 = vmax.f32 %v537, 0.0
  %v794 = vmax.f32 %v538, 0.0
  %v795 = vmax.f32 %v539, 0.0
  %v796 = vmax.f32 %v540, 0.0
  %v797 = vmax.f32 %v541, 0.0
  %v798 = vmax.f32 %v542, 0.0
  %v799 = vmax.f32 %v543, 0.0
  %v800 = vmax.f32 %v544, 0.0
  %v801 = vmax.f32 %v545, 0.0
  %v802 = vmax.f32 %v546, 0.0
  %v803 = vmax.f32 %v547, 0.0
  %v804 = vmax.f32 %v548, 0.0
  %v805 = vmax.f32 %v549, 0.0
  %v806 = vmax.f32 %v550, 0.0
  %v807 = vmax.f32 %v551, 0.0
  %v808 = vmax.f32 %v552, 0.0
  %v809 = vmax.f32 %v553, 0.0
  %v810 = vmax.f32 %v554, 0.0
  %v811 = vmax.f32 %v555, 0.0
  %v812 = vmax.f32 %v556, 0.0
  %v813 = vmax.f32 %v557, 0.0
  %v814 = vmax.f32 %v558, 0.0
  %v815 = vmax.f32 %v559, 0.0
  %v816 = vmax.f32 %v560, 0.0
  %v817 = vmax.f32 %v561, 0.0
  %v818 = vmax.f32 %v562, 0.0
  %v819 = vmax.f32 %v563, 0.0
  %v820 = vmax.f32 %v564, 0.0
  %v821 = vmax.f32 %v565, 0.0
  %v822 = vmax.f32 %v566, 0.0
  %v823 = vmax.f32 %v567, 0.0
  %v824 = vmax.f32 %v568, 0.0
  %v825 = vmax.f32 %v569, 0.0
  %v826 = vmax.f32 %v570, 0.0
  %v827 = vmax.f32 %v571, 0.0
  %v828 = vmax.f32 %v572, 0.0
  %v829 = vmax.f32 %v573, 0.0
  %v830 = vmax.f32 %v574, 0.0
  %v831 = vmax.f32 %v575, 0.0
  %v832 = vmax.f32 %v576, 0.0
  %v833 = vmax.f32 %v577, 0.0
  %v834 = vmax.f32 %v578, 0.0
  %v835 = vmax.f32 %v579, 0.0
  %v836 = vmax.f32 %v580, 0.0
  %v837 = vmax.f32 %v581, 0.0
  %v838 = vmax.f32 %v582, 0.0
  %v839 = vmax.f32 %v583, 0.0
  %v840 = vmax.f32 %v584, 0.0
  %v841 = vmax.f32 %v585, 0.0
  %v842 = vmax.f32 %v586, 0.0
  %v843 = vmax.f32 %v587, 0.0
  %v844 = vmax.f32 %v588, 0.0
  %v845 = vmax.f32 %v589, 0.0
  %v846 = vmax.f32 %v590, 0.0
  %v847 = vmax.f32 %v591, 0.0
  %v848 = vmax.f32 %v592, 0.0
  %v849 = vmax.f32 %v593, 0.0
  %v850 = vmax.f32 %v594, 0.0
  %v851 = vmax.f32 %v595, 0.0
  %v852 = vmax.f32 %v596, 0.0
  %v853 = vmax.f32 %v597, 0.0
  %v854 = vmax.f32 %v598, 0.0
  %v855 = vmax.f32 %v599, 0.0
  %v856 = vmax.f32 %v600, 0.0
  %v857 = vmax.f32 %v601, 0.0
  %v858 = vmax.f32 %v602, 0.0
  %v859 = vmax.f32 %v603, 0.0
  %v860 = vmax.f32 %v604, 0.0
  %v861 = vmax.f32 %v605, 0.0
  %v862 = vmax.f32 %v606, 0.0
  %v863 = vmax.f32 %v607, 0.0
  %v864 = vmax.f32 %v608, 0.0
  %v865 = vmax.f32 %v609, 0.0
  %v866 = vmax.f32 %v610, 0.0
  %v867 = vmax.f32 %v611, 0.0
  %v868 = vmax.f32 %v612, 0.0
  %v869 = vmax.f32 %v613, 0.0
  %v870 = vmax.f32 %v614, 0.0
  %v871 = vmax.f32 %v615, 0.0
  %v872 = vmax.f32 %v616, 0.0
  %v873 = vmax.f32 %v617, 0.0
  %v874 = vmax.f32 %v618, 0.0
  %v875 = vmax.f32 %v619, 0.0
  %v876 = vmax.f32 %v620, 0.0
  %v877 = vmax.f32 %v621, 0.0
  %v878 = vmax.f32 %v622, 0.0
  %v879 = vmax.f32 %v623, 0.0
  %v880 = vmax.f32 %v624, 0.0
  %v881 = vmax.f32 %v625, 0.0
  %v882 = vmax.f32 %v626, 0.0
  %v883 = vmax.f32 %v627, 0.0
  %v884 = vmax.f32 %v628, 0.0
  %v885 = vmax.f32 %v629, 0.0
  %v886 = vmax.f32 %v630, 0.0
  %v887 = vmax.f32 %v631, 0.0
  %v888 = vmax.f32 %v632, 0.0
  %v889 = vmax.f32 %v633, 0.0
  %v890 = vmax.f32 %v634, 0.0
  %v891 = vmax.f32 %v635, 0.0
  %v892 = vmax.f32 %v636, 0.0
  %v893 = vmax.f32 %v637, 0.0
  %v894 = vmax.f32 %v638, 0.0
  %v895 = vmax.f32 %v639, 0.0
  %v896 = vmax.f32 %v640, 0.0
  %v897 = vmax.f32 %v641, 0.0
  %v898 = vmax.f32 %v642, 0.0
  %v899 = vmax.f32 %v643, 0.0
  %v900 = vmax.f32 %v644, 0.0
  %v901 = vmax.f32 %v645, 0.0
  %v902 = vmax.f32 %v646, 0.0
  %v903 = vmax.f32 %v647, 0.0
  %v904 = vmax.f32 %v648, 0.0
  %v905 = vmax.f32 %v649, 0.0
  %v906 = vmax.f32 %v650, 0.0
  %v907 = vmax.f32 %v651, 0.0
  %v908 = vmax.f32 %v652, 0.0
  %v909 = vmax.f32 %v653, 0.0
  %v910 = vmax.f32 %v654, 0.0
  %v911 = vmax.f32 %v655, 0.0
  %v912 = vmax.f32 %v656, 0.0
  %v913 = vmax.f32 %v657, 0.0
  %v914 = vmax.f32 %v658, 0.0
  %v915 = vmax.f32 %v659, 0.0
  %v916 = vmax.f32 %v660, 0.0
  %v917 = vmax.f32 %v661, 0.0
  %v918 = vmax.f32 %v662, 0.0
  %v919 = vmax.f32 %v663, 0.0
  %v920 = vmax.f32 %v664, 0.0
  %v921 = vmax.f32 %v665, 0.0
  %v922 = vmax.f32 %v666, 0.0
  %v923 = vmax.f32 %v667, 0.0
  %v924 = vmax.f32 %v668, 0.0
  %v925 = vmax.f32 %v669, 0.0
  %v926 = vmax.f32 %v670, 0.0
  %v927 = vmax.f32 %v671, 0.0
  %v928 = vmax.f32 %v672, 0.0
  %v929 = vmax.f32 %v673, 0.0
  %v930 = vmax.f32 %v674, 0.0
  %v931 = vmax.f32 %v675, 0.0
  %v932 = vmax.f32 %v676, 0.0
  %v933 = vmax.f32 %v677, 0.0
  %v934 = vmax.f32 %v678, 0.0
  %v935 = vmax.f32 %v679, 0.0
  %v936 = vmax.f32 %v680, 0.0
  %v937 = vmax.f32 %v681, 0.0
  %v938 = vmax.f32 %v682, 0.0
  %v939 = vmax.f32 %v683, 0.0
  %v940 = vmax.f32 %v684, 0.0
  %v941 = vmax.f32 %v685, 0.0
  %v942 = vmax.f32 %v686, 0.0
  %v943 = vmax.f32 %v687, 0.0
  %v944 = vmax.f32 %v688, 0.0
  %v945 = vmax.f32 %v689, 0.0
  %v946 = vmax.f32 %v690, 0.0
  %v947 = vmax.f32 %v691, 0.0
  %v948 = vmax.f32 %v692, 0.0
  %v949 = vmax.f32 %v693, 0.0
  %v950 = vmax.f32 %v694, 0.0
  %v951 = vmax.f32 %v695, 0.0
  %v952 = vmax.f32 %v696, 0.0
  %v953 = vmax.f32 %v697, 0.0
  %v954 = vmax.f32 %v698, 0.0
  %v955 = vmax.f32 %v699, 0.0
  %v956 = vmax.f32 %v700, 0.0
  %v957 = vmax.f32 %v701, 0.0
  %v958 = vmax.f32 %v702, 0.0
  %v959 = vmax.f32 %v703, 0.0
  %v960 = vmax.f32 %v704, 0.0
  %v961 = vmax.f32 %v705, 0.0
  %v962 = vmax.f32 %v706, 0.0
  %v963 = vmax.f32 %v707, 0.0
  %v964 = vmax.f32 %v708, 0.0
  %v965 = vmax.f32 %v709, 0.0
  %v966 = vmax.f32 %v710, 0.0
  %v967 = vmax.f32 %v711, 0.0
  %v968 = vmax.f32 %v712, 0.0
  %v969 = vmax.f32 %v713, 0.0
  %v970 = vmax.f32 %v714, 0.0
  %v971 = vmax.f32 %v715, 0.0
  %v972 = vmax.f32 %v716, 0.0
  %v973 = vmax.f32 %v717, 0.0
  %v974 = vmax.f32 %v718, 0.0
  %v975 = vmax.f32 %v719, 0.0
  %v976 = vmax.f32 %v720, 0.0
  %v977 = vmax.f32 %v721, 0.0
  %v978 = vmax.f32 %v722, 0.0
  %v979 = vmax.f32 %v723, 0.0
  %v980 = vmax.f32 %v724, 0.0
  %v981 = vmax.f32 %v725, 0.0
  %v982 = vmax.f32 %v726, 0.0
  %v983 = vmax.f32 %v727, 0.0
  %v984 = vmax.f32 %v728, 0.0
  %v985 = vmax.f32 %v729, 0.0
  %v986 = vmax.f32 %v730, 0.0
  %v987 = vmax.f32 %v731, 0.0
  %v988 = vmax.f32 %v732, 0.0
  %v989 = vmax.f32 %v733, 0.0
  %v990 = vmax.f32 %v734, 0.0
  %v991 = vmax.f32 %v735, 0.0
  %v992 = vmax.f32 %v736, 0.0
  %v993 = vmax.f32 %v737, 0.0
  %v994 = vmax.f32 %v738, 0.0
  %v995 = vmax.f32 %v739, 0.0
  %v996 = vmax.f32 %v740, 0.0
  %v997 = vmax.f32 %v741, 0.0
  %v998 = vmax.f32 %v742, 0.0
  %v999 = vmax.f32 %v743, 0.0
  %v1000 = vmax.f32 %v744, 0.0
  %v1001 = vmax.f32 %v745, 0.0
  %v1002 = vmax.f32 %v746, 0.0
  %v1003 = vmax.f32 %v747, 0.0
  %v1004 = vmax.f32 %v748, 0.0
  %v1005 = vmax.f32 %v749, 0.0
  %v1006 = vmax.f32 %v750, 0.0
  %v1007 = vmax.f32 %v751, 0.0
  %v1008 = vmax.f32 %v752, 0.0
  %v1009 = vmax.f32 %v753, 0.0
  %v1010 = vmax.f32 %v754, 0.0
  %v1011 = vmax.f32 %v755, 0.0
  %v1012 = vmax.f32 %v756, 0.0
  %v1013 = vmax.f32 %v757, 0.0
  %v1014 = vmax.f32 %v758, 0.0
  %v1015 = vmax.f32 %v759, 0.0
  %v1016 = vmax.f32 %v760, 0.0
  %v1017 = vmax.f32 %v761, 0.0
  %v1018 = vmax.f32 %v762, 0.0
  %v1019 = vmax.f32 %v763, 0.0
  %v1020 = vmax.f32 %v764, 0.0
  %v1021 = vmax.f32 %v765, 0.0
  %v1022 = vmax.f32 %v766, 0.0
  %v1023 = vmax.f32 %v767, 0.0
  %v1024 = vmax.f32 %v768, 0.0
  %v1025 = vmax.f32 %v769, 0.0
  %v1026 = vmax.f32 %v770, 0.0
  %v1027 = vmax.f32 %v771, 0.0
  %v1028 = vmax.f32 %v772, 0.0
  %v1029 = vmax.f32 %v773, 0.0
  %v1030 = vmax.f32 %v774, 0.0
  %v1031 = vmax.f32 %v775, 0.0
  %v1032 = vmax.f32 %v776, 0.0
  %v1033 = vmax.f32 %v777, 0.0
  %v1034 = vmax.f32 %v778, 0.0
  %v1035 = vmax.f32 %v779, 0.0
  %v1036 = vmax.f32 %v780, 0.0
  %v1037 = vmax.f32 %v781, 0.0
  %v1038 = vmax.f32 %v782, 0.0
  %v1039 = vmax.f32 %v783, 0.0
  %v1040 = vmax.f32 %v784, 0.0
  %v1041 = vmax.f32 %v785, 0.0
  %v1042 = vmax.f32 %v786, 0.0
  %v1043 = vmax.f32 %v787, 0.0
  %v1044 = vmax.f32 %v788, 0.0
  %v1045 = vmax.f32 %v789, 0.0
  %1046 = vst [vmem:[%s3] sm:$0xff] %v790
  %1047 = vst [vmem:[%s3 + $0x8] sm:$0xff] %v791
  %1048 = vst [vmem:[%s3 + $0x10] sm:$0xff] %v792
  %1049 = vst [vmem:[%s3 + $0x18] sm:$0xff] %v793
  %1050 = vst [vmem:[%s3 + $0x20] sm:$0xff] %v794
  %1051 = vst [vmem:[%s3 + $0x28] sm:$0xff] %v795
  %1052 = vst [vmem:[%s3 + $0x30] sm:$0xff] %v796
  %1053 = vst [vmem:[%s3 + $0x38] sm:$0xff] %v797
  %1054 = vst [vmem:[%s3 + $0x40] sm:$0xff] %v798
  %1055 = vst [vmem:[%s3 + $0x48] sm:$0xff] %v799
  %1056 = vst [vmem:[%s3 + $0x50] sm:$0xff] %v800
  %1057 = vst [vmem:[%s3 + $0x58] sm:$0xff] %v801
  %1058 = vst [vmem:[%s3 + $0x60] sm:$0xff] %v802
  %1059 = vst [vmem:[%s3 + $0x68] sm:$0xff] %v803
  %1060 = vst [vmem:[%s3 + $0x70] sm:$0xff] %v804
  %1061 = vst [vmem:[%s3 + $0x78] sm:$0xff] %v805
  %1062 = vst [vmem:[%s3 + $0x80] sm:$0xff] %v806
  %1063 = vst [vmem:[%s3 + $0x88] sm:$0xff] %v807
  %1064 = vst [vmem:[%s3 + $0x90] sm:$0xff] %v808
  %1065 = vst [vmem:[%s3 + $0x98] sm:$0xff] %v809
  %1066 = vst [vmem:[%s3 + $0xa0] sm:$0xff] %v810
  %1067 = vst [vmem:[%s3 + $0xa8] sm:$0xff] %v811
  %1068 = vst [vmem:[%s3 + $0xb0] sm:$0xff] %v812
  %1069 = vst [vmem:[%s3 + $0xb8] sm:$0xff] %v813
  %1070 = vst [vmem:[%s3 + $0xc0] sm:$0xff] %v814
  %1071 = vst [vmem:[%s3 + $0xc8] sm:$0xff] %v815
  %1072 = vst [vmem:[%s3 + $0xd0] sm:$0xff] %v816
  %1073 = vst [vmem:[%s3 + $0xd8] sm:$0xff] %v817
  %1074 = vst [vmem:[%s3 + $0xe0] sm:$0xff] %v818
  %1075 = vst [vmem:[%s3 + $0xe8] sm:$0xff] %v819
  %1076 = vst [vmem:[%s3 + $0xf0] sm:$0xff] %v820
  %1077 = vst [vmem:[%s3 + $0xf8] sm:$0xff] %v821
  %1078 = vst [vmem:[%s3 + $0x100] sm:$0xff] %v822
  %1079 = vst [vmem:[%s3 + $0x108] sm:$0xff] %v823
  %1080 = vst [vmem:[%s3 + $0x110] sm:$0xff] %v824
  %1081 = vst [vmem:[%s3 + $0x118] sm:$0xff] %v825
  %1082 = vst [vmem:[%s3 + $0x120] sm:$0xff] %v826
  %1083 = vst [vmem:[%s3 + $0x128] sm:$0xff] %v827
  %1084 = vst [vmem:[%s3 + $0x130] sm:$0xff] %v828
  %1085 = vst [vmem:[%s3 + $0x138] sm:$0xff] %v829
  %1086 = vst [vmem:[%s3 + $0x140] sm:$0xff] %v830
  %1087 = vst [vmem:[%s3 + $0x148] sm:$0xff] %v831
  %1088 = vst [vmem:[%s3 + $0x150] sm:$0xff] %v832
  %1089 = vst [vmem:[%s3 + $0x158] sm:$0xff] %v833
  %1090 = vst [vmem:[%s3 + $0x160] sm:$0xff] %v834
  %1091 = vst [vmem:[%s3 + $0x168] sm:$0xff] %v835
  %1092 = vst [vmem:[%s3 + $0x170] sm:$0xff] %v836
  %1093 = vst [vmem:[%s3 + $0x178] sm:$0xff] %v837
  %1094 = vst [vmem:[%s3 + $0x180] sm:$0xff] %v838
  %1095 = vst [vmem:[%s3 + $0x188] sm:$0xff] %v839
  %1096 = vst [vmem:[%s3 + $0x190] sm:$0xff] %v840
  %1097 = vst [vmem:[%s3 + $0x198] sm:$0xff] %v841
  %1098 = vst [vmem:[%s3 + $0x1a0] sm:$0xff] %v842
  %1099 = vst [vmem:[%s3 + $0x1a8] sm:$0xff] %v843
  %1100 = vst [vmem:[%s3 + $0x1b0] sm:$0xff] %v844
  %1101 = vst [vmem:[%s3 + $0x1b8] sm:$0xff] %v845
  %1102 = vst [vmem:[%s3 + $0x1c0] sm:$0xff] %v846
  %1103 = vst [vmem:[%s3 + $0x1c8] sm:$0xff] %v847
  %1104 = vst [vmem:[%s3 + $0x1d0] sm:$0xff] %v848
  %1105 = vst [vmem:[%s3 + $0x1d8] sm:$0xff] %v849
  %1106 = vst [vmem:[%s3 + $0x1e0] sm:$0xff] %v850
  %1107 = vst [vmem:[%s3 + $0x1e8] sm:$0xff] %v851
  %1108 = vst [vmem:[%s3 + $0x1f0] sm:$0xff] %v852
  %1109 = vst [vmem:[%s3 + $0x1f8] sm:$0xff] %v853
  %1110 = vst [vmem:[%s3 + $0x200] sm:$0xff] %v854
  %1111 = vst [vmem:[%s3 + $0x208] sm:$0xff] %v855
  %1112 = vst [vmem:[%s3 + $0x210] sm:$0xff] %v856
  %1113 = vst [vmem:[%s3 + $0x218] sm:$0xff] %v857
  %1114 = vst [vmem:[%s3 + $0x220] sm:$0xff] %v858
  %1115 = vst [vmem:[%s3 + $0x228] sm:$0xff] %v859
  %1116 = vst [vmem:[%s3 + $0x230] sm:$0xff] %v860
  %1117 = vst [vmem:[%s3 + $0x238] sm:$0xff] %v861
  %1118 = vst [vmem:[%s3 + $0x240] sm:$0xff] %v862
  %1119 = vst [vmem:[%s3 + $0x248] sm:$0xff] %v863
  %1120 = vst [vmem:[%s3 + $0x250] sm:$0xff] %v864
  %1121 = vst [vmem:[%s3 + $0x258] sm:$0xff] %v865
  %1122 = vst [vmem:[%s3 + $0x260] sm:$0xff] %v866
  %1123 = vst [vmem:[%s3 + $0x268] sm:$0xff] %v867
  %1124 = vst [vmem:[%s3 + $0x270] sm:$0xff] %v868
  %1125 = vst [vmem:[%s3 + $0x278] sm:$0xff] %v869
  %1126 = vst [vmem:[%s3 + $0x280] sm:$0xff] %v870
  %1127 = vst [vmem:[%s3 + $0x288] sm:$0xff] %v871
  %1128 = vst [vmem:[%s3 + $0x290] sm:$0xff] %v872
  %1129 = vst [vmem:[%s3 + $0x298] sm:$0xff] %v873
  %1130 = vst [vmem:[%s3 + $0x2a0] sm:$0xff] %v874
  %1131 = vst [vmem:[%s3 + $0x2a8] sm:$0xff] %v875
  %1132 = vst [vmem:[%s3 + $0x2b0] sm:$0xff] %v876
  %1133 = vst [vmem:[%s3 + $0x2b8] sm:$0xff] %v877
  %1134 = vst [vmem:[%s3 + $0x2c0] sm:$0xff] %v878
  %1135 = vst [vmem:[%s3 + $0x2c8] sm:$0xff] %v879
  %1136 = vst [vmem:[%s3 + $0x2d0] sm:$0xff] %v880
  %1137 = vst [vmem:[%s3 + $0x2d8] sm:$0xff] %v881
  %1138 = vst [vmem:[%s3 + $0x2e0] sm:$0xff] %v882
  %1139 = vst [vmem:[%s3 + $0x2e8] sm:$0xff] %v883
  %1140 = vst [vmem:[%s3 + $0x2f0] sm:$0xff] %v884
  %1141 = vst [vmem:[%s3 + $0x2f8] sm:$0xff] %v885
  %1142 = vst [vmem:[%s3 + $0x300] sm:$0xff] %v886
  %1143 = vst [vmem:[%s3 + $0x308] sm:$0xff] %v887
  %1144 = vst [vmem:[%s3 + $0x310] sm:$0xff] %v888
  %1145 = vst [vmem:[%s3 + $0x318] sm:$0xff] %v889
  %1146 = vst [vmem:[%s3 + $0x320] sm:$0xff] %v890
  %1147 = vst [vmem:[%s3 + $0x328] sm:$0xff] %v891
  %1148 = vst [vmem:[%s3 + $0x330] sm:$0xff] %v892
  %1149 = vst [vmem:[%s3 + $0x338] sm:$0xff] %v893
  %1150 = vst [vmem:[%s3 + $0x340] sm:$0xff] %v894
  %1151 = vst [vmem:[%s3 + $0x348] sm:$0xff] %v895
  %1152 = vst [vmem:[%s3 + $0x350] sm:$0xff] %v896
  %1153 = vst [vmem:[%s3 + $0x358] sm:$0xff] %v897
  %1154 = vst [vmem:[%s3 + $0x360] sm:$0xff] %v898
  %1155 = vst [vmem:[%s3 + $0x368] sm:$0xff] %v899
  %1156 = vst [vmem:[%s3 + $0x370] sm:$0xff] %v900
  %1157 = vst [vmem:[%s3 + $0x378] sm:$0xff] %v901
  %1158 = vst [vmem:[%s3 + $0x380] sm:$0xff] %v902
  %1159 = vst [vmem:[%s3 + $0x388] sm:$0xff] %v903
  %1160 = vst [vmem:[%s3 + $0x390] sm:$0xff] %v904
  %1161 = vst [vmem:[%s3 + $0x398] sm:$0xff] %v905
  %1162 = vst [vmem:[%s3 + $0x3a0] sm:$0xff] %v906
  %1163 = vst [vmem:[%s3 + $0x3a8] sm:$0xff] %v907
  %1164 = vst [vmem:[%s3 + $0x3b0] sm:$0xff] %v908
  %1165 = vst [vmem:[%s3 + $0x3b8] sm:$0xff] %v909
  %1166 = vst [vmem:[%s3 + $0x3c0] sm:$0xff] %v910
  %1167 = vst [vmem:[%s3 + $0x3c8] sm:$0xff] %v911
  %1168 = vst [vmem:[%s3 + $0x3d0] sm:$0xff] %v912
  %1169 = vst [vmem:[%s3 + $0x3d8] sm:$0xff] %v913
  %1170 = vst [vmem:[%s3 + $0x3e0] sm:$0xff] %v914
  %1171 = vst [vmem:[%s3 + $0x3e8] sm:$0xff] %v915
  %1172 = vst [vmem:[%s3 + $0x3f0] sm:$0xff] %v916
  %1173 = vst [vmem:[%s3 + $0x3f8] sm:$0xff] %v917
  %1174 = vst [vmem:[%s3 + $0x400] sm:$0xff] %v918
  %1175 = vst [vmem:[%s3 + $0x408] sm:$0xff] %v919
  %1176 = vst [vmem:[%s3 + $0x410] sm:$0xff] %v920
  %1177 = vst [vmem:[%s3 + $0x418] sm:$0xff] %v921
  %1178 = vst [vmem:[%s3 + $0x420] sm:$0xff] %v922
  %1179 = vst [vmem:[%s3 + $0x428] sm:$0xff] %v923
  %1180 = vst [vmem:[%s3 + $0x430] sm:$0xff] %v924
  %1181 = vst [vmem:[%s3 + $0x438] sm:$0xff] %v925
  %1182 = vst [vmem:[%s3 + $0x440] sm:$0xff] %v926
  %1183 = vst [vmem:[%s3 + $0x448] sm:$0xff] %v927
  %1184 = vst [vmem:[%s3 + $0x450] sm:$0xff] %v928
  %1185 = vst [vmem:[%s3 + $0x458] sm:$0xff] %v929
  %1186 = vst [vmem:[%s3 + $0x460] sm:$0xff] %v930
  %1187 = vst [vmem:[%s3 + $0x468] sm:$0xff] %v931
  %1188 = vst [vmem:[%s3 + $0x470] sm:$0xff] %v932
  %1189 = vst [vmem:[%s3 + $0x478] sm:$0xff] %v933
  %1190 = vst [vmem:[%s3 + $0x480] sm:$0xff] %v934
  %1191 = vst [vmem:[%s3 + $0x488] sm:$0xff] %v935
  %1192 = vst [vmem:[%s3 + $0x490] sm:$0xff] %v936
  %1193 = vst [vmem:[%s3 + $0x498] sm:$0xff] %v937
  %1194 = vst [vmem:[%s3 + $0x4a0] sm:$0xff] %v938
  %1195 = vst [vmem:[%s3 + $0x4a8] sm:$0xff] %v939
  %1196 = vst [vmem:[%s3 + $0x4b0] sm:$0xff] %v940
  %1197 = vst [vmem:[%s3 + $0x4b8] sm:$0xff] %v941
  %1198 = vst [vmem:[%s3 + $0x4c0] sm:$0xff] %v942
  %1199 = vst [vmem:[%s3 + $0x4c8] sm:$0xff] %v943
  %1200 = vst [vmem:[%s3 + $0x4d0] sm:$0xff] %v944
  %1201 = vst [vmem:[%s3 + $0x4d8] sm:$0xff] %v945
  %1202 = vst [vmem:[%s3 + $0x4e0] sm:$0xff] %v946
  %1203 = vst [vmem:[%s3 + $0x4e8] sm:$0xff] %v947
  %1204 = vst [vmem:[%s3 + $0x4f0] sm:$0xff] %v948
  %1205 = vst [vmem:[%s3 + $0x4f8] sm:$0xff] %v949
  %1206 = vst [vmem:[%s3 + $0x500] sm:$0xff] %v950
  %1207 = vst [vmem:[%s3 + $0x508] sm:$0xff] %v951
  %1208 = vst [vmem:[%s3 + $0x510] sm:$0xff] %v952
  %1209 = vst [vmem:[%s3 + $0x518] sm:$0xff] %v953
  %1210 = vst [vmem:[%s3 + $0x520] sm:$0xff] %v954
  %1211 = vst [vmem:[%s3 + $0x528] sm:$0xff] %v955
  %1212 = vst [vmem:[%s3 + $0x530] sm:$0xff] %v956
  %1213 = vst [vmem:[%s3 + $0x538] sm:$0xff] %v957
  %1214 = vst [vmem:[%s3 + $0x540] sm:$0xff] %v958
  %1215 = vst [vmem:[%s3 + $0x548] sm:$0xff] %v959
  %1216 = vst [vmem:[%s3 + $0x550] sm:$0xff] %v960
  %1217 = vst [vmem:[%s3 + $0x558] sm:$0xff] %v961
  %1218 = vst [vmem:[%s3 + $0x560] sm:$0xff] %v962
  %1219 = vst [vmem:[%s3 + $0x568] sm:$0xff] %v963
  %1220 = vst [vmem:[%s3 + $0x570] sm:$0xff] %v964
  %1221 = vst [vmem:[%s3 + $0x578] sm:$0xff] %v965
  %1222 = vst [vmem:[%s3 + $0x580] sm:$0xff] %v966
  %1223 = vst [vmem:[%s3 + $0x588] sm:$0xff] %v967
  %1224 = vst [vmem:[%s3 + $0x590] sm:$0xff] %v968
  %1225 = vst [vmem:[%s3 + $0x598] sm:$0xff] %v969
  %1226 = vst [vmem:[%s3 + $0x5a0] sm:$0xff] %v970
  %1227 = vst [vmem:[%s3 + $0x5a8] sm:$0xff] %v971
  %1228 = vst [vmem:[%s3 + $0x5b0] sm:$0xff] %v972
  %1229 = vst [vmem:[%s3 + $0x5b8] sm:$0xff] %v973
  %1230 = vst [vmem:[%s3 + $0x5c0] sm:$0xff] %v974
  %1231 = vst [vmem:[%s3 + $0x5c8] sm:$0xff] %v975
  %1232 = vst [vmem:[%s3 + $0x5d0] sm:$0xff] %v976
  %1233 = vst [vmem:[%s3 + $0x5d8] sm:$0xff] %v977
  %1234 = vst [vmem:[%s3 + $0x5e0] sm:$0xff] %v978
  %1235 = vst [vmem:[%s3 + $0x5e8] sm:$0xff] %v979
  %1236 = vst [vmem:[%s3 + $0x5f0] sm:$0xff] %v980
  %1237 = vst [vmem:[%s3 + $0x5f8] sm:$0xff] %v981
  %1238 = vst [vmem:[%s3 + $0x600] sm:$0xff] %v982
  %1239 = vst [vmem:[%s3 + $0x608] sm:$0xff] %v983
  %1240 = vst [vmem:[%s3 + $0x610] sm:$0xff] %v984
  %1241 = vst [vmem:[%s3 + $0x618] sm:$0xff] %v985
  %1242 = vst [vmem:[%s3 + $0x620] sm:$0xff] %v986
  %1243 = vst [vmem:[%s3 + $0x628] sm:$0xff] %v987
  %1244 = vst [vmem:[%s3 + $0x630] sm:$0xff] %v988
  %1245 = vst [vmem:[%s3 + $0x638] sm:$0xff] %v989
  %1246 = vst [vmem:[%s3 + $0x640] sm:$0xff] %v990
  %1247 = vst [vmem:[%s3 + $0x648] sm:$0xff] %v991
  %1248 = vst [vmem:[%s3 + $0x650] sm:$0xff] %v992
  %1249 = vst [vmem:[%s3 + $0x658] sm:$0xff] %v993
  %1250 = vst [vmem:[%s3 + $0x660] sm:$0xff] %v994
  %1251 = vst [vmem:[%s3 + $0x668] sm:$0xff] %v995
  %1252 = vst [vmem:[%s3 + $0x670] sm:$0xff] %v996
  %1253 = vst [vmem:[%s3 + $0x678] sm:$0xff] %v997
  %1254 = vst [vmem:[%s3 + $0x680] sm:$0xff] %v998
  %1255 = vst [vmem:[%s3 + $0x688] sm:$0xff] %v999
  %1256 = vst [vmem:[%s3 + $0x690] sm:$0xff] %v1000
  %1257 = vst [vmem:[%s3 + $0x698] sm:$0xff] %v1001
  %1258 = vst [vmem:[%s3 + $0x6a0] sm:$0xff] %v1002
  %1259 = vst [vmem:[%s3 + $0x6a8] sm:$0xff] %v1003
  %1260 = vst [vmem:[%s3 + $0x6b0] sm:$0xff] %v1004
  %1261 = vst [vmem:[%s3 + $0x6b8] sm:$0xff] %v1005
  %1262 = vst [vmem:[%s3 + $0x6c0] sm:$0xff] %v1006
  %1263 = vst [vmem:[%s3 + $0x6c8] sm:$0xff] %v1007
  %1264 = vst [vmem:[%s3 + $0x6d0] sm:$0xff] %v1008
  %1265 = vst [vmem:[%s3 + $0x6d8] sm:$0xff] %v1009
  %1266 = vst [vmem:[%s3 + $0x6e0] sm:$0xff] %v1010
  %1267 = vst [vmem:[%s3 + $0x6e8] sm:$0xff] %v1011
  %1268 = vst [vmem:[%s3 + $0x6f0] sm:$0xff] %v1012
  %1269 = vst [vmem:[%s3 + $0x6f8] sm:$0xff] %v1013
  %1270 = vst [vmem:[%s3 + $0x700] sm:$0xff] %v1014
  %1271 = vst [vmem:[%s3 + $0x708] sm:$0xff] %v1015
  %1272 = vst [vmem:[%s3 + $0x710] sm:$0xff] %v1016
  %1273 = vst [vmem:[%s3 + $0x718] sm:$0xff] %v1017
  %1274 = vst [vmem:[%s3 + $0x720] sm:$0xff] %v1018
  %1275 = vst [vmem:[%s3 + $0x728] sm:$0xff] %v1019
  %1276 = vst [vmem:[%s3 + $0x730] sm:$0xff] %v1020
  %1277 = vst [vmem:[%s3 + $0x738] sm:$0xff] %v1021
  %1278 = vst [vmem:[%s3 + $0x740] sm:$0xff] %v1022
  %1279 = vst [vmem:[%s3 + $0x748] sm:$0xff] %v1023
  %1280 = vst [vmem:[%s3 + $0x750] sm:$0xff] %v1024
  %1281 = vst [vmem:[%s3 + $0x758] sm:$0xff] %v1025
  %1282 = vst [vmem:[%s3 + $0x760] sm:$0xff] %v1026
  %1283 = vst [vmem:[%s3 + $0x768] sm:$0xff] %v1027
  %1284 = vst [vmem:[%s3 + $0x770] sm:$0xff] %v1028
  %1285 = vst [vmem:[%s3 + $0x778] sm:$0xff] %v1029
  %1286 = vst [vmem:[%s3 + $0x780] sm:$0xff] %v1030
  %1287 = vst [vmem:[%s3 + $0x788] sm:$0xff] %v1031
  %1288 = vst [vmem:[%s3 + $0x790] sm:$0xff] %v1032
  %1289 = vst [vmem:[%s3 + $0x798] sm:$0xff] %v1033
  %1290 = vst [vmem:[%s3 + $0x7a0] sm:$0xff] %v1034
  %1291 = vst [vmem:[%s3 + $0x7a8] sm:$0xff] %v1035
  %1292 = vst [vmem:[%s3 + $0x7b0] sm:$0xff] %v1036
  %1293 = vst [vmem:[%s3 + $0x7b8] sm:$0xff] %v1037
  %1294 = vst [vmem:[%s3 + $0x7c0] sm:$0xff] %v1038
  %1295 = vst [vmem:[%s3 + $0x7c8] sm:$0xff] %v1039
  %1296 = vst [vmem:[%s3 + $0x7d0] sm:$0xff] %v1040
  %1297 = vst [vmem:[%s3 + $0x7d8] sm:$0xff] %v1041
  %1298 = vst [vmem:[%s3 + $0x7e0] sm:$0xff] %v1042
  %1299 = vst [vmem:[%s3 + $0x7e8] sm:$0xff] %v1043
  %1300 = vst [vmem:[%s3 + $0x7f0] sm:$0xff] %v1044
  %1301 = vst [vmem:[%s3 + $0x7f8] sm:$0xff] %v1045
  // Predicated region
  $region14: #{generator_forward.16} parent=0 // pred_check
    _
  $region15: #{generator_forward.16} parent=0 // pred_check_branch
    %1303 = sbr.rel (0) target = $region17
  $region16: #{generator_forward.16} parent=0 // pred_region
    _
  $region17: #{generator_forward.16} parent=0 // pred_fallthru
    _
  // Predicated region
  $region18: #{generator_forward.16} parent=0 // pred_check
    _
  $region19: #{generator_forward.16} parent=0 // pred_check_branch
    %1305 = sbr.rel (0) target = $region21
  $region20: #{generator_forward.16} parent=0 // pred_region
    _
  $region21: #{generator_forward.16} parent=0 // pred_fallthru
    _

// kernel: generator_forward.15
$region0: #{generator_forward.15}
  #allocation0 [shape = 'u32[]', space=smem, size = 0x4, offset = 0x4, fixed_abs, tag = 'smem constant byte address 0x4 - core index']
  #allocation1 [shape = 'u32[72,128]{1,0:T(1,128)}', space=vmem, size = 0x9000, scoped, tag = 'internal scratch']
  #allocation2 [shape = 'f32[512,128]{1,0:T(8,128)}', space=vmem, size = 0x40000, scoped, tag = 'scratch operand']
  %s0 = inlined_call_operand.vmem [shape: f32[2048,256], index: 0, kind: input, shape index: {}]
  %s1 = inlined_call_operand.vmem [shape: f32[256,128], index: 1, kind: input, shape index: {}]
  %s2 = inlined_call_operand.vmem [shape: f32[2048,128], index: 2, kind: output, shape index: {0}]
  %s3 = inlined_call_operand.vmem [shape: f32[1,128], index: 3, kind: output, shape index: {1}]
  %s4 = inlined_call_operand.vmem [shape: f32[1,128], index: 4, kind: output, shape index: {2}]
  %5 = xla_tuple %s2, %s3, %s4
  %s6 = sld [smem:[#allocation0]]
  $region69: #{generator_forward.15} parent=0
    _
  %s8 = ssub.s32 1, %s6
  %s9 = scalar_select 0, %s8, %s6
  loop: start=0, step=1, limit=6
  $region2: #{generator_forward.15} parent=0 // loop_pre_header
    _
  $region3: #{generator_forward.15} parent=0 // loop_header
    %s11 = sphi 0, %s15
    %p12 = scmp.ge.s32.totalorder %s11, 6
    %s18 = sphi 0, %s30
    %s19 = sphi 0, %s26
    %s20 = sphi 0, %s18
    %s21 = sphi 0, %s19
    %s22 = sphi 0, %s20
    %s23 = sphi 0, %s21
    %s35 = sphi 0, %s37
    %s38 = sphi 0, %s35
    %s39 = sphi 0, %s38
    %s55 = sphi 0, %s39
    %s61 = sphi 0, %s63
    %s64 = sphi 0, %s61
    %s65 = sphi 0, %s64
    %s81 = sphi 0, %s65
    %s87 = sphi 0, %s89
    %s90 = sphi 0, %s87
    %s91 = sphi 0, %s90
    %s107 = sphi 0, %s91
    %s111 = sphi 0, %s111
    %s113 = sphi 0, %s111
    %s114 = sphi 0, %s113
    %s128 = sphi 0, %s114
    %s132 = sphi 0, %s132
    %s134 = sphi 0, %s132
    %s135 = sphi 0, %s134
    %s149 = sphi 0, %s135
  $region4: #{generator_forward.15} parent=0 // loop_header_branch
    %14 = sbr.rel (%p12) target = $region8
  $region5: #{generator_forward.15} parent=0 // loop_body
    %s16 = ssub.s32 %s11, 1
    %s17 = ssub.s32 %s11, 2
    %s24 = sadd.s32 1, %s19
    %p25 = scmp.ge.s32.totalorder %s24, 1
    %s26 = scalar_select %p25, 0, %s24
    %s27 = sadd.s32 1, %s18
    %s28 = scalar_select %p25, %s27, %s18
    %p29 = scmp.ge.s32.totalorder %s28, 4
    %s30 = scalar_select %p29, 0, %s28
    %s31 = ssub.s32 %s18, %s30
    %s32 = ssub.s32 %s19, %s26
    %s33 = sor.u32 %s31, %s32
    %p34 = scmp.eq.s32.totalorder %s33, 0
    %s36 = sadd.s32 %s35, 1
    %s37 = scalar_select %p34, %s35, %s36
    %p40 = pneg %p34
    %p41 = scmp.eq.s32.totalorder %s11, 3
    %p42 = por %p40, %p41
    %p43 = scmp.ne.s32.totalorder %s35, %s38
    %p44 = scmp.eq.s32.totalorder %s11, 0
    %p45 = por %p43, %p44
    %p46 = scmp.ne.s32.totalorder %s35, %s38
    %p47 = scmp.eq.s32.totalorder %s16, 3
    %p48 = por %p46, %p47
    %p49 = scmp.ne.s32.totalorder %s38, %s39
    %p50 = scmp.eq.s32.totalorder %s16, 0
    %p51 = por %p49, %p50
    %p52 = scmp.ne.s32.totalorder %s38, %s39
    %p53 = scmp.eq.s32.totalorder %s17, 3
    %p54 = por %p52, %p53
    %p56 = scmp.ne.s32.totalorder %s39, %s55
    %p57 = scmp.eq.s32.totalorder %s17, 0
    %p58 = por %p56, %p57
    %s59 = ssub.s32 %s19, %s26
    %p60 = scmp.eq.s32.totalorder %s59, 0
    %s62 = sadd.s32 %s61, 1
    %s63 = scalar_select %p60, %s61, %s62
    %p66 = pneg %p60
    %p67 = scmp.eq.s32.totalorder %s11, 3
    %p68 = por %p66, %p67
    %p69 = scmp.ne.s32.totalorder %s61, %s64
    %p70 = scmp.eq.s32.totalorder %s11, 0
    %p71 = por %p69, %p70
    %p72 = scmp.ne.s32.totalorder %s61, %s64
    %p73 = scmp.eq.s32.totalorder %s16, 3
    %p74 = por %p72, %p73
    %p75 = scmp.ne.s32.totalorder %s64, %s65
    %p76 = scmp.eq.s32.totalorder %s16, 0
    %p77 = por %p75, %p76
    %p78 = scmp.ne.s32.totalorder %s64, %s65
    %p79 = scmp.eq.s32.totalorder %s17, 3
    %p80 = por %p78, %p79
    %p82 = scmp.ne.s32.totalorder %s65, %s81
    %p83 = scmp.eq.s32.totalorder %s17, 0
    %p84 = por %p82, %p83
    %s85 = ssub.s32 %s18, %s30
    %p86 = scmp.eq.s32.totalorder %s85, 0
    %s88 = sadd.s32 %s87, 1
    %s89 = scalar_select %p86, %s87, %s88
    %p92 = pneg %p86
    %p93 = scmp.eq.s32.totalorder %s11, 3
    %p94 = por %p92, %p93
    %p95 = scmp.ne.s32.totalorder %s87, %s90
    %p96 = scmp.eq.s32.totalorder %s11, 0
    %p97 = por %p95, %p96
    %p98 = scmp.ne.s32.totalorder %s87, %s90
    %p99 = scmp.eq.s32.totalorder %s16, 3
    %p100 = por %p98, %p99
    %p101 = scmp.ne.s32.totalorder %s90, %s91
    %p102 = scmp.eq.s32.totalorder %s16, 0
    %p103 = por %p101, %p102
    %p104 = scmp.ne.s32.totalorder %s90, %s91
    %p105 = scmp.eq.s32.totalorder %s17, 3
    %p106 = por %p104, %p105
    %p108 = scmp.ne.s32.totalorder %s91, %s107
    %p109 = scmp.eq.s32.totalorder %s17, 0
    %p110 = por %p108, %p109
    %s112 = sadd.s32 %s111, 1
    %p115 = scmp.eq.s32.totalorder %s11, 3
    %p116 = scmp.ne.s32.totalorder %s111, %s113
    %p117 = scmp.eq.s32.totalorder %s11, 0
    %p118 = por %p116, %p117
    %p119 = scmp.ne.s32.totalorder %s111, %s113
    %p120 = scmp.eq.s32.totalorder %s16, 3
    %p121 = por %p119, %p120
    %p122 = scmp.ne.s32.totalorder %s113, %s114
    %p123 = scmp.eq.s32.totalorder %s16, 0
    %p124 = por %p122, %p123
    %p125 = scmp.ne.s32.totalorder %s113, %s114
    %p126 = scmp.eq.s32.totalorder %s17, 3
    %p127 = por %p125, %p126
    %p129 = scmp.ne.s32.totalorder %s114, %s128
    %p130 = scmp.eq.s32.totalorder %s17, 0
    %p131 = por %p129, %p130
    %s133 = sadd.s32 %s132, 1
    %p136 = scmp.eq.s32.totalorder %s11, 3
    %p137 = scmp.ne.s32.totalorder %s132, %s134
    %p138 = scmp.eq.s32.totalorder %s11, 0
    %p139 = por %p137, %p138
    %p140 = scmp.ne.s32.totalorder %s132, %s134
    %p141 = scmp.eq.s32.totalorder %s16, 3
    %p142 = por %p140, %p141
    %p143 = scmp.ne.s32.totalorder %s134, %s135
    %p144 = scmp.eq.s32.totalorder %s16, 0
    %p145 = por %p143, %p144
    %p146 = scmp.ne.s32.totalorder %s134, %s135
    %p147 = scmp.eq.s32.totalorder %s17, 3
    %p148 = por %p146, %p147
    %p150 = scmp.ne.s32.totalorder %s135, %s149
    %p151 = scmp.eq.s32.totalorder %s17, 0
    %p152 = por %p150, %p151
    %p153 = scmp.le.s32.totalorder 1, %s11
    %p154 = scmp.lt.s32.totalorder %s11, 5
    %p155 = pnand %p153, %p154
    %p156 = pneg %p155
    // Predicated region
    $region9: #{generator_forward.15} parent=5 // pred_check
      _
    $region10: #{generator_forward.15} parent=5 // pred_check_branch
      %158 = sbr.rel (%p155) target = $region12
    $region11: #{generator_forward.15} parent=5 // pred_region
      %s159 = ssub.s32 %s11, 1
      // Predicated region
      $region13: #{generator_forward.15} parent=11 // pred_check
        %p160 = pneg %p77
      $region14: #{generator_forward.15} parent=11 // pred_check_branch
        %162 = sbr.rel (%p160) target = $region16
      $region15: #{generator_forward.15} parent=11 // pred_region
        %s163 = smul.u32 32, %s21
        %p164 = scmp.lt.s32.totalorder %s163, 31
        %s165 = scalar_select %p164, %s163, 31
        %s166 = smul.addr %s165, 8
        %s167 = scalar_lea.vmem %s1, %s166
        %s168 = smul.u32 32, %s21
      $region16: #{generator_forward.15} parent=11 // pred_fallthru
        _
    $region12: #{generator_forward.15} parent=5 // pred_fallthru
      _
    %p169 = scmp.lt.s32.totalorder %s11, 4
    // Predicated region
    $region17: #{generator_forward.15} parent=5 // pred_check
      %p170 = pneg %p169
    $region18: #{generator_forward.15} parent=5 // pred_check_branch
      %172 = sbr.rel (%p170) target = $region20
    $region19: #{generator_forward.15} parent=5 // pred_region
      // Predicated region
      $region21: #{generator_forward.15} parent=19 // pred_check
        %p173 = pneg %p45
      $region22: #{generator_forward.15} parent=19 // pred_check_branch
        %175 = sbr.rel (%p173) target = $region24
      $region23: #{generator_forward.15} parent=19 // pred_region
        %s176 = smul.u32 64, %s18
        %s177 = smul.u32 2, %s19
        %p178 = scmp.lt.s32.totalorder %s176, 255
        %s179 = scalar_select %p178, %s176, 255
        %p180 = scmp.lt.s32.totalorder %s177, 1
        %s181 = scalar_select %p180, %s177, 1
        %s182 = smul.addr %s179, 2
        %s183 = sadd.s32 %s181, %s182
        %s184 = smul.addr %s183, 8
        %s185 = scalar_lea.vmem %s0, %s184
        %s186 = smul.u32 64, %s18
        %s187 = smul.u32 2, %s19
      $region24: #{generator_forward.15} parent=19 // pred_fallthru
        _
    $region20: #{generator_forward.15} parent=5 // pred_fallthru
      _
    %p188 = scmp.le.s32.totalorder 1, %s11
    %p189 = scmp.lt.s32.totalorder %s11, 5
    %p190 = pnand %p188, %p189
    %p191 = pneg %p190
    // Predicated region
    $region25: #{generator_forward.15} parent=5 // pred_check
      _
    $region26: #{generator_forward.15} parent=5 // pred_check_branch
      %193 = sbr.rel (%p190) target = $region28
    $region27: #{generator_forward.15} parent=5 // pred_region
      %s194 = ssub.s32 %s11, 1
      %s195 = smul.u32 64, %s20
      %s196 = smul.u32 2, %s21
      %p197 = scmp.lt.s32.totalorder %s195, 255
      %s198 = scalar_select %p197, %s195, 255
      %p199 = scmp.lt.s32.totalorder %s196, 1
      %s200 = scalar_select %p199, %s196, 1
      %s201 = smul.addr %s198, 2
      %s202 = sadd.s32 %s200, %s201
      %s203 = smul.addr %s202, 8
      %s204 = scalar_lea.vmem %s0, %s203
      %p205 = pneg %p51
      %p206 = pneg %p48
      %s207 = smul.u32 32, %s21
      %p208 = scmp.lt.s32.totalorder %s207, 31
      %s209 = scalar_select %p208, %s207, 31
      %s210 = smul.addr %s209, 8
      %s211 = scalar_lea.vmem %s1, %s210
      %p212 = pneg %p77
      %p213 = pneg %p74
      %p214 = pneg %p103
      %p215 = pneg %p100
      %s216 = smul.u32 64, %s20
      %p217 = scmp.lt.s32.totalorder %s216, 255
      %s218 = scalar_select %p217, %s216, 255
      %s219 = smul.addr %s218, 8
      %s220 = scalar_lea.vmem %s2, %s219
      %p221 = pneg %p124
      %p222 = pneg %p121
      %p223 = pneg %p145
      %p224 = pneg %p142
      %s225 = smul.u32 64, %s20
      %s226 = smul.u32 2, %s21
      %p227 = scmp.lt.s32.totalorder %s225, 255
      %s228 = scalar_select %p227, %s225, 255
      %p229 = scmp.lt.s32.totalorder %s226, 1
      %s230 = scalar_select %p229, %s226, 1
      %s231 = smul.addr %s228, 2
      %s232 = sadd.s32 %s230, %s231
      %s233 = smul.addr %s232, 8
      %s234 = scalar_lea.vmem %s0, %s233
      %s235 = smul.u32 64, %s20
      %s236 = smul.u32 2, %s21
      %s237 = smul.u32 32, %s21
      %p238 = scmp.lt.s32.totalorder %s237, 31
      %s239 = scalar_select %p238, %s237, 31
      %s240 = smul.addr %s239, 8
      %s241 = scalar_lea.vmem %s1, %s240
      %s242 = smul.u32 32, %s21
      %s243 = smul.u32 64, %s20
      %p244 = scmp.lt.s32.totalorder %s243, 255
      %s245 = scalar_select %p244, %s243, 255
      %s246 = smul.addr %s245, 8
      %s247 = scalar_lea.vmem %s2, %s246
      %s248 = smul.u32 64, %s20
      %p249 = scmp.eq.s32.totalorder %s20, 0
      %p250 = scmp.eq.s32.totalorder %s21, 0
      %p251 = pnand %p249, %p250
      %p252 = pneg %p251
      // Predicated region
      $region29: #{generator_forward.15} parent=27 // pred_check
        _
      $region30: #{generator_forward.15} parent=27 // pred_check_branch
        %254 = sbr.rel (%p251) target = $region32
      $region31: #{generator_forward.15} parent=27 // pred_region
        %255 = vst [vmem:[%s3] sm:$0x1] 0.0
        %256 = vst [vmem:[%s4] sm:$0x1] 0.0
      $region32: #{generator_forward.15} parent=27 // pred_fallthru
        _
      // Predicated region
      $region33: #{generator_forward.15} parent=27 // pred_check
        %p257 = pneg %p250
      $region34: #{generator_forward.15} parent=27 // pred_check_branch
        %259 = sbr.rel (%p257) target = $region36
      $region35: #{generator_forward.15} parent=27 // pred_region
        %260 = vst [vmem:[#allocation2] sm:$0xff] 0.0
        %261 = vst [vmem:[#allocation2 + $0x8] sm:$0xff] 0.0
        %262 = vst [vmem:[#allocation2 + $0x10] sm:$0xff] 0.0
        %263 = vst [vmem:[#allocation2 + $0x18] sm:$0xff] 0.0
        %264 = vst [vmem:[#allocation2 + $0x20] sm:$0xff] 0.0
        %265 = vst [vmem:[#allocation2 + $0x28] sm:$0xff] 0.0
        %266 = vst [vmem:[#allocation2 + $0x30] sm:$0xff] 0.0
        %267 = vst [vmem:[#allocation2 + $0x38] sm:$0xff] 0.0
        %268 = vst [vmem:[#allocation2 + $0x40] sm:$0xff] 0.0
        %269 = vst [vmem:[#allocation2 + $0x48] sm:$0xff] 0.0
        %270 = vst [vmem:[#allocation2 + $0x50] sm:$0xff] 0.0
        %271 = vst [vmem:[#allocation2 + $0x58] sm:$0xff] 0.0
        %272 = vst [vmem:[#allocation2 + $0x60] sm:$0xff] 0.0
        %273 = vst [vmem:[#allocation2 + $0x68] sm:$0xff] 0.0
        %274 = vst [vmem:[#allocation2 + $0x70] sm:$0xff] 0.0
        %275 = vst [vmem:[#allocation2 + $0x78] sm:$0xff] 0.0
        %276 = vst [vmem:[#allocation2 + $0x80] sm:$0xff] 0.0
        %277 = vst [vmem:[#allocation2 + $0x88] sm:$0xff] 0.0
        %278 = vst [vmem:[#allocation2 + $0x90] sm:$0xff] 0.0
        %279 = vst [vmem:[#allocation2 + $0x98] sm:$0xff] 0.0
        %280 = vst [vmem:[#allocation2 + $0xa0] sm:$0xff] 0.0
        %281 = vst [vmem:[#allocation2 + $0xa8] sm:$0xff] 0.0
        %282 = vst [vmem:[#allocation2 + $0xb0] sm:$0xff] 0.0
        %283 = vst [vmem:[#allocation2 + $0xb8] sm:$0xff] 0.0
        %284 = vst [vmem:[#allocation2 + $0xc0] sm:$0xff] 0.0
        %285 = vst [vmem:[#allocation2 + $0xc8] sm:$0xff] 0.0
        %286 = vst [vmem:[#allocation2 + $0xd0] sm:$0xff] 0.0
        %287 = vst [vmem:[#allocation2 + $0xd8] sm:$0xff] 0.0
        %288 = vst [vmem:[#allocation2 + $0xe0] sm:$0xff] 0.0
        %289 = vst [vmem:[#allocation2 + $0xe8] sm:$0xff] 0.0
        %290 = vst [vmem:[#allocation2 + $0xf0] sm:$0xff] 0.0
        %291 = vst [vmem:[#allocation2 + $0xf8] sm:$0xff] 0.0
        %292 = vst [vmem:[#allocation2 + $0x100] sm:$0xff] 0.0
        %293 = vst [vmem:[#allocation2 + $0x108] sm:$0xff] 0.0
        %294 = vst [vmem:[#allocation2 + $0x110] sm:$0xff] 0.0
        %295 = vst [vmem:[#allocation2 + $0x118] sm:$0xff] 0.0
        %296 = vst [vmem:[#allocation2 + $0x120] sm:$0xff] 0.0
        %297 = vst [vmem:[#allocation2 + $0x128] sm:$0xff] 0.0
        %298 = vst [vmem:[#allocation2 + $0x130] sm:$0xff] 0.0
        %299 = vst [vmem:[#allocation2 + $0x138] sm:$0xff] 0.0
        %300 = vst [vmem:[#allocation2 + $0x140] sm:$0xff] 0.0
        %301 = vst [vmem:[#allocation2 + $0x148] sm:$0xff] 0.0
        %302 = vst [vmem:[#allocation2 + $0x150] sm:$0xff] 0.0
        %303 = vst [vmem:[#allocation2 + $0x158] sm:$0xff] 0.0
        %304 = vst [vmem:[#allocation2 + $0x160] sm:$0xff] 0.0
        %305 = vst [vmem:[#allocation2 + $0x168] sm:$0xff] 0.0
        %306 = vst [vmem:[#allocation2 + $0x170] sm:$0xff] 0.0
        %307 = vst [vmem:[#allocation2 + $0x178] sm:$0xff] 0.0
        %308 = vst [vmem:[#allocation2 + $0x180] sm:$0xff] 0.0
        %309 = vst [vmem:[#allocation2 + $0x188] sm:$0xff] 0.0
        %310 = vst [vmem:[#allocation2 + $0x190] sm:$0xff] 0.0
        %311 = vst [vmem:[#allocation2 + $0x198] sm:$0xff] 0.0
        %312 = vst [vmem:[#allocation2 + $0x1a0] sm:$0xff] 0.0
        %313 = vst [vmem:[#allocation2 + $0x1a8] sm:$0xff] 0.0
        %314 = vst [vmem:[#allocation2 + $0x1b0] sm:$0xff] 0.0
        %315 = vst [vmem:[#allocation2 + $0x1b8] sm:$0xff] 0.0
        %316 = vst [vmem:[#allocation2 + $0x1c0] sm:$0xff] 0.0
        %317 = vst [vmem:[#allocation2 + $0x1c8] sm:$0xff] 0.0
        %318 = vst [vmem:[#allocation2 + $0x1d0] sm:$0xff] 0.0
        %319 = vst [vmem:[#allocation2 + $0x1d8] sm:$0xff] 0.0
        %320 = vst [vmem:[#allocation2 + $0x1e0] sm:$0xff] 0.0
        %321 = vst [vmem:[#allocation2 + $0x1e8] sm:$0xff] 0.0
        %322 = vst [vmem:[#allocation2 + $0x1f0] sm:$0xff] 0.0
        %323 = vst [vmem:[#allocation2 + $0x1f8] sm:$0xff] 0.0
      $region36: #{generator_forward.15} parent=27 // pred_fallthru
        _
      %v324 = vld [vmem:[#allocation2] sm:$0xff]
      %v325 = vld [vmem:[#allocation2 + $0x8] sm:$0xff]
      %v326 = vld [vmem:[#allocation2 + $0x10] sm:$0xff]
      %v327 = vld [vmem:[#allocation2 + $0x18] sm:$0xff]
      %v328 = vld [vmem:[#allocation2 + $0x20] sm:$0xff]
      %v329 = vld [vmem:[#allocation2 + $0x28] sm:$0xff]
      %v330 = vld [vmem:[#allocation2 + $0x30] sm:$0xff]
      %v331 = vld [vmem:[#allocation2 + $0x38] sm:$0xff]
      %v332 = vld [vmem:[#allocation2 + $0x40] sm:$0xff]
      %v333 = vld [vmem:[#allocation2 + $0x48] sm:$0xff]
      %v334 = vld [vmem:[#allocation2 + $0x50] sm:$0xff]
      %v335 = vld [vmem:[#allocation2 + $0x58] sm:$0xff]
      %v336 = vld [vmem:[#allocation2 + $0x60] sm:$0xff]
      %v337 = vld [vmem:[#allocation2 + $0x68] sm:$0xff]
      %v338 = vld [vmem:[#allocation2 + $0x70] sm:$0xff]
      %v339 = vld [vmem:[#allocation2 + $0x78] sm:$0xff]
      %v340 = vld [vmem:[#allocation2 + $0x80] sm:$0xff]
      %v341 = vld [vmem:[#allocation2 + $0x88] sm:$0xff]
      %v342 = vld [vmem:[#allocation2 + $0x90] sm:$0xff]
      %v343 = vld [vmem:[#allocation2 + $0x98] sm:$0xff]
      %v344 = vld [vmem:[#allocation2 + $0xa0] sm:$0xff]
      %v345 = vld [vmem:[#allocation2 + $0xa8] sm:$0xff]
      %v346 = vld [vmem:[#allocation2 + $0xb0] sm:$0xff]
      %v347 = vld [vmem:[#allocation2 + $0xb8] sm:$0xff]
      %v348 = vld [vmem:[#allocation2 + $0xc0] sm:$0xff]
      %v349 = vld [vmem:[#allocation2 + $0xc8] sm:$0xff]
      %v350 = vld [vmem:[#allocation2 + $0xd0] sm:$0xff]
      %v351 = vld [vmem:[#allocation2 + $0xd8] sm:$0xff]
      %v352 = vld [vmem:[#allocation2 + $0xe0] sm:$0xff]
      %v353 = vld [vmem:[#allocation2 + $0xe8] sm:$0xff]
      %v354 = vld [vmem:[#allocation2 + $0xf0] sm:$0xff]
      %v355 = vld [vmem:[#allocation2 + $0xf8] sm:$0xff]
      %v356 = vld [vmem:[#allocation2 + $0x100] sm:$0xff]
      %v357 = vld [vmem:[#allocation2 + $0x108] sm:$0xff]
      %v358 = vld [vmem:[#allocation2 + $0x110] sm:$0xff]
      %v359 = vld [vmem:[#allocation2 + $0x118] sm:$0xff]
      %v360 = vld [vmem:[#allocation2 + $0x120] sm:$0xff]
      %v361 = vld [vmem:[#allocation2 + $0x128] sm:$0xff]
      %v362 = vld [vmem:[#allocation2 + $0x130] sm:$0xff]
      %v363 = vld [vmem:[#allocation2 + $0x138] sm:$0xff]
      %v364 = vld [vmem:[#allocation2 + $0x140] sm:$0xff]
      %v365 = vld [vmem:[#allocation2 + $0x148] sm:$0xff]
      %v366 = vld [vmem:[#allocation2 + $0x150] sm:$0xff]
      %v367 = vld [vmem:[#allocation2 + $0x158] sm:$0xff]
      %v368 = vld [vmem:[#allocation2 + $0x160] sm:$0xff]
      %v369 = vld [vmem:[#allocation2 + $0x168] sm:$0xff]
      %v370 = vld [vmem:[#allocation2 + $0x170] sm:$0xff]
      %v371 = vld [vmem:[#allocation2 + $0x178] sm:$0xff]
      %v372 = vld [vmem:[#allocation2 + $0x180] sm:$0xff]
      %v373 = vld [vmem:[#allocation2 + $0x188] sm:$0xff]
      %v374 = vld [vmem:[#allocation2 + $0x190] sm:$0xff]
      %v375 = vld [vmem:[#allocation2 + $0x198] sm:$0xff]
      %v376 = vld [vmem:[#allocation2 + $0x1a0] sm:$0xff]
      %v377 = vld [vmem:[#allocation2 + $0x1a8] sm:$0xff]
      %v378 = vld [vmem:[#allocation2 + $0x1b0] sm:$0xff]
      %v379 = vld [vmem:[#allocation2 + $0x1b8] sm:$0xff]
      %v380 = vld [vmem:[#allocation2 + $0x1c0] sm:$0xff]
      %v381 = vld [vmem:[#allocation2 + $0x1c8] sm:$0xff]
      %v382 = vld [vmem:[#allocation2 + $0x1d0] sm:$0xff]
      %v383 = vld [vmem:[#allocation2 + $0x1d8] sm:$0xff]
      %v384 = vld [vmem:[#allocation2 + $0x1e0] sm:$0xff]
      %v385 = vld [vmem:[#allocation2 + $0x1e8] sm:$0xff]
      %v386 = vld [vmem:[#allocation2 + $0x1f0] sm:$0xff]
      %v387 = vld [vmem:[#allocation2 + $0x1f8] sm:$0xff]
      %v388 = vld [vmem:[%s234] sm:$0xff]
      %v389 = vld [vmem:[%s234 + $0x8] sm:$0xff]
      %v390 = vld [vmem:[%s234 + $0x10] sm:$0xff]
      %v391 = vld [vmem:[%s234 + $0x18] sm:$0xff]
      %v392 = vld [vmem:[%s234 + $0x20] sm:$0xff]
      %v393 = vld [vmem:[%s234 + $0x28] sm:$0xff]
      %v394 = vld [vmem:[%s234 + $0x30] sm:$0xff]
      %v395 = vld [vmem:[%s234 + $0x38] sm:$0xff]
      %v396 = vld [vmem:[%s234 + $0x40] sm:$0xff]
      %v397 = vld [vmem:[%s234 + $0x48] sm:$0xff]
      %v398 = vld [vmem:[%s234 + $0x50] sm:$0xff]
      %v399 = vld [vmem:[%s234 + $0x58] sm:$0xff]
      %v400 = vld [vmem:[%s234 + $0x60] sm:$0xff]
      %v401 = vld [vmem:[%s234 + $0x68] sm:$0xff]
      %v402 = vld [vmem:[%s234 + $0x70] sm:$0xff]
      %v403 = vld [vmem:[%s234 + $0x78] sm:$0xff]
      %v404 = vld [vmem:[%s234 + $0x80] sm:$0xff]
      %v405 = vld [vmem:[%s234 + $0x88] sm:$0xff]
      %v406 = vld [vmem:[%s234 + $0x90] sm:$0xff]
      %v407 = vld [vmem:[%s234 + $0x98] sm:$0xff]
      %v408 = vld [vmem:[%s234 + $0xa0] sm:$0xff]
      %v409 = vld [vmem:[%s234 + $0xa8] sm:$0xff]
      %v410 = vld [vmem:[%s234 + $0xb0] sm:$0xff]
      %v411 = vld [vmem:[%s234 + $0xb8] sm:$0xff]
      %v412 = vld [vmem:[%s234 + $0xc0] sm:$0xff]
      %v413 = vld [vmem:[%s234 + $0xc8] sm:$0xff]
      %v414 = vld [vmem:[%s234 + $0xd0] sm:$0xff]
      %v415 = vld [vmem:[%s234 + $0xd8] sm:$0xff]
      %v416 = vld [vmem:[%s234 + $0xe0] sm:$0xff]
      %v417 = vld [vmem:[%s234 + $0xe8] sm:$0xff]
      %v418 = vld [vmem:[%s234 + $0xf0] sm:$0xff]
      %v419 = vld [vmem:[%s234 + $0xf8] sm:$0xff]
      %v420 = vld [vmem:[%s234 + $0x100] sm:$0xff]
      %v421 = vld [vmem:[%s234 + $0x108] sm:$0xff]
      %v422 = vld [vmem:[%s234 + $0x110] sm:$0xff]
      %v423 = vld [vmem:[%s234 + $0x118] sm:$0xff]
      %v424 = vld [vmem:[%s234 + $0x120] sm:$0xff]
      %v425 = vld [vmem:[%s234 + $0x128] sm:$0xff]
      %v426 = vld [vmem:[%s234 + $0x130] sm:$0xff]
      %v427 = vld [vmem:[%s234 + $0x138] sm:$0xff]
      %v428 = vld [vmem:[%s234 + $0x140] sm:$0xff]
      %v429 = vld [vmem:[%s234 + $0x148] sm:$0xff]
      %v430 = vld [vmem:[%s234 + $0x150] sm:$0xff]
      %v431 = vld [vmem:[%s234 + $0x158] sm:$0xff]
      %v432 = vld [vmem:[%s234 + $0x160] sm:$0xff]
      %v433 = vld [vmem:[%s234 + $0x168] sm:$0xff]
      %v434 = vld [vmem:[%s234 + $0x170] sm:$0xff]
      %v435 = vld [vmem:[%s234 + $0x178] sm:$0xff]
      %v436 = vld [vmem:[%s234 + $0x180] sm:$0xff]
      %v437 = vld [vmem:[%s234 + $0x188] sm:$0xff]
      %v438 = vld [vmem:[%s234 + $0x190] sm:$0xff]
      %v439 = vld [vmem:[%s234 + $0x198] sm:$0xff]
      %v440 = vld [vmem:[%s234 + $0x1a0] sm:$0xff]
      %v441 = vld [vmem:[%s234 + $0x1a8] sm:$0xff]
      %v442 = vld [vmem:[%s234 + $0x1b0] sm:$0xff]
      %v443 = vld [vmem:[%s234 + $0x1b8] sm:$0xff]
      %v444 = vld [vmem:[%s234 + $0x1c0] sm:$0xff]
      %v445 = vld [vmem:[%s234 + $0x1c8] sm:$0xff]
      %v446 = vld [vmem:[%s234 + $0x1d0] sm:$0xff]
      %v447 = vld [vmem:[%s234 + $0x1d8] sm:$0xff]
      %v448 = vld [vmem:[%s234 + $0x1e0] sm:$0xff]
      %v449 = vld [vmem:[%s234 + $0x1e8] sm:$0xff]
      %v450 = vld [vmem:[%s234 + $0x1f0] sm:$0xff]
      %v451 = vld [vmem:[%s234 + $0x1f8] sm:$0xff]
      %v452 = vld [vmem:[%s234 + $0x200] sm:$0xff]
      %v453 = vld [vmem:[%s234 + $0x208] sm:$0xff]
      %v454 = vld [vmem:[%s234 + $0x210] sm:$0xff]
      %v455 = vld [vmem:[%s234 + $0x218] sm:$0xff]
      %v456 = vld [vmem:[%s234 + $0x220] sm:$0xff]
      %v457 = vld [vmem:[%s234 + $0x228] sm:$0xff]
      %v458 = vld [vmem:[%s234 + $0x230] sm:$0xff]
      %v459 = vld [vmem:[%s234 + $0x238] sm:$0xff]
      %v460 = vld [vmem:[%s234 + $0x240] sm:$0xff]
      %v461 = vld [vmem:[%s234 + $0x248] sm:$0xff]
      %v462 = vld [vmem:[%s234 + $0x250] sm:$0xff]
      %v463 = vld [vmem:[%s234 + $0x258] sm:$0xff]
      %v464 = vld [vmem:[%s234 + $0x260] sm:$0xff]
      %v465 = vld [vmem:[%s234 + $0x268] sm:$0xff]
      %v466 = vld [vmem:[%s234 + $0x270] sm:$0xff]
      %v467 = vld [vmem:[%s234 + $0x278] sm:$0xff]
      %v468 = vld [vmem:[%s234 + $0x280] sm:$0xff]
      %v469 = vld [vmem:[%s234 + $0x288] sm:$0xff]
      %v470 = vld [vmem:[%s234 + $0x290] sm:$0xff]
      %v471 = vld [vmem:[%s234 + $0x298] sm:$0xff]
      %v472 = vld [vmem:[%s234 + $0x2a0] sm:$0xff]
      %v473 = vld [vmem:[%s234 + $0x2a8] sm:$0xff]
      %v474 = vld [vmem:[%s234 + $0x2b0] sm:$0xff]
      %v475 = vld [vmem:[%s234 + $0x2b8] sm:$0xff]
      %v476 = vld [vmem:[%s234 + $0x2c0] sm:$0xff]
      %v477 = vld [vmem:[%s234 + $0x2c8] sm:$0xff]
      %v478 = vld [vmem:[%s234 + $0x2d0] sm:$0xff]
      %v479 = vld [vmem:[%s234 + $0x2d8] sm:$0xff]
      %v480 = vld [vmem:[%s234 + $0x2e0] sm:$0xff]
      %v481 = vld [vmem:[%s234 + $0x2e8] sm:$0xff]
      %v482 = vld [vmem:[%s234 + $0x2f0] sm:$0xff]
      %v483 = vld [vmem:[%s234 + $0x2f8] sm:$0xff]
      %v484 = vld [vmem:[%s234 + $0x300] sm:$0xff]
      %v485 = vld [vmem:[%s234 + $0x308] sm:$0xff]
      %v486 = vld [vmem:[%s234 + $0x310] sm:$0xff]
      %v487 = vld [vmem:[%s234 + $0x318] sm:$0xff]
      %v488 = vld [vmem:[%s234 + $0x320] sm:$0xff]
      %v489 = vld [vmem:[%s234 + $0x328] sm:$0xff]
      %v490 = vld [vmem:[%s234 + $0x330] sm:$0xff]
      %v491 = vld [vmem:[%s234 + $0x338] sm:$0xff]
      %v492 = vld [vmem:[%s234 + $0x340] sm:$0xff]
      %v493 = vld [vmem:[%s234 + $0x348] sm:$0xff]
      %v494 = vld [vmem:[%s234 + $0x350] sm:$0xff]
      %v495 = vld [vmem:[%s234 + $0x358] sm:$0xff]
      %v496 = vld [vmem:[%s234 + $0x360] sm:$0xff]
      %v497 = vld [vmem:[%s234 + $0x368] sm:$0xff]
      %v498 = vld [vmem:[%s234 + $0x370] sm:$0xff]
      %v499 = vld [vmem:[%s234 + $0x378] sm:$0xff]
      %v500 = vld [vmem:[%s234 + $0x380] sm:$0xff]
      %v501 = vld [vmem:[%s234 + $0x388] sm:$0xff]
      %v502 = vld [vmem:[%s234 + $0x390] sm:$0xff]
      %v503 = vld [vmem:[%s234 + $0x398] sm:$0xff]
      %v504 = vld [vmem:[%s234 + $0x3a0] sm:$0xff]
      %v505 = vld [vmem:[%s234 + $0x3a8] sm:$0xff]
      %v506 = vld [vmem:[%s234 + $0x3b0] sm:$0xff]
      %v507 = vld [vmem:[%s234 + $0x3b8] sm:$0xff]
      %v508 = vld [vmem:[%s234 + $0x3c0] sm:$0xff]
      %v509 = vld [vmem:[%s234 + $0x3c8] sm:$0xff]
      %v510 = vld [vmem:[%s234 + $0x3d0] sm:$0xff]
      %v511 = vld [vmem:[%s234 + $0x3d8] sm:$0xff]
      %v512 = vld [vmem:[%s234 + $0x3e0] sm:$0xff]
      %v513 = vld [vmem:[%s234 + $0x3e8] sm:$0xff]
      %v514 = vld [vmem:[%s234 + $0x3f0] sm:$0xff]
      %v515 = vld [vmem:[%s234 + $0x3f8] sm:$0xff]
      %v516 = vld [vmem:[%s241] sm:$0xff]
      %v517 = vld [vmem:[%s241 + $0x8] sm:$0xff]
      %v518 = vld [vmem:[%s241 + $0x10] sm:$0xff]
      %v519 = vld [vmem:[%s241 + $0x18] sm:$0xff]
      %v520 = vld [vmem:[%s241 + $0x20] sm:$0xff]
      %v521 = vld [vmem:[%s241 + $0x28] sm:$0xff]
      %v522 = vld [vmem:[%s241 + $0x30] sm:$0xff]
      %v523 = vld [vmem:[%s241 + $0x38] sm:$0xff]
      %v524 = vld [vmem:[%s241 + $0x40] sm:$0xff]
      %v525 = vld [vmem:[%s241 + $0x48] sm:$0xff]
      %v526 = vld [vmem:[%s241 + $0x50] sm:$0xff]
      %v527 = vld [vmem:[%s241 + $0x58] sm:$0xff]
      %v528 = vld [vmem:[%s241 + $0x60] sm:$0xff]
      %v529 = vld [vmem:[%s241 + $0x68] sm:$0xff]
      %v530 = vld [vmem:[%s241 + $0x70] sm:$0xff]
      %v531 = vld [vmem:[%s241 + $0x78] sm:$0xff]
      %v532 = vld [vmem:[%s241 + $0x80] sm:$0xff]
      %v533 = vld [vmem:[%s241 + $0x88] sm:$0xff]
      %v534 = vld [vmem:[%s241 + $0x90] sm:$0xff]
      %v535 = vld [vmem:[%s241 + $0x98] sm:$0xff]
      %v536 = vld [vmem:[%s241 + $0xa0] sm:$0xff]
      %v537 = vld [vmem:[%s241 + $0xa8] sm:$0xff]
      %v538 = vld [vmem:[%s241 + $0xb0] sm:$0xff]
      %v539 = vld [vmem:[%s241 + $0xb8] sm:$0xff]
      %v540 = vld [vmem:[%s241 + $0xc0] sm:$0xff]
      %v541 = vld [vmem:[%s241 + $0xc8] sm:$0xff]
      %v542 = vld [vmem:[%s241 + $0xd0] sm:$0xff]
      %v543 = vld [vmem:[%s241 + $0xd8] sm:$0xff]
      %v544 = vld [vmem:[%s241 + $0xe0] sm:$0xff]
      %v545 = vld [vmem:[%s241 + $0xe8] sm:$0xff]
      %v546 = vld [vmem:[%s241 + $0xf0] sm:$0xff]
      %v547 = vld [vmem:[%s241 + $0xf8] sm:$0xff]
      %548 = vmatpush.msra.mxu0 %v531
      %549 = vmatpush.msra.mxu0 %v530
      %550 = vmatpush.msra.mxu0 %v529
      %551 = vmatpush.msra.mxu0 %v528
      %552 = vmatpush.msra.mxu0 %v527
      %553 = vmatpush.msra.mxu0 %v526
      %554 = vmatpush.msra.mxu0 %v525
      %555 = vmatpush.msra.mxu0 %v524
      %556 = vmatpush.msra.mxu0 %v523
      %557 = vmatpush.msra.mxu0 %v522
      %558 = vmatpush.msra.mxu0 %v521
      %559 = vmatpush.msra.mxu0 %v520
      %560 = vmatpush.msra.mxu0 %v519
      %561 = vmatpush.msra.mxu0 %v518
      %562 = vmatpush.msra.mxu0 %v517
      %563 = vmatpush.msra.mxu0 %v516
      %564 = vmatmul.f32.gmra.mxu0 %v388
      %v565 = vpop.f32.mrf.mxu0
      %v566 = vadd.f32 0.0, %v565
      %567 = vmatmul.f32.gmra.mxu0 %v390
      %v568 = vpop.f32.mrf.mxu0
      %v569 = vadd.f32 0.0, %v568
      %570 = vmatmul.f32.gmra.mxu0 %v392
      %v571 = vpop.f32.mrf.mxu0
      %v572 = vadd.f32 0.0, %v571
      %573 = vmatmul.f32.gmra.mxu0 %v394
      %v574 = vpop.f32.mrf.mxu0
      %v575 = vadd.f32 0.0, %v574
      %576 = vmatmul.f32.gmra.mxu0 %v396
      %v577 = vpop.f32.mrf.mxu0
      %v578 = vadd.f32 0.0, %v577
      %579 = vmatmul.f32.gmra.mxu0 %v398
      %v580 = vpop.f32.mrf.mxu0
      %v581 = vadd.f32 0.0, %v580
      %582 = vmatmul.f32.gmra.mxu0 %v400
      %v583 = vpop.f32.mrf.mxu0
      %v584 = vadd.f32 0.0, %v583
      %585 = vmatmul.f32.gmra.mxu0 %v402
      %v586 = vpop.f32.mrf.mxu0
      %v587 = vadd.f32 0.0, %v586
      %588 = vmatmul.f32.gmra.mxu0 %v404
      %v589 = vpop.f32.mrf.mxu0
      %v590 = vadd.f32 0.0, %v589
      %591 = vmatmul.f32.gmra.mxu0 %v406
      %v592 = vpop.f32.mrf.mxu0
      %v593 = vadd.f32 0.0, %v592
      %594 = vmatmul.f32.gmra.mxu0 %v408
      %v595 = vpop.f32.mrf.mxu0
      %v596 = vadd.f32 0.0, %v595
      %597 = vmatmul.f32.gmra.mxu0 %v410
      %v598 = vpop.f32.mrf.mxu0
      %v599 = vadd.f32 0.0, %v598
      %600 = vmatmul.f32.gmra.mxu0 %v412
      %v601 = vpop.f32.mrf.mxu0
      %v602 = vadd.f32 0.0, %v601
      %603 = vmatmul.f32.gmra.mxu0 %v414
      %v604 = vpop.f32.mrf.mxu0
      %v605 = vadd.f32 0.0, %v604
      %606 = vmatmul.f32.gmra.mxu0 %v416
      %v607 = vpop.f32.mrf.mxu0
      %v608 = vadd.f32 0.0, %v607
      %609 = vmatmul.f32.gmra.mxu0 %v418
      %v610 = vpop.f32.mrf.mxu0
      %v611 = vadd.f32 0.0, %v610
      %612 = vmatmul.f32.gmra.mxu0 %v420
      %v613 = vpop.f32.mrf.mxu0
      %v614 = vadd.f32 0.0, %v613
      %615 = vmatmul.f32.gmra.mxu0 %v422
      %v616 = vpop.f32.mrf.mxu0
      %v617 = vadd.f32 0.0, %v616
      %618 = vmatmul.f32.gmra.mxu0 %v424
      %v619 = vpop.f32.mrf.mxu0
      %v620 = vadd.f32 0.0, %v619
      %621 = vmatmul.f32.gmra.mxu0 %v426
      %v622 = vpop.f32.mrf.mxu0
      %v623 = vadd.f32 0.0, %v622
      %624 = vmatmul.f32.gmra.mxu0 %v428
      %v625 = vpop.f32.mrf.mxu0
      %v626 = vadd.f32 0.0, %v625
      %627 = vmatmul.f32.gmra.mxu0 %v430
      %v628 = vpop.f32.mrf.mxu0
      %v629 = vadd.f32 0.0, %v628
      %630 = vmatmul.f32.gmra.mxu0 %v432
      %v631 = vpop.f32.mrf.mxu0
      %v632 = vadd.f32 0.0, %v631
      %633 = vmatmul.f32.gmra.mxu0 %v434
      %v634 = vpop.f32.mrf.mxu0
      %v635 = vadd.f32 0.0, %v634
      %636 = vmatmul.f32.gmra.mxu0 %v436
      %v637 = vpop.f32.mrf.mxu0
      %v638 = vadd.f32 0.0, %v637
      %639 = vmatmul.f32.gmra.mxu0 %v438
      %v640 = vpop.f32.mrf.mxu0
      %v641 = vadd.f32 0.0, %v640
      %642 = vmatmul.f32.gmra.mxu0 %v440
      %v643 = vpop.f32.mrf.mxu0
      %v644 = vadd.f32 0.0, %v643
      %645 = vmatmul.f32.gmra.mxu0 %v442
      %v646 = vpop.f32.mrf.mxu0
      %v647 = vadd.f32 0.0, %v646
      %648 = vmatmul.f32.gmra.mxu0 %v444
      %v649 = vpop.f32.mrf.mxu0
      %v650 = vadd.f32 0.0, %v649
      %651 = vmatmul.f32.gmra.mxu0 %v446
      %v652 = vpop.f32.mrf.mxu0
      %v653 = vadd.f32 0.0, %v652
      %654 = vmatmul.f32.gmra.mxu0 %v448
      %v655 = vpop.f32.mrf.mxu0
      %v656 = vadd.f32 0.0, %v655
      %657 = vmatmul.f32.gmra.mxu0 %v450
      %v658 = vpop.f32.mrf.mxu0
      %v659 = vadd.f32 0.0, %v658
      %660 = vmatmul.f32.gmra.mxu0 %v452
      %v661 = vpop.f32.mrf.mxu0
      %v662 = vadd.f32 0.0, %v661
      %663 = vmatmul.f32.gmra.mxu0 %v454
      %v664 = vpop.f32.mrf.mxu0
      %v665 = vadd.f32 0.0, %v664
      %666 = vmatmul.f32.gmra.mxu0 %v456
      %v667 = vpop.f32.mrf.mxu0
      %v668 = vadd.f32 0.0, %v667
      %669 = vmatmul.f32.gmra.mxu0 %v458
      %v670 = vpop.f32.mrf.mxu0
      %v671 = vadd.f32 0.0, %v670
      %672 = vmatmul.f32.gmra.mxu0 %v460
      %v673 = vpop.f32.mrf.mxu0
      %v674 = vadd.f32 0.0, %v673
      %675 = vmatmul.f32.gmra.mxu0 %v462
      %v676 = vpop.f32.mrf.mxu0
      %v677 = vadd.f32 0.0, %v676
      %678 = vmatmul.f32.gmra.mxu0 %v464
      %v679 = vpop.f32.mrf.mxu0
      %v680 = vadd.f32 0.0, %v679
      %681 = vmatmul.f32.gmra.mxu0 %v466
      %v682 = vpop.f32.mrf.mxu0
      %v683 = vadd.f32 0.0, %v682
      %684 = vmatmul.f32.gmra.mxu0 %v468
      %v685 = vpop.f32.mrf.mxu0
      %v686 = vadd.f32 0.0, %v685
      %687 = vmatmul.f32.gmra.mxu0 %v470
      %v688 = vpop.f32.mrf.mxu0
      %v689 = vadd.f32 0.0, %v688
      %690 = vmatmul.f32.gmra.mxu0 %v472
      %v691 = vpop.f32.mrf.mxu0
      %v692 = vadd.f32 0.0, %v691
      %693 = vmatmul.f32.gmra.mxu0 %v474
      %v694 = vpop.f32.mrf.mxu0
      %v695 = vadd.f32 0.0, %v694
      %696 = vmatmul.f32.gmra.mxu0 %v476
      %v697 = vpop.f32.mrf.mxu0
      %v698 = vadd.f32 0.0, %v697
      %699 = vmatmul.f32.gmra.mxu0 %v478
      %v700 = vpop.f32.mrf.mxu0
      %v701 = vadd.f32 0.0, %v700
      %702 = vmatmul.f32.gmra.mxu0 %v480
      %v703 = vpop.f32.mrf.mxu0
      %v704 = vadd.f32 0.0, %v703
      %705 = vmatmul.f32.gmra.mxu0 %v482
      %v706 = vpop.f32.mrf.mxu0
      %v707 = vadd.f32 0.0, %v706
      %708 = vmatmul.f32.gmra.mxu0 %v484
      %v709 = vpop.f32.mrf.mxu0
      %v710 = vadd.f32 0.0, %v709
      %711 = vmatmul.f32.gmra.mxu0 %v486
      %v712 = vpop.f32.mrf.mxu0
      %v713 = vadd.f32 0.0, %v712
      %714 = vmatmul.f32.gmra.mxu0 %v488
      %v715 = vpop.f32.mrf.mxu0
      %v716 = vadd.f32 0.0, %v715
      %717 = vmatmul.f32.gmra.mxu0 %v490
      %v718 = vpop.f32.mrf.mxu0
      %v719 = vadd.f32 0.0, %v718
      %720 = vmatmul.f32.gmra.mxu0 %v492
      %v721 = vpop.f32.mrf.mxu0
      %v722 = vadd.f32 0.0, %v721
      %723 = vmatmul.f32.gmra.mxu0 %v494
      %v724 = vpop.f32.mrf.mxu0
      %v725 = vadd.f32 0.0, %v724
      %726 = vmatmul.f32.gmra.mxu0 %v496
      %v727 = vpop.f32.mrf.mxu0
      %v728 = vadd.f32 0.0, %v727
      %729 = vmatmul.f32.gmra.mxu0 %v498
      %v730 = vpop.f32.mrf.mxu0
      %v731 = vadd.f32 0.0, %v730
      %732 = vmatmul.f32.gmra.mxu0 %v500
      %v733 = vpop.f32.mrf.mxu0
      %v734 = vadd.f32 0.0, %v733
      %735 = vmatmul.f32.gmra.mxu0 %v502
      %v736 = vpop.f32.mrf.mxu0
      %v737 = vadd.f32 0.0, %v736
      %738 = vmatmul.f32.gmra.mxu0 %v504
      %v739 = vpop.f32.mrf.mxu0
      %v740 = vadd.f32 0.0, %v739
      %741 = vmatmul.f32.gmra.mxu0 %v506
      %v742 = vpop.f32.mrf.mxu0
      %v743 = vadd.f32 0.0, %v742
      %744 = vmatmul.f32.gmra.mxu0 %v508
      %v745 = vpop.f32.mrf.mxu0
      %v746 = vadd.f32 0.0, %v745
      %747 = vmatmul.f32.gmra.mxu0 %v510
      %v748 = vpop.f32.mrf.mxu0
      %v749 = vadd.f32 0.0, %v748
      %750 = vmatmul.f32.gmra.mxu0 %v512
      %v751 = vpop.f32.mrf.mxu0
      %v752 = vadd.f32 0.0, %v751
      %753 = vmatmul.f32.gmra.mxu0 %v514
      %v754 = vpop.f32.mrf.mxu0
      %v755 = vadd.f32 0.0, %v754
      %756 = vdwg.mxu0
      %757 = vmatpush.msra.mxu0 %v547
      %758 = vmatpush.msra.mxu0 %v546
      %759 = vmatpush.msra.mxu0 %v545
      %760 = vmatpush.msra.mxu0 %v544
      %761 = vmatpush.msra.mxu0 %v543
      %762 = vmatpush.msra.mxu0 %v542
      %763 = vmatpush.msra.mxu0 %v541
      %764 = vmatpush.msra.mxu0 %v540
      %765 = vmatpush.msra.mxu0 %v539
      %766 = vmatpush.msra.mxu0 %v538
      %767 = vmatpush.msra.mxu0 %v537
      %768 = vmatpush.msra.mxu0 %v536
      %769 = vmatpush.msra.mxu0 %v535
      %770 = vmatpush.msra.mxu0 %v534
      %771 = vmatpush.msra.mxu0 %v533
      %772 = vmatpush.msra.mxu0 %v532
      %773 = vmatmul.f32.gmra.mxu0 %v389
      %v774 = vpop.f32.mrf.mxu0
      %v775 = vadd.f32 %v566, %v774
      %776 = vmatmul.f32.gmra.mxu0 %v391
      %v777 = vpop.f32.mrf.mxu0
      %v778 = vadd.f32 %v569, %v777
      %779 = vmatmul.f32.gmra.mxu0 %v393
      %v780 = vpop.f32.mrf.mxu0
      %v781 = vadd.f32 %v572, %v780
      %782 = vmatmul.f32.gmra.mxu0 %v395
      %v783 = vpop.f32.mrf.mxu0
      %v784 = vadd.f32 %v575, %v783
      %785 = vmatmul.f32.gmra.mxu0 %v397
      %v786 = vpop.f32.mrf.mxu0
      %v787 = vadd.f32 %v578, %v786
      %788 = vmatmul.f32.gmra.mxu0 %v399
      %v789 = vpop.f32.mrf.mxu0
      %v790 = vadd.f32 %v581, %v789
      %791 = vmatmul.f32.gmra.mxu0 %v401
      %v792 = vpop.f32.mrf.mxu0
      %v793 = vadd.f32 %v584, %v792
      %794 = vmatmul.f32.gmra.mxu0 %v403
      %v795 = vpop.f32.mrf.mxu0
      %v796 = vadd.f32 %v587, %v795
      %797 = vmatmul.f32.gmra.mxu0 %v405
      %v798 = vpop.f32.mrf.mxu0
      %v799 = vadd.f32 %v590, %v798
      %800 = vmatmul.f32.gmra.mxu0 %v407
      %v801 = vpop.f32.mrf.mxu0
      %v802 = vadd.f32 %v593, %v801
      %803 = vmatmul.f32.gmra.mxu0 %v409
      %v804 = vpop.f32.mrf.mxu0
      %v805 = vadd.f32 %v596, %v804
      %806 = vmatmul.f32.gmra.mxu0 %v411
      %v807 = vpop.f32.mrf.mxu0
      %v808 = vadd.f32 %v599, %v807
      %809 = vmatmul.f32.gmra.mxu0 %v413
      %v810 = vpop.f32.mrf.mxu0
      %v811 = vadd.f32 %v602, %v810
      %812 = vmatmul.f32.gmra.mxu0 %v415
      %v813 = vpop.f32.mrf.mxu0
      %v814 = vadd.f32 %v605, %v813
      %815 = vmatmul.f32.gmra.mxu0 %v417
      %v816 = vpop.f32.mrf.mxu0
      %v817 = vadd.f32 %v608, %v816
      %818 = vmatmul.f32.gmra.mxu0 %v419
      %v819 = vpop.f32.mrf.mxu0
      %v820 = vadd.f32 %v611, %v819
      %821 = vmatmul.f32.gmra.mxu0 %v421
      %v822 = vpop.f32.mrf.mxu0
      %v823 = vadd.f32 %v614, %v822
      %824 = vmatmul.f32.gmra.mxu0 %v423
      %v825 = vpop.f32.mrf.mxu0
      %v826 = vadd.f32 %v617, %v825
      %827 = vmatmul.f32.gmra.mxu0 %v425
      %v828 = vpop.f32.mrf.mxu0
      %v829 = vadd.f32 %v620, %v828
      %830 = vmatmul.f32.gmra.mxu0 %v427
      %v831 = vpop.f32.mrf.mxu0
      %v832 = vadd.f32 %v623, %v831
      %833 = vmatmul.f32.gmra.mxu0 %v429
      %v834 = vpop.f32.mrf.mxu0
      %v835 = vadd.f32 %v626, %v834
      %836 = vmatmul.f32.gmra.mxu0 %v431
      %v837 = vpop.f32.mrf.mxu0
      %v838 = vadd.f32 %v629, %v837
      %839 = vmatmul.f32.gmra.mxu0 %v433
      %v840 = vpop.f32.mrf.mxu0
      %v841 = vadd.f32 %v632, %v840
      %842 = vmatmul.f32.gmra.mxu0 %v435
      %v843 = vpop.f32.mrf.mxu0
      %v844 = vadd.f32 %v635, %v843
      %845 = vmatmul.f32.gmra.mxu0 %v437
      %v846 = vpop.f32.mrf.mxu0
      %v847 = vadd.f32 %v638, %v846
      %848 = vmatmul.f32.gmra.mxu0 %v439
      %v849 = vpop.f32.mrf.mxu0
      %v850 = vadd.f32 %v641, %v849
      %851 = vmatmul.f32.gmra.mxu0 %v441
      %v852 = vpop.f32.mrf.mxu0
      %v853 = vadd.f32 %v644, %v852
      %854 = vmatmul.f32.gmra.mxu0 %v443
      %v855 = vpop.f32.mrf.mxu0
      %v856 = vadd.f32 %v647, %v855
      %857 = vmatmul.f32.gmra.mxu0 %v445
      %v858 = vpop.f32.mrf.mxu0
      %v859 = vadd.f32 %v650, %v858
      %860 = vmatmul.f32.gmra.mxu0 %v447
      %v861 = vpop.f32.mrf.mxu0
      %v862 = vadd.f32 %v653, %v861
      %863 = vmatmul.f32.gmra.mxu0 %v449
      %v864 = vpop.f32.mrf.mxu0
      %v865 = vadd.f32 %v656, %v864
      %866 = vmatmul.f32.gmra.mxu0 %v451
      %v867 = vpop.f32.mrf.mxu0
      %v868 = vadd.f32 %v659, %v867
      %869 = vmatmul.f32.gmra.mxu0 %v453
      %v870 = vpop.f32.mrf.mxu0
      %v871 = vadd.f32 %v662, %v870
      %872 = vmatmul.f32.gmra.mxu0 %v455
      %v873 = vpop.f32.mrf.mxu0
      %v874 = vadd.f32 %v665, %v873
      %875 = vmatmul.f32.gmra.mxu0 %v457
      %v876 = vpop.f32.mrf.mxu0
      %v877 = vadd.f32 %v668, %v876
      %878 = vmatmul.f32.gmra.mxu0 %v459
      %v879 = vpop.f32.mrf.mxu0
      %v880 = vadd.f32 %v671, %v879
      %881 = vmatmul.f32.gmra.mxu0 %v461
      %v882 = vpop.f32.mrf.mxu0
      %v883 = vadd.f32 %v674, %v882
      %884 = vmatmul.f32.gmra.mxu0 %v463
      %v885 = vpop.f32.mrf.mxu0
      %v886 = vadd.f32 %v677, %v885
      %887 = vmatmul.f32.gmra.mxu0 %v465
      %v888 = vpop.f32.mrf.mxu0
      %v889 = vadd.f32 %v680, %v888
      %890 = vmatmul.f32.gmra.mxu0 %v467
      %v891 = vpop.f32.mrf.mxu0
      %v892 = vadd.f32 %v683, %v891
      %893 = vmatmul.f32.gmra.mxu0 %v469
      %v894 = vpop.f32.mrf.mxu0
      %v895 = vadd.f32 %v686, %v894
      %896 = vmatmul.f32.gmra.mxu0 %v471
      %v897 = vpop.f32.mrf.mxu0
      %v898 = vadd.f32 %v689, %v897
      %899 = vmatmul.f32.gmra.mxu0 %v473
      %v900 = vpop.f32.mrf.mxu0
      %v901 = vadd.f32 %v692, %v900
      %902 = vmatmul.f32.gmra.mxu0 %v475
      %v903 = vpop.f32.mrf.mxu0
      %v904 = vadd.f32 %v695, %v903
      %905 = vmatmul.f32.gmra.mxu0 %v477
      %v906 = vpop.f32.mrf.mxu0
      %v907 = vadd.f32 %v698, %v906
      %908 = vmatmul.f32.gmra.mxu0 %v479
      %v909 = vpop.f32.mrf.mxu0
      %v910 = vadd.f32 %v701, %v909
      %911 = vmatmul.f32.gmra.mxu0 %v481
      %v912 = vpop.f32.mrf.mxu0
      %v913 = vadd.f32 %v704, %v912
      %914 = vmatmul.f32.gmra.mxu0 %v483
      %v915 = vpop.f32.mrf.mxu0
      %v916 = vadd.f32 %v707, %v915
      %917 = vmatmul.f32.gmra.mxu0 %v485
      %v918 = vpop.f32.mrf.mxu0
      %v919 = vadd.f32 %v710, %v918
      %920 = vmatmul.f32.gmra.mxu0 %v487
      %v921 = vpop.f32.mrf.mxu0
      %v922 = vadd.f32 %v713, %v921
      %923 = vmatmul.f32.gmra.mxu0 %v489
      %v924 = vpop.f32.mrf.mxu0
      %v925 = vadd.f32 %v716, %v924
      %926 = vmatmul.f32.gmra.mxu0 %v491
      %v927 = vpop.f32.mrf.mxu0
      %v928 = vadd.f32 %v719, %v927
      %929 = vmatmul.f32.gmra.mxu0 %v493
      %v930 = vpop.f32.mrf.mxu0
      %v931 = vadd.f32 %v722, %v930
      %932 = vmatmul.f32.gmra.mxu0 %v495
      %v933 = vpop.f32.mrf.mxu0
      %v934 = vadd.f32 %v725, %v933
      %935 = vmatmul.f32.gmra.mxu0 %v497
      %v936 = vpop.f32.mrf.mxu0
      %v937 = vadd.f32 %v728, %v936
      %938 = vmatmul.f32.gmra.mxu0 %v499
      %v939 = vpop.f32.mrf.mxu0
      %v940 = vadd.f32 %v731, %v939
      %941 = vmatmul.f32.gmra.mxu0 %v501
      %v942 = vpop.f32.mrf.mxu0
      %v943 = vadd.f32 %v734, %v942
      %944 = vmatmul.f32.gmra.mxu0 %v503
      %v945 = vpop.f32.mrf.mxu0
      %v946 = vadd.f32 %v737, %v945
      %947 = vmatmul.f32.gmra.mxu0 %v505
      %v948 = vpop.f32.mrf.mxu0
      %v949 = vadd.f32 %v740, %v948
      %950 = vmatmul.f32.gmra.mxu0 %v507
      %v951 = vpop.f32.mrf.mxu0
      %v952 = vadd.f32 %v743, %v951
      %953 = vmatmul.f32.gmra.mxu0 %v509
      %v954 = vpop.f32.mrf.mxu0
      %v955 = vadd.f32 %v746, %v954
      %956 = vmatmul.f32.gmra.mxu0 %v511
      %v957 = vpop.f32.mrf.mxu0
      %v958 = vadd.f32 %v749, %v957
      %959 = vmatmul.f32.gmra.mxu0 %v513
      %v960 = vpop.f32.mrf.mxu0
      %v961 = vadd.f32 %v752, %v960
      %962 = vmatmul.f32.gmra.mxu0 %v515
      %v963 = vpop.f32.mrf.mxu0
      %v964 = vadd.f32 %v755, %v963
      %965 = vdwg.mxu0
      %v966 = vadd.f32 %v324, %v775
      %v967 = vadd.f32 %v325, %v778
      %v968 = vadd.f32 %v326, %v781
      %v969 = vadd.f32 %v327, %v784
      %v970 = vadd.f32 %v328, %v787
      %v971 = vadd.f32 %v329, %v790
      %v972 = vadd.f32 %v330, %v793
      %v973 = vadd.f32 %v331, %v796
      %v974 = vadd.f32 %v332, %v799
      %v975 = vadd.f32 %v333, %v802
      %v976 = vadd.f32 %v334, %v805
      %v977 = vadd.f32 %v335, %v808
      %v978 = vadd.f32 %v336, %v811
      %v979 = vadd.f32 %v337, %v814
      %v980 = vadd.f32 %v338, %v817
      %v981 = vadd.f32 %v339, %v820
      %v982 = vadd.f32 %v340, %v823
      %v983 = vadd.f32 %v341, %v826
      %v984 = vadd.f32 %v342, %v829
      %v985 = vadd.f32 %v343, %v832
      %v986 = vadd.f32 %v344, %v835
      %v987 = vadd.f32 %v345, %v838
      %v988 = vadd.f32 %v346, %v841
      %v989 = vadd.f32 %v347, %v844
      %v990 = vadd.f32 %v348, %v847
      %v991 = vadd.f32 %v349, %v850
      %v992 = vadd.f32 %v350, %v853
      %v993 = vadd.f32 %v351, %v856
      %v994 = vadd.f32 %v352, %v859
      %v995 = vadd.f32 %v353, %v862
      %v996 = vadd.f32 %v354, %v865
      %v997 = vadd.f32 %v355, %v868
      %v998 = vadd.f32 %v356, %v871
      %v999 = vadd.f32 %v357, %v874
      %v1000 = vadd.f32 %v358, %v877
      %v1001 = vadd.f32 %v359, %v880
      %v1002 = vadd.f32 %v360, %v883
      %v1003 = vadd.f32 %v361, %v886
      %v1004 = vadd.f32 %v362, %v889
      %v1005 = vadd.f32 %v363, %v892
      %v1006 = vadd.f32 %v364, %v895
      %v1007 = vadd.f32 %v365, %v898
      %v1008 = vadd.f32 %v366, %v901
      %v1009 = vadd.f32 %v367, %v904
      %v1010 = vadd.f32 %v368, %v907
      %v1011 = vadd.f32 %v369, %v910
      %v1012 = vadd.f32 %v370, %v913
      %v1013 = vadd.f32 %v371, %v916
      %v1014 = vadd.f32 %v372, %v919
      %v1015 = vadd.f32 %v373, %v922
      %v1016 = vadd.f32 %v374, %v925
      %v1017 = vadd.f32 %v375, %v928
      %v1018 = vadd.f32 %v376, %v931
      %v1019 = vadd.f32 %v377, %v934
      %v1020 = vadd.f32 %v378, %v937
      %v1021 = vadd.f32 %v379, %v940
      %v1022 = vadd.f32 %v380, %v943
      %v1023 = vadd.f32 %v381, %v946
      %v1024 = vadd.f32 %v382, %v949
      %v1025 = vadd.f32 %v383, %v952
      %v1026 = vadd.f32 %v384, %v955
      %v1027 = vadd.f32 %v385, %v958
      %v1028 = vadd.f32 %v386, %v961
      %v1029 = vadd.f32 %v387, %v964
      %1030 = vst [vmem:[#allocation2] sm:$0xff] %v966
      %1031 = vst [vmem:[#allocation2 + $0x8] sm:$0xff] %v967
      %1032 = vst [vmem:[#allocation2 + $0x10] sm:$0xff] %v968
      %1033 = vst [vmem:[#allocation2 + $0x18] sm:$0xff] %v969
      %1034 = vst [vmem:[#allocation2 + $0x20] sm:$0xff] %v970
      %1035 = vst [vmem:[#allocation2 + $0x28] sm:$0xff] %v971
      %1036 = vst [vmem:[#allocation2 + $0x30] sm:$0xff] %v972
      %1037 = vst [vmem:[#allocation2 + $0x38] sm:$0xff] %v973
      %1038 = vst [vmem:[#allocation2 + $0x40] sm:$0xff] %v974
      %1039 = vst [vmem:[#allocation2 + $0x48] sm:$0xff] %v975
      %1040 = vst [vmem:[#allocation2 + $0x50] sm:$0xff] %v976
      %1041 = vst [vmem:[#allocation2 + $0x58] sm:$0xff] %v977
      %1042 = vst [vmem:[#allocation2 + $0x60] sm:$0xff] %v978
      %1043 = vst [vmem:[#allocation2 + $0x68] sm:$0xff] %v979
      %1044 = vst [vmem:[#allocation2 + $0x70] sm:$0xff] %v980
      %1045 = vst [vmem:[#allocation2 + $0x78] sm:$0xff] %v981
      %1046 = vst [vmem:[#allocation2 + $0x80] sm:$0xff] %v982
      %1047 = vst [vmem:[#allocation2 + $0x88] sm:$0xff] %v983
      %1048 = vst [vmem:[#allocation2 + $0x90] sm:$0xff] %v984
      %1049 = vst [vmem:[#allocation2 + $0x98] sm:$0xff] %v985
      %1050 = vst [vmem:[#allocation2 + $0xa0] sm:$0xff] %v986
      %1051 = vst [vmem:[#allocation2 + $0xa8] sm:$0xff] %v987
      %1052 = vst [vmem:[#allocation2 + $0xb0] sm:$0xff] %v988
      %1053 = vst [vmem:[#allocation2 + $0xb8] sm:$0xff] %v989
      %1054 = vst [vmem:[#allocation2 + $0xc0] sm:$0xff] %v990
      %1055 = vst [vmem:[#allocation2 + $0xc8] sm:$0xff] %v991
      %1056 = vst [vmem:[#allocation2 + $0xd0] sm:$0xff] %v992
      %1057 = vst [vmem:[#allocation2 + $0xd8] sm:$0xff] %v993
      %1058 = vst [vmem:[#allocation2 + $0xe0] sm:$0xff] %v994
      %1059 = vst [vmem:[#allocation2 + $0xe8] sm:$0xff] %v995
      %1060 = vst [vmem:[#allocation2 + $0xf0] sm:$0xff] %v996
      %1061 = vst [vmem:[#allocation2 + $0xf8] sm:$0xff] %v997
      %1062 = vst [vmem:[#allocation2 + $0x100] sm:$0xff] %v998
      %1063 = vst [vmem:[#allocation2 + $0x108] sm:$0xff] %v999
      %1064 = vst [vmem:[#allocation2 + $0x110] sm:$0xff] %v1000
      %1065 = vst [vmem:[#allocation2 + $0x118] sm:$0xff] %v1001
      %1066 = vst [vmem:[#allocation2 + $0x120] sm:$0xff] %v1002
      %1067 = vst [vmem:[#allocation2 + $0x128] sm:$0xff] %v1003
      %1068 = vst [vmem:[#allocation2 + $0x130] sm:$0xff] %v1004
      %1069 = vst [vmem:[#allocation2 + $0x138] sm:$0xff] %v1005
      %1070 = vst [vmem:[#allocation2 + $0x140] sm:$0xff] %v1006
      %1071 = vst [vmem:[#allocation2 + $0x148] sm:$0xff] %v1007
      %1072 = vst [vmem:[#allocation2 + $0x150] sm:$0xff] %v1008
      %1073 = vst [vmem:[#allocation2 + $0x158] sm:$0xff] %v1009
      %1074 = vst [vmem:[#allocation2 + $0x160] sm:$0xff] %v1010
      %1075 = vst [vmem:[#allocation2 + $0x168] sm:$0xff] %v1011
      %1076 = vst [vmem:[#allocation2 + $0x170] sm:$0xff] %v1012
      %1077 = vst [vmem:[#allocation2 + $0x178] sm:$0xff] %v1013
      %1078 = vst [vmem:[#allocation2 + $0x180] sm:$0xff] %v1014
      %1079 = vst [vmem:[#allocation2 + $0x188] sm:$0xff] %v1015
      %1080 = vst [vmem:[#allocation2 + $0x190] sm:$0xff] %v1016
      %1081 = vst [vmem:[#allocation2 + $0x198] sm:$0xff] %v1017
      %1082 = vst [vmem:[#allocation2 + $0x1a0] sm:$0xff] %v1018
      %1083 = vst [vmem:[#allocation2 + $0x1a8] sm:$0xff] %v1019
      %1084 = vst [vmem:[#allocation2 + $0x1b0] sm:$0xff] %v1020
      %1085 = vst [vmem:[#allocation2 + $0x1b8] sm:$0xff] %v1021
      %1086 = vst [vmem:[#allocation2 + $0x1c0] sm:$0xff] %v1022
      %1087 = vst [vmem:[#allocation2 + $0x1c8] sm:$0xff] %v1023
      %1088 = vst [vmem:[#allocation2 + $0x1d0] sm:$0xff] %v1024
      %1089 = vst [vmem:[#allocation2 + $0x1d8] sm:$0xff] %v1025
      %1090 = vst [vmem:[#allocation2 + $0x1e0] sm:$0xff] %v1026
      %1091 = vst [vmem:[#allocation2 + $0x1e8] sm:$0xff] %v1027
      %1092 = vst [vmem:[#allocation2 + $0x1f0] sm:$0xff] %v1028
      %1093 = vst [vmem:[#allocation2 + $0x1f8] sm:$0xff] %v1029
      // Predicated region
      $region37: #{generator_forward.15} parent=27 // pred_check
        %p1094 = pneg %p250
      $region38: #{generator_forward.15} parent=27 // pred_check_branch
        %1096 = sbr.rel (%p1094) target = $region40
      $region39: #{generator_forward.15} parent=27 // pred_region
        %v1097 = vld [vmem:[#allocation2] sm:$0xff]
        %v1098 = vld [vmem:[#allocation2 + $0x8] sm:$0xff]
        %v1099 = vld [vmem:[#allocation2 + $0x10] sm:$0xff]
        %v1100 = vld [vmem:[#allocation2 + $0x18] sm:$0xff]
        %v1101 = vld [vmem:[#allocation2 + $0x20] sm:$0xff]
        %v1102 = vld [vmem:[#allocation2 + $0x28] sm:$0xff]
        %v1103 = vld [vmem:[#allocation2 + $0x30] sm:$0xff]
        %v1104 = vld [vmem:[#allocation2 + $0x38] sm:$0xff]
        %v1105 = vld [vmem:[#allocation2 + $0x40] sm:$0xff]
        %v1106 = vld [vmem:[#allocation2 + $0x48] sm:$0xff]
        %v1107 = vld [vmem:[#allocation2 + $0x50] sm:$0xff]
        %v1108 = vld [vmem:[#allocation2 + $0x58] sm:$0xff]
        %v1109 = vld [vmem:[#allocation2 + $0x60] sm:$0xff]
        %v1110 = vld [vmem:[#allocation2 + $0x68] sm:$0xff]
        %v1111 = vld [vmem:[#allocation2 + $0x70] sm:$0xff]
        %v1112 = vld [vmem:[#allocation2 + $0x78] sm:$0xff]
        %v1113 = vld [vmem:[#allocation2 + $0x80] sm:$0xff]
        %v1114 = vld [vmem:[#allocation2 + $0x88] sm:$0xff]
        %v1115 = vld [vmem:[#allocation2 + $0x90] sm:$0xff]
        %v1116 = vld [vmem:[#allocation2 + $0x98] sm:$0xff]
        %v1117 = vld [vmem:[#allocation2 + $0xa0] sm:$0xff]
        %v1118 = vld [vmem:[#allocation2 + $0xa8] sm:$0xff]
        %v1119 = vld [vmem:[#allocation2 + $0xb0] sm:$0xff]
        %v1120 = vld [vmem:[#allocation2 + $0xb8] sm:$0xff]
        %v1121 = vld [vmem:[#allocation2 + $0xc0] sm:$0xff]
        %v1122 = vld [vmem:[#allocation2 + $0xc8] sm:$0xff]
        %v1123 = vld [vmem:[#allocation2 + $0xd0] sm:$0xff]
        %v1124 = vld [vmem:[#allocation2 + $0xd8] sm:$0xff]
        %v1125 = vld [vmem:[#allocation2 + $0xe0] sm:$0xff]
        %v1126 = vld [vmem:[#allocation2 + $0xe8] sm:$0xff]
        %v1127 = vld [vmem:[#allocation2 + $0xf0] sm:$0xff]
        %v1128 = vld [vmem:[#allocation2 + $0xf8] sm:$0xff]
        %v1129 = vld [vmem:[#allocation2 + $0x100] sm:$0xff]
        %v1130 = vld [vmem:[#allocation2 + $0x108] sm:$0xff]
        %v1131 = vld [vmem:[#allocation2 + $0x110] sm:$0xff]
        %v1132 = vld [vmem:[#allocation2 + $0x118] sm:$0xff]
        %v1133 = vld [vmem:[#allocation2 + $0x120] sm:$0xff]
        %v1134 = vld [vmem:[#allocation2 + $0x128] sm:$0xff]
        %v1135 = vld [vmem:[#allocation2 + $0x130] sm:$0xff]
        %v1136 = vld [vmem:[#allocation2 + $0x138] sm:$0xff]
        %v1137 = vld [vmem:[#allocation2 + $0x140] sm:$0xff]
        %v1138 = vld [vmem:[#allocation2 + $0x148] sm:$0xff]
        %v1139 = vld [vmem:[#allocation2 + $0x150] sm:$0xff]
        %v1140 = vld [vmem:[#allocation2 + $0x158] sm:$0xff]
        %v1141 = vld [vmem:[#allocation2 + $0x160] sm:$0xff]
        %v1142 = vld [vmem:[#allocation2 + $0x168] sm:$0xff]
        %v1143 = vld [vmem:[#allocation2 + $0x170] sm:$0xff]
        %v1144 = vld [vmem:[#allocation2 + $0x178] sm:$0xff]
        %v1145 = vld [vmem:[#allocation2 + $0x180] sm:$0xff]
        %v1146 = vld [vmem:[#allocation2 + $0x188] sm:$0xff]
        %v1147 = vld [vmem:[#allocation2 + $0x190] sm:$0xff]
        %v1148 = vld [vmem:[#allocation2 + $0x198] sm:$0xff]
        %v1149 = vld [vmem:[#allocation2 + $0x1a0] sm:$0xff]
        %v1150 = vld [vmem:[#allocation2 + $0x1a8] sm:$0xff]
        %v1151 = vld [vmem:[#allocation2 + $0x1b0] sm:$0xff]
        %v1152 = vld [vmem:[#allocation2 + $0x1b8] sm:$0xff]
        %v1153 = vld [vmem:[#allocation2 + $0x1c0] sm:$0xff]
        %v1154 = vld [vmem:[#allocation2 + $0x1c8] sm:$0xff]
        %v1155 = vld [vmem:[#allocation2 + $0x1d0] sm:$0xff]
        %v1156 = vld [vmem:[#allocation2 + $0x1d8] sm:$0xff]
        %v1157 = vld [vmem:[#allocation2 + $0x1e0] sm:$0xff]
        %v1158 = vld [vmem:[#allocation2 + $0x1e8] sm:$0xff]
        %v1159 = vld [vmem:[#allocation2 + $0x1f0] sm:$0xff]
        %v1160 = vld [vmem:[#allocation2 + $0x1f8] sm:$0xff]
        %1161 = vst [vmem:[%s247] sm:$0xff] %v1097
        %1162 = vst [vmem:[%s247 + $0x8] sm:$0xff] %v1098
        %1163 = vst [vmem:[%s247 + $0x10] sm:$0xff] %v1099
        %1164 = vst [vmem:[%s247 + $0x18] sm:$0xff] %v1100
        %1165 = vst [vmem:[%s247 + $0x20] sm:$0xff] %v1101
        %1166 = vst [vmem:[%s247 + $0x28] sm:$0xff] %v1102
        %1167 = vst [vmem:[%s247 + $0x30] sm:$0xff] %v1103
        %1168 = vst [vmem:[%s247 + $0x38] sm:$0xff] %v1104
        %1169 = vst [vmem:[%s247 + $0x40] sm:$0xff] %v1105
        %1170 = vst [vmem:[%s247 + $0x48] sm:$0xff] %v1106
        %1171 = vst [vmem:[%s247 + $0x50] sm:$0xff] %v1107
        %1172 = vst [vmem:[%s247 + $0x58] sm:$0xff] %v1108
        %1173 = vst [vmem:[%s247 + $0x60] sm:$0xff] %v1109
        %1174 = vst [vmem:[%s247 + $0x68] sm:$0xff] %v1110
        %1175 = vst [vmem:[%s247 + $0x70] sm:$0xff] %v1111
        %1176 = vst [vmem:[%s247 + $0x78] sm:$0xff] %v1112
        %1177 = vst [vmem:[%s247 + $0x80] sm:$0xff] %v1113
        %1178 = vst [vmem:[%s247 + $0x88] sm:$0xff] %v1114
        %1179 = vst [vmem:[%s247 + $0x90] sm:$0xff] %v1115
        %1180 = vst [vmem:[%s247 + $0x98] sm:$0xff] %v1116
        %1181 = vst [vmem:[%s247 + $0xa0] sm:$0xff] %v1117
        %1182 = vst [vmem:[%s247 + $0xa8] sm:$0xff] %v1118
        %1183 = vst [vmem:[%s247 + $0xb0] sm:$0xff] %v1119
        %1184 = vst [vmem:[%s247 + $0xb8] sm:$0xff] %v1120
        %1185 = vst [vmem:[%s247 + $0xc0] sm:$0xff] %v1121
        %1186 = vst [vmem:[%s247 + $0xc8] sm:$0xff] %v1122
        %1187 = vst [vmem:[%s247 + $0xd0] sm:$0xff] %v1123
        %1188 = vst [vmem:[%s247 + $0xd8] sm:$0xff] %v1124
        %1189 = vst [vmem:[%s247 + $0xe0] sm:$0xff] %v1125
        %1190 = vst [vmem:[%s247 + $0xe8] sm:$0xff] %v1126
        %1191 = vst [vmem:[%s247 + $0xf0] sm:$0xff] %v1127
        %1192 = vst [vmem:[%s247 + $0xf8] sm:$0xff] %v1128
        %1193 = vst [vmem:[%s247 + $0x100] sm:$0xff] %v1129
        %1194 = vst [vmem:[%s247 + $0x108] sm:$0xff] %v1130
        %1195 = vst [vmem:[%s247 + $0x110] sm:$0xff] %v1131
        %1196 = vst [vmem:[%s247 + $0x118] sm:$0xff] %v1132
        %1197 = vst [vmem:[%s247 + $0x120] sm:$0xff] %v1133
        %1198 = vst [vmem:[%s247 + $0x128] sm:$0xff] %v1134
        %1199 = vst [vmem:[%s247 + $0x130] sm:$0xff] %v1135
        %1200 = vst [vmem:[%s247 + $0x138] sm:$0xff] %v1136
        %1201 = vst [vmem:[%s247 + $0x140] sm:$0xff] %v1137
        %1202 = vst [vmem:[%s247 + $0x148] sm:$0xff] %v1138
        %1203 = vst [vmem:[%s247 + $0x150] sm:$0xff] %v1139
        %1204 = vst [vmem:[%s247 + $0x158] sm:$0xff] %v1140
        %1205 = vst [vmem:[%s247 + $0x160] sm:$0xff] %v1141
        %1206 = vst [vmem:[%s247 + $0x168] sm:$0xff] %v1142
        %1207 = vst [vmem:[%s247 + $0x170] sm:$0xff] %v1143
        %1208 = vst [vmem:[%s247 + $0x178] sm:$0xff] %v1144
        %1209 = vst [vmem:[%s247 + $0x180] sm:$0xff] %v1145
        %1210 = vst [vmem:[%s247 + $0x188] sm:$0xff] %v1146
        %1211 = vst [vmem:[%s247 + $0x190] sm:$0xff] %v1147
        %1212 = vst [vmem:[%s247 + $0x198] sm:$0xff] %v1148
        %1213 = vst [vmem:[%s247 + $0x1a0] sm:$0xff] %v1149
        %1214 = vst [vmem:[%s247 + $0x1a8] sm:$0xff] %v1150
        %1215 = vst [vmem:[%s247 + $0x1b0] sm:$0xff] %v1151
        %1216 = vst [vmem:[%s247 + $0x1b8] sm:$0xff] %v1152
        %1217 = vst [vmem:[%s247 + $0x1c0] sm:$0xff] %v1153
        %1218 = vst [vmem:[%s247 + $0x1c8] sm:$0xff] %v1154
        %1219 = vst [vmem:[%s247 + $0x1d0] sm:$0xff] %v1155
        %1220 = vst [vmem:[%s247 + $0x1d8] sm:$0xff] %v1156
        %1221 = vst [vmem:[%s247 + $0x1e0] sm:$0xff] %v1157
        %1222 = vst [vmem:[%s247 + $0x1e8] sm:$0xff] %v1158
        %1223 = vst [vmem:[%s247 + $0x1f0] sm:$0xff] %v1159
        %1224 = vst [vmem:[%s247 + $0x1f8] sm:$0xff] %v1160
        %v1225 = vld [vmem:[%s3] sm:$0x1]
        %v1226 = vadd.f32 %v1097, %v1098
        %v1227 = vadd.f32 %v1226, %v1099
        %v1228 = vadd.f32 %v1227, %v1100
        %v1229 = vadd.f32 %v1228, %v1101
        %v1230 = vadd.f32 %v1229, %v1102
        %v1231 = vadd.f32 %v1230, %v1103
        %v1232 = vadd.f32 %v1231, %v1104
        %v1233 = vadd.f32 %v1232, %v1105
        %v1234 = vadd.f32 %v1233, %v1106
        %v1235 = vadd.f32 %v1234, %v1107
        %v1236 = vadd.f32 %v1235, %v1108
        %v1237 = vadd.f32 %v1236, %v1109
        %v1238 = vadd.f32 %v1237, %v1110
        %v1239 = vadd.f32 %v1238, %v1111
        %v1240 = vadd.f32 %v1239, %v1112
        %v1241 = vadd.f32 %v1240, %v1113
        %v1242 = vadd.f32 %v1241, %v1114
        %v1243 = vadd.f32 %v1242, %v1115
        %v1244 = vadd.f32 %v1243, %v1116
        %v1245 = vadd.f32 %v1244, %v1117
        %v1246 = vadd.f32 %v1245, %v1118
        %v1247 = vadd.f32 %v1246, %v1119
        %v1248 = vadd.f32 %v1247, %v1120
        %v1249 = vadd.f32 %v1248, %v1121
        %v1250 = vadd.f32 %v1249, %v1122
        %v1251 = vadd.f32 %v1250, %v1123
        %v1252 = vadd.f32 %v1251, %v1124
        %v1253 = vadd.f32 %v1252, %v1125
        %v1254 = vadd.f32 %v1253, %v1126
        %v1255 = vadd.f32 %v1254, %v1127
        %v1256 = vadd.f32 %v1255, %v1128
        %v1257 = vadd.f32 %v1256, %v1129
        %v1258 = vadd.f32 %v1257, %v1130
        %v1259 = vadd.f32 %v1258, %v1131
        %v1260 = vadd.f32 %v1259, %v1132
        %v1261 = vadd.f32 %v1260, %v1133
        %v1262 = vadd.f32 %v1261, %v1134
        %v1263 = vadd.f32 %v1262, %v1135
        %v1264 = vadd.f32 %v1263, %v1136
        %v1265 = vadd.f32 %v1264, %v1137
        %v1266 = vadd.f32 %v1265, %v1138
        %v1267 = vadd.f32 %v1266, %v1139
        %v1268 = vadd.f32 %v1267, %v1140
        %v1269 = vadd.f32 %v1268, %v1141
        %v1270 = vadd.f32 %v1269, %v1142
        %v1271 = vadd.f32 %v1270, %v1143
        %v1272 = vadd.f32 %v1271, %v1144
        %v1273 = vadd.f32 %v1272, %v1145
        %v1274 = vadd.f32 %v1273, %v1146
        %v1275 = vadd.f32 %v1274, %v1147
        %v1276 = vadd.f32 %v1275, %v1148
        %v1277 = vadd.f32 %v1276, %v1149
        %v1278 = vadd.f32 %v1277, %v1150
        %v1279 = vadd.f32 %v1278, %v1151
        %v1280 = vadd.f32 %v1279, %v1152
        %v1281 = vadd.f32 %v1280, %v1153
        %v1282 = vadd.f32 %v1281, %v1154
        %v1283 = vadd.f32 %v1282, %v1155
        %v1284 = vadd.f32 %v1283, %v1156
        %v1285 = vadd.f32 %v1284, %v1157
        %v1286 = vadd.f32 %v1285, %v1158
        %v1287 = vadd.f32 %v1286, %v1159
        %v1288 = vadd.f32 %v1287, %v1160
        %v1289 = vrot.slane %v1288, 4
        %v1290 = vadd.f32 %v1288, %v1289
        %v1291 = vrot.slane %v1290, 2
        %v1292 = vadd.f32 %v1290, %v1291
        %v1293 = vrot.slane %v1292, 1
        %v1294 = vadd.f32 %v1292, %v1293
        %v1295 = vadd.f32 %v1225, %v1294
        %1296 = vst [vmem:[%s3] sm:$0x1] %v1295
        %v1297 = vld [vmem:[%s4] sm:$0x1]
        %v1298 = vmul.f32 %v1097, %v1097
        %v1299 = vmul.f32 %v1098, %v1098
        %v1300 = vmul.f32 %v1099, %v1099
        %v1301 = vmul.f32 %v1100, %v1100
        %v1302 = vmul.f32 %v1101, %v1101
        %v1303 = vmul.f32 %v1102, %v1102
        %v1304 = vmul.f32 %v1103, %v1103
        %v1305 = vmul.f32 %v1104, %v1104
        %v1306 = vmul.f32 %v1105, %v1105
        %v1307 = vmul.f32 %v1106, %v1106
        %v1308 = vmul.f32 %v1107, %v1107
        %v1309 = vmul.f32 %v1108, %v1108
        %v1310 = vmul.f32 %v1109, %v1109
        %v1311 = vmul.f32 %v1110, %v1110
        %v1312 = vmul.f32 %v1111, %v1111
        %v1313 = vmul.f32 %v1112, %v1112
        %v1314 = vmul.f32 %v1113, %v1113
        %v1315 = vmul.f32 %v1114, %v1114
        %v1316 = vmul.f32 %v1115, %v1115
        %v1317 = vmul.f32 %v1116, %v1116
        %v1318 = vmul.f32 %v1117, %v1117
        %v1319 = vmul.f32 %v1118, %v1118
        %v1320 = vmul.f32 %v1119, %v1119
        %v1321 = vmul.f32 %v1120, %v1120
        %v1322 = vmul.f32 %v1121, %v1121
        %v1323 = vmul.f32 %v1122, %v1122
        %v1324 = vmul.f32 %v1123, %v1123
        %v1325 = vmul.f32 %v1124, %v1124
        %v1326 = vmul.f32 %v1125, %v1125
        %v1327 = vmul.f32 %v1126, %v1126
        %v1328 = vmul.f32 %v1127, %v1127
        %v1329 = vmul.f32 %v1128, %v1128
        %v1330 = vmul.f32 %v1129, %v1129
        %v1331 = vmul.f32 %v1130, %v1130
        %v1332 = vmul.f32 %v1131, %v1131
        %v1333 = vmul.f32 %v1132, %v1132
        %v1334 = vmul.f32 %v1133, %v1133
        %v1335 = vmul.f32 %v1134, %v1134
        %v1336 = vmul.f32 %v1135, %v1135
        %v1337 = vmul.f32 %v1136, %v1136
        %v1338 = vmul.f32 %v1137, %v1137
        %v1339 = vmul.f32 %v1138, %v1138
        %v1340 = vmul.f32 %v1139, %v1139
        %v1341 = vmul.f32 %v1140, %v1140
        %v1342 = vmul.f32 %v1141, %v1141
        %v1343 = vmul.f32 %v1142, %v1142
        %v1344 = vmul.f32 %v1143, %v1143
        %v1345 = vmul.f32 %v1144, %v1144
        %v1346 = vmul.f32 %v1145, %v1145
        %v1347 = vmul.f32 %v1146, %v1146
        %v1348 = vmul.f32 %v1147, %v1147
        %v1349 = vmul.f32 %v1148, %v1148
        %v1350 = vmul.f32 %v1149, %v1149
        %v1351 = vmul.f32 %v1150, %v1150
        %v1352 = vmul.f32 %v1151, %v1151
        %v1353 = vmul.f32 %v1152, %v1152
        %v1354 = vmul.f32 %v1153, %v1153
        %v1355 = vmul.f32 %v1154, %v1154
        %v1356 = vmul.f32 %v1155, %v1155
        %v1357 = vmul.f32 %v1156, %v1156
        %v1358 = vmul.f32 %v1157, %v1157
        %v1359 = vmul.f32 %v1158, %v1158
        %v1360 = vmul.f32 %v1159, %v1159
        %v1361 = vmul.f32 %v1160, %v1160
        %v1362 = vadd.f32 %v1298, %v1299
        %v1363 = vadd.f32 %v1362, %v1300
        %v1364 = vadd.f32 %v1363, %v1301
        %v1365 = vadd.f32 %v1364, %v1302
        %v1366 = vadd.f32 %v1365, %v1303
        %v1367 = vadd.f32 %v1366, %v1304
        %v1368 = vadd.f32 %v1367, %v1305
        %v1369 = vadd.f32 %v1368, %v1306
        %v1370 = vadd.f32 %v1369, %v1307
        %v1371 = vadd.f32 %v1370, %v1308
        %v1372 = vadd.f32 %v1371, %v1309
        %v1373 = vadd.f32 %v1372, %v1310
        %v1374 = vadd.f32 %v1373, %v1311
        %v1375 = vadd.f32 %v1374, %v1312
        %v1376 = vadd.f32 %v1375, %v1313
        %v1377 = vadd.f32 %v1376, %v1314
        %v1378 = vadd.f32 %v1377, %v1315
        %v1379 = vadd.f32 %v1378, %v1316
        %v1380 = vadd.f32 %v1379, %v1317
        %v1381 = vadd.f32 %v1380, %v1318
        %v1382 = vadd.f32 %v1381, %v1319
        %v1383 = vadd.f32 %v1382, %v1320
        %v1384 = vadd.f32 %v1383, %v1321
        %v1385 = vadd.f32 %v1384, %v1322
        %v1386 = vadd.f32 %v1385, %v1323
        %v1387 = vadd.f32 %v1386, %v1324
        %v1388 = vadd.f32 %v1387, %v1325
        %v1389 = vadd.f32 %v1388, %v1326
        %v1390 = vadd.f32 %v1389, %v1327
        %v1391 = vadd.f32 %v1390, %v1328
        %v1392 = vadd.f32 %v1391, %v1329
        %v1393 = vadd.f32 %v1392, %v1330
        %v1394 = vadd.f32 %v1393, %v1331
        %v1395 = vadd.f32 %v1394, %v1332
        %v1396 = vadd.f32 %v1395, %v1333
        %v1397 = vadd.f32 %v1396, %v1334
        %v1398 = vadd.f32 %v1397, %v1335
        %v1399 = vadd.f32 %v1398, %v1336
        %v1400 = vadd.f32 %v1399, %v1337
        %v1401 = vadd.f32 %v1400, %v1338
        %v1402 = vadd.f32 %v1401, %v1339
        %v1403 = vadd.f32 %v1402, %v1340
        %v1404 = vadd.f32 %v1403, %v1341
        %v1405 = vadd.f32 %v1404, %v1342
        %v1406 = vadd.f32 %v1405, %v1343
        %v1407 = vadd.f32 %v1406, %v1344
        %v1408 = vadd.f32 %v1407, %v1345
        %v1409 = vadd.f32 %v1408, %v1346
        %v1410 = vadd.f32 %v1409, %v1347
        %v1411 = vadd.f32 %v1410, %v1348
        %v1412 = vadd.f32 %v1411, %v1349
        %v1413 = vadd.f32 %v1412, %v1350
        %v1414 = vadd.f32 %v1413, %v1351
        %v1415 = vadd.f32 %v1414, %v1352
        %v1416 = vadd.f32 %v1415, %v1353
        %v1417 = vadd.f32 %v1416, %v1354
        %v1418 = vadd.f32 %v1417, %v1355
        %v1419 = vadd.f32 %v1418, %v1356
        %v1420 = vadd.f32 %v1419, %v1357
        %v1421 = vadd.f32 %v1420, %v1358
        %v1422 = vadd.f32 %v1421, %v1359
        %v1423 = vadd.f32 %v1422, %v1360
        %v1424 = vadd.f32 %v1423, %v1361
        %v1425 = vrot.slane %v1424, 4
        %v1426 = vadd.f32 %v1424, %v1425
        %v1427 = vrot.slane %v1426, 2
        %v1428 = vadd.f32 %v1426, %v1427
        %v1429 = vrot.slane %v1428, 1
        %v1430 = vadd.f32 %v1428, %v1429
        %v1431 = vadd.f32 %v1297, %v1430
        %1432 = vst [vmem:[%s4] sm:$0x1] %v1431
      $region40: #{generator_forward.15} parent=27 // pred_fallthru
        _
      %s1433 = smul.u32 64, %s20
      %p1434 = scmp.lt.s32.totalorder %s1433, 255
      %s1435 = scalar_select %p1434, %s1433, 255
      %s1436 = smul.addr %s1435, 8
      %s1437 = scalar_lea.vmem %s2, %s1436
      // Predicated region
      $region41: #{generator_forward.15} parent=27 // pred_check
        %p1438 = pneg %p100
      $region42: #{generator_forward.15} parent=27 // pred_check_branch
        %1440 = sbr.rel (%p1438) target = $region44
      $region43: #{generator_forward.15} parent=27 // pred_region
        %s1441 = smul.u32 64, %s20
      $region44: #{generator_forward.15} parent=27 // pred_fallthru
        _
      // Predicated region
      $region45: #{generator_forward.15} parent=27 // pred_check
        %p1442 = pneg %p121
      $region46: #{generator_forward.15} parent=27 // pred_check_branch
        %1444 = sbr.rel (%p1442) target = $region48
      $region47: #{generator_forward.15} parent=27 // pred_region
        _
      $region48: #{generator_forward.15} parent=27 // pred_fallthru
        _
      // Predicated region
      $region49: #{generator_forward.15} parent=27 // pred_check
        %p1445 = pneg %p142
      $region50: #{generator_forward.15} parent=27 // pred_check_branch
        %1447 = sbr.rel (%p1445) target = $region52
      $region51: #{generator_forward.15} parent=27 // pred_region
        _
      $region52: #{generator_forward.15} parent=27 // pred_fallthru
        _
      // Predicated region
      $region53: #{generator_forward.15} parent=27 // pred_check
        %p1448 = pneg %p121
      $region54: #{generator_forward.15} parent=27 // pred_check_branch
        %1450 = sbr.rel (%p1448) target = $region56
      $region55: #{generator_forward.15} parent=27 // pred_region
        _
      $region56: #{generator_forward.15} parent=27 // pred_fallthru
        _
      // Predicated region
      $region57: #{generator_forward.15} parent=27 // pred_check
        %p1451 = pneg %p142
      $region58: #{generator_forward.15} parent=27 // pred_check_branch
        %1453 = sbr.rel (%p1451) target = $region60
      $region59: #{generator_forward.15} parent=27 // pred_region
        _
      $region60: #{generator_forward.15} parent=27 // pred_fallthru
        _
    $region28: #{generator_forward.15} parent=5 // pred_fallthru
      _
    %p1454 = scmp.le.s32.totalorder 2, %s11
    // Predicated region
    $region61: #{generator_forward.15} parent=5 // pred_check
      %p1455 = pneg %p1454
    $region62: #{generator_forward.15} parent=5 // pred_check_branch
      %1457 = sbr.rel (%p1455) target = $region64
    $region63: #{generator_forward.15} parent=5 // pred_region
      %s1458 = ssub.s32 %s11, 2
      // Predicated region
      $region65: #{generator_forward.15} parent=63 // pred_check
        %p1459 = pneg %p106
      $region66: #{generator_forward.15} parent=63 // pred_check_branch
        %1461 = sbr.rel (%p1459) target = $region68
      $region67: #{generator_forward.15} parent=63 // pred_region
        %s1462 = smul.u32 64, %s22
        %p1463 = scmp.lt.s32.totalorder %s1462, 255
        %s1464 = scalar_select %p1463, %s1462, 255
        %s1465 = smul.addr %s1464, 8
        %s1466 = scalar_lea.vmem %s2, %s1465
      $region68: #{generator_forward.15} parent=63 // pred_fallthru
        _
    $region64: #{generator_forward.15} parent=5 // pred_fallthru
      _
  $region6: #{generator_forward.15} parent=0 // loop_footer
    %s15 = sadd.s32 1, %s11
  $region7: #{generator_forward.15} parent=0 // loop_footer_branch
    %10 = sbr.rel target = $region3
  $region8: #{generator_forward.15} parent=0 // loop_exit
    _

// kernel: generator_forward.17
$region0: #{generator_forward.17}
  #allocation0 [shape = 'u32[]', space=smem, size = 0x4, offset = 0x4, fixed_abs, tag = 'smem constant byte address 0x4 - core index']
  #allocation1 [shape = 'u32[72,128]{1,0:T(1,128)}', space=vmem, size = 0x9000, scoped, tag = 'internal scratch']
  #allocation2 [shape = 'f32[512,128]{1,0:T(8,128)}', space=vmem, size = 0x40000, scoped, tag = 'scratch operand']
  %s0 = inlined_call_operand.vmem [shape: f32[8192,128], index: 0, kind: input, shape index: {}]
  %s1 = inlined_call_operand.vmem [shape: f32[128,128], index: 1, kind: input, shape index: {}]
  %s2 = inlined_call_operand.vmem [shape: f32[8192,128], index: 2, kind: output, shape index: {}]
  %s3 = sld [smem:[#allocation0]]
  $region49: #{generator_forward.17} parent=0
    _
  %s5 = ssub.s32 1, %s3
  %s6 = scalar_select 0, %s5, %s3
  loop: start=0, step=1, limit=18
  $region2: #{generator_forward.17} parent=0 // loop_pre_header
    _
  $region3: #{generator_forward.17} parent=0 // loop_header
    %s8 = sphi 0, %s12
    %p9 = scmp.ge.s32.totalorder %s8, 18
    %s15 = sphi 0, %s27
    %s16 = sphi 0, %s23
    %s17 = sphi 0, %s15
    %s18 = sphi 0, %s16
    %s19 = sphi 0, %s17
    %s20 = sphi 0, %s18
    %s32 = sphi 0, %s34
    %s35 = sphi 0, %s32
    %s36 = sphi 0, %s35
    %s52 = sphi 0, %s36
    %s58 = sphi 0, %s60
    %s61 = sphi 0, %s58
    %s62 = sphi 0, %s61
    %s78 = sphi 0, %s62
    %s84 = sphi 0, %s86
    %s87 = sphi 0, %s84
    %s88 = sphi 0, %s87
    %s104 = sphi 0, %s88
  $region4: #{generator_forward.17} parent=0 // loop_header_branch
    %11 = sbr.rel (%p9) target = $region8
  $region5: #{generator_forward.17} parent=0 // loop_body
    %s13 = ssub.s32 %s8, 1
    %s14 = ssub.s32 %s8, 2
    %s21 = sadd.s32 1, %s16
    %p22 = scmp.ge.s32.totalorder %s21, 1
    %s23 = scalar_select %p22, 0, %s21
    %s24 = sadd.s32 1, %s15
    %s25 = scalar_select %p22, %s24, %s15
    %p26 = scmp.ge.s32.totalorder %s25, 16
    %s27 = scalar_select %p26, 0, %s25
    %s28 = ssub.s32 %s15, %s27
    %s29 = ssub.s32 %s16, %s23
    %s30 = sor.u32 %s28, %s29
    %p31 = scmp.eq.s32.totalorder %s30, 0
    %s33 = sadd.s32 %s32, 1
    %s34 = scalar_select %p31, %s32, %s33
    %p37 = pneg %p31
    %p38 = scmp.eq.s32.totalorder %s8, 15
    %p39 = por %p37, %p38
    %p40 = scmp.ne.s32.totalorder %s32, %s35
    %p41 = scmp.eq.s32.totalorder %s8, 0
    %p42 = por %p40, %p41
    %p43 = scmp.ne.s32.totalorder %s32, %s35
    %p44 = scmp.eq.s32.totalorder %s13, 15
    %p45 = por %p43, %p44
    %p46 = scmp.ne.s32.totalorder %s35, %s36
    %p47 = scmp.eq.s32.totalorder %s13, 0
    %p48 = por %p46, %p47
    %p49 = scmp.ne.s32.totalorder %s35, %s36
    %p50 = scmp.eq.s32.totalorder %s14, 15
    %p51 = por %p49, %p50
    %p53 = scmp.ne.s32.totalorder %s36, %s52
    %p54 = scmp.eq.s32.totalorder %s14, 0
    %p55 = por %p53, %p54
    %s56 = ssub.s32 %s16, %s23
    %p57 = scmp.eq.s32.totalorder %s56, 0
    %s59 = sadd.s32 %s58, 1
    %s60 = scalar_select %p57, %s58, %s59
    %p63 = pneg %p57
    %p64 = scmp.eq.s32.totalorder %s8, 15
    %p65 = por %p63, %p64
    %p66 = scmp.ne.s32.totalorder %s58, %s61
    %p67 = scmp.eq.s32.totalorder %s8, 0
    %p68 = por %p66, %p67
    %p69 = scmp.ne.s32.totalorder %s58, %s61
    %p70 = scmp.eq.s32.totalorder %s13, 15
    %p71 = por %p69, %p70
    %p72 = scmp.ne.s32.totalorder %s61, %s62
    %p73 = scmp.eq.s32.totalorder %s13, 0
    %p74 = por %p72, %p73
    %p75 = scmp.ne.s32.totalorder %s61, %s62
    %p76 = scmp.eq.s32.totalorder %s14, 15
    %p77 = por %p75, %p76
    %p79 = scmp.ne.s32.totalorder %s62, %s78
    %p80 = scmp.eq.s32.totalorder %s14, 0
    %p81 = por %p79, %p80
    %s82 = ssub.s32 %s15, %s27
    %p83 = scmp.eq.s32.totalorder %s82, 0
    %s85 = sadd.s32 %s84, 1
    %s86 = scalar_select %p83, %s84, %s85
    %p89 = pneg %p83
    %p90 = scmp.eq.s32.totalorder %s8, 15
    %p91 = por %p89, %p90
    %p92 = scmp.ne.s32.totalorder %s84, %s87
    %p93 = scmp.eq.s32.totalorder %s8, 0
    %p94 = por %p92, %p93
    %p95 = scmp.ne.s32.totalorder %s84, %s87
    %p96 = scmp.eq.s32.totalorder %s13, 15
    %p97 = por %p95, %p96
    %p98 = scmp.ne.s32.totalorder %s87, %s88
    %p99 = scmp.eq.s32.totalorder %s13, 0
    %p100 = por %p98, %p99
    %p101 = scmp.ne.s32.totalorder %s87, %s88
    %p102 = scmp.eq.s32.totalorder %s14, 15
    %p103 = por %p101, %p102
    %p105 = scmp.ne.s32.totalorder %s88, %s104
    %p106 = scmp.eq.s32.totalorder %s14, 0
    %p107 = por %p105, %p106
    %p108 = scmp.le.s32.totalorder 1, %s8
    %p109 = scmp.lt.s32.totalorder %s8, 17
    %p110 = pnand %p108, %p109
    %p111 = pneg %p110
    // Predicated region
    $region9: #{generator_forward.17} parent=5 // pred_check
      _
    $region10: #{generator_forward.17} parent=5 // pred_check_branch
      %113 = sbr.rel (%p110) target = $region12
    $region11: #{generator_forward.17} parent=5 // pred_region
      %s114 = ssub.s32 %s8, 1
      // Predicated region
      $region13: #{generator_forward.17} parent=11 // pred_check
        %p115 = pneg %p74
      $region14: #{generator_forward.17} parent=11 // pred_check_branch
        %117 = sbr.rel (%p115) target = $region16
      $region15: #{generator_forward.17} parent=11 // pred_region
        %s118 = smul.u32 16, %s18
        %p119 = scmp.lt.s32.totalorder %s118, 15
        %s120 = scalar_select %p119, %s118, 15
        %s121 = smul.addr %s120, 8
        %s122 = scalar_lea.vmem %s1, %s121
        %s123 = smul.u32 16, %s18
      $region16: #{generator_forward.17} parent=11 // pred_fallthru
        _
    $region12: #{generator_forward.17} parent=5 // pred_fallthru
      _
    %p124 = scmp.lt.s32.totalorder %s8, 16
    // Predicated region
    $region17: #{generator_forward.17} parent=5 // pred_check
      %p125 = pneg %p124
    $region18: #{generator_forward.17} parent=5 // pred_check_branch
      %127 = sbr.rel (%p125) target = $region20
    $region19: #{generator_forward.17} parent=5 // pred_region
      // Predicated region
      $region21: #{generator_forward.17} parent=19 // pred_check
        %p128 = pneg %p42
      $region22: #{generator_forward.17} parent=19 // pred_check_branch
        %130 = sbr.rel (%p128) target = $region24
      $region23: #{generator_forward.17} parent=19 // pred_region
        %s131 = smul.u32 64, %s15
        %p132 = scmp.lt.s32.totalorder %s131, 1023
        %s133 = scalar_select %p132, %s131, 1023
        %p134 = scmp.lt.s32.totalorder %s16, 0
        %s135 = scalar_select %p134, %s16, 0
        %s136 = sadd.s32 %s135, %s133
        %s137 = smul.addr %s136, 8
        %s138 = scalar_lea.vmem %s0, %s137
        %s139 = smul.u32 64, %s15
      $region24: #{generator_forward.17} parent=19 // pred_fallthru
        _
    $region20: #{generator_forward.17} parent=5 // pred_fallthru
      _
    %p140 = scmp.le.s32.totalorder 1, %s8
    %p141 = scmp.lt.s32.totalorder %s8, 17
    %p142 = pnand %p140, %p141
    %p143 = pneg %p142
    // Predicated region
    $region25: #{generator_forward.17} parent=5 // pred_check
      _
    $region26: #{generator_forward.17} parent=5 // pred_check_branch
      %145 = sbr.rel (%p142) target = $region28
    $region27: #{generator_forward.17} parent=5 // pred_region
      %s146 = ssub.s32 %s8, 1
      %s147 = smul.u32 64, %s17
      %p148 = scmp.lt.s32.totalorder %s147, 1023
      %s149 = scalar_select %p148, %s147, 1023
      %p150 = scmp.lt.s32.totalorder %s18, 0
      %s151 = scalar_select %p150, %s18, 0
      %s152 = sadd.s32 %s151, %s149
      %s153 = smul.addr %s152, 8
      %s154 = scalar_lea.vmem %s0, %s153
      %p155 = pneg %p48
      %p156 = pneg %p45
      %s157 = smul.u32 16, %s18
      %p158 = scmp.lt.s32.totalorder %s157, 15
      %s159 = scalar_select %p158, %s157, 15
      %s160 = smul.addr %s159, 8
      %s161 = scalar_lea.vmem %s1, %s160
      %p162 = pneg %p74
      %p163 = pneg %p71
      %p164 = pneg %p100
      %p165 = pneg %p97
      %s166 = smul.u32 64, %s17
      %p167 = scmp.lt.s32.totalorder %s166, 1023
      %s168 = scalar_select %p167, %s166, 1023
      %s169 = smul.addr %s168, 8
      %s170 = scalar_lea.vmem %s2, %s169
      %s171 = smul.u32 64, %s17
      %p172 = scmp.lt.s32.totalorder %s171, 1023
      %s173 = scalar_select %p172, %s171, 1023
      %p174 = scmp.lt.s32.totalorder %s18, 0
      %s175 = scalar_select %p174, %s18, 0
      %s176 = sadd.s32 %s175, %s173
      %s177 = smul.addr %s176, 8
      %s178 = scalar_lea.vmem %s0, %s177
      %s179 = smul.u32 64, %s17
      %s180 = smul.u32 16, %s18
      %p181 = scmp.lt.s32.totalorder %s180, 15
      %s182 = scalar_select %p181, %s180, 15
      %s183 = smul.addr %s182, 8
      %s184 = scalar_lea.vmem %s1, %s183
      %s185 = smul.u32 16, %s18
      %s186 = smul.u32 64, %s17
      %p187 = scmp.lt.s32.totalorder %s186, 1023
      %s188 = scalar_select %p187, %s186, 1023
      %s189 = smul.addr %s188, 8
      %s190 = scalar_lea.vmem %s2, %s189
      %s191 = smul.u32 64, %s17
      %p192 = scmp.eq.s32.totalorder %s18, 0
      // Predicated region
      $region29: #{generator_forward.17} parent=27 // pred_check
        %p193 = pneg %p192
      $region30: #{generator_forward.17} parent=27 // pred_check_branch
        %195 = sbr.rel (%p193) target = $region32
      $region31: #{generator_forward.17} parent=27 // pred_region
        %196 = vst [vmem:[#allocation2] sm:$0xff] 0.0
        %197 = vst [vmem:[#allocation2 + $0x8] sm:$0xff] 0.0
        %198 = vst [vmem:[#allocation2 + $0x10] sm:$0xff] 0.0
        %199 = vst [vmem:[#allocation2 + $0x18] sm:$0xff] 0.0
        %200 = vst [vmem:[#allocation2 + $0x20] sm:$0xff] 0.0
        %201 = vst [vmem:[#allocation2 + $0x28] sm:$0xff] 0.0
        %202 = vst [vmem:[#allocation2 + $0x30] sm:$0xff] 0.0
        %203 = vst [vmem:[#allocation2 + $0x38] sm:$0xff] 0.0
        %204 = vst [vmem:[#allocation2 + $0x40] sm:$0xff] 0.0
        %205 = vst [vmem:[#allocation2 + $0x48] sm:$0xff] 0.0
        %206 = vst [vmem:[#allocation2 + $0x50] sm:$0xff] 0.0
        %207 = vst [vmem:[#allocation2 + $0x58] sm:$0xff] 0.0
        %208 = vst [vmem:[#allocation2 + $0x60] sm:$0xff] 0.0
        %209 = vst [vmem:[#allocation2 + $0x68] sm:$0xff] 0.0
        %210 = vst [vmem:[#allocation2 + $0x70] sm:$0xff] 0.0
        %211 = vst [vmem:[#allocation2 + $0x78] sm:$0xff] 0.0
        %212 = vst [vmem:[#allocation2 + $0x80] sm:$0xff] 0.0
        %213 = vst [vmem:[#allocation2 + $0x88] sm:$0xff] 0.0
        %214 = vst [vmem:[#allocation2 + $0x90] sm:$0xff] 0.0
        %215 = vst [vmem:[#allocation2 + $0x98] sm:$0xff] 0.0
        %216 = vst [vmem:[#allocation2 + $0xa0] sm:$0xff] 0.0
        %217 = vst [vmem:[#allocation2 + $0xa8] sm:$0xff] 0.0
        %218 = vst [vmem:[#allocation2 + $0xb0] sm:$0xff] 0.0
        %219 = vst [vmem:[#allocation2 + $0xb8] sm:$0xff] 0.0
        %220 = vst [vmem:[#allocation2 + $0xc0] sm:$0xff] 0.0
        %221 = vst [vmem:[#allocation2 + $0xc8] sm:$0xff] 0.0
        %222 = vst [vmem:[#allocation2 + $0xd0] sm:$0xff] 0.0
        %223 = vst [vmem:[#allocation2 + $0xd8] sm:$0xff] 0.0
        %224 = vst [vmem:[#allocation2 + $0xe0] sm:$0xff] 0.0
        %225 = vst [vmem:[#allocation2 + $0xe8] sm:$0xff] 0.0
        %226 = vst [vmem:[#allocation2 + $0xf0] sm:$0xff] 0.0
        %227 = vst [vmem:[#allocation2 + $0xf8] sm:$0xff] 0.0
        %228 = vst [vmem:[#allocation2 + $0x100] sm:$0xff] 0.0
        %229 = vst [vmem:[#allocation2 + $0x108] sm:$0xff] 0.0
        %230 = vst [vmem:[#allocation2 + $0x110] sm:$0xff] 0.0
        %231 = vst [vmem:[#allocation2 + $0x118] sm:$0xff] 0.0
        %232 = vst [vmem:[#allocation2 + $0x120] sm:$0xff] 0.0
        %233 = vst [vmem:[#allocation2 + $0x128] sm:$0xff] 0.0
        %234 = vst [vmem:[#allocation2 + $0x130] sm:$0xff] 0.0
        %235 = vst [vmem:[#allocation2 + $0x138] sm:$0xff] 0.0
        %236 = vst [vmem:[#allocation2 + $0x140] sm:$0xff] 0.0
        %237 = vst [vmem:[#allocation2 + $0x148] sm:$0xff] 0.0
        %238 = vst [vmem:[#allocation2 + $0x150] sm:$0xff] 0.0
        %239 = vst [vmem:[#allocation2 + $0x158] sm:$0xff] 0.0
        %240 = vst [vmem:[#allocation2 + $0x160] sm:$0xff] 0.0
        %241 = vst [vmem:[#allocation2 + $0x168] sm:$0xff] 0.0
        %242 = vst [vmem:[#allocation2 + $0x170] sm:$0xff] 0.0
        %243 = vst [vmem:[#allocation2 + $0x178] sm:$0xff] 0.0
        %244 = vst [vmem:[#allocation2 + $0x180] sm:$0xff] 0.0
        %245 = vst [vmem:[#allocation2 + $0x188] sm:$0xff] 0.0
        %246 = vst [vmem:[#allocation2 + $0x190] sm:$0xff] 0.0
        %247 = vst [vmem:[#allocation2 + $0x198] sm:$0xff] 0.0
        %248 = vst [vmem:[#allocation2 + $0x1a0] sm:$0xff] 0.0
        %249 = vst [vmem:[#allocation2 + $0x1a8] sm:$0xff] 0.0
        %250 = vst [vmem:[#allocation2 + $0x1b0] sm:$0xff] 0.0
        %251 = vst [vmem:[#allocation2 + $0x1b8] sm:$0xff] 0.0
        %252 = vst [vmem:[#allocation2 + $0x1c0] sm:$0xff] 0.0
        %253 = vst [vmem:[#allocation2 + $0x1c8] sm:$0xff] 0.0
        %254 = vst [vmem:[#allocation2 + $0x1d0] sm:$0xff] 0.0
        %255 = vst [vmem:[#allocation2 + $0x1d8] sm:$0xff] 0.0
        %256 = vst [vmem:[#allocation2 + $0x1e0] sm:$0xff] 0.0
        %257 = vst [vmem:[#allocation2 + $0x1e8] sm:$0xff] 0.0
        %258 = vst [vmem:[#allocation2 + $0x1f0] sm:$0xff] 0.0
        %259 = vst [vmem:[#allocation2 + $0x1f8] sm:$0xff] 0.0
      $region32: #{generator_forward.17} parent=27 // pred_fallthru
        _
      %v260 = vld [vmem:[#allocation2] sm:$0xff]
      %v261 = vld [vmem:[#allocation2 + $0x8] sm:$0xff]
      %v262 = vld [vmem:[#allocation2 + $0x10] sm:$0xff]
      %v263 = vld [vmem:[#allocation2 + $0x18] sm:$0xff]
      %v264 = vld [vmem:[#allocation2 + $0x20] sm:$0xff]
      %v265 = vld [vmem:[#allocation2 + $0x28] sm:$0xff]
      %v266 = vld [vmem:[#allocation2 + $0x30] sm:$0xff]
      %v267 = vld [vmem:[#allocation2 + $0x38] sm:$0xff]
      %v268 = vld [vmem:[#allocation2 + $0x40] sm:$0xff]
      %v269 = vld [vmem:[#allocation2 + $0x48] sm:$0xff]
      %v270 = vld [vmem:[#allocation2 + $0x50] sm:$0xff]
      %v271 = vld [vmem:[#allocation2 + $0x58] sm:$0xff]
      %v272 = vld [vmem:[#allocation2 + $0x60] sm:$0xff]
      %v273 = vld [vmem:[#allocation2 + $0x68] sm:$0xff]
      %v274 = vld [vmem:[#allocation2 + $0x70] sm:$0xff]
      %v275 = vld [vmem:[#allocation2 + $0x78] sm:$0xff]
      %v276 = vld [vmem:[#allocation2 + $0x80] sm:$0xff]
      %v277 = vld [vmem:[#allocation2 + $0x88] sm:$0xff]
      %v278 = vld [vmem:[#allocation2 + $0x90] sm:$0xff]
      %v279 = vld [vmem:[#allocation2 + $0x98] sm:$0xff]
      %v280 = vld [vmem:[#allocation2 + $0xa0] sm:$0xff]
      %v281 = vld [vmem:[#allocation2 + $0xa8] sm:$0xff]
      %v282 = vld [vmem:[#allocation2 + $0xb0] sm:$0xff]
      %v283 = vld [vmem:[#allocation2 + $0xb8] sm:$0xff]
      %v284 = vld [vmem:[#allocation2 + $0xc0] sm:$0xff]
      %v285 = vld [vmem:[#allocation2 + $0xc8] sm:$0xff]
      %v286 = vld [vmem:[#allocation2 + $0xd0] sm:$0xff]
      %v287 = vld [vmem:[#allocation2 + $0xd8] sm:$0xff]
      %v288 = vld [vmem:[#allocation2 + $0xe0] sm:$0xff]
      %v289 = vld [vmem:[#allocation2 + $0xe8] sm:$0xff]
      %v290 = vld [vmem:[#allocation2 + $0xf0] sm:$0xff]
      %v291 = vld [vmem:[#allocation2 + $0xf8] sm:$0xff]
      %v292 = vld [vmem:[#allocation2 + $0x100] sm:$0xff]
      %v293 = vld [vmem:[#allocation2 + $0x108] sm:$0xff]
      %v294 = vld [vmem:[#allocation2 + $0x110] sm:$0xff]
      %v295 = vld [vmem:[#allocation2 + $0x118] sm:$0xff]
      %v296 = vld [vmem:[#allocation2 + $0x120] sm:$0xff]
      %v297 = vld [vmem:[#allocation2 + $0x128] sm:$0xff]
      %v298 = vld [vmem:[#allocation2 + $0x130] sm:$0xff]
      %v299 = vld [vmem:[#allocation2 + $0x138] sm:$0xff]
      %v300 = vld [vmem:[#allocation2 + $0x140] sm:$0xff]
      %v301 = vld [vmem:[#allocation2 + $0x148] sm:$0xff]
      %v302 = vld [vmem:[#allocation2 + $0x150] sm:$0xff]
      %v303 = vld [vmem:[#allocation2 + $0x158] sm:$0xff]
      %v304 = vld [vmem:[#allocation2 + $0x160] sm:$0xff]
      %v305 = vld [vmem:[#allocation2 + $0x168] sm:$0xff]
      %v306 = vld [vmem:[#allocation2 + $0x170] sm:$0xff]
      %v307 = vld [vmem:[#allocation2 + $0x178] sm:$0xff]
      %v308 = vld [vmem:[#allocation2 + $0x180] sm:$0xff]
      %v309 = vld [vmem:[#allocation2 + $0x188] sm:$0xff]
      %v310 = vld [vmem:[#allocation2 + $0x190] sm:$0xff]
      %v311 = vld [vmem:[#allocation2 + $0x198] sm:$0xff]
      %v312 = vld [vmem:[#allocation2 + $0x1a0] sm:$0xff]
      %v313 = vld [vmem:[#allocation2 + $0x1a8] sm:$0xff]
      %v314 = vld [vmem:[#allocation2 + $0x1b0] sm:$0xff]
      %v315 = vld [vmem:[#allocation2 + $0x1b8] sm:$0xff]
      %v316 = vld [vmem:[#allocation2 + $0x1c0] sm:$0xff]
      %v317 = vld [vmem:[#allocation2 + $0x1c8] sm:$0xff]
      %v318 = vld [vmem:[#allocation2 + $0x1d0] sm:$0xff]
      %v319 = vld [vmem:[#allocation2 + $0x1d8] sm:$0xff]
      %v320 = vld [vmem:[#allocation2 + $0x1e0] sm:$0xff]
      %v321 = vld [vmem:[#allocation2 + $0x1e8] sm:$0xff]
      %v322 = vld [vmem:[#allocation2 + $0x1f0] sm:$0xff]
      %v323 = vld [vmem:[#allocation2 + $0x1f8] sm:$0xff]
      %v324 = vld [vmem:[%s178] sm:$0xff]
      %v325 = vld [vmem:[%s178 + $0x8] sm:$0xff]
      %v326 = vld [vmem:[%s178 + $0x10] sm:$0xff]
      %v327 = vld [vmem:[%s178 + $0x18] sm:$0xff]
      %v328 = vld [vmem:[%s178 + $0x20] sm:$0xff]
      %v329 = vld [vmem:[%s178 + $0x28] sm:$0xff]
      %v330 = vld [vmem:[%s178 + $0x30] sm:$0xff]
      %v331 = vld [vmem:[%s178 + $0x38] sm:$0xff]
      %v332 = vld [vmem:[%s178 + $0x40] sm:$0xff]
      %v333 = vld [vmem:[%s178 + $0x48] sm:$0xff]
      %v334 = vld [vmem:[%s178 + $0x50] sm:$0xff]
      %v335 = vld [vmem:[%s178 + $0x58] sm:$0xff]
      %v336 = vld [vmem:[%s178 + $0x60] sm:$0xff]
      %v337 = vld [vmem:[%s178 + $0x68] sm:$0xff]
      %v338 = vld [vmem:[%s178 + $0x70] sm:$0xff]
      %v339 = vld [vmem:[%s178 + $0x78] sm:$0xff]
      %v340 = vld [vmem:[%s178 + $0x80] sm:$0xff]
      %v341 = vld [vmem:[%s178 + $0x88] sm:$0xff]
      %v342 = vld [vmem:[%s178 + $0x90] sm:$0xff]
      %v343 = vld [vmem:[%s178 + $0x98] sm:$0xff]
      %v344 = vld [vmem:[%s178 + $0xa0] sm:$0xff]
      %v345 = vld [vmem:[%s178 + $0xa8] sm:$0xff]
      %v346 = vld [vmem:[%s178 + $0xb0] sm:$0xff]
      %v347 = vld [vmem:[%s178 + $0xb8] sm:$0xff]
      %v348 = vld [vmem:[%s178 + $0xc0] sm:$0xff]
      %v349 = vld [vmem:[%s178 + $0xc8] sm:$0xff]
      %v350 = vld [vmem:[%s178 + $0xd0] sm:$0xff]
      %v351 = vld [vmem:[%s178 + $0xd8] sm:$0xff]
      %v352 = vld [vmem:[%s178 + $0xe0] sm:$0xff]
      %v353 = vld [vmem:[%s178 + $0xe8] sm:$0xff]
      %v354 = vld [vmem:[%s178 + $0xf0] sm:$0xff]
      %v355 = vld [vmem:[%s178 + $0xf8] sm:$0xff]
      %v356 = vld [vmem:[%s178 + $0x100] sm:$0xff]
      %v357 = vld [vmem:[%s178 + $0x108] sm:$0xff]
      %v358 = vld [vmem:[%s178 + $0x110] sm:$0xff]
      %v359 = vld [vmem:[%s178 + $0x118] sm:$0xff]
      %v360 = vld [vmem:[%s178 + $0x120] sm:$0xff]
      %v361 = vld [vmem:[%s178 + $0x128] sm:$0xff]
      %v362 = vld [vmem:[%s178 + $0x130] sm:$0xff]
      %v363 = vld [vmem:[%s178 + $0x138] sm:$0xff]
      %v364 = vld [vmem:[%s178 + $0x140] sm:$0xff]
      %v365 = vld [vmem:[%s178 + $0x148] sm:$0xff]
      %v366 = vld [vmem:[%s178 + $0x150] sm:$0xff]
      %v367 = vld [vmem:[%s178 + $0x158] sm:$0xff]
      %v368 = vld [vmem:[%s178 + $0x160] sm:$0xff]
      %v369 = vld [vmem:[%s178 + $0x168] sm:$0xff]
      %v370 = vld [vmem:[%s178 + $0x170] sm:$0xff]
      %v371 = vld [vmem:[%s178 + $0x178] sm:$0xff]
      %v372 = vld [vmem:[%s178 + $0x180] sm:$0xff]
      %v373 = vld [vmem:[%s178 + $0x188] sm:$0xff]
      %v374 = vld [vmem:[%s178 + $0x190] sm:$0xff]
      %v375 = vld [vmem:[%s178 + $0x198] sm:$0xff]
      %v376 = vld [vmem:[%s178 + $0x1a0] sm:$0xff]
      %v377 = vld [vmem:[%s178 + $0x1a8] sm:$0xff]
      %v378 = vld [vmem:[%s178 + $0x1b0] sm:$0xff]
      %v379 = vld [vmem:[%s178 + $0x1b8] sm:$0xff]
      %v380 = vld [vmem:[%s178 + $0x1c0] sm:$0xff]
      %v381 = vld [vmem:[%s178 + $0x1c8] sm:$0xff]
      %v382 = vld [vmem:[%s178 + $0x1d0] sm:$0xff]
      %v383 = vld [vmem:[%s178 + $0x1d8] sm:$0xff]
      %v384 = vld [vmem:[%s178 + $0x1e0] sm:$0xff]
      %v385 = vld [vmem:[%s178 + $0x1e8] sm:$0xff]
      %v386 = vld [vmem:[%s178 + $0x1f0] sm:$0xff]
      %v387 = vld [vmem:[%s178 + $0x1f8] sm:$0xff]
      %v388 = vld [vmem:[%s184] sm:$0xff]
      %v389 = vld [vmem:[%s184 + $0x8] sm:$0xff]
      %v390 = vld [vmem:[%s184 + $0x10] sm:$0xff]
      %v391 = vld [vmem:[%s184 + $0x18] sm:$0xff]
      %v392 = vld [vmem:[%s184 + $0x20] sm:$0xff]
      %v393 = vld [vmem:[%s184 + $0x28] sm:$0xff]
      %v394 = vld [vmem:[%s184 + $0x30] sm:$0xff]
      %v395 = vld [vmem:[%s184 + $0x38] sm:$0xff]
      %v396 = vld [vmem:[%s184 + $0x40] sm:$0xff]
      %v397 = vld [vmem:[%s184 + $0x48] sm:$0xff]
      %v398 = vld [vmem:[%s184 + $0x50] sm:$0xff]
      %v399 = vld [vmem:[%s184 + $0x58] sm:$0xff]
      %v400 = vld [vmem:[%s184 + $0x60] sm:$0xff]
      %v401 = vld [vmem:[%s184 + $0x68] sm:$0xff]
      %v402 = vld [vmem:[%s184 + $0x70] sm:$0xff]
      %v403 = vld [vmem:[%s184 + $0x78] sm:$0xff]
      %404 = vmatpush.msra.mxu0 %v403
      %405 = vmatpush.msra.mxu0 %v402
      %406 = vmatpush.msra.mxu0 %v401
      %407 = vmatpush.msra.mxu0 %v400
      %408 = vmatpush.msra.mxu0 %v399
      %409 = vmatpush.msra.mxu0 %v398
      %410 = vmatpush.msra.mxu0 %v397
      %411 = vmatpush.msra.mxu0 %v396
      %412 = vmatpush.msra.mxu0 %v395
      %413 = vmatpush.msra.mxu0 %v394
      %414 = vmatpush.msra.mxu0 %v393
      %415 = vmatpush.msra.mxu0 %v392
      %416 = vmatpush.msra.mxu0 %v391
      %417 = vmatpush.msra.mxu0 %v390
      %418 = vmatpush.msra.mxu0 %v389
      %419 = vmatpush.msra.mxu0 %v388
      %420 = vmatmul.f32.gmra.mxu0 %v324
      %v421 = vpop.f32.mrf.mxu0
      %v422 = vadd.f32 0.0, %v421
      %423 = vmatmul.f32.gmra.mxu0 %v325
      %v424 = vpop.f32.mrf.mxu0
      %v425 = vadd.f32 0.0, %v424
      %426 = vmatmul.f32.gmra.mxu0 %v326
      %v427 = vpop.f32.mrf.mxu0
      %v428 = vadd.f32 0.0, %v427
      %429 = vmatmul.f32.gmra.mxu0 %v327
      %v430 = vpop.f32.mrf.mxu0
      %v431 = vadd.f32 0.0, %v430
      %432 = vmatmul.f32.gmra.mxu0 %v328
      %v433 = vpop.f32.mrf.mxu0
      %v434 = vadd.f32 0.0, %v433
      %435 = vmatmul.f32.gmra.mxu0 %v329
      %v436 = vpop.f32.mrf.mxu0
      %v437 = vadd.f32 0.0, %v436
      %438 = vmatmul.f32.gmra.mxu0 %v330
      %v439 = vpop.f32.mrf.mxu0
      %v440 = vadd.f32 0.0, %v439
      %441 = vmatmul.f32.gmra.mxu0 %v331
      %v442 = vpop.f32.mrf.mxu0
      %v443 = vadd.f32 0.0, %v442
      %444 = vmatmul.f32.gmra.mxu0 %v332
      %v445 = vpop.f32.mrf.mxu0
      %v446 = vadd.f32 0.0, %v445
      %447 = vmatmul.f32.gmra.mxu0 %v333
      %v448 = vpop.f32.mrf.mxu0
      %v449 = vadd.f32 0.0, %v448
      %450 = vmatmul.f32.gmra.mxu0 %v334
      %v451 = vpop.f32.mrf.mxu0
      %v452 = vadd.f32 0.0, %v451
      %453 = vmatmul.f32.gmra.mxu0 %v335
      %v454 = vpop.f32.mrf.mxu0
      %v455 = vadd.f32 0.0, %v454
      %456 = vmatmul.f32.gmra.mxu0 %v336
      %v457 = vpop.f32.mrf.mxu0
      %v458 = vadd.f32 0.0, %v457
      %459 = vmatmul.f32.gmra.mxu0 %v337
      %v460 = vpop.f32.mrf.mxu0
      %v461 = vadd.f32 0.0, %v460
      %462 = vmatmul.f32.gmra.mxu0 %v338
      %v463 = vpop.f32.mrf.mxu0
      %v464 = vadd.f32 0.0, %v463
      %465 = vmatmul.f32.gmra.mxu0 %v339
      %v466 = vpop.f32.mrf.mxu0
      %v467 = vadd.f32 0.0, %v466
      %468 = vmatmul.f32.gmra.mxu0 %v340
      %v469 = vpop.f32.mrf.mxu0
      %v470 = vadd.f32 0.0, %v469
      %471 = vmatmul.f32.gmra.mxu0 %v341
      %v472 = vpop.f32.mrf.mxu0
      %v473 = vadd.f32 0.0, %v472
      %474 = vmatmul.f32.gmra.mxu0 %v342
      %v475 = vpop.f32.mrf.mxu0
      %v476 = vadd.f32 0.0, %v475
      %477 = vmatmul.f32.gmra.mxu0 %v343
      %v478 = vpop.f32.mrf.mxu0
      %v479 = vadd.f32 0.0, %v478
      %480 = vmatmul.f32.gmra.mxu0 %v344
      %v481 = vpop.f32.mrf.mxu0
      %v482 = vadd.f32 0.0, %v481
      %483 = vmatmul.f32.gmra.mxu0 %v345
      %v484 = vpop.f32.mrf.mxu0
      %v485 = vadd.f32 0.0, %v484
      %486 = vmatmul.f32.gmra.mxu0 %v346
      %v487 = vpop.f32.mrf.mxu0
      %v488 = vadd.f32 0.0, %v487
      %489 = vmatmul.f32.gmra.mxu0 %v347
      %v490 = vpop.f32.mrf.mxu0
      %v491 = vadd.f32 0.0, %v490
      %492 = vmatmul.f32.gmra.mxu0 %v348
      %v493 = vpop.f32.mrf.mxu0
      %v494 = vadd.f32 0.0, %v493
      %495 = vmatmul.f32.gmra.mxu0 %v349
      %v496 = vpop.f32.mrf.mxu0
      %v497 = vadd.f32 0.0, %v496
      %498 = vmatmul.f32.gmra.mxu0 %v350
      %v499 = vpop.f32.mrf.mxu0
      %v500 = vadd.f32 0.0, %v499
      %501 = vmatmul.f32.gmra.mxu0 %v351
      %v502 = vpop.f32.mrf.mxu0
      %v503 = vadd.f32 0.0, %v502
      %504 = vmatmul.f32.gmra.mxu0 %v352
      %v505 = vpop.f32.mrf.mxu0
      %v506 = vadd.f32 0.0, %v505
      %507 = vmatmul.f32.gmra.mxu0 %v353
      %v508 = vpop.f32.mrf.mxu0
      %v509 = vadd.f32 0.0, %v508
      %510 = vmatmul.f32.gmra.mxu0 %v354
      %v511 = vpop.f32.mrf.mxu0
      %v512 = vadd.f32 0.0, %v511
      %513 = vmatmul.f32.gmra.mxu0 %v355
      %v514 = vpop.f32.mrf.mxu0
      %v515 = vadd.f32 0.0, %v514
      %516 = vmatmul.f32.gmra.mxu0 %v356
      %v517 = vpop.f32.mrf.mxu0
      %v518 = vadd.f32 0.0, %v517
      %519 = vmatmul.f32.gmra.mxu0 %v357
      %v520 = vpop.f32.mrf.mxu0
      %v521 = vadd.f32 0.0, %v520
      %522 = vmatmul.f32.gmra.mxu0 %v358
      %v523 = vpop.f32.mrf.mxu0
      %v524 = vadd.f32 0.0, %v523
      %525 = vmatmul.f32.gmra.mxu0 %v359
      %v526 = vpop.f32.mrf.mxu0
      %v527 = vadd.f32 0.0, %v526
      %528 = vmatmul.f32.gmra.mxu0 %v360
      %v529 = vpop.f32.mrf.mxu0
      %v530 = vadd.f32 0.0, %v529
      %531 = vmatmul.f32.gmra.mxu0 %v361
      %v532 = vpop.f32.mrf.mxu0
      %v533 = vadd.f32 0.0, %v532
      %534 = vmatmul.f32.gmra.mxu0 %v362
      %v535 = vpop.f32.mrf.mxu0
      %v536 = vadd.f32 0.0, %v535
      %537 = vmatmul.f32.gmra.mxu0 %v363
      %v538 = vpop.f32.mrf.mxu0
      %v539 = vadd.f32 0.0, %v538
      %540 = vmatmul.f32.gmra.mxu0 %v364
      %v541 = vpop.f32.mrf.mxu0
      %v542 = vadd.f32 0.0, %v541
      %543 = vmatmul.f32.gmra.mxu0 %v365
      %v544 = vpop.f32.mrf.mxu0
      %v545 = vadd.f32 0.0, %v544
      %546 = vmatmul.f32.gmra.mxu0 %v366
      %v547 = vpop.f32.mrf.mxu0
      %v548 = vadd.f32 0.0, %v547
      %549 = vmatmul.f32.gmra.mxu0 %v367
      %v550 = vpop.f32.mrf.mxu0
      %v551 = vadd.f32 0.0, %v550
      %552 = vmatmul.f32.gmra.mxu0 %v368
      %v553 = vpop.f32.mrf.mxu0
      %v554 = vadd.f32 0.0, %v553
      %555 = vmatmul.f32.gmra.mxu0 %v369
      %v556 = vpop.f32.mrf.mxu0
      %v557 = vadd.f32 0.0, %v556
      %558 = vmatmul.f32.gmra.mxu0 %v370
      %v559 = vpop.f32.mrf.mxu0
      %v560 = vadd.f32 0.0, %v559
      %561 = vmatmul.f32.gmra.mxu0 %v371
      %v562 = vpop.f32.mrf.mxu0
      %v563 = vadd.f32 0.0, %v562
      %564 = vmatmul.f32.gmra.mxu0 %v372
      %v565 = vpop.f32.mrf.mxu0
      %v566 = vadd.f32 0.0, %v565
      %567 = vmatmul.f32.gmra.mxu0 %v373
      %v568 = vpop.f32.mrf.mxu0
      %v569 = vadd.f32 0.0, %v568
      %570 = vmatmul.f32.gmra.mxu0 %v374
      %v571 = vpop.f32.mrf.mxu0
      %v572 = vadd.f32 0.0, %v571
      %573 = vmatmul.f32.gmra.mxu0 %v375
      %v574 = vpop.f32.mrf.mxu0
      %v575 = vadd.f32 0.0, %v574
      %576 = vmatmul.f32.gmra.mxu0 %v376
      %v577 = vpop.f32.mrf.mxu0
      %v578 = vadd.f32 0.0, %v577
      %579 = vmatmul.f32.gmra.mxu0 %v377
      %v580 = vpop.f32.mrf.mxu0
      %v581 = vadd.f32 0.0, %v580
      %582 = vmatmul.f32.gmra.mxu0 %v378
      %v583 = vpop.f32.mrf.mxu0
      %v584 = vadd.f32 0.0, %v583
      %585 = vmatmul.f32.gmra.mxu0 %v379
      %v586 = vpop.f32.mrf.mxu0
      %v587 = vadd.f32 0.0, %v586
      %588 = vmatmul.f32.gmra.mxu0 %v380
      %v589 = vpop.f32.mrf.mxu0
      %v590 = vadd.f32 0.0, %v589
      %591 = vmatmul.f32.gmra.mxu0 %v381
      %v592 = vpop.f32.mrf.mxu0
      %v593 = vadd.f32 0.0, %v592
      %594 = vmatmul.f32.gmra.mxu0 %v382
      %v595 = vpop.f32.mrf.mxu0
      %v596 = vadd.f32 0.0, %v595
      %597 = vmatmul.f32.gmra.mxu0 %v383
      %v598 = vpop.f32.mrf.mxu0
      %v599 = vadd.f32 0.0, %v598
      %600 = vmatmul.f32.gmra.mxu0 %v384
      %v601 = vpop.f32.mrf.mxu0
      %v602 = vadd.f32 0.0, %v601
      %603 = vmatmul.f32.gmra.mxu0 %v385
      %v604 = vpop.f32.mrf.mxu0
      %v605 = vadd.f32 0.0, %v604
      %606 = vmatmul.f32.gmra.mxu0 %v386
      %v607 = vpop.f32.mrf.mxu0
      %v608 = vadd.f32 0.0, %v607
      %609 = vmatmul.f32.gmra.mxu0 %v387
      %v610 = vpop.f32.mrf.mxu0
      %v611 = vadd.f32 0.0, %v610
      %612 = vdwg.mxu0
      %v613 = vadd.f32 %v260, %v422
      %v614 = vadd.f32 %v261, %v425
      %v615 = vadd.f32 %v262, %v428
      %v616 = vadd.f32 %v263, %v431
      %v617 = vadd.f32 %v264, %v434
      %v618 = vadd.f32 %v265, %v437
      %v619 = vadd.f32 %v266, %v440
      %v620 = vadd.f32 %v267, %v443
      %v621 = vadd.f32 %v268, %v446
      %v622 = vadd.f32 %v269, %v449
      %v623 = vadd.f32 %v270, %v452
      %v624 = vadd.f32 %v271, %v455
      %v625 = vadd.f32 %v272, %v458
      %v626 = vadd.f32 %v273, %v461
      %v627 = vadd.f32 %v274, %v464
      %v628 = vadd.f32 %v275, %v467
      %v629 = vadd.f32 %v276, %v470
      %v630 = vadd.f32 %v277, %v473
      %v631 = vadd.f32 %v278, %v476
      %v632 = vadd.f32 %v279, %v479
      %v633 = vadd.f32 %v280, %v482
      %v634 = vadd.f32 %v281, %v485
      %v635 = vadd.f32 %v282, %v488
      %v636 = vadd.f32 %v283, %v491
      %v637 = vadd.f32 %v284, %v494
      %v638 = vadd.f32 %v285, %v497
      %v639 = vadd.f32 %v286, %v500
      %v640 = vadd.f32 %v287, %v503
      %v641 = vadd.f32 %v288, %v506
      %v642 = vadd.f32 %v289, %v509
      %v643 = vadd.f32 %v290, %v512
      %v644 = vadd.f32 %v291, %v515
      %v645 = vadd.f32 %v292, %v518
      %v646 = vadd.f32 %v293, %v521
      %v647 = vadd.f32 %v294, %v524
      %v648 = vadd.f32 %v295, %v527
      %v649 = vadd.f32 %v296, %v530
      %v650 = vadd.f32 %v297, %v533
      %v651 = vadd.f32 %v298, %v536
      %v652 = vadd.f32 %v299, %v539
      %v653 = vadd.f32 %v300, %v542
      %v654 = vadd.f32 %v301, %v545
      %v655 = vadd.f32 %v302, %v548
      %v656 = vadd.f32 %v303, %v551
      %v657 = vadd.f32 %v304, %v554
      %v658 = vadd.f32 %v305, %v557
      %v659 = vadd.f32 %v306, %v560
      %v660 = vadd.f32 %v307, %v563
      %v661 = vadd.f32 %v308, %v566
      %v662 = vadd.f32 %v309, %v569
      %v663 = vadd.f32 %v310, %v572
      %v664 = vadd.f32 %v311, %v575
      %v665 = vadd.f32 %v312, %v578
      %v666 = vadd.f32 %v313, %v581
      %v667 = vadd.f32 %v314, %v584
      %v668 = vadd.f32 %v315, %v587
      %v669 = vadd.f32 %v316, %v590
      %v670 = vadd.f32 %v317, %v593
      %v671 = vadd.f32 %v318, %v596
      %v672 = vadd.f32 %v319, %v599
      %v673 = vadd.f32 %v320, %v602
      %v674 = vadd.f32 %v321, %v605
      %v675 = vadd.f32 %v322, %v608
      %v676 = vadd.f32 %v323, %v611
      %677 = vst [vmem:[#allocation2] sm:$0xff] %v613
      %678 = vst [vmem:[#allocation2 + $0x8] sm:$0xff] %v614
      %679 = vst [vmem:[#allocation2 + $0x10] sm:$0xff] %v615
      %680 = vst [vmem:[#allocation2 + $0x18] sm:$0xff] %v616
      %681 = vst [vmem:[#allocation2 + $0x20] sm:$0xff] %v617
      %682 = vst [vmem:[#allocation2 + $0x28] sm:$0xff] %v618
      %683 = vst [vmem:[#allocation2 + $0x30] sm:$0xff] %v619
      %684 = vst [vmem:[#allocation2 + $0x38] sm:$0xff] %v620
      %685 = vst [vmem:[#allocation2 + $0x40] sm:$0xff] %v621
      %686 = vst [vmem:[#allocation2 + $0x48] sm:$0xff] %v622
      %687 = vst [vmem:[#allocation2 + $0x50] sm:$0xff] %v623
      %688 = vst [vmem:[#allocation2 + $0x58] sm:$0xff] %v624
      %689 = vst [vmem:[#allocation2 + $0x60] sm:$0xff] %v625
      %690 = vst [vmem:[#allocation2 + $0x68] sm:$0xff] %v626
      %691 = vst [vmem:[#allocation2 + $0x70] sm:$0xff] %v627
      %692 = vst [vmem:[#allocation2 + $0x78] sm:$0xff] %v628
      %693 = vst [vmem:[#allocation2 + $0x80] sm:$0xff] %v629
      %694 = vst [vmem:[#allocation2 + $0x88] sm:$0xff] %v630
      %695 = vst [vmem:[#allocation2 + $0x90] sm:$0xff] %v631
      %696 = vst [vmem:[#allocation2 + $0x98] sm:$0xff] %v632
      %697 = vst [vmem:[#allocation2 + $0xa0] sm:$0xff] %v633
      %698 = vst [vmem:[#allocation2 + $0xa8] sm:$0xff] %v634
      %699 = vst [vmem:[#allocation2 + $0xb0] sm:$0xff] %v635
      %700 = vst [vmem:[#allocation2 + $0xb8] sm:$0xff] %v636
      %701 = vst [vmem:[#allocation2 + $0xc0] sm:$0xff] %v637
      %702 = vst [vmem:[#allocation2 + $0xc8] sm:$0xff] %v638
      %703 = vst [vmem:[#allocation2 + $0xd0] sm:$0xff] %v639
      %704 = vst [vmem:[#allocation2 + $0xd8] sm:$0xff] %v640
      %705 = vst [vmem:[#allocation2 + $0xe0] sm:$0xff] %v641
      %706 = vst [vmem:[#allocation2 + $0xe8] sm:$0xff] %v642
      %707 = vst [vmem:[#allocation2 + $0xf0] sm:$0xff] %v643
      %708 = vst [vmem:[#allocation2 + $0xf8] sm:$0xff] %v644
      %709 = vst [vmem:[#allocation2 + $0x100] sm:$0xff] %v645
      %710 = vst [vmem:[#allocation2 + $0x108] sm:$0xff] %v646
      %711 = vst [vmem:[#allocation2 + $0x110] sm:$0xff] %v647
      %712 = vst [vmem:[#allocation2 + $0x118] sm:$0xff] %v648
      %713 = vst [vmem:[#allocation2 + $0x120] sm:$0xff] %v649
      %714 = vst [vmem:[#allocation2 + $0x128] sm:$0xff] %v650
      %715 = vst [vmem:[#allocation2 + $0x130] sm:$0xff] %v651
      %716 = vst [vmem:[#allocation2 + $0x138] sm:$0xff] %v652
      %717 = vst [vmem:[#allocation2 + $0x140] sm:$0xff] %v653
      %718 = vst [vmem:[#allocation2 + $0x148] sm:$0xff] %v654
      %719 = vst [vmem:[#allocation2 + $0x150] sm:$0xff] %v655
      %720 = vst [vmem:[#allocation2 + $0x158] sm:$0xff] %v656
      %721 = vst [vmem:[#allocation2 + $0x160] sm:$0xff] %v657
      %722 = vst [vmem:[#allocation2 + $0x168] sm:$0xff] %v658
      %723 = vst [vmem:[#allocation2 + $0x170] sm:$0xff] %v659
      %724 = vst [vmem:[#allocation2 + $0x178] sm:$0xff] %v660
      %725 = vst [vmem:[#allocation2 + $0x180] sm:$0xff] %v661
      %726 = vst [vmem:[#allocation2 + $0x188] sm:$0xff] %v662
      %727 = vst [vmem:[#allocation2 + $0x190] sm:$0xff] %v663
      %728 = vst [vmem:[#allocation2 + $0x198] sm:$0xff] %v664
      %729 = vst [vmem:[#allocation2 + $0x1a0] sm:$0xff] %v665
      %730 = vst [vmem:[#allocation2 + $0x1a8] sm:$0xff] %v666
      %731 = vst [vmem:[#allocation2 + $0x1b0] sm:$0xff] %v667
      %732 = vst [vmem:[#allocation2 + $0x1b8] sm:$0xff] %v668
      %733 = vst [vmem:[#allocation2 + $0x1c0] sm:$0xff] %v669
      %734 = vst [vmem:[#allocation2 + $0x1c8] sm:$0xff] %v670
      %735 = vst [vmem:[#allocation2 + $0x1d0] sm:$0xff] %v671
      %736 = vst [vmem:[#allocation2 + $0x1d8] sm:$0xff] %v672
      %737 = vst [vmem:[#allocation2 + $0x1e0] sm:$0xff] %v673
      %738 = vst [vmem:[#allocation2 + $0x1e8] sm:$0xff] %v674
      %739 = vst [vmem:[#allocation2 + $0x1f0] sm:$0xff] %v675
      %740 = vst [vmem:[#allocation2 + $0x1f8] sm:$0xff] %v676
      // Predicated region
      $region33: #{generator_forward.17} parent=27 // pred_check
        %p741 = pneg %p192
      $region34: #{generator_forward.17} parent=27 // pred_check_branch
        %743 = sbr.rel (%p741) target = $region36
      $region35: #{generator_forward.17} parent=27 // pred_region
        %v744 = vld [vmem:[#allocation2] sm:$0xff]
        %v745 = vld [vmem:[#allocation2 + $0x8] sm:$0xff]
        %v746 = vld [vmem:[#allocation2 + $0x10] sm:$0xff]
        %v747 = vld [vmem:[#allocation2 + $0x18] sm:$0xff]
        %v748 = vld [vmem:[#allocation2 + $0x20] sm:$0xff]
        %v749 = vld [vmem:[#allocation2 + $0x28] sm:$0xff]
        %v750 = vld [vmem:[#allocation2 + $0x30] sm:$0xff]
        %v751 = vld [vmem:[#allocation2 + $0x38] sm:$0xff]
        %v752 = vld [vmem:[#allocation2 + $0x40] sm:$0xff]
        %v753 = vld [vmem:[#allocation2 + $0x48] sm:$0xff]
        %v754 = vld [vmem:[#allocation2 + $0x50] sm:$0xff]
        %v755 = vld [vmem:[#allocation2 + $0x58] sm:$0xff]
        %v756 = vld [vmem:[#allocation2 + $0x60] sm:$0xff]
        %v757 = vld [vmem:[#allocation2 + $0x68] sm:$0xff]
        %v758 = vld [vmem:[#allocation2 + $0x70] sm:$0xff]
        %v759 = vld [vmem:[#allocation2 + $0x78] sm:$0xff]
        %v760 = vld [vmem:[#allocation2 + $0x80] sm:$0xff]
        %v761 = vld [vmem:[#allocation2 + $0x88] sm:$0xff]
        %v762 = vld [vmem:[#allocation2 + $0x90] sm:$0xff]
        %v763 = vld [vmem:[#allocation2 + $0x98] sm:$0xff]
        %v764 = vld [vmem:[#allocation2 + $0xa0] sm:$0xff]
        %v765 = vld [vmem:[#allocation2 + $0xa8] sm:$0xff]
        %v766 = vld [vmem:[#allocation2 + $0xb0] sm:$0xff]
        %v767 = vld [vmem:[#allocation2 + $0xb8] sm:$0xff]
        %v768 = vld [vmem:[#allocation2 + $0xc0] sm:$0xff]
        %v769 = vld [vmem:[#allocation2 + $0xc8] sm:$0xff]
        %v770 = vld [vmem:[#allocation2 + $0xd0] sm:$0xff]
        %v771 = vld [vmem:[#allocation2 + $0xd8] sm:$0xff]
        %v772 = vld [vmem:[#allocation2 + $0xe0] sm:$0xff]
        %v773 = vld [vmem:[#allocation2 + $0xe8] sm:$0xff]
        %v774 = vld [vmem:[#allocation2 + $0xf0] sm:$0xff]
        %v775 = vld [vmem:[#allocation2 + $0xf8] sm:$0xff]
        %v776 = vld [vmem:[#allocation2 + $0x100] sm:$0xff]
        %v777 = vld [vmem:[#allocation2 + $0x108] sm:$0xff]
        %v778 = vld [vmem:[#allocation2 + $0x110] sm:$0xff]
        %v779 = vld [vmem:[#allocation2 + $0x118] sm:$0xff]
        %v780 = vld [vmem:[#allocation2 + $0x120] sm:$0xff]
        %v781 = vld [vmem:[#allocation2 + $0x128] sm:$0xff]
        %v782 = vld [vmem:[#allocation2 + $0x130] sm:$0xff]
        %v783 = vld [vmem:[#allocation2 + $0x138] sm:$0xff]
        %v784 = vld [vmem:[#allocation2 + $0x140] sm:$0xff]
        %v785 = vld [vmem:[#allocation2 + $0x148] sm:$0xff]
        %v786 = vld [vmem:[#allocation2 + $0x150] sm:$0xff]
        %v787 = vld [vmem:[#allocation2 + $0x158] sm:$0xff]
        %v788 = vld [vmem:[#allocation2 + $0x160] sm:$0xff]
        %v789 = vld [vmem:[#allocation2 + $0x168] sm:$0xff]
        %v790 = vld [vmem:[#allocation2 + $0x170] sm:$0xff]
        %v791 = vld [vmem:[#allocation2 + $0x178] sm:$0xff]
        %v792 = vld [vmem:[#allocation2 + $0x180] sm:$0xff]
        %v793 = vld [vmem:[#allocation2 + $0x188] sm:$0xff]
        %v794 = vld [vmem:[#allocation2 + $0x190] sm:$0xff]
        %v795 = vld [vmem:[#allocation2 + $0x198] sm:$0xff]
        %v796 = vld [vmem:[#allocation2 + $0x1a0] sm:$0xff]
        %v797 = vld [vmem:[#allocation2 + $0x1a8] sm:$0xff]
        %v798 = vld [vmem:[#allocation2 + $0x1b0] sm:$0xff]
        %v799 = vld [vmem:[#allocation2 + $0x1b8] sm:$0xff]
        %v800 = vld [vmem:[#allocation2 + $0x1c0] sm:$0xff]
        %v801 = vld [vmem:[#allocation2 + $0x1c8] sm:$0xff]
        %v802 = vld [vmem:[#allocation2 + $0x1d0] sm:$0xff]
        %v803 = vld [vmem:[#allocation2 + $0x1d8] sm:$0xff]
        %v804 = vld [vmem:[#allocation2 + $0x1e0] sm:$0xff]
        %v805 = vld [vmem:[#allocation2 + $0x1e8] sm:$0xff]
        %v806 = vld [vmem:[#allocation2 + $0x1f0] sm:$0xff]
        %v807 = vld [vmem:[#allocation2 + $0x1f8] sm:$0xff]
        %v808 = vtanh.pop %v744
        %v809 = vtanh.pop %v745
        %v810 = vtanh.pop %v746
        %v811 = vtanh.pop %v747
        %v812 = vtanh.pop %v748
        %v813 = vtanh.pop %v749
        %v814 = vtanh.pop %v750
        %v815 = vtanh.pop %v751
        %v816 = vtanh.pop %v752
        %v817 = vtanh.pop %v753
        %v818 = vtanh.pop %v754
        %v819 = vtanh.pop %v755
        %v820 = vtanh.pop %v756
        %v821 = vtanh.pop %v757
        %v822 = vtanh.pop %v758
        %v823 = vtanh.pop %v759
        %v824 = vtanh.pop %v760
        %v825 = vtanh.pop %v761
        %v826 = vtanh.pop %v762
        %v827 = vtanh.pop %v763
        %v828 = vtanh.pop %v764
        %v829 = vtanh.pop %v765
        %v830 = vtanh.pop %v766
        %v831 = vtanh.pop %v767
        %v832 = vtanh.pop %v768
        %v833 = vtanh.pop %v769
        %v834 = vtanh.pop %v770
        %v835 = vtanh.pop %v771
        %v836 = vtanh.pop %v772
        %v837 = vtanh.pop %v773
        %v838 = vtanh.pop %v774
        %v839 = vtanh.pop %v775
        %v840 = vtanh.pop %v776
        %v841 = vtanh.pop %v777
        %v842 = vtanh.pop %v778
        %v843 = vtanh.pop %v779
        %v844 = vtanh.pop %v780
        %v845 = vtanh.pop %v781
        %v846 = vtanh.pop %v782
        %v847 = vtanh.pop %v783
        %v848 = vtanh.pop %v784
        %v849 = vtanh.pop %v785
        %v850 = vtanh.pop %v786
        %v851 = vtanh.pop %v787
        %v852 = vtanh.pop %v788
        %v853 = vtanh.pop %v789
        %v854 = vtanh.pop %v790
        %v855 = vtanh.pop %v791
        %v856 = vtanh.pop %v792
        %v857 = vtanh.pop %v793
        %v858 = vtanh.pop %v794
        %v859 = vtanh.pop %v795
        %v860 = vtanh.pop %v796
        %v861 = vtanh.pop %v797
        %v862 = vtanh.pop %v798
        %v863 = vtanh.pop %v799
        %v864 = vtanh.pop %v800
        %v865 = vtanh.pop %v801
        %v866 = vtanh.pop %v802
        %v867 = vtanh.pop %v803
        %v868 = vtanh.pop %v804
        %v869 = vtanh.pop %v805
        %v870 = vtanh.pop %v806
        %v871 = vtanh.pop %v807
        %872 = vst [vmem:[%s190] sm:$0xff] %v808
        %873 = vst [vmem:[%s190 + $0x8] sm:$0xff] %v809
        %874 = vst [vmem:[%s190 + $0x10] sm:$0xff] %v810
        %875 = vst [vmem:[%s190 + $0x18] sm:$0xff] %v811
        %876 = vst [vmem:[%s190 + $0x20] sm:$0xff] %v812
        %877 = vst [vmem:[%s190 + $0x28] sm:$0xff] %v813
        %878 = vst [vmem:[%s190 + $0x30] sm:$0xff] %v814
        %879 = vst [vmem:[%s190 + $0x38] sm:$0xff] %v815
        %880 = vst [vmem:[%s190 + $0x40] sm:$0xff] %v816
        %881 = vst [vmem:[%s190 + $0x48] sm:$0xff] %v817
        %882 = vst [vmem:[%s190 + $0x50] sm:$0xff] %v818
        %883 = vst [vmem:[%s190 + $0x58] sm:$0xff] %v819
        %884 = vst [vmem:[%s190 + $0x60] sm:$0xff] %v820
        %885 = vst [vmem:[%s190 + $0x68] sm:$0xff] %v821
        %886 = vst [vmem:[%s190 + $0x70] sm:$0xff] %v822
        %887 = vst [vmem:[%s190 + $0x78] sm:$0xff] %v823
        %888 = vst [vmem:[%s190 + $0x80] sm:$0xff] %v824
        %889 = vst [vmem:[%s190 + $0x88] sm:$0xff] %v825
        %890 = vst [vmem:[%s190 + $0x90] sm:$0xff] %v826
        %891 = vst [vmem:[%s190 + $0x98] sm:$0xff] %v827
        %892 = vst [vmem:[%s190 + $0xa0] sm:$0xff] %v828
        %893 = vst [vmem:[%s190 + $0xa8] sm:$0xff] %v829
        %894 = vst [vmem:[%s190 + $0xb0] sm:$0xff] %v830
        %895 = vst [vmem:[%s190 + $0xb8] sm:$0xff] %v831
        %896 = vst [vmem:[%s190 + $0xc0] sm:$0xff] %v832
        %897 = vst [vmem:[%s190 + $0xc8] sm:$0xff] %v833
        %898 = vst [vmem:[%s190 + $0xd0] sm:$0xff] %v834
        %899 = vst [vmem:[%s190 + $0xd8] sm:$0xff] %v835
        %900 = vst [vmem:[%s190 + $0xe0] sm:$0xff] %v836
        %901 = vst [vmem:[%s190 + $0xe8] sm:$0xff] %v837
        %902 = vst [vmem:[%s190 + $0xf0] sm:$0xff] %v838
        %903 = vst [vmem:[%s190 + $0xf8] sm:$0xff] %v839
        %904 = vst [vmem:[%s190 + $0x100] sm:$0xff] %v840
        %905 = vst [vmem:[%s190 + $0x108] sm:$0xff] %v841
        %906 = vst [vmem:[%s190 + $0x110] sm:$0xff] %v842
        %907 = vst [vmem:[%s190 + $0x118] sm:$0xff] %v843
        %908 = vst [vmem:[%s190 + $0x120] sm:$0xff] %v844
        %909 = vst [vmem:[%s190 + $0x128] sm:$0xff] %v845
        %910 = vst [vmem:[%s190 + $0x130] sm:$0xff] %v846
        %911 = vst [vmem:[%s190 + $0x138] sm:$0xff] %v847
        %912 = vst [vmem:[%s190 + $0x140] sm:$0xff] %v848
        %913 = vst [vmem:[%s190 + $0x148] sm:$0xff] %v849
        %914 = vst [vmem:[%s190 + $0x150] sm:$0xff] %v850
        %915 = vst [vmem:[%s190 + $0x158] sm:$0xff] %v851
        %916 = vst [vmem:[%s190 + $0x160] sm:$0xff] %v852
        %917 = vst [vmem:[%s190 + $0x168] sm:$0xff] %v853
        %918 = vst [vmem:[%s190 + $0x170] sm:$0xff] %v854
        %919 = vst [vmem:[%s190 + $0x178] sm:$0xff] %v855
        %920 = vst [vmem:[%s190 + $0x180] sm:$0xff] %v856
        %921 = vst [vmem:[%s190 + $0x188] sm:$0xff] %v857
        %922 = vst [vmem:[%s190 + $0x190] sm:$0xff] %v858
        %923 = vst [vmem:[%s190 + $0x198] sm:$0xff] %v859
        %924 = vst [vmem:[%s190 + $0x1a0] sm:$0xff] %v860
        %925 = vst [vmem:[%s190 + $0x1a8] sm:$0xff] %v861
        %926 = vst [vmem:[%s190 + $0x1b0] sm:$0xff] %v862
        %927 = vst [vmem:[%s190 + $0x1b8] sm:$0xff] %v863
        %928 = vst [vmem:[%s190 + $0x1c0] sm:$0xff] %v864
        %929 = vst [vmem:[%s190 + $0x1c8] sm:$0xff] %v865
        %930 = vst [vmem:[%s190 + $0x1d0] sm:$0xff] %v866
        %931 = vst [vmem:[%s190 + $0x1d8] sm:$0xff] %v867
        %932 = vst [vmem:[%s190 + $0x1e0] sm:$0xff] %v868
        %933 = vst [vmem:[%s190 + $0x1e8] sm:$0xff] %v869
        %934 = vst [vmem:[%s190 + $0x1f0] sm:$0xff] %v870
        %935 = vst [vmem:[%s190 + $0x1f8] sm:$0xff] %v871
      $region36: #{generator_forward.17} parent=27 // pred_fallthru
        _
      %s936 = smul.u32 64, %s17
      %p937 = scmp.lt.s32.totalorder %s936, 1023
      %s938 = scalar_select %p937, %s936, 1023
      %s939 = smul.addr %s938, 8
      %s940 = scalar_lea.vmem %s2, %s939
      // Predicated region
      $region37: #{generator_forward.17} parent=27 // pred_check
        %p941 = pneg %p97
      $region38: #{generator_forward.17} parent=27 // pred_check_branch
        %943 = sbr.rel (%p941) target = $region40
      $region39: #{generator_forward.17} parent=27 // pred_region
        %s944 = smul.u32 64, %s17
      $region40: #{generator_forward.17} parent=27 // pred_fallthru
        _
    $region28: #{generator_forward.17} parent=5 // pred_fallthru
      _
    %p945 = scmp.le.s32.totalorder 2, %s8
    // Predicated region
    $region41: #{generator_forward.17} parent=5 // pred_check
      %p946 = pneg %p945
    $region42: #{generator_forward.17} parent=5 // pred_check_branch
      %948 = sbr.rel (%p946) target = $region44
    $region43: #{generator_forward.17} parent=5 // pred_region
      %s949 = ssub.s32 %s8, 2
      // Predicated region
      $region45: #{generator_forward.17} parent=43 // pred_check
        %p950 = pneg %p103
      $region46: #{generator_forward.17} parent=43 // pred_check_branch
        %952 = sbr.rel (%p950) target = $region48
      $region47: #{generator_forward.17} parent=43 // pred_region
        %s953 = smul.u32 64, %s19
        %p954 = scmp.lt.s32.totalorder %s953, 1023
        %s955 = scalar_select %p954, %s953, 1023
        %s956 = smul.addr %s955, 8
        %s957 = scalar_lea.vmem %s2, %s956
      $region48: #{generator_forward.17} parent=43 // pred_fallthru
        _
    $region44: #{generator_forward.17} parent=5 // pred_fallthru
      _
  $region6: #{generator_forward.17} parent=0 // loop_footer
    %s12 = sadd.s32 1, %s8
  $region7: #{generator_forward.17} parent=0 // loop_footer_branch
    %7 = sbr.rel target = $region3
  $region8: #{generator_forward.17} parent=0 // loop_exit
    _

</llo_original>
